<compile_context>
chip_gen: v6e
topology: v6e:2x2x1
jax: 0.10.0
libtpu: 0.0.40
codegen_flags: <defaults>
</compile_context>

<pallas_src>
import math
import functools

import jax
import jax.numpy as jnp
import numpy as np
from jax.experimental import pallas as pl
from jax.experimental.pallas import tpu as pltpu

LANE_PAD = 128          # lane-dense padded width for fc logits / attention keys
NEG_INF = -1e30


# ----------------------------------------------------------------------------
# One fused kernel: n_layers bidirectional LSTM layers + attention + fc
# ----------------------------------------------------------------------------
def _fused_forward_kernel(*refs, n_layers, S, B, H, scale, lane_pad):
    # refs = [ x_ref,                                    (S*B, In0)   time-major rows (t*B + b)
    #          per layer l: wih (In_l, 8H)  cols [fwd i f g o | bwd i f g o],
    #                       whh_f (H, 4H), whh_b (H, 4H),
    #                       bias (1, 8H),
    #          wfc (2H, lane_pad), bfc (1, lane_pad),
    #          attn_ref (B, S, lane_pad), logit_ref (B, lane_pad) ]
    x_ref = refs[0]
    layer_refs = []
    idx = 1
    for _ in range(n_layers):
        layer_refs.append(refs[idx:idx + 4])
        idx += 4
    wfc_ref, bfc_ref = refs[idx], refs[idx + 1]
    attn_ref, logit_ref = refs[idx + 2], refs[idx + 3]

    H2, H3, H4 = 2 * H, 3 * H, 4 * H

    x = x_ref[...]                                          # (S*B, In0)
    hs = None                                               # per-t (B, 2H) hidden of last layer

    for l in range(n_layers):
        wih_ref, whhf_ref, whhb_ref, b_ref = layer_refs[l]

        # (1) hoisted input projection: one big MXU matmul for all timesteps & both directions
        xp = (jnp.dot(x, wih_ref[...], preferred_element_type=jnp.float32)
              + b_ref[...])                                 # (S*B, 8H)
        whh_f = whhf_ref[...]                               # (H, 4H)
        whh_b = whhb_ref[...]                               # (H, 4H)

        h_f = jnp.zeros((B, H), jnp.float32)
        c_f = jnp.zeros((B, H), jnp.float32)
        h_b = jnp.zeros((B, H), jnp.float32)
        c_b = jnp.zeros((B, H), jnp.float32)
        hs_f = [None] * S
        hs_b = [None] * S

        # (2) serial recurrence, fully unrolled (S small & static); only h @ W_hh on the chain
        for t in range(S):
            tb = S - 1 - t                                  # backward direction's timestep
            g_f = xp[t * B:(t + 1) * B, :H4] + jnp.dot(
                h_f, whh_f, preferred_element_type=jnp.float32)          # (B, 4H)
            g_b = xp[tb * B:(tb + 1) * B, H4:] + jnp.dot(
                h_b, whh_b, preferred_element_type=jnp.float32)          # (B, 4H)

            i_f = jax.nn.sigmoid(g_f[:, :H]);       i_b = jax.nn.sigmoid(g_b[:, :H])
            f_fg = jax.nn.sigmoid(g_f[:, H:H2]);    f_bg = jax.nn.sigmoid(g_b[:, H:H2])
            gg_f = jnp.tanh(g_f[:, H2:H3]);         gg_b = jnp.tanh(g_b[:, H2:H3])
            o_f = jax.nn.sigmoid(g_f[:, H3:H4]);    o_b = jax.nn.sigmoid(g_b[:, H3:H4])

            c_f = f_fg * c_f + i_f * gg_f
            c_b = f_bg * c_b + i_b * gg_b
            h_f = o_f * jnp.tanh(c_f)
            h_b = o_b * jnp.tanh(c_b)

            hs_f[t] = h_f                                    # fwd hidden for output time t
            hs_b[tb] = h_b                                   # bwd hidden for output time tb

        hs = [jnp.concatenate([hs_f[t], hs_b[t]], axis=1) for t in range(S)]   # (B, 2H) each
        if l + 1 < n_layers:
            # next layer's input, time-major rows (t*B + b) — stays in registers/VMEM
            x = jnp.concatenate(hs, axis=0)                  # (S*B, 2H)

    # (3) attention + softmax + context + fc, per batch (B tiny & static).
    #     sum_q(P @ X) is rewritten as (sum_q P) @ X; softmax runs over a lane_pad-wide
    #     key-padded domain so the attention store is a dense (S, lane_pad) tile.
    wfc = wfc_ref[...]                                       # (2H, lane_pad)
    bfc = bfc_ref[...]                                       # (1, lane_pad)
    key_mask = jax.lax.broadcasted_iota(jnp.int32, (S, lane_pad), 1) < S
    key_pad_zeros = jnp.zeros((lane_pad - S, H2), jnp.float32)

    logit_rows = []
    for b in range(B):
        # per-batch (S, 2H) slab of last-layer hidden states (query == x, dropout identity)
        xb = jnp.concatenate([hs[t][b:b + 1, :] for t in range(S)], axis=0)     # (S, 2H)
        xb_pad = jnp.concatenate([xb, key_pad_zeros], axis=0)                   # (lane_pad, 2H)

        sc = jax.lax.dot_general(xb, xb_pad, (((1,), (1,)), ((), ())),
                                 preferred_element_type=jnp.float32) * scale    # (S, lane_pad)
        sc = jnp.where(key_mask, sc, NEG_INF)
        sc = sc - jnp.max(sc, axis=-1, keepdims=True)
        e = jnp.exp(sc)
        p = e / jnp.sum(e, axis=-1, keepdims=True)           # padded cols are exactly 0
        attn_ref[b, :, :] = p                                # dense (S, lane_pad) store

        colw = jnp.sum(p, axis=0, keepdims=True)             # (1, lane_pad)  == sum_q P
        ctx = jnp.dot(colw, xb_pad, preferred_element_type=jnp.float32)         # (1, 2H)
        logit_rows.append(jnp.dot(ctx, wfc, preferred_element_type=jnp.float32) + bfc)

    logit_ref[...] = jnp.concatenate(logit_rows, axis=0)     # (B, lane_pad)


# ----------------------------------------------------------------------------
# One-time parameter packing (hoisted out of the forward pass)
# ----------------------------------------------------------------------------
def prepare_params(params, n_layers):
    packed = {"embedding": params["embedding"].astype(jnp.float32), "layers": []}
    for l in range(n_layers):
        w_ih_f = params[f"w_ih_l{l}"]; w_ih_b = params[f"w_ih_l{l}_rev"]
        w_hh_f = params[f"w_hh_l{l}"]; w_hh_b = params[f"w_hh_l{l}_rev"]
        bias_f = params[f"b_ih_l{l}"] + params[f"b_hh_l{l}"]
        bias_b = params[f"b_ih_l{l}_rev"] + params[f"b_hh_l{l}_rev"]
        packed["layers"].append(dict(
            wih=jnp.concatenate([w_ih_f.T, w_ih_b.T], axis=1).astype(jnp.float32),   # (In, 8H)
            whh_f=w_hh_f.T.astype(jnp.float32),                                      # (H, 4H)
            whh_b=w_hh_b.T.astype(jnp.float32),                                      # (H, 4H)
            bias=jnp.concatenate([bias_f, bias_b]).reshape(1, -1).astype(jnp.float32),
        ))
    n_out, h2 = params["fc_w"].shape
    packed["fc_w"] = (jnp.zeros((h2, LANE_PAD), jnp.float32)
                      .at[:, :n_out].set(params["fc_w"].T.astype(jnp.float32)))
    packed["fc_b"] = (jnp.zeros((1, LANE_PAD), jnp.float32)
                      .at[:, :n_out].set(params["fc_b"].astype(jnp.float32)))
    return packed


# ----------------------------------------------------------------------------
# Forward: embedding gather (plain JAX) + one fused pallas_call
# ----------------------------------------------------------------------------
def bilstm_attention_forward(packed, x_ids, *, n_classes=2):
    layers = packed["layers"]
    n_layers = len(layers)
    H = layers[0]["whh_f"].shape[0]
    H2, H4, H8 = 2 * H, 4 * H, 8 * H
    B, S = x_ids.shape
    assert S <= LANE_PAD

    # x.permute(1, 0) then embedding lookup (dropout = identity in eval mode)
    emb = packed["embedding"][x_ids.T]                       # (S, B, E)
    E = emb.shape[-1]
    x2d = emb.reshape(S * B, E)                              # time-major rows (t*B + b)

    kernel = functools.partial(
        _fused_forward_kernel, n_layers=n_layers, S=S, B=B, H=H,
        scale=1.0 / math.sqrt(H2), lane_pad=LANE_PAD)

    in_specs = [pl.BlockSpec((S * B, E), lambda i: (0, 0))]
    operands = [x2d]
    for l in range(n_layers):
        lw = layers[l]
        in_dim = lw["wih"].shape[0]
        in_specs += [
            pl.BlockSpec((in_dim, H8), lambda i: (0, 0)),
            pl.BlockSpec((H, H4), lambda i: (0, 0)),
            pl.BlockSpec((H, H4), lambda i: (0, 0)),
            pl.BlockSpec((1, H8), lambda i: (0, 0)),
        ]
        operands += [lw["wih"], lw["whh_f"], lw["whh_b"], lw["bias"]]
    in_specs += [pl.BlockSpec((H2, LANE_PAD), lambda i: (0, 0)),
                 pl.BlockSpec((1, LANE_PAD), lambda i: (0, 0))]
    operands += [packed["fc_w"], packed["fc_b"]]

    attn_pad, logit_pad = pl.pallas_call(
        kernel,
        out_shape=(jax.ShapeDtypeStruct((B, S, LANE_PAD), jnp.float32),
                   jax.ShapeDtypeStruct((B, LANE_PAD), jnp.float32)),
        grid=(1,),
        in_specs=in_specs,
        out_specs=(pl.BlockSpec((B, S, LANE_PAD), lambda i: (0, 0, 0)),
                   pl.BlockSpec((B, LANE_PAD), lambda i: (0, 0))),
        compiler_params=pltpu.CompilerParams(
            dimension_semantics=("arbitrary",),               # serial recurrence inside
            vmem_limit_bytes=32 * 1024 * 1024),
    )(*operands)

    return logit_pad[:, :n_classes], attn_pad[:, :, :S]


# ----------------------------------------------------------------------------
# Pure-JAX reference (for correctness check)
# ----------------------------------------------------------------------------
def _lstm_layer_ref(x, w_ih, w_hh, b_ih, b_hh, reverse):
    S, B, _ = x.shape
    H = w_hh.shape[1]

    def step(carry, x_t):
        h, c = carry
        gates = x_t @ w_ih.T + h @ w_hh.T + b_ih + b_hh
        i = jax.nn.sigmoid(gates[:, :H])
        f = jax.nn.sigmoid(gates[:, H:2 * H])
        g = jnp.tanh(gates[:, 2 * H:3 * H])
        o = jax.nn.sigmoid(gates[:, 3 * H:])
        c = f * c + i * g
        h = o * jnp.tanh(c)
        return (h, c), h

    xs = x[::-1] if reverse else x
    (_, _), hs = jax.lax.scan(step, (jnp.zeros((B, H)), jnp.zeros((B, H))), xs)
    return hs[::-1] if reverse else hs


def _forward_ref(params, x_ids, *, n_layers):
    x_sb = x_ids.T
    layer_in = params["embedding"][x_sb]
    for layer in range(n_layers):
        fwd = _lstm_layer_ref(layer_in, params[f"w_ih_l{layer}"],
                              params[f"w_hh_l{layer}"],
                              params[f"b_ih_l{layer}"],
                              params[f"b_hh_l{layer}"], False)
        bwd = _lstm_layer_ref(layer_in, params[f"w_ih_l{layer}_rev"],
                              params[f"w_hh_l{layer}_rev"],
                              params[f"b_ih_l{layer}_rev"],
                              params[f"b_hh_l{layer}_rev"], True)
        layer_in = jnp.concatenate([fwd, bwd], axis=-1)
    output = jnp.transpose(layer_in, (1, 0, 2))               # (B, S, 2H)
    d_k = output.shape[-1]
    scores = jnp.einsum("bqd,bkd->bqk", output, output) / math.sqrt(d_k)
    p_attn = jax.nn.softmax(scores, axis=-1)
    context = jnp.einsum("bqk,bkd->bqd", p_attn, output).sum(1)
    logit = context @ params["fc_w"].T + params["fc_b"]
    return logit, p_attn


# ----------------------------------------------------------------------------
# Deterministic parameter init (shapes from the PyTorch module's __init__)
# ----------------------------------------------------------------------------
def init_params(key, vocab_size, embedding_dim, hidden_dim, n_layers):
    params = {}
    k = 1.0 / math.sqrt(hidden_dim)
    keys = iter(jax.random.split(key, 8 * n_layers + 4))
    params["embedding"] = jax.random.normal(
        next(keys), (vocab_size, embedding_dim), jnp.float32) * 0.02
    for layer in range(n_layers):
        in_dim = embedding_dim if layer == 0 else 2 * hidden_dim
        for suffix in ("", "_rev"):
            params[f"w_ih_l{layer}{suffix}"] = jax.random.uniform(
                next(keys), (4 * hidden_dim, in_dim), jnp.float32, -k, k)
            params[f"w_hh_l{layer}{suffix}"] = jax.random.uniform(
                next(keys), (4 * hidden_dim, hidden_dim), jnp.float32, -k, k)
            params[f"b_ih_l{layer}{suffix}"] = jax.random.uniform(
                next(keys), (4 * hidden_dim,), jnp.float32, -k, k)
            params[f"b_hh_l{layer}{suffix}"] = jax.random.uniform(
                next(keys), (4 * hidden_dim,), jnp.float32, -k, k)
    kf = 1.0 / math.sqrt(2 * hidden_dim)
    params["fc_w"] = jax.random.uniform(next(keys), (2, 2 * hidden_dim),
                                        jnp.float32, -kf, kf)
    params["fc_b"] = jax.random.uniform(next(keys), (2,), jnp.float32, -kf, kf)
    return params


if __name__ == "__main__":
    # Small shapes consistent with the module's forward pass.
    VOCAB = 100
    EMB = 128
    HID = 128
    N_LAYERS = 2
    BATCH = 2
    SEQ = 8

    key = jax.random.PRNGKey(0)
    pkey, xkey = jax.random.split(key)
    params = init_params(pkey, VOCAB, EMB, HID, N_LAYERS)
    x_ids = jax.random.randint(xkey, (BATCH, SEQ), 0, VOCAB, dtype=jnp.int32)

    # One-time weight packing (hoisted out of the per-call forward).
    packed = prepare_params(params, N_LAYERS)
    packed = jax.tree_util.tree_map(jax.block_until_ready, packed)

    fwd = jax.jit(bilstm_attention_forward)
    logit, attention = fwd(packed, x_ids)
    jax.block_until_ready((logit, attention))

    # Correctness check against pure-JAX reference.
    logit_ref, attn_ref = _forward_ref(params, x_ids, n_layers=N_LAYERS)
    np.testing.assert_allclose(np.asarray(logit), np.asarray(logit_ref),
                               rtol=1e-3, atol=1e-3)
    np.testing.assert_allclose(np.asarray(attention), np.asarray(attn_ref),
                               rtol=1e-3, atol=1e-3)
    assert logit.shape == (BATCH, 2) and attention.shape == (BATCH, SEQ, SEQ)

    print("KERNEL_OK")
</pallas_src>

<mosaic_0001>
module attributes {stable_mosaic.version = 11 : i64} {
  func.func @_fused_forward_kernel(%arg0: i32, %arg1: memref<16x128xf32, #tpu.memory_space<vmem>>, %arg2: memref<128x1024xf32, #tpu.memory_space<vmem>>, %arg3: memref<128x512xf32, #tpu.memory_space<vmem>>, %arg4: memref<128x512xf32, #tpu.memory_space<vmem>>, %arg5: memref<1x1024xf32, #tpu.memory_space<vmem>>, %arg6: memref<256x1024xf32, #tpu.memory_space<vmem>>, %arg7: memref<128x512xf32, #tpu.memory_space<vmem>>, %arg8: memref<128x512xf32, #tpu.memory_space<vmem>>, %arg9: memref<1x1024xf32, #tpu.memory_space<vmem>>, %arg10: memref<256x128xf32, #tpu.memory_space<vmem>>, %arg11: memref<1x128xf32, #tpu.memory_space<vmem>>, %arg12: memref<2x8x128xf32, #tpu.memory_space<vmem>>, %arg13: memref<2x128xf32, #tpu.memory_space<vmem>>) attributes {dimension_semantics = [#tpu.dimension_semantics<arbitrary>], iteration_bounds = array<i64: 1>, scalar_prefetch = 0 : i64, scratch_operands = 0 : i64, tpu.core_type = #tpu.core_type<tc>, window_params = [{pipeline_mode = #tpu.pipeline_mode<synchronous>, transform_indices = @transform_0, window_bounds = array<i64: 16, 128>}, {pipeline_mode = #tpu.pipeline_mode<synchronous>, transform_indices = @transform_1, window_bounds = array<i64: 128, 1024>}, {pipeline_mode = #tpu.pipeline_mode<synchronous>, transform_indices = @transform_2, window_bounds = array<i64: 128, 512>}, {pipeline_mode = #tpu.pipeline_mode<synchronous>, transform_indices = @transform_3, window_bounds = array<i64: 128, 512>}, {pipeline_mode = #tpu.pipeline_mode<synchronous>, transform_indices = @transform_4, window_bounds = array<i64: 1, 1024>}, {pipeline_mode = #tpu.pipeline_mode<synchronous>, transform_indices = @transform_5, window_bounds = array<i64: 256, 1024>}, {pipeline_mode = #tpu.pipeline_mode<synchronous>, transform_indices = @transform_6, window_bounds = array<i64: 128, 512>}, {pipeline_mode = #tpu.pipeline_mode<synchronous>, transform_indices = @transform_7, window_bounds = array<i64: 128, 512>}, {pipeline_mode = #tpu.pipeline_mode<synchronous>, transform_indices = @transform_8, window_bounds = array<i64: 1, 1024>}, {pipeline_mode = #tpu.pipeline_mode<synchronous>, transform_indices = @transform_9, window_bounds = array<i64: 256, 128>}, {pipeline_mode = #tpu.pipeline_mode<synchronous>, transform_indices = @transform_10, window_bounds = array<i64: 1, 128>}, {pipeline_mode = #tpu.pipeline_mode<synchronous>, transform_indices = @transform_11, window_bounds = array<i64: 2, 8, 128>}, {pipeline_mode = #tpu.pipeline_mode<synchronous>, transform_indices = @transform_12, window_bounds = array<i64: 2, 128>}]} {
    %c0 = arith.constant 0 : index
    %c0_0 = arith.constant 0 : index
    %0 = vector.load %arg1[%c0, %c0_0] : memref<16x128xf32, #tpu.memory_space<vmem>>, vector<16x128xf32>
    %c0_1 = arith.constant 0 : index
    %c0_2 = arith.constant 0 : index
    %1 = vector.load %arg2[%c0_1, %c0_2] : memref<128x1024xf32, #tpu.memory_space<vmem>>, vector<128x1024xf32>
    %cst = arith.constant dense<0.000000e+00> : vector<16x1024xf32>
    %2 = tpu.matmul %0, %1, %cst {dimension_numbers = #tpu.dot_dimension_numbers<[1], [0], [0], [1], [0, 0, 1, 1], [], []>} : vector<16x128xf32>, vector<128x1024xf32>, vector<16x1024xf32> -> vector<16x1024xf32>
    %c0_3 = arith.constant 0 : index
    %c0_4 = arith.constant 0 : index
    %3 = vector.load %arg5[%c0_3, %c0_4] : memref<1x1024xf32, #tpu.memory_space<vmem>>, vector<1x1024xf32>
    %4 = vector.broadcast %3 : vector<1x1024xf32> to vector<16x1024xf32>
    %5 = arith.addf %2, %4 : vector<16x1024xf32>
    %c0_5 = arith.constant 0 : index
    %c0_6 = arith.constant 0 : index
    %6 = vector.load %arg3[%c0_5, %c0_6] : memref<128x512xf32, #tpu.memory_space<vmem>>, vector<128x512xf32>
    %c0_7 = arith.constant 0 : index
    %c0_8 = arith.constant 0 : index
    %7 = vector.load %arg4[%c0_7, %c0_8] : memref<128x512xf32, #tpu.memory_space<vmem>>, vector<128x512xf32>
    %cst_9 = arith.constant 0.000000e+00 : f32
    %8 = vector.broadcast %cst_9 : f32 to vector<2x128xf32>
    %cst_10 = arith.constant 0.000000e+00 : f32
    %9 = vector.broadcast %cst_10 : f32 to vector<2x128xf32>
    %cst_11 = arith.constant 0.000000e+00 : f32
    %10 = vector.broadcast %cst_11 : f32 to vector<2x128xf32>
    %cst_12 = arith.constant 0.000000e+00 : f32
    %11 = vector.broadcast %cst_12 : f32 to vector<2x128xf32>
    %12 = vector.extract_strided_slice %5 {offsets = [0, 0], sizes = [2, 512], strides = [1, 1]} : vector<16x1024xf32> to vector<2x512xf32>
    %cst_13 = arith.constant dense<0.000000e+00> : vector<2x512xf32>
    %13 = tpu.matmul %8, %6, %cst_13 {dimension_numbers = #tpu.dot_dimension_numbers<[1], [0], [0], [1], [0, 0, 1, 1], [], []>} : vector<2x128xf32>, vector<128x512xf32>, vector<2x512xf32> -> vector<2x512xf32>
    %14 = arith.addf %12, %13 : vector<2x512xf32>
    %15 = vector.extract_strided_slice %5 {offsets = [14, 512], sizes = [2, 512], strides = [1, 1]} : vector<16x1024xf32> to vector<2x512xf32>
    %cst_14 = arith.constant dense<0.000000e+00> : vector<2x512xf32>
    %16 = tpu.matmul %10, %7, %cst_14 {dimension_numbers = #tpu.dot_dimension_numbers<[1], [0], [0], [1], [0, 0, 1, 1], [], []>} : vector<2x128xf32>, vector<128x512xf32>, vector<2x512xf32> -> vector<2x512xf32>
    %17 = arith.addf %15, %16 : vector<2x512xf32>
    %18 = vector.extract_strided_slice %14 {offsets = [0, 0], sizes = [2, 128], strides = [1, 1]} : vector<2x512xf32> to vector<2x128xf32>
    %19 = arith.negf %18 : vector<2x128xf32>
    %20 = math.exp %19 : vector<2x128xf32>
    %cst_15 = arith.constant 1.000000e+00 : f32
    %21 = vector.broadcast %cst_15 : f32 to vector<2x128xf32>
    %22 = arith.addf %21, %20 : vector<2x128xf32>
    %23 = arith.divf %21, %22 : vector<2x128xf32>
    %24 = vector.extract_strided_slice %17 {offsets = [0, 0], sizes = [2, 128], strides = [1, 1]} : vector<2x512xf32> to vector<2x128xf32>
    %25 = arith.negf %24 : vector<2x128xf32>
    %26 = math.exp %25 : vector<2x128xf32>
    %cst_16 = arith.constant 1.000000e+00 : f32
    %27 = vector.broadcast %cst_16 : f32 to vector<2x128xf32>
    %28 = arith.addf %27, %26 : vector<2x128xf32>
    %29 = arith.divf %27, %28 : vector<2x128xf32>
    %30 = vector.extract_strided_slice %14 {offsets = [0, 128], sizes = [2, 128], strides = [1, 1]} : vector<2x512xf32> to vector<2x128xf32>
    %31 = arith.negf %30 : vector<2x128xf32>
    %32 = math.exp %31 : vector<2x128xf32>
    %cst_17 = arith.constant 1.000000e+00 : f32
    %33 = vector.broadcast %cst_17 : f32 to vector<2x128xf32>
    %34 = arith.addf %33, %32 : vector<2x128xf32>
    %35 = arith.divf %33, %34 : vector<2x128xf32>
    %36 = vector.extract_strided_slice %17 {offsets = [0, 128], sizes = [2, 128], strides = [1, 1]} : vector<2x512xf32> to vector<2x128xf32>
    %37 = arith.negf %36 : vector<2x128xf32>
    %38 = math.exp %37 : vector<2x128xf32>
    %cst_18 = arith.constant 1.000000e+00 : f32
    %39 = vector.broadcast %cst_18 : f32 to vector<2x128xf32>
    %40 = arith.addf %39, %38 : vector<2x128xf32>
    %41 = arith.divf %39, %40 : vector<2x128xf32>
    %42 = vector.extract_strided_slice %14 {offsets = [0, 256], sizes = [2, 128], strides = [1, 1]} : vector<2x512xf32> to vector<2x128xf32>
    %43 = math.tanh %42 : vector<2x128xf32>
    %44 = vector.extract_strided_slice %17 {offsets = [0, 256], sizes = [2, 128], strides = [1, 1]} : vector<2x512xf32> to vector<2x128xf32>
    %45 = math.tanh %44 : vector<2x128xf32>
    %46 = vector.extract_strided_slice %14 {offsets = [0, 384], sizes = [2, 128], strides = [1, 1]} : vector<2x512xf32> to vector<2x128xf32>
    %47 = arith.negf %46 : vector<2x128xf32>
    %48 = math.exp %47 : vector<2x128xf32>
    %cst_19 = arith.constant 1.000000e+00 : f32
    %49 = vector.broadcast %cst_19 : f32 to vector<2x128xf32>
    %50 = arith.addf %49, %48 : vector<2x128xf32>
    %51 = arith.divf %49, %50 : vector<2x128xf32>
    %52 = vector.extract_strided_slice %17 {offsets = [0, 384], sizes = [2, 128], strides = [1, 1]} : vector<2x512xf32> to vector<2x128xf32>
    %53 = arith.negf %52 : vector<2x128xf32>
    %54 = math.exp %53 : vector<2x128xf32>
    %cst_20 = arith.constant 1.000000e+00 : f32
    %55 = vector.broadcast %cst_20 : f32 to vector<2x128xf32>
    %56 = arith.addf %55, %54 : vector<2x128xf32>
    %57 = arith.divf %55, %56 : vector<2x128xf32>
    %58 = arith.mulf %35, %9 : vector<2x128xf32>
    %59 = arith.mulf %23, %43 : vector<2x128xf32>
    %60 = arith.addf %58, %59 : vector<2x128xf32>
    %61 = arith.mulf %41, %11 : vector<2x128xf32>
    %62 = arith.mulf %29, %45 : vector<2x128xf32>
    %63 = arith.addf %61, %62 : vector<2x128xf32>
    %64 = math.tanh %60 : vector<2x128xf32>
    %65 = arith.mulf %51, %64 : vector<2x128xf32>
    %66 = math.tanh %63 : vector<2x128xf32>
    %67 = arith.mulf %57, %66 : vector<2x128xf32>
    %68 = vector.extract_strided_slice %5 {offsets = [2, 0], sizes = [2, 512], strides = [1, 1]} : vector<16x1024xf32> to vector<2x512xf32>
    %cst_21 = arith.constant dense<0.000000e+00> : vector<2x512xf32>
    %69 = tpu.matmul %65, %6, %cst_21 {dimension_numbers = #tpu.dot_dimension_numbers<[1], [0], [0], [1], [0, 0, 1, 1], [], []>} : vector<2x128xf32>, vector<128x512xf32>, vector<2x512xf32> -> vector<2x512xf32>
    %70 = arith.addf %68, %69 : vector<2x512xf32>
    %71 = vector.extract_strided_slice %5 {offsets = [12, 512], sizes = [2, 512], strides = [1, 1]} : vector<16x1024xf32> to vector<2x512xf32>
    %cst_22 = arith.constant dense<0.000000e+00> : vector<2x512xf32>
    %72 = tpu.matmul %67, %7, %cst_22 {dimension_numbers = #tpu.dot_dimension_numbers<[1], [0], [0], [1], [0, 0, 1, 1], [], []>} : vector<2x128xf32>, vector<128x512xf32>, vector<2x512xf32> -> vector<2x512xf32>
    %73 = arith.addf %71, %72 : vector<2x512xf32>
    %74 = vector.extract_strided_slice %70 {offsets = [0, 0], sizes = [2, 128], strides = [1, 1]} : vector<2x512xf32> to vector<2x128xf32>
    %75 = arith.negf %74 : vector<2x128xf32>
    %76 = math.exp %75 : vector<2x128xf32>
    %cst_23 = arith.constant 1.000000e+00 : f32
    %77 = vector.broadcast %cst_23 : f32 to vector<2x128xf32>
    %78 = arith.addf %77, %76 : vector<2x128xf32>
    %79 = arith.divf %77, %78 : vector<2x128xf32>
    %80 = vector.extract_strided_slice %73 {offsets = [0, 0], sizes = [2, 128], strides = [1, 1]} : vector<2x512xf32> to vector<2x128xf32>
    %81 = arith.negf %80 : vector<2x128xf32>
    %82 = math.exp %81 : vector<2x128xf32>
    %cst_24 = arith.constant 1.000000e+00 : f32
    %83 = vector.broadcast %cst_24 : f32 to vector<2x128xf32>
    %84 = arith.addf %83, %82 : vector<2x128xf32>
    %85 = arith.divf %83, %84 : vector<2x128xf32>
    %86 = vector.extract_strided_slice %70 {offsets = [0, 128], sizes = [2, 128], strides = [1, 1]} : vector<2x512xf32> to vector<2x128xf32>
    %87 = arith.negf %86 : vector<2x128xf32>
    %88 = math.exp %87 : vector<2x128xf32>
    %cst_25 = arith.constant 1.000000e+00 : f32
    %89 = vector.broadcast %cst_25 : f32 to vector<2x128xf32>
    %90 = arith.addf %89, %88 : vector<2x128xf32>
    %91 = arith.divf %89, %90 : vector<2x128xf32>
    %92 = vector.extract_strided_slice %73 {offsets = [0, 128], sizes = [2, 128], strides = [1, 1]} : vector<2x512xf32> to vector<2x128xf32>
    %93 = arith.negf %92 : vector<2x128xf32>
    %94 = math.exp %93 : vector<2x128xf32>
    %cst_26 = arith.constant 1.000000e+00 : f32
    %95 = vector.broadcast %cst_26 : f32 to vector<2x128xf32>
    %96 = arith.addf %95, %94 : vector<2x128xf32>
    %97 = arith.divf %95, %96 : vector<2x128xf32>
    %98 = vector.extract_strided_slice %70 {offsets = [0, 256], sizes = [2, 128], strides = [1, 1]} : vector<2x512xf32> to vector<2x128xf32>
    %99 = math.tanh %98 : vector<2x128xf32>
    %100 = vector.extract_strided_slice %73 {offsets = [0, 256], sizes = [2, 128], strides = [1, 1]} : vector<2x512xf32> to vector<2x128xf32>
    %101 = math.tanh %100 : vector<2x128xf32>
    %102 = vector.extract_strided_slice %70 {offsets = [0, 384], sizes = [2, 128], strides = [1, 1]} : vector<2x512xf32> to vector<2x128xf32>
    %103 = arith.negf %102 : vector<2x128xf32>
    %104 = math.exp %103 : vector<2x128xf32>
    %cst_27 = arith.constant 1.000000e+00 : f32
    %105 = vector.broadcast %cst_27 : f32 to vector<2x128xf32>
    %106 = arith.addf %105, %104 : vector<2x128xf32>
    %107 = arith.divf %105, %106 : vector<2x128xf32>
    %108 = vector.extract_strided_slice %73 {offsets = [0, 384], sizes = [2, 128], strides = [1, 1]} : vector<2x512xf32> to vector<2x128xf32>
    %109 = arith.negf %108 : vector<2x128xf32>
    %110 = math.exp %109 : vector<2x128xf32>
    %cst_28 = arith.constant 1.000000e+00 : f32
    %111 = vector.broadcast %cst_28 : f32 to vector<2x128xf32>
    %112 = arith.addf %111, %110 : vector<2x128xf32>
    %113 = arith.divf %111, %112 : vector<2x128xf32>
    %114 = arith.mulf %91, %60 : vector<2x128xf32>
    %115 = arith.mulf %79, %99 : vector<2x128xf32>
    %116 = arith.addf %114, %115 : vector<2x128xf32>
    %117 = arith.mulf %97, %63 : vector<2x128xf32>
    %118 = arith.mulf %85, %101 : vector<2x128xf32>
    %119 = arith.addf %117, %118 : vector<2x128xf32>
    %120 = math.tanh %116 : vector<2x128xf32>
    %121 = arith.mulf %107, %120 : vector<2x128xf32>
    %122 = math.tanh %119 : vector<2x128xf32>
    %123 = arith.mulf %113, %122 : vector<2x128xf32>
    %124 = vector.extract_strided_slice %5 {offsets = [4, 0], sizes = [2, 512], strides = [1, 1]} : vector<16x1024xf32> to vector<2x512xf32>
    %cst_29 = arith.constant dense<0.000000e+00> : vector<2x512xf32>
    %125 = tpu.matmul %121, %6, %cst_29 {dimension_numbers = #tpu.dot_dimension_numbers<[1], [0], [0], [1], [0, 0, 1, 1], [], []>} : vector<2x128xf32>, vector<128x512xf32>, vector<2x512xf32> -> vector<2x512xf32>
    %126 = arith.addf %124, %125 : vector<2x512xf32>
    %127 = vector.extract_strided_slice %5 {offsets = [10, 512], sizes = [2, 512], strides = [1, 1]} : vector<16x1024xf32> to vector<2x512xf32>
    %cst_30 = arith.constant dense<0.000000e+00> : vector<2x512xf32>
    %128 = tpu.matmul %123, %7, %cst_30 {dimension_numbers = #tpu.dot_dimension_numbers<[1], [0], [0], [1], [0, 0, 1, 1], [], []>} : vector<2x128xf32>, vector<128x512xf32>, vector<2x512xf32> -> vector<2x512xf32>
    %129 = arith.addf %127, %128 : vector<2x512xf32>
    %130 = vector.extract_strided_slice %126 {offsets = [0, 0], sizes = [2, 128], strides = [1, 1]} : vector<2x512xf32> to vector<2x128xf32>
    %131 = arith.negf %130 : vector<2x128xf32>
    %132 = math.exp %131 : vector<2x128xf32>
    %cst_31 = arith.constant 1.000000e+00 : f32
    %133 = vector.broadcast %cst_31 : f32 to vector<2x128xf32>
    %134 = arith.addf %133, %132 : vector<2x128xf32>
    %135 = arith.divf %133, %134 : vector<2x128xf32>
    %136 = vector.extract_strided_slice %129 {offsets = [0, 0], sizes = [2, 128], strides = [1, 1]} : vector<2x512xf32> to vector<2x128xf32>
    %137 = arith.negf %136 : vector<2x128xf32>
    %138 = math.exp %137 : vector<2x128xf32>
    %cst_32 = arith.constant 1.000000e+00 : f32
    %139 = vector.broadcast %cst_32 : f32 to vector<2x128xf32>
    %140 = arith.addf %139, %138 : vector<2x128xf32>
    %141 = arith.divf %139, %140 : vector<2x128xf32>
    %142 = vector.extract_strided_slice %126 {offsets = [0, 128], sizes = [2, 128], strides = [1, 1]} : vector<2x512xf32> to vector<2x128xf32>
    %143 = arith.negf %142 : vector<2x128xf32>
    %144 = math.exp %143 : vector<2x128xf32>
    %cst_33 = arith.constant 1.000000e+00 : f32
    %145 = vector.broadcast %cst_33 : f32 to vector<2x128xf32>
    %146 = arith.addf %145, %144 : vector<2x128xf32>
    %147 = arith.divf %145, %146 : vector<2x128xf32>
    %148 = vector.extract_strided_slice %129 {offsets = [0, 128], sizes = [2, 128], strides = [1, 1]} : vector<2x512xf32> to vector<2x128xf32>
    %149 = arith.negf %148 : vector<2x128xf32>
    %150 = math.exp %149 : vector<2x128xf32>
    %cst_34 = arith.constant 1.000000e+00 : f32
    %151 = vector.broadcast %cst_34 : f32 to vector<2x128xf32>
    %152 = arith.addf %151, %150 : vector<2x128xf32>
    %153 = arith.divf %151, %152 : vector<2x128xf32>
    %154 = vector.extract_strided_slice %126 {offsets = [0, 256], sizes = [2, 128], strides = [1, 1]} : vector<2x512xf32> to vector<2x128xf32>
    %155 = math.tanh %154 : vector<2x128xf32>
    %156 = vector.extract_strided_slice %129 {offsets = [0, 256], sizes = [2, 128], strides = [1, 1]} : vector<2x512xf32> to vector<2x128xf32>
    %157 = math.tanh %156 : vector<2x128xf32>
    %158 = vector.extract_strided_slice %126 {offsets = [0, 384], sizes = [2, 128], strides = [1, 1]} : vector<2x512xf32> to vector<2x128xf32>
    %159 = arith.negf %158 : vector<2x128xf32>
    %160 = math.exp %159 : vector<2x128xf32>
    %cst_35 = arith.constant 1.000000e+00 : f32
    %161 = vector.broadcast %cst_35 : f32 to vector<2x128xf32>
    %162 = arith.addf %161, %160 : vector<2x128xf32>
    %163 = arith.divf %161, %162 : vector<2x128xf32>
    %164 = vector.extract_strided_slice %129 {offsets = [0, 384], sizes = [2, 128], strides = [1, 1]} : vector<2x512xf32> to vector<2x128xf32>
    %165 = arith.negf %164 : vector<2x128xf32>
    %166 = math.exp %165 : vector<2x128xf32>
    %cst_36 = arith.constant 1.000000e+00 : f32
    %167 = vector.broadcast %cst_36 : f32 to vector<2x128xf32>
    %168 = arith.addf %167, %166 : vector<2x128xf32>
    %169 = arith.divf %167, %168 : vector<2x128xf32>
    %170 = arith.mulf %147, %116 : vector<2x128xf32>
    %171 = arith.mulf %135, %155 : vector<2x128xf32>
    %172 = arith.addf %170, %171 : vector<2x128xf32>
    %173 = arith.mulf %153, %119 : vector<2x128xf32>
    %174 = arith.mulf %141, %157 : vector<2x128xf32>
    %175 = arith.addf %173, %174 : vector<2x128xf32>
    %176 = math.tanh %172 : vector<2x128xf32>
    %177 = arith.mulf %163, %176 : vector<2x128xf32>
    %178 = math.tanh %175 : vector<2x128xf32>
    %179 = arith.mulf %169, %178 : vector<2x128xf32>
    %180 = vector.extract_strided_slice %5 {offsets = [6, 0], sizes = [2, 512], strides = [1, 1]} : vector<16x1024xf32> to vector<2x512xf32>
    %cst_37 = arith.constant dense<0.000000e+00> : vector<2x512xf32>
    %181 = tpu.matmul %177, %6, %cst_37 {dimension_numbers = #tpu.dot_dimension_numbers<[1], [0], [0], [1], [0, 0, 1, 1], [], []>} : vector<2x128xf32>, vector<128x512xf32>, vector<2x512xf32> -> vector<2x512xf32>
    %182 = arith.addf %180, %181 : vector<2x512xf32>
    %183 = vector.extract_strided_slice %5 {offsets = [8, 512], sizes = [2, 512], strides = [1, 1]} : vector<16x1024xf32> to vector<2x512xf32>
    %cst_38 = arith.constant dense<0.000000e+00> : vector<2x512xf32>
    %184 = tpu.matmul %179, %7, %cst_38 {dimension_numbers = #tpu.dot_dimension_numbers<[1], [0], [0], [1], [0, 0, 1, 1], [], []>} : vector<2x128xf32>, vector<128x512xf32>, vector<2x512xf32> -> vector<2x512xf32>
    %185 = arith.addf %183, %184 : vector<2x512xf32>
    %186 = vector.extract_strided_slice %182 {offsets = [0, 0], sizes = [2, 128], strides = [1, 1]} : vector<2x512xf32> to vector<2x128xf32>
    %187 = arith.negf %186 : vector<2x128xf32>
    %188 = math.exp %187 : vector<2x128xf32>
    %cst_39 = arith.constant 1.000000e+00 : f32
    %189 = vector.broadcast %cst_39 : f32 to vector<2x128xf32>
    %190 = arith.addf %189, %188 : vector<2x128xf32>
    %191 = arith.divf %189, %190 : vector<2x128xf32>
    %192 = vector.extract_strided_slice %185 {offsets = [0, 0], sizes = [2, 128], strides = [1, 1]} : vector<2x512xf32> to vector<2x128xf32>
    %193 = arith.negf %192 : vector<2x128xf32>
    %194 = math.exp %193 : vector<2x128xf32>
    %cst_40 = arith.constant 1.000000e+00 : f32
    %195 = vector.broadcast %cst_40 : f32 to vector<2x128xf32>
    %196 = arith.addf %195, %194 : vector<2x128xf32>
    %197 = arith.divf %195, %196 : vector<2x128xf32>
    %198 = vector.extract_strided_slice %182 {offsets = [0, 128], sizes = [2, 128], strides = [1, 1]} : vector<2x512xf32> to vector<2x128xf32>
    %199 = arith.negf %198 : vector<2x128xf32>
    %200 = math.exp %199 : vector<2x128xf32>
    %cst_41 = arith.constant 1.000000e+00 : f32
    %201 = vector.broadcast %cst_41 : f32 to vector<2x128xf32>
    %202 = arith.addf %201, %200 : vector<2x128xf32>
    %203 = arith.divf %201, %202 : vector<2x128xf32>
    %204 = vector.extract_strided_slice %185 {offsets = [0, 128], sizes = [2, 128], strides = [1, 1]} : vector<2x512xf32> to vector<2x128xf32>
    %205 = arith.negf %204 : vector<2x128xf32>
    %206 = math.exp %205 : vector<2x128xf32>
    %cst_42 = arith.constant 1.000000e+00 : f32
    %207 = vector.broadcast %cst_42 : f32 to vector<2x128xf32>
    %208 = arith.addf %207, %206 : vector<2x128xf32>
    %209 = arith.divf %207, %208 : vector<2x128xf32>
    %210 = vector.extract_strided_slice %182 {offsets = [0, 256], sizes = [2, 128], strides = [1, 1]} : vector<2x512xf32> to vector<2x128xf32>
    %211 = math.tanh %210 : vector<2x128xf32>
    %212 = vector.extract_strided_slice %185 {offsets = [0, 256], sizes = [2, 128], strides = [1, 1]} : vector<2x512xf32> to vector<2x128xf32>
    %213 = math.tanh %212 : vector<2x128xf32>
    %214 = vector.extract_strided_slice %182 {offsets = [0, 384], sizes = [2, 128], strides = [1, 1]} : vector<2x512xf32> to vector<2x128xf32>
    %215 = arith.negf %214 : vector<2x128xf32>
    %216 = math.exp %215 : vector<2x128xf32>
    %cst_43 = arith.constant 1.000000e+00 : f32
    %217 = vector.broadcast %cst_43 : f32 to vector<2x128xf32>
    %218 = arith.addf %217, %216 : vector<2x128xf32>
    %219 = arith.divf %217, %218 : vector<2x128xf32>
    %220 = vector.extract_strided_slice %185 {offsets = [0, 384], sizes = [2, 128], strides = [1, 1]} : vector<2x512xf32> to vector<2x128xf32>
    %221 = arith.negf %220 : vector<2x128xf32>
    %222 = math.exp %221 : vector<2x128xf32>
    %cst_44 = arith.constant 1.000000e+00 : f32
    %223 = vector.broadcast %cst_44 : f32 to vector<2x128xf32>
    %224 = arith.addf %223, %222 : vector<2x128xf32>
    %225 = arith.divf %223, %224 : vector<2x128xf32>
    %226 = arith.mulf %203, %172 : vector<2x128xf32>
    %227 = arith.mulf %191, %211 : vector<2x128xf32>
    %228 = arith.addf %226, %227 : vector<2x128xf32>
    %229 = arith.mulf %209, %175 : vector<2x128xf32>
    %230 = arith.mulf %197, %213 : vector<2x128xf32>
    %231 = arith.addf %229, %230 : vector<2x128xf32>
    %232 = math.tanh %228 : vector<2x128xf32>
    %233 = arith.mulf %219, %232 : vector<2x128xf32>
    %234 = math.tanh %231 : vector<2x128xf32>
    %235 = arith.mulf %225, %234 : vector<2x128xf32>
    %236 = vector.extract_strided_slice %5 {offsets = [8, 0], sizes = [2, 512], strides = [1, 1]} : vector<16x1024xf32> to vector<2x512xf32>
    %cst_45 = arith.constant dense<0.000000e+00> : vector<2x512xf32>
    %237 = tpu.matmul %233, %6, %cst_45 {dimension_numbers = #tpu.dot_dimension_numbers<[1], [0], [0], [1], [0, 0, 1, 1], [], []>} : vector<2x128xf32>, vector<128x512xf32>, vector<2x512xf32> -> vector<2x512xf32>
    %238 = arith.addf %236, %237 : vector<2x512xf32>
    %239 = vector.extract_strided_slice %5 {offsets = [6, 512], sizes = [2, 512], strides = [1, 1]} : vector<16x1024xf32> to vector<2x512xf32>
    %cst_46 = arith.constant dense<0.000000e+00> : vector<2x512xf32>
    %240 = tpu.matmul %235, %7, %cst_46 {dimension_numbers = #tpu.dot_dimension_numbers<[1], [0], [0], [1], [0, 0, 1, 1], [], []>} : vector<2x128xf32>, vector<128x512xf32>, vector<2x512xf32> -> vector<2x512xf32>
    %241 = arith.addf %239, %240 : vector<2x512xf32>
    %242 = vector.extract_strided_slice %238 {offsets = [0, 0], sizes = [2, 128], strides = [1, 1]} : vector<2x512xf32> to vector<2x128xf32>
    %243 = arith.negf %242 : vector<2x128xf32>
    %244 = math.exp %243 : vector<2x128xf32>
    %cst_47 = arith.constant 1.000000e+00 : f32
    %245 = vector.broadcast %cst_47 : f32 to vector<2x128xf32>
    %246 = arith.addf %245, %244 : vector<2x128xf32>
    %247 = arith.divf %245, %246 : vector<2x128xf32>
    %248 = vector.extract_strided_slice %241 {offsets = [0, 0], sizes = [2, 128], strides = [1, 1]} : vector<2x512xf32> to vector<2x128xf32>
    %249 = arith.negf %248 : vector<2x128xf32>
    %250 = math.exp %249 : vector<2x128xf32>
    %cst_48 = arith.constant 1.000000e+00 : f32
    %251 = vector.broadcast %cst_48 : f32 to vector<2x128xf32>
    %252 = arith.addf %251, %250 : vector<2x128xf32>
    %253 = arith.divf %251, %252 : vector<2x128xf32>
    %254 = vector.extract_strided_slice %238 {offsets = [0, 128], sizes = [2, 128], strides = [1, 1]} : vector<2x512xf32> to vector<2x128xf32>
    %255 = arith.negf %254 : vector<2x128xf32>
    %256 = math.exp %255 : vector<2x128xf32>
    %cst_49 = arith.constant 1.000000e+00 : f32
    %257 = vector.broadcast %cst_49 : f32 to vector<2x128xf32>
    %258 = arith.addf %257, %256 : vector<2x128xf32>
    %259 = arith.divf %257, %258 : vector<2x128xf32>
    %260 = vector.extract_strided_slice %241 {offsets = [0, 128], sizes = [2, 128], strides = [1, 1]} : vector<2x512xf32> to vector<2x128xf32>
    %261 = arith.negf %260 : vector<2x128xf32>
    %262 = math.exp %261 : vector<2x128xf32>
    %cst_50 = arith.constant 1.000000e+00 : f32
    %263 = vector.broadcast %cst_50 : f32 to vector<2x128xf32>
    %264 = arith.addf %263, %262 : vector<2x128xf32>
    %265 = arith.divf %263, %264 : vector<2x128xf32>
    %266 = vector.extract_strided_slice %238 {offsets = [0, 256], sizes = [2, 128], strides = [1, 1]} : vector<2x512xf32> to vector<2x128xf32>
    %267 = math.tanh %266 : vector<2x128xf32>
    %268 = vector.extract_strided_slice %241 {offsets = [0, 256], sizes = [2, 128], strides = [1, 1]} : vector<2x512xf32> to vector<2x128xf32>
    %269 = math.tanh %268 : vector<2x128xf32>
    %270 = vector.extract_strided_slice %238 {offsets = [0, 384], sizes = [2, 128], strides = [1, 1]} : vector<2x512xf32> to vector<2x128xf32>
    %271 = arith.negf %270 : vector<2x128xf32>
    %272 = math.exp %271 : vector<2x128xf32>
    %cst_51 = arith.constant 1.000000e+00 : f32
    %273 = vector.broadcast %cst_51 : f32 to vector<2x128xf32>
    %274 = arith.addf %273, %272 : vector<2x128xf32>
    %275 = arith.divf %273, %274 : vector<2x128xf32>
    %276 = vector.extract_strided_slice %241 {offsets = [0, 384], sizes = [2, 128], strides = [1, 1]} : vector<2x512xf32> to vector<2x128xf32>
    %277 = arith.negf %276 : vector<2x128xf32>
    %278 = math.exp %277 : vector<2x128xf32>
    %cst_52 = arith.constant 1.000000e+00 : f32
    %279 = vector.broadcast %cst_52 : f32 to vector<2x128xf32>
    %280 = arith.addf %279, %278 : vector<2x128xf32>
    %281 = arith.divf %279, %280 : vector<2x128xf32>
    %282 = arith.mulf %259, %228 : vector<2x128xf32>
    %283 = arith.mulf %247, %267 : vector<2x128xf32>
    %284 = arith.addf %282, %283 : vector<2x128xf32>
    %285 = arith.mulf %265, %231 : vector<2x128xf32>
    %286 = arith.mulf %253, %269 : vector<2x128xf32>
    %287 = arith.addf %285, %286 : vector<2x128xf32>
    %288 = math.tanh %284 : vector<2x128xf32>
    %289 = arith.mulf %275, %288 : vector<2x128xf32>
    %290 = math.tanh %287 : vector<2x128xf32>
    %291 = arith.mulf %281, %290 : vector<2x128xf32>
    %292 = vector.extract_strided_slice %5 {offsets = [10, 0], sizes = [2, 512], strides = [1, 1]} : vector<16x1024xf32> to vector<2x512xf32>
    %cst_53 = arith.constant dense<0.000000e+00> : vector<2x512xf32>
    %293 = tpu.matmul %289, %6, %cst_53 {dimension_numbers = #tpu.dot_dimension_numbers<[1], [0], [0], [1], [0, 0, 1, 1], [], []>} : vector<2x128xf32>, vector<128x512xf32>, vector<2x512xf32> -> vector<2x512xf32>
    %294 = arith.addf %292, %293 : vector<2x512xf32>
    %295 = vector.extract_strided_slice %5 {offsets = [4, 512], sizes = [2, 512], strides = [1, 1]} : vector<16x1024xf32> to vector<2x512xf32>
    %cst_54 = arith.constant dense<0.000000e+00> : vector<2x512xf32>
    %296 = tpu.matmul %291, %7, %cst_54 {dimension_numbers = #tpu.dot_dimension_numbers<[1], [0], [0], [1], [0, 0, 1, 1], [], []>} : vector<2x128xf32>, vector<128x512xf32>, vector<2x512xf32> -> vector<2x512xf32>
    %297 = arith.addf %295, %296 : vector<2x512xf32>
    %298 = vector.extract_strided_slice %294 {offsets = [0, 0], sizes = [2, 128], strides = [1, 1]} : vector<2x512xf32> to vector<2x128xf32>
    %299 = arith.negf %298 : vector<2x128xf32>
    %300 = math.exp %299 : vector<2x128xf32>
    %cst_55 = arith.constant 1.000000e+00 : f32
    %301 = vector.broadcast %cst_55 : f32 to vector<2x128xf32>
    %302 = arith.addf %301, %300 : vector<2x128xf32>
    %303 = arith.divf %301, %302 : vector<2x128xf32>
    %304 = vector.extract_strided_slice %297 {offsets = [0, 0], sizes = [2, 128], strides = [1, 1]} : vector<2x512xf32> to vector<2x128xf32>
    %305 = arith.negf %304 : vector<2x128xf32>
    %306 = math.exp %305 : vector<2x128xf32>
    %cst_56 = arith.constant 1.000000e+00 : f32
    %307 = vector.broadcast %cst_56 : f32 to vector<2x128xf32>
    %308 = arith.addf %307, %306 : vector<2x128xf32>
    %309 = arith.divf %307, %308 : vector<2x128xf32>
    %310 = vector.extract_strided_slice %294 {offsets = [0, 128], sizes = [2, 128], strides = [1, 1]} : vector<2x512xf32> to vector<2x128xf32>
    %311 = arith.negf %310 : vector<2x128xf32>
    %312 = math.exp %311 : vector<2x128xf32>
    %cst_57 = arith.constant 1.000000e+00 : f32
    %313 = vector.broadcast %cst_57 : f32 to vector<2x128xf32>
    %314 = arith.addf %313, %312 : vector<2x128xf32>
    %315 = arith.divf %313, %314 : vector<2x128xf32>
    %316 = vector.extract_strided_slice %297 {offsets = [0, 128], sizes = [2, 128], strides = [1, 1]} : vector<2x512xf32> to vector<2x128xf32>
    %317 = arith.negf %316 : vector<2x128xf32>
    %318 = math.exp %317 : vector<2x128xf32>
    %cst_58 = arith.constant 1.000000e+00 : f32
    %319 = vector.broadcast %cst_58 : f32 to vector<2x128xf32>
    %320 = arith.addf %319, %318 : vector<2x128xf32>
    %321 = arith.divf %319, %320 : vector<2x128xf32>
    %322 = vector.extract_strided_slice %294 {offsets = [0, 256], sizes = [2, 128], strides = [1, 1]} : vector<2x512xf32> to vector<2x128xf32>
    %323 = math.tanh %322 : vector<2x128xf32>
    %324 = vector.extract_strided_slice %297 {offsets = [0, 256], sizes = [2, 128], strides = [1, 1]} : vector<2x512xf32> to vector<2x128xf32>
    %325 = math.tanh %324 : vector<2x128xf32>
    %326 = vector.extract_strided_slice %294 {offsets = [0, 384], sizes = [2, 128], strides = [1, 1]} : vector<2x512xf32> to vector<2x128xf32>
    %327 = arith.negf %326 : vector<2x128xf32>
    %328 = math.exp %327 : vector<2x128xf32>
    %cst_59 = arith.constant 1.000000e+00 : f32
    %329 = vector.broadcast %cst_59 : f32 to vector<2x128xf32>
    %330 = arith.addf %329, %328 : vector<2x128xf32>
    %331 = arith.divf %329, %330 : vector<2x128xf32>
    %332 = vector.extract_strided_slice %297 {offsets = [0, 384], sizes = [2, 128], strides = [1, 1]} : vector<2x512xf32> to vector<2x128xf32>
    %333 = arith.negf %332 : vector<2x128xf32>
    %334 = math.exp %333 : vector<2x128xf32>
    %cst_60 = arith.constant 1.000000e+00 : f32
    %335 = vector.broadcast %cst_60 : f32 to vector<2x128xf32>
    %336 = arith.addf %335, %334 : vector<2x128xf32>
    %337 = arith.divf %335, %336 : vector<2x128xf32>
    %338 = arith.mulf %315, %284 : vector<2x128xf32>
    %339 = arith.mulf %303, %323 : vector<2x128xf32>
    %340 = arith.addf %338, %339 : vector<2x128xf32>
    %341 = arith.mulf %321, %287 : vector<2x128xf32>
    %342 = arith.mulf %309, %325 : vector<2x128xf32>
    %343 = arith.addf %341, %342 : vector<2x128xf32>
    %344 = math.tanh %340 : vector<2x128xf32>
    %345 = arith.mulf %331, %344 : vector<2x128xf32>
    %346 = math.tanh %343 : vector<2x128xf32>
    %347 = arith.mulf %337, %346 : vector<2x128xf32>
    %348 = vector.extract_strided_slice %5 {offsets = [12, 0], sizes = [2, 512], strides = [1, 1]} : vector<16x1024xf32> to vector<2x512xf32>
    %cst_61 = arith.constant dense<0.000000e+00> : vector<2x512xf32>
    %349 = tpu.matmul %345, %6, %cst_61 {dimension_numbers = #tpu.dot_dimension_numbers<[1], [0], [0], [1], [0, 0, 1, 1], [], []>} : vector<2x128xf32>, vector<128x512xf32>, vector<2x512xf32> -> vector<2x512xf32>
    %350 = arith.addf %348, %349 : vector<2x512xf32>
    %351 = vector.extract_strided_slice %5 {offsets = [2, 512], sizes = [2, 512], strides = [1, 1]} : vector<16x1024xf32> to vector<2x512xf32>
    %cst_62 = arith.constant dense<0.000000e+00> : vector<2x512xf32>
    %352 = tpu.matmul %347, %7, %cst_62 {dimension_numbers = #tpu.dot_dimension_numbers<[1], [0], [0], [1], [0, 0, 1, 1], [], []>} : vector<2x128xf32>, vector<128x512xf32>, vector<2x512xf32> -> vector<2x512xf32>
    %353 = arith.addf %351, %352 : vector<2x512xf32>
    %354 = vector.extract_strided_slice %350 {offsets = [0, 0], sizes = [2, 128], strides = [1, 1]} : vector<2x512xf32> to vector<2x128xf32>
    %355 = arith.negf %354 : vector<2x128xf32>
    %356 = math.exp %355 : vector<2x128xf32>
    %cst_63 = arith.constant 1.000000e+00 : f32
    %357 = vector.broadcast %cst_63 : f32 to vector<2x128xf32>
    %358 = arith.addf %357, %356 : vector<2x128xf32>
    %359 = arith.divf %357, %358 : vector<2x128xf32>
    %360 = vector.extract_strided_slice %353 {offsets = [0, 0], sizes = [2, 128], strides = [1, 1]} : vector<2x512xf32> to vector<2x128xf32>
    %361 = arith.negf %360 : vector<2x128xf32>
    %362 = math.exp %361 : vector<2x128xf32>
    %cst_64 = arith.constant 1.000000e+00 : f32
    %363 = vector.broadcast %cst_64 : f32 to vector<2x128xf32>
    %364 = arith.addf %363, %362 : vector<2x128xf32>
    %365 = arith.divf %363, %364 : vector<2x128xf32>
    %366 = vector.extract_strided_slice %350 {offsets = [0, 128], sizes = [2, 128], strides = [1, 1]} : vector<2x512xf32> to vector<2x128xf32>
    %367 = arith.negf %366 : vector<2x128xf32>
    %368 = math.exp %367 : vector<2x128xf32>
    %cst_65 = arith.constant 1.000000e+00 : f32
    %369 = vector.broadcast %cst_65 : f32 to vector<2x128xf32>
    %370 = arith.addf %369, %368 : vector<2x128xf32>
    %371 = arith.divf %369, %370 : vector<2x128xf32>
    %372 = vector.extract_strided_slice %353 {offsets = [0, 128], sizes = [2, 128], strides = [1, 1]} : vector<2x512xf32> to vector<2x128xf32>
    %373 = arith.negf %372 : vector<2x128xf32>
    %374 = math.exp %373 : vector<2x128xf32>
    %cst_66 = arith.constant 1.000000e+00 : f32
    %375 = vector.broadcast %cst_66 : f32 to vector<2x128xf32>
    %376 = arith.addf %375, %374 : vector<2x128xf32>
    %377 = arith.divf %375, %376 : vector<2x128xf32>
    %378 = vector.extract_strided_slice %350 {offsets = [0, 256], sizes = [2, 128], strides = [1, 1]} : vector<2x512xf32> to vector<2x128xf32>
    %379 = math.tanh %378 : vector<2x128xf32>
    %380 = vector.extract_strided_slice %353 {offsets = [0, 256], sizes = [2, 128], strides = [1, 1]} : vector<2x512xf32> to vector<2x128xf32>
    %381 = math.tanh %380 : vector<2x128xf32>
    %382 = vector.extract_strided_slice %350 {offsets = [0, 384], sizes = [2, 128], strides = [1, 1]} : vector<2x512xf32> to vector<2x128xf32>
    %383 = arith.negf %382 : vector<2x128xf32>
    %384 = math.exp %383 : vector<2x128xf32>
    %cst_67 = arith.constant 1.000000e+00 : f32
    %385 = vector.broadcast %cst_67 : f32 to vector<2x128xf32>
    %386 = arith.addf %385, %384 : vector<2x128xf32>
    %387 = arith.divf %385, %386 : vector<2x128xf32>
    %388 = vector.extract_strided_slice %353 {offsets = [0, 384], sizes = [2, 128], strides = [1, 1]} : vector<2x512xf32> to vector<2x128xf32>
    %389 = arith.negf %388 : vector<2x128xf32>
    %390 = math.exp %389 : vector<2x128xf32>
    %cst_68 = arith.constant 1.000000e+00 : f32
    %391 = vector.broadcast %cst_68 : f32 to vector<2x128xf32>
    %392 = arith.addf %391, %390 : vector<2x128xf32>
    %393 = arith.divf %391, %392 : vector<2x128xf32>
    %394 = arith.mulf %371, %340 : vector<2x128xf32>
    %395 = arith.mulf %359, %379 : vector<2x128xf32>
    %396 = arith.addf %394, %395 : vector<2x128xf32>
    %397 = arith.mulf %377, %343 : vector<2x128xf32>
    %398 = arith.mulf %365, %381 : vector<2x128xf32>
    %399 = arith.addf %397, %398 : vector<2x128xf32>
    %400 = math.tanh %396 : vector<2x128xf32>
    %401 = arith.mulf %387, %400 : vector<2x128xf32>
    %402 = math.tanh %399 : vector<2x128xf32>
    %403 = arith.mulf %393, %402 : vector<2x128xf32>
    %404 = vector.extract_strided_slice %5 {offsets = [14, 0], sizes = [2, 512], strides = [1, 1]} : vector<16x1024xf32> to vector<2x512xf32>
    %cst_69 = arith.constant dense<0.000000e+00> : vector<2x512xf32>
    %405 = tpu.matmul %401, %6, %cst_69 {dimension_numbers = #tpu.dot_dimension_numbers<[1], [0], [0], [1], [0, 0, 1, 1], [], []>} : vector<2x128xf32>, vector<128x512xf32>, vector<2x512xf32> -> vector<2x512xf32>
    %406 = arith.addf %404, %405 : vector<2x512xf32>
    %407 = vector.extract_strided_slice %5 {offsets = [0, 512], sizes = [2, 512], strides = [1, 1]} : vector<16x1024xf32> to vector<2x512xf32>
    %cst_70 = arith.constant dense<0.000000e+00> : vector<2x512xf32>
    %408 = tpu.matmul %403, %7, %cst_70 {dimension_numbers = #tpu.dot_dimension_numbers<[1], [0], [0], [1], [0, 0, 1, 1], [], []>} : vector<2x128xf32>, vector<128x512xf32>, vector<2x512xf32> -> vector<2x512xf32>
    %409 = arith.addf %407, %408 : vector<2x512xf32>
    %410 = vector.extract_strided_slice %406 {offsets = [0, 0], sizes = [2, 128], strides = [1, 1]} : vector<2x512xf32> to vector<2x128xf32>
    %411 = arith.negf %410 : vector<2x128xf32>
    %412 = math.exp %411 : vector<2x128xf32>
    %cst_71 = arith.constant 1.000000e+00 : f32
    %413 = vector.broadcast %cst_71 : f32 to vector<2x128xf32>
    %414 = arith.addf %413, %412 : vector<2x128xf32>
    %415 = arith.divf %413, %414 : vector<2x128xf32>
    %416 = vector.extract_strided_slice %409 {offsets = [0, 0], sizes = [2, 128], strides = [1, 1]} : vector<2x512xf32> to vector<2x128xf32>
    %417 = arith.negf %416 : vector<2x128xf32>
    %418 = math.exp %417 : vector<2x128xf32>
    %cst_72 = arith.constant 1.000000e+00 : f32
    %419 = vector.broadcast %cst_72 : f32 to vector<2x128xf32>
    %420 = arith.addf %419, %418 : vector<2x128xf32>
    %421 = arith.divf %419, %420 : vector<2x128xf32>
    %422 = vector.extract_strided_slice %406 {offsets = [0, 128], sizes = [2, 128], strides = [1, 1]} : vector<2x512xf32> to vector<2x128xf32>
    %423 = arith.negf %422 : vector<2x128xf32>
    %424 = math.exp %423 : vector<2x128xf32>
    %cst_73 = arith.constant 1.000000e+00 : f32
    %425 = vector.broadcast %cst_73 : f32 to vector<2x128xf32>
    %426 = arith.addf %425, %424 : vector<2x128xf32>
    %427 = arith.divf %425, %426 : vector<2x128xf32>
    %428 = vector.extract_strided_slice %409 {offsets = [0, 128], sizes = [2, 128], strides = [1, 1]} : vector<2x512xf32> to vector<2x128xf32>
    %429 = arith.negf %428 : vector<2x128xf32>
    %430 = math.exp %429 : vector<2x128xf32>
    %cst_74 = arith.constant 1.000000e+00 : f32
    %431 = vector.broadcast %cst_74 : f32 to vector<2x128xf32>
    %432 = arith.addf %431, %430 : vector<2x128xf32>
    %433 = arith.divf %431, %432 : vector<2x128xf32>
    %434 = vector.extract_strided_slice %406 {offsets = [0, 256], sizes = [2, 128], strides = [1, 1]} : vector<2x512xf32> to vector<2x128xf32>
    %435 = math.tanh %434 : vector<2x128xf32>
    %436 = vector.extract_strided_slice %409 {offsets = [0, 256], sizes = [2, 128], strides = [1, 1]} : vector<2x512xf32> to vector<2x128xf32>
    %437 = math.tanh %436 : vector<2x128xf32>
    %438 = vector.extract_strided_slice %406 {offsets = [0, 384], sizes = [2, 128], strides = [1, 1]} : vector<2x512xf32> to vector<2x128xf32>
    %439 = arith.negf %438 : vector<2x128xf32>
    %440 = math.exp %439 : vector<2x128xf32>
    %cst_75 = arith.constant 1.000000e+00 : f32
    %441 = vector.broadcast %cst_75 : f32 to vector<2x128xf32>
    %442 = arith.addf %441, %440 : vector<2x128xf32>
    %443 = arith.divf %441, %442 : vector<2x128xf32>
    %444 = vector.extract_strided_slice %409 {offsets = [0, 384], sizes = [2, 128], strides = [1, 1]} : vector<2x512xf32> to vector<2x128xf32>
    %445 = arith.negf %444 : vector<2x128xf32>
    %446 = math.exp %445 : vector<2x128xf32>
    %cst_76 = arith.constant 1.000000e+00 : f32
    %447 = vector.broadcast %cst_76 : f32 to vector<2x128xf32>
    %448 = arith.addf %447, %446 : vector<2x128xf32>
    %449 = arith.divf %447, %448 : vector<2x128xf32>
    %450 = arith.mulf %427, %396 : vector<2x128xf32>
    %451 = arith.mulf %415, %435 : vector<2x128xf32>
    %452 = arith.addf %450, %451 : vector<2x128xf32>
    %453 = arith.mulf %433, %399 : vector<2x128xf32>
    %454 = arith.mulf %421, %437 : vector<2x128xf32>
    %455 = arith.addf %453, %454 : vector<2x128xf32>
    %456 = math.tanh %452 : vector<2x128xf32>
    %457 = arith.mulf %443, %456 : vector<2x128xf32>
    %458 = math.tanh %455 : vector<2x128xf32>
    %459 = arith.mulf %449, %458 : vector<2x128xf32>
    %460 = tpu.concatenate %65, %459 in 1 : vector<2x128xf32>, vector<2x128xf32> -> vector<2x256xf32>
    %461 = tpu.concatenate %121, %403 in 1 : vector<2x128xf32>, vector<2x128xf32> -> vector<2x256xf32>
    %462 = tpu.concatenate %177, %347 in 1 : vector<2x128xf32>, vector<2x128xf32> -> vector<2x256xf32>
    %463 = tpu.concatenate %233, %291 in 1 : vector<2x128xf32>, vector<2x128xf32> -> vector<2x256xf32>
    %464 = tpu.concatenate %289, %235 in 1 : vector<2x128xf32>, vector<2x128xf32> -> vector<2x256xf32>
    %465 = tpu.concatenate %345, %179 in 1 : vector<2x128xf32>, vector<2x128xf32> -> vector<2x256xf32>
    %466 = tpu.concatenate %401, %123 in 1 : vector<2x128xf32>, vector<2x128xf32> -> vector<2x256xf32>
    %467 = tpu.concatenate %457, %67 in 1 : vector<2x128xf32>, vector<2x128xf32> -> vector<2x256xf32>
    %468 = tpu.concatenate %460, %461, %462, %463, %464, %465, %466, %467 in 0 : vector<2x256xf32>, vector<2x256xf32>, vector<2x256xf32>, vector<2x256xf32>, vector<2x256xf32>, vector<2x256xf32>, vector<2x256xf32>, vector<2x256xf32> -> vector<16x256xf32>
    %c0_77 = arith.constant 0 : index
    %c0_78 = arith.constant 0 : index
    %469 = vector.load %arg6[%c0_77, %c0_78] : memref<256x1024xf32, #tpu.memory_space<vmem>>, vector<256x1024xf32>
    %cst_79 = arith.constant dense<0.000000e+00> : vector<16x1024xf32>
    %470 = tpu.matmul %468, %469, %cst_79 {dimension_numbers = #tpu.dot_dimension_numbers<[1], [0], [0], [1], [0, 0, 1, 1], [], []>} : vector<16x256xf32>, vector<256x1024xf32>, vector<16x1024xf32> -> vector<16x1024xf32>
    %c0_80 = arith.constant 0 : index
    %c0_81 = arith.constant 0 : index
    %471 = vector.load %arg9[%c0_80, %c0_81] : memref<1x1024xf32, #tpu.memory_space<vmem>>, vector<1x1024xf32>
    %472 = vector.broadcast %471 : vector<1x1024xf32> to vector<16x1024xf32>
    %473 = arith.addf %470, %472 : vector<16x1024xf32>
    %c0_82 = arith.constant 0 : index
    %c0_83 = arith.constant 0 : index
    %474 = vector.load %arg7[%c0_82, %c0_83] : memref<128x512xf32, #tpu.memory_space<vmem>>, vector<128x512xf32>
    %c0_84 = arith.constant 0 : index
    %c0_85 = arith.constant 0 : index
    %475 = vector.load %arg8[%c0_84, %c0_85] : memref<128x512xf32, #tpu.memory_space<vmem>>, vector<128x512xf32>
    %cst_86 = arith.constant 0.000000e+00 : f32
    %476 = vector.broadcast %cst_86 : f32 to vector<2x128xf32>
    %cst_87 = arith.constant 0.000000e+00 : f32
    %477 = vector.broadcast %cst_87 : f32 to vector<2x128xf32>
    %cst_88 = arith.constant 0.000000e+00 : f32
    %478 = vector.broadcast %cst_88 : f32 to vector<2x128xf32>
    %cst_89 = arith.constant 0.000000e+00 : f32
    %479 = vector.broadcast %cst_89 : f32 to vector<2x128xf32>
    %480 = vector.extract_strided_slice %473 {offsets = [0, 0], sizes = [2, 512], strides = [1, 1]} : vector<16x1024xf32> to vector<2x512xf32>
    %cst_90 = arith.constant dense<0.000000e+00> : vector<2x512xf32>
    %481 = tpu.matmul %476, %474, %cst_90 {dimension_numbers = #tpu.dot_dimension_numbers<[1], [0], [0], [1], [0, 0, 1, 1], [], []>} : vector<2x128xf32>, vector<128x512xf32>, vector<2x512xf32> -> vector<2x512xf32>
    %482 = arith.addf %480, %481 : vector<2x512xf32>
    %483 = vector.extract_strided_slice %473 {offsets = [14, 512], sizes = [2, 512], strides = [1, 1]} : vector<16x1024xf32> to vector<2x512xf32>
    %cst_91 = arith.constant dense<0.000000e+00> : vector<2x512xf32>
    %484 = tpu.matmul %478, %475, %cst_91 {dimension_numbers = #tpu.dot_dimension_numbers<[1], [0], [0], [1], [0, 0, 1, 1], [], []>} : vector<2x128xf32>, vector<128x512xf32>, vector<2x512xf32> -> vector<2x512xf32>
    %485 = arith.addf %483, %484 : vector<2x512xf32>
    %486 = vector.extract_strided_slice %482 {offsets = [0, 0], sizes = [2, 128], strides = [1, 1]} : vector<2x512xf32> to vector<2x128xf32>
    %487 = arith.negf %486 : vector<2x128xf32>
    %488 = math.exp %487 : vector<2x128xf32>
    %cst_92 = arith.constant 1.000000e+00 : f32
    %489 = vector.broadcast %cst_92 : f32 to vector<2x128xf32>
    %490 = arith.addf %489, %488 : vector<2x128xf32>
    %491 = arith.divf %489, %490 : vector<2x128xf32>
    %492 = vector.extract_strided_slice %485 {offsets = [0, 0], sizes = [2, 128], strides = [1, 1]} : vector<2x512xf32> to vector<2x128xf32>
    %493 = arith.negf %492 : vector<2x128xf32>
    %494 = math.exp %493 : vector<2x128xf32>
    %cst_93 = arith.constant 1.000000e+00 : f32
    %495 = vector.broadcast %cst_93 : f32 to vector<2x128xf32>
    %496 = arith.addf %495, %494 : vector<2x128xf32>
    %497 = arith.divf %495, %496 : vector<2x128xf32>
    %498 = vector.extract_strided_slice %482 {offsets = [0, 128], sizes = [2, 128], strides = [1, 1]} : vector<2x512xf32> to vector<2x128xf32>
    %499 = arith.negf %498 : vector<2x128xf32>
    %500 = math.exp %499 : vector<2x128xf32>
    %cst_94 = arith.constant 1.000000e+00 : f32
    %501 = vector.broadcast %cst_94 : f32 to vector<2x128xf32>
    %502 = arith.addf %501, %500 : vector<2x128xf32>
    %503 = arith.divf %501, %502 : vector<2x128xf32>
    %504 = vector.extract_strided_slice %485 {offsets = [0, 128], sizes = [2, 128], strides = [1, 1]} : vector<2x512xf32> to vector<2x128xf32>
    %505 = arith.negf %504 : vector<2x128xf32>
    %506 = math.exp %505 : vector<2x128xf32>
    %cst_95 = arith.constant 1.000000e+00 : f32
    %507 = vector.broadcast %cst_95 : f32 to vector<2x128xf32>
    %508 = arith.addf %507, %506 : vector<2x128xf32>
    %509 = arith.divf %507, %508 : vector<2x128xf32>
    %510 = vector.extract_strided_slice %482 {offsets = [0, 256], sizes = [2, 128], strides = [1, 1]} : vector<2x512xf32> to vector<2x128xf32>
    %511 = math.tanh %510 : vector<2x128xf32>
    %512 = vector.extract_strided_slice %485 {offsets = [0, 256], sizes = [2, 128], strides = [1, 1]} : vector<2x512xf32> to vector<2x128xf32>
    %513 = math.tanh %512 : vector<2x128xf32>
    %514 = vector.extract_strided_slice %482 {offsets = [0, 384], sizes = [2, 128], strides = [1, 1]} : vector<2x512xf32> to vector<2x128xf32>
    %515 = arith.negf %514 : vector<2x128xf32>
    %516 = math.exp %515 : vector<2x128xf32>
    %cst_96 = arith.constant 1.000000e+00 : f32
    %517 = vector.broadcast %cst_96 : f32 to vector<2x128xf32>
    %518 = arith.addf %517, %516 : vector<2x128xf32>
    %519 = arith.divf %517, %518 : vector<2x128xf32>
    %520 = vector.extract_strided_slice %485 {offsets = [0, 384], sizes = [2, 128], strides = [1, 1]} : vector<2x512xf32> to vector<2x128xf32>
    %521 = arith.negf %520 : vector<2x128xf32>
    %522 = math.exp %521 : vector<2x128xf32>
    %cst_97 = arith.constant 1.000000e+00 : f32
    %523 = vector.broadcast %cst_97 : f32 to vector<2x128xf32>
    %524 = arith.addf %523, %522 : vector<2x128xf32>
    %525 = arith.divf %523, %524 : vector<2x128xf32>
    %526 = arith.mulf %503, %477 : vector<2x128xf32>
    %527 = arith.mulf %491, %511 : vector<2x128xf32>
    %528 = arith.addf %526, %527 : vector<2x128xf32>
    %529 = arith.mulf %509, %479 : vector<2x128xf32>
    %530 = arith.mulf %497, %513 : vector<2x128xf32>
    %531 = arith.addf %529, %530 : vector<2x128xf32>
    %532 = math.tanh %528 : vector<2x128xf32>
    %533 = arith.mulf %519, %532 : vector<2x128xf32>
    %534 = math.tanh %531 : vector<2x128xf32>
    %535 = arith.mulf %525, %534 : vector<2x128xf32>
    %536 = vector.extract_strided_slice %473 {offsets = [2, 0], sizes = [2, 512], strides = [1, 1]} : vector<16x1024xf32> to vector<2x512xf32>
    %cst_98 = arith.constant dense<0.000000e+00> : vector<2x512xf32>
    %537 = tpu.matmul %533, %474, %cst_98 {dimension_numbers = #tpu.dot_dimension_numbers<[1], [0], [0], [1], [0, 0, 1, 1], [], []>} : vector<2x128xf32>, vector<128x512xf32>, vector<2x512xf32> -> vector<2x512xf32>
    %538 = arith.addf %536, %537 : vector<2x512xf32>
    %539 = vector.extract_strided_slice %473 {offsets = [12, 512], sizes = [2, 512], strides = [1, 1]} : vector<16x1024xf32> to vector<2x512xf32>
    %cst_99 = arith.constant dense<0.000000e+00> : vector<2x512xf32>
    %540 = tpu.matmul %535, %475, %cst_99 {dimension_numbers = #tpu.dot_dimension_numbers<[1], [0], [0], [1], [0, 0, 1, 1], [], []>} : vector<2x128xf32>, vector<128x512xf32>, vector<2x512xf32> -> vector<2x512xf32>
    %541 = arith.addf %539, %540 : vector<2x512xf32>
    %542 = vector.extract_strided_slice %538 {offsets = [0, 0], sizes = [2, 128], strides = [1, 1]} : vector<2x512xf32> to vector<2x128xf32>
    %543 = arith.negf %542 : vector<2x128xf32>
    %544 = math.exp %543 : vector<2x128xf32>
    %cst_100 = arith.constant 1.000000e+00 : f32
    %545 = vector.broadcast %cst_100 : f32 to vector<2x128xf32>
    %546 = arith.addf %545, %544 : vector<2x128xf32>
    %547 = arith.divf %545, %546 : vector<2x128xf32>
    %548 = vector.extract_strided_slice %541 {offsets = [0, 0], sizes = [2, 128], strides = [1, 1]} : vector<2x512xf32> to vector<2x128xf32>
    %549 = arith.negf %548 : vector<2x128xf32>
    %550 = math.exp %549 : vector<2x128xf32>
    %cst_101 = arith.constant 1.000000e+00 : f32
    %551 = vector.broadcast %cst_101 : f32 to vector<2x128xf32>
    %552 = arith.addf %551, %550 : vector<2x128xf32>
    %553 = arith.divf %551, %552 : vector<2x128xf32>
    %554 = vector.extract_strided_slice %538 {offsets = [0, 128], sizes = [2, 128], strides = [1, 1]} : vector<2x512xf32> to vector<2x128xf32>
    %555 = arith.negf %554 : vector<2x128xf32>
    %556 = math.exp %555 : vector<2x128xf32>
    %cst_102 = arith.constant 1.000000e+00 : f32
    %557 = vector.broadcast %cst_102 : f32 to vector<2x128xf32>
    %558 = arith.addf %557, %556 : vector<2x128xf32>
    %559 = arith.divf %557, %558 : vector<2x128xf32>
    %560 = vector.extract_strided_slice %541 {offsets = [0, 128], sizes = [2, 128], strides = [1, 1]} : vector<2x512xf32> to vector<2x128xf32>
    %561 = arith.negf %560 : vector<2x128xf32>
    %562 = math.exp %561 : vector<2x128xf32>
    %cst_103 = arith.constant 1.000000e+00 : f32
    %563 = vector.broadcast %cst_103 : f32 to vector<2x128xf32>
    %564 = arith.addf %563, %562 : vector<2x128xf32>
    %565 = arith.divf %563, %564 : vector<2x128xf32>
    %566 = vector.extract_strided_slice %538 {offsets = [0, 256], sizes = [2, 128], strides = [1, 1]} : vector<2x512xf32> to vector<2x128xf32>
    %567 = math.tanh %566 : vector<2x128xf32>
    %568 = vector.extract_strided_slice %541 {offsets = [0, 256], sizes = [2, 128], strides = [1, 1]} : vector<2x512xf32> to vector<2x128xf32>
    %569 = math.tanh %568 : vector<2x128xf32>
    %570 = vector.extract_strided_slice %538 {offsets = [0, 384], sizes = [2, 128], strides = [1, 1]} : vector<2x512xf32> to vector<2x128xf32>
    %571 = arith.negf %570 : vector<2x128xf32>
    %572 = math.exp %571 : vector<2x128xf32>
    %cst_104 = arith.constant 1.000000e+00 : f32
    %573 = vector.broadcast %cst_104 : f32 to vector<2x128xf32>
    %574 = arith.addf %573, %572 : vector<2x128xf32>
    %575 = arith.divf %573, %574 : vector<2x128xf32>
    %576 = vector.extract_strided_slice %541 {offsets = [0, 384], sizes = [2, 128], strides = [1, 1]} : vector<2x512xf32> to vector<2x128xf32>
    %577 = arith.negf %576 : vector<2x128xf32>
    %578 = math.exp %577 : vector<2x128xf32>
    %cst_105 = arith.constant 1.000000e+00 : f32
    %579 = vector.broadcast %cst_105 : f32 to vector<2x128xf32>
    %580 = arith.addf %579, %578 : vector<2x128xf32>
    %581 = arith.divf %579, %580 : vector<2x128xf32>
    %582 = arith.mulf %559, %528 : vector<2x128xf32>
    %583 = arith.mulf %547, %567 : vector<2x128xf32>
    %584 = arith.addf %582, %583 : vector<2x128xf32>
    %585 = arith.mulf %565, %531 : vector<2x128xf32>
    %586 = arith.mulf %553, %569 : vector<2x128xf32>
    %587 = arith.addf %585, %586 : vector<2x128xf32>
    %588 = math.tanh %584 : vector<2x128xf32>
    %589 = arith.mulf %575, %588 : vector<2x128xf32>
    %590 = math.tanh %587 : vector<2x128xf32>
    %591 = arith.mulf %581, %590 : vector<2x128xf32>
    %592 = vector.extract_strided_slice %473 {offsets = [4, 0], sizes = [2, 512], strides = [1, 1]} : vector<16x1024xf32> to vector<2x512xf32>
    %cst_106 = arith.constant dense<0.000000e+00> : vector<2x512xf32>
    %593 = tpu.matmul %589, %474, %cst_106 {dimension_numbers = #tpu.dot_dimension_numbers<[1], [0], [0], [1], [0, 0, 1, 1], [], []>} : vector<2x128xf32>, vector<128x512xf32>, vector<2x512xf32> -> vector<2x512xf32>
    %594 = arith.addf %592, %593 : vector<2x512xf32>
    %595 = vector.extract_strided_slice %473 {offsets = [10, 512], sizes = [2, 512], strides = [1, 1]} : vector<16x1024xf32> to vector<2x512xf32>
    %cst_107 = arith.constant dense<0.000000e+00> : vector<2x512xf32>
    %596 = tpu.matmul %591, %475, %cst_107 {dimension_numbers = #tpu.dot_dimension_numbers<[1], [0], [0], [1], [0, 0, 1, 1], [], []>} : vector<2x128xf32>, vector<128x512xf32>, vector<2x512xf32> -> vector<2x512xf32>
    %597 = arith.addf %595, %596 : vector<2x512xf32>
    %598 = vector.extract_strided_slice %594 {offsets = [0, 0], sizes = [2, 128], strides = [1, 1]} : vector<2x512xf32> to vector<2x128xf32>
    %599 = arith.negf %598 : vector<2x128xf32>
    %600 = math.exp %599 : vector<2x128xf32>
    %cst_108 = arith.constant 1.000000e+00 : f32
    %601 = vector.broadcast %cst_108 : f32 to vector<2x128xf32>
    %602 = arith.addf %601, %600 : vector<2x128xf32>
    %603 = arith.divf %601, %602 : vector<2x128xf32>
    %604 = vector.extract_strided_slice %597 {offsets = [0, 0], sizes = [2, 128], strides = [1, 1]} : vector<2x512xf32> to vector<2x128xf32>
    %605 = arith.negf %604 : vector<2x128xf32>
    %606 = math.exp %605 : vector<2x128xf32>
    %cst_109 = arith.constant 1.000000e+00 : f32
    %607 = vector.broadcast %cst_109 : f32 to vector<2x128xf32>
    %608 = arith.addf %607, %606 : vector<2x128xf32>
    %609 = arith.divf %607, %608 : vector<2x128xf32>
    %610 = vector.extract_strided_slice %594 {offsets = [0, 128], sizes = [2, 128], strides = [1, 1]} : vector<2x512xf32> to vector<2x128xf32>
    %611 = arith.negf %610 : vector<2x128xf32>
    %612 = math.exp %611 : vector<2x128xf32>
    %cst_110 = arith.constant 1.000000e+00 : f32
    %613 = vector.broadcast %cst_110 : f32 to vector<2x128xf32>
    %614 = arith.addf %613, %612 : vector<2x128xf32>
    %615 = arith.divf %613, %614 : vector<2x128xf32>
    %616 = vector.extract_strided_slice %597 {offsets = [0, 128], sizes = [2, 128], strides = [1, 1]} : vector<2x512xf32> to vector<2x128xf32>
    %617 = arith.negf %616 : vector<2x128xf32>
    %618 = math.exp %617 : vector<2x128xf32>
    %cst_111 = arith.constant 1.000000e+00 : f32
    %619 = vector.broadcast %cst_111 : f32 to vector<2x128xf32>
    %620 = arith.addf %619, %618 : vector<2x128xf32>
    %621 = arith.divf %619, %620 : vector<2x128xf32>
    %622 = vector.extract_strided_slice %594 {offsets = [0, 256], sizes = [2, 128], strides = [1, 1]} : vector<2x512xf32> to vector<2x128xf32>
    %623 = math.tanh %622 : vector<2x128xf32>
    %624 = vector.extract_strided_slice %597 {offsets = [0, 256], sizes = [2, 128], strides = [1, 1]} : vector<2x512xf32> to vector<2x128xf32>
    %625 = math.tanh %624 : vector<2x128xf32>
    %626 = vector.extract_strided_slice %594 {offsets = [0, 384], sizes = [2, 128], strides = [1, 1]} : vector<2x512xf32> to vector<2x128xf32>
    %627 = arith.negf %626 : vector<2x128xf32>
    %628 = math.exp %627 : vector<2x128xf32>
    %cst_112 = arith.constant 1.000000e+00 : f32
    %629 = vector.broadcast %cst_112 : f32 to vector<2x128xf32>
    %630 = arith.addf %629, %628 : vector<2x128xf32>
    %631 = arith.divf %629, %630 : vector<2x128xf32>
    %632 = vector.extract_strided_slice %597 {offsets = [0, 384], sizes = [2, 128], strides = [1, 1]} : vector<2x512xf32> to vector<2x128xf32>
    %633 = arith.negf %632 : vector<2x128xf32>
    %634 = math.exp %633 : vector<2x128xf32>
    %cst_113 = arith.constant 1.000000e+00 : f32
    %635 = vector.broadcast %cst_113 : f32 to vector<2x128xf32>
    %636 = arith.addf %635, %634 : vector<2x128xf32>
    %637 = arith.divf %635, %636 : vector<2x128xf32>
    %638 = arith.mulf %615, %584 : vector<2x128xf32>
    %639 = arith.mulf %603, %623 : vector<2x128xf32>
    %640 = arith.addf %638, %639 : vector<2x128xf32>
    %641 = arith.mulf %621, %587 : vector<2x128xf32>
    %642 = arith.mulf %609, %625 : vector<2x128xf32>
    %643 = arith.addf %641, %642 : vector<2x128xf32>
    %644 = math.tanh %640 : vector<2x128xf32>
    %645 = arith.mulf %631, %644 : vector<2x128xf32>
    %646 = math.tanh %643 : vector<2x128xf32>
    %647 = arith.mulf %637, %646 : vector<2x128xf32>
    %648 = vector.extract_strided_slice %473 {offsets = [6, 0], sizes = [2, 512], strides = [1, 1]} : vector<16x1024xf32> to vector<2x512xf32>
    %cst_114 = arith.constant dense<0.000000e+00> : vector<2x512xf32>
    %649 = tpu.matmul %645, %474, %cst_114 {dimension_numbers = #tpu.dot_dimension_numbers<[1], [0], [0], [1], [0, 0, 1, 1], [], []>} : vector<2x128xf32>, vector<128x512xf32>, vector<2x512xf32> -> vector<2x512xf32>
    %650 = arith.addf %648, %649 : vector<2x512xf32>
    %651 = vector.extract_strided_slice %473 {offsets = [8, 512], sizes = [2, 512], strides = [1, 1]} : vector<16x1024xf32> to vector<2x512xf32>
    %cst_115 = arith.constant dense<0.000000e+00> : vector<2x512xf32>
    %652 = tpu.matmul %647, %475, %cst_115 {dimension_numbers = #tpu.dot_dimension_numbers<[1], [0], [0], [1], [0, 0, 1, 1], [], []>} : vector<2x128xf32>, vector<128x512xf32>, vector<2x512xf32> -> vector<2x512xf32>
    %653 = arith.addf %651, %652 : vector<2x512xf32>
    %654 = vector.extract_strided_slice %650 {offsets = [0, 0], sizes = [2, 128], strides = [1, 1]} : vector<2x512xf32> to vector<2x128xf32>
    %655 = arith.negf %654 : vector<2x128xf32>
    %656 = math.exp %655 : vector<2x128xf32>
    %cst_116 = arith.constant 1.000000e+00 : f32
    %657 = vector.broadcast %cst_116 : f32 to vector<2x128xf32>
    %658 = arith.addf %657, %656 : vector<2x128xf32>
    %659 = arith.divf %657, %658 : vector<2x128xf32>
    %660 = vector.extract_strided_slice %653 {offsets = [0, 0], sizes = [2, 128], strides = [1, 1]} : vector<2x512xf32> to vector<2x128xf32>
    %661 = arith.negf %660 : vector<2x128xf32>
    %662 = math.exp %661 : vector<2x128xf32>
    %cst_117 = arith.constant 1.000000e+00 : f32
    %663 = vector.broadcast %cst_117 : f32 to vector<2x128xf32>
    %664 = arith.addf %663, %662 : vector<2x128xf32>
    %665 = arith.divf %663, %664 : vector<2x128xf32>
    %666 = vector.extract_strided_slice %650 {offsets = [0, 128], sizes = [2, 128], strides = [1, 1]} : vector<2x512xf32> to vector<2x128xf32>
    %667 = arith.negf %666 : vector<2x128xf32>
    %668 = math.exp %667 : vector<2x128xf32>
    %cst_118 = arith.constant 1.000000e+00 : f32
    %669 = vector.broadcast %cst_118 : f32 to vector<2x128xf32>
    %670 = arith.addf %669, %668 : vector<2x128xf32>
    %671 = arith.divf %669, %670 : vector<2x128xf32>
    %672 = vector.extract_strided_slice %653 {offsets = [0, 128], sizes = [2, 128], strides = [1, 1]} : vector<2x512xf32> to vector<2x128xf32>
    %673 = arith.negf %672 : vector<2x128xf32>
    %674 = math.exp %673 : vector<2x128xf32>
    %cst_119 = arith.constant 1.000000e+00 : f32
    %675 = vector.broadcast %cst_119 : f32 to vector<2x128xf32>
    %676 = arith.addf %675, %674 : vector<2x128xf32>
    %677 = arith.divf %675, %676 : vector<2x128xf32>
    %678 = vector.extract_strided_slice %650 {offsets = [0, 256], sizes = [2, 128], strides = [1, 1]} : vector<2x512xf32> to vector<2x128xf32>
    %679 = math.tanh %678 : vector<2x128xf32>
    %680 = vector.extract_strided_slice %653 {offsets = [0, 256], sizes = [2, 128], strides = [1, 1]} : vector<2x512xf32> to vector<2x128xf32>
    %681 = math.tanh %680 : vector<2x128xf32>
    %682 = vector.extract_strided_slice %650 {offsets = [0, 384], sizes = [2, 128], strides = [1, 1]} : vector<2x512xf32> to vector<2x128xf32>
    %683 = arith.negf %682 : vector<2x128xf32>
    %684 = math.exp %683 : vector<2x128xf32>
    %cst_120 = arith.constant 1.000000e+00 : f32
    %685 = vector.broadcast %cst_120 : f32 to vector<2x128xf32>
    %686 = arith.addf %685, %684 : vector<2x128xf32>
    %687 = arith.divf %685, %686 : vector<2x128xf32>
    %688 = vector.extract_strided_slice %653 {offsets = [0, 384], sizes = [2, 128], strides = [1, 1]} : vector<2x512xf32> to vector<2x128xf32>
    %689 = arith.negf %688 : vector<2x128xf32>
    %690 = math.exp %689 : vector<2x128xf32>
    %cst_121 = arith.constant 1.000000e+00 : f32
    %691 = vector.broadcast %cst_121 : f32 to vector<2x128xf32>
    %692 = arith.addf %691, %690 : vector<2x128xf32>
    %693 = arith.divf %691, %692 : vector<2x128xf32>
    %694 = arith.mulf %671, %640 : vector<2x128xf32>
    %695 = arith.mulf %659, %679 : vector<2x128xf32>
    %696 = arith.addf %694, %695 : vector<2x128xf32>
    %697 = arith.mulf %677, %643 : vector<2x128xf32>
    %698 = arith.mulf %665, %681 : vector<2x128xf32>
    %699 = arith.addf %697, %698 : vector<2x128xf32>
    %700 = math.tanh %696 : vector<2x128xf32>
    %701 = arith.mulf %687, %700 : vector<2x128xf32>
    %702 = math.tanh %699 : vector<2x128xf32>
    %703 = arith.mulf %693, %702 : vector<2x128xf32>
    %704 = vector.extract_strided_slice %473 {offsets = [8, 0], sizes = [2, 512], strides = [1, 1]} : vector<16x1024xf32> to vector<2x512xf32>
    %cst_122 = arith.constant dense<0.000000e+00> : vector<2x512xf32>
    %705 = tpu.matmul %701, %474, %cst_122 {dimension_numbers = #tpu.dot_dimension_numbers<[1], [0], [0], [1], [0, 0, 1, 1], [], []>} : vector<2x128xf32>, vector<128x512xf32>, vector<2x512xf32> -> vector<2x512xf32>
    %706 = arith.addf %704, %705 : vector<2x512xf32>
    %707 = vector.extract_strided_slice %473 {offsets = [6, 512], sizes = [2, 512], strides = [1, 1]} : vector<16x1024xf32> to vector<2x512xf32>
    %cst_123 = arith.constant dense<0.000000e+00> : vector<2x512xf32>
    %708 = tpu.matmul %703, %475, %cst_123 {dimension_numbers = #tpu.dot_dimension_numbers<[1], [0], [0], [1], [0, 0, 1, 1], [], []>} : vector<2x128xf32>, vector<128x512xf32>, vector<2x512xf32> -> vector<2x512xf32>
    %709 = arith.addf %707, %708 : vector<2x512xf32>
    %710 = vector.extract_strided_slice %706 {offsets = [0, 0], sizes = [2, 128], strides = [1, 1]} : vector<2x512xf32> to vector<2x128xf32>
    %711 = arith.negf %710 : vector<2x128xf32>
    %712 = math.exp %711 : vector<2x128xf32>
    %cst_124 = arith.constant 1.000000e+00 : f32
    %713 = vector.broadcast %cst_124 : f32 to vector<2x128xf32>
    %714 = arith.addf %713, %712 : vector<2x128xf32>
    %715 = arith.divf %713, %714 : vector<2x128xf32>
    %716 = vector.extract_strided_slice %709 {offsets = [0, 0], sizes = [2, 128], strides = [1, 1]} : vector<2x512xf32> to vector<2x128xf32>
    %717 = arith.negf %716 : vector<2x128xf32>
    %718 = math.exp %717 : vector<2x128xf32>
    %cst_125 = arith.constant 1.000000e+00 : f32
    %719 = vector.broadcast %cst_125 : f32 to vector<2x128xf32>
    %720 = arith.addf %719, %718 : vector<2x128xf32>
    %721 = arith.divf %719, %720 : vector<2x128xf32>
    %722 = vector.extract_strided_slice %706 {offsets = [0, 128], sizes = [2, 128], strides = [1, 1]} : vector<2x512xf32> to vector<2x128xf32>
    %723 = arith.negf %722 : vector<2x128xf32>
    %724 = math.exp %723 : vector<2x128xf32>
    %cst_126 = arith.constant 1.000000e+00 : f32
    %725 = vector.broadcast %cst_126 : f32 to vector<2x128xf32>
    %726 = arith.addf %725, %724 : vector<2x128xf32>
    %727 = arith.divf %725, %726 : vector<2x128xf32>
    %728 = vector.extract_strided_slice %709 {offsets = [0, 128], sizes = [2, 128], strides = [1, 1]} : vector<2x512xf32> to vector<2x128xf32>
    %729 = arith.negf %728 : vector<2x128xf32>
    %730 = math.exp %729 : vector<2x128xf32>
    %cst_127 = arith.constant 1.000000e+00 : f32
    %731 = vector.broadcast %cst_127 : f32 to vector<2x128xf32>
    %732 = arith.addf %731, %730 : vector<2x128xf32>
    %733 = arith.divf %731, %732 : vector<2x128xf32>
    %734 = vector.extract_strided_slice %706 {offsets = [0, 256], sizes = [2, 128], strides = [1, 1]} : vector<2x512xf32> to vector<2x128xf32>
    %735 = math.tanh %734 : vector<2x128xf32>
    %736 = vector.extract_strided_slice %709 {offsets = [0, 256], sizes = [2, 128], strides = [1, 1]} : vector<2x512xf32> to vector<2x128xf32>
    %737 = math.tanh %736 : vector<2x128xf32>
    %738 = vector.extract_strided_slice %706 {offsets = [0, 384], sizes = [2, 128], strides = [1, 1]} : vector<2x512xf32> to vector<2x128xf32>
    %739 = arith.negf %738 : vector<2x128xf32>
    %740 = math.exp %739 : vector<2x128xf32>
    %cst_128 = arith.constant 1.000000e+00 : f32
    %741 = vector.broadcast %cst_128 : f32 to vector<2x128xf32>
    %742 = arith.addf %741, %740 : vector<2x128xf32>
    %743 = arith.divf %741, %742 : vector<2x128xf32>
    %744 = vector.extract_strided_slice %709 {offsets = [0, 384], sizes = [2, 128], strides = [1, 1]} : vector<2x512xf32> to vector<2x128xf32>
    %745 = arith.negf %744 : vector<2x128xf32>
    %746 = math.exp %745 : vector<2x128xf32>
    %cst_129 = arith.constant 1.000000e+00 : f32
    %747 = vector.broadcast %cst_129 : f32 to vector<2x128xf32>
    %748 = arith.addf %747, %746 : vector<2x128xf32>
    %749 = arith.divf %747, %748 : vector<2x128xf32>
    %750 = arith.mulf %727, %696 : vector<2x128xf32>
    %751 = arith.mulf %715, %735 : vector<2x128xf32>
    %752 = arith.addf %750, %751 : vector<2x128xf32>
    %753 = arith.mulf %733, %699 : vector<2x128xf32>
    %754 = arith.mulf %721, %737 : vector<2x128xf32>
    %755 = arith.addf %753, %754 : vector<2x128xf32>
    %756 = math.tanh %752 : vector<2x128xf32>
    %757 = arith.mulf %743, %756 : vector<2x128xf32>
    %758 = math.tanh %755 : vector<2x128xf32>
    %759 = arith.mulf %749, %758 : vector<2x128xf32>
    %760 = vector.extract_strided_slice %473 {offsets = [10, 0], sizes = [2, 512], strides = [1, 1]} : vector<16x1024xf32> to vector<2x512xf32>
    %cst_130 = arith.constant dense<0.000000e+00> : vector<2x512xf32>
    %761 = tpu.matmul %757, %474, %cst_130 {dimension_numbers = #tpu.dot_dimension_numbers<[1], [0], [0], [1], [0, 0, 1, 1], [], []>} : vector<2x128xf32>, vector<128x512xf32>, vector<2x512xf32> -> vector<2x512xf32>
    %762 = arith.addf %760, %761 : vector<2x512xf32>
    %763 = vector.extract_strided_slice %473 {offsets = [4, 512], sizes = [2, 512], strides = [1, 1]} : vector<16x1024xf32> to vector<2x512xf32>
    %cst_131 = arith.constant dense<0.000000e+00> : vector<2x512xf32>
    %764 = tpu.matmul %759, %475, %cst_131 {dimension_numbers = #tpu.dot_dimension_numbers<[1], [0], [0], [1], [0, 0, 1, 1], [], []>} : vector<2x128xf32>, vector<128x512xf32>, vector<2x512xf32> -> vector<2x512xf32>
    %765 = arith.addf %763, %764 : vector<2x512xf32>
    %766 = vector.extract_strided_slice %762 {offsets = [0, 0], sizes = [2, 128], strides = [1, 1]} : vector<2x512xf32> to vector<2x128xf32>
    %767 = arith.negf %766 : vector<2x128xf32>
    %768 = math.exp %767 : vector<2x128xf32>
    %cst_132 = arith.constant 1.000000e+00 : f32
    %769 = vector.broadcast %cst_132 : f32 to vector<2x128xf32>
    %770 = arith.addf %769, %768 : vector<2x128xf32>
    %771 = arith.divf %769, %770 : vector<2x128xf32>
    %772 = vector.extract_strided_slice %765 {offsets = [0, 0], sizes = [2, 128], strides = [1, 1]} : vector<2x512xf32> to vector<2x128xf32>
    %773 = arith.negf %772 : vector<2x128xf32>
    %774 = math.exp %773 : vector<2x128xf32>
    %cst_133 = arith.constant 1.000000e+00 : f32
    %775 = vector.broadcast %cst_133 : f32 to vector<2x128xf32>
    %776 = arith.addf %775, %774 : vector<2x128xf32>
    %777 = arith.divf %775, %776 : vector<2x128xf32>
    %778 = vector.extract_strided_slice %762 {offsets = [0, 128], sizes = [2, 128], strides = [1, 1]} : vector<2x512xf32> to vector<2x128xf32>
    %779 = arith.negf %778 : vector<2x128xf32>
    %780 = math.exp %779 : vector<2x128xf32>
    %cst_134 = arith.constant 1.000000e+00 : f32
    %781 = vector.broadcast %cst_134 : f32 to vector<2x128xf32>
    %782 = arith.addf %781, %780 : vector<2x128xf32>
    %783 = arith.divf %781, %782 : vector<2x128xf32>
    %784 = vector.extract_strided_slice %765 {offsets = [0, 128], sizes = [2, 128], strides = [1, 1]} : vector<2x512xf32> to vector<2x128xf32>
    %785 = arith.negf %784 : vector<2x128xf32>
    %786 = math.exp %785 : vector<2x128xf32>
    %cst_135 = arith.constant 1.000000e+00 : f32
    %787 = vector.broadcast %cst_135 : f32 to vector<2x128xf32>
    %788 = arith.addf %787, %786 : vector<2x128xf32>
    %789 = arith.divf %787, %788 : vector<2x128xf32>
    %790 = vector.extract_strided_slice %762 {offsets = [0, 256], sizes = [2, 128], strides = [1, 1]} : vector<2x512xf32> to vector<2x128xf32>
    %791 = math.tanh %790 : vector<2x128xf32>
    %792 = vector.extract_strided_slice %765 {offsets = [0, 256], sizes = [2, 128], strides = [1, 1]} : vector<2x512xf32> to vector<2x128xf32>
    %793 = math.tanh %792 : vector<2x128xf32>
    %794 = vector.extract_strided_slice %762 {offsets = [0, 384], sizes = [2, 128], strides = [1, 1]} : vector<2x512xf32> to vector<2x128xf32>
    %795 = arith.negf %794 : vector<2x128xf32>
    %796 = math.exp %795 : vector<2x128xf32>
    %cst_136 = arith.constant 1.000000e+00 : f32
    %797 = vector.broadcast %cst_136 : f32 to vector<2x128xf32>
    %798 = arith.addf %797, %796 : vector<2x128xf32>
    %799 = arith.divf %797, %798 : vector<2x128xf32>
    %800 = vector.extract_strided_slice %765 {offsets = [0, 384], sizes = [2, 128], strides = [1, 1]} : vector<2x512xf32> to vector<2x128xf32>
    %801 = arith.negf %800 : vector<2x128xf32>
    %802 = math.exp %801 : vector<2x128xf32>
    %cst_137 = arith.constant 1.000000e+00 : f32
    %803 = vector.broadcast %cst_137 : f32 to vector<2x128xf32>
    %804 = arith.addf %803, %802 : vector<2x128xf32>
    %805 = arith.divf %803, %804 : vector<2x128xf32>
    %806 = arith.mulf %783, %752 : vector<2x128xf32>
    %807 = arith.mulf %771, %791 : vector<2x128xf32>
    %808 = arith.addf %806, %807 : vector<2x128xf32>
    %809 = arith.mulf %789, %755 : vector<2x128xf32>
    %810 = arith.mulf %777, %793 : vector<2x128xf32>
    %811 = arith.addf %809, %810 : vector<2x128xf32>
    %812 = math.tanh %808 : vector<2x128xf32>
    %813 = arith.mulf %799, %812 : vector<2x128xf32>
    %814 = math.tanh %811 : vector<2x128xf32>
    %815 = arith.mulf %805, %814 : vector<2x128xf32>
    %816 = vector.extract_strided_slice %473 {offsets = [12, 0], sizes = [2, 512], strides = [1, 1]} : vector<16x1024xf32> to vector<2x512xf32>
    %cst_138 = arith.constant dense<0.000000e+00> : vector<2x512xf32>
    %817 = tpu.matmul %813, %474, %cst_138 {dimension_numbers = #tpu.dot_dimension_numbers<[1], [0], [0], [1], [0, 0, 1, 1], [], []>} : vector<2x128xf32>, vector<128x512xf32>, vector<2x512xf32> -> vector<2x512xf32>
    %818 = arith.addf %816, %817 : vector<2x512xf32>
    %819 = vector.extract_strided_slice %473 {offsets = [2, 512], sizes = [2, 512], strides = [1, 1]} : vector<16x1024xf32> to vector<2x512xf32>
    %cst_139 = arith.constant dense<0.000000e+00> : vector<2x512xf32>
    %820 = tpu.matmul %815, %475, %cst_139 {dimension_numbers = #tpu.dot_dimension_numbers<[1], [0], [0], [1], [0, 0, 1, 1], [], []>} : vector<2x128xf32>, vector<128x512xf32>, vector<2x512xf32> -> vector<2x512xf32>
    %821 = arith.addf %819, %820 : vector<2x512xf32>
    %822 = vector.extract_strided_slice %818 {offsets = [0, 0], sizes = [2, 128], strides = [1, 1]} : vector<2x512xf32> to vector<2x128xf32>
    %823 = arith.negf %822 : vector<2x128xf32>
    %824 = math.exp %823 : vector<2x128xf32>
    %cst_140 = arith.constant 1.000000e+00 : f32
    %825 = vector.broadcast %cst_140 : f32 to vector<2x128xf32>
    %826 = arith.addf %825, %824 : vector<2x128xf32>
    %827 = arith.divf %825, %826 : vector<2x128xf32>
    %828 = vector.extract_strided_slice %821 {offsets = [0, 0], sizes = [2, 128], strides = [1, 1]} : vector<2x512xf32> to vector<2x128xf32>
    %829 = arith.negf %828 : vector<2x128xf32>
    %830 = math.exp %829 : vector<2x128xf32>
    %cst_141 = arith.constant 1.000000e+00 : f32
    %831 = vector.broadcast %cst_141 : f32 to vector<2x128xf32>
    %832 = arith.addf %831, %830 : vector<2x128xf32>
    %833 = arith.divf %831, %832 : vector<2x128xf32>
    %834 = vector.extract_strided_slice %818 {offsets = [0, 128], sizes = [2, 128], strides = [1, 1]} : vector<2x512xf32> to vector<2x128xf32>
    %835 = arith.negf %834 : vector<2x128xf32>
    %836 = math.exp %835 : vector<2x128xf32>
    %cst_142 = arith.constant 1.000000e+00 : f32
    %837 = vector.broadcast %cst_142 : f32 to vector<2x128xf32>
    %838 = arith.addf %837, %836 : vector<2x128xf32>
    %839 = arith.divf %837, %838 : vector<2x128xf32>
    %840 = vector.extract_strided_slice %821 {offsets = [0, 128], sizes = [2, 128], strides = [1, 1]} : vector<2x512xf32> to vector<2x128xf32>
    %841 = arith.negf %840 : vector<2x128xf32>
    %842 = math.exp %841 : vector<2x128xf32>
    %cst_143 = arith.constant 1.000000e+00 : f32
    %843 = vector.broadcast %cst_143 : f32 to vector<2x128xf32>
    %844 = arith.addf %843, %842 : vector<2x128xf32>
    %845 = arith.divf %843, %844 : vector<2x128xf32>
    %846 = vector.extract_strided_slice %818 {offsets = [0, 256], sizes = [2, 128], strides = [1, 1]} : vector<2x512xf32> to vector<2x128xf32>
    %847 = math.tanh %846 : vector<2x128xf32>
    %848 = vector.extract_strided_slice %821 {offsets = [0, 256], sizes = [2, 128], strides = [1, 1]} : vector<2x512xf32> to vector<2x128xf32>
    %849 = math.tanh %848 : vector<2x128xf32>
    %850 = vector.extract_strided_slice %818 {offsets = [0, 384], sizes = [2, 128], strides = [1, 1]} : vector<2x512xf32> to vector<2x128xf32>
    %851 = arith.negf %850 : vector<2x128xf32>
    %852 = math.exp %851 : vector<2x128xf32>
    %cst_144 = arith.constant 1.000000e+00 : f32
    %853 = vector.broadcast %cst_144 : f32 to vector<2x128xf32>
    %854 = arith.addf %853, %852 : vector<2x128xf32>
    %855 = arith.divf %853, %854 : vector<2x128xf32>
    %856 = vector.extract_strided_slice %821 {offsets = [0, 384], sizes = [2, 128], strides = [1, 1]} : vector<2x512xf32> to vector<2x128xf32>
    %857 = arith.negf %856 : vector<2x128xf32>
    %858 = math.exp %857 : vector<2x128xf32>
    %cst_145 = arith.constant 1.000000e+00 : f32
    %859 = vector.broadcast %cst_145 : f32 to vector<2x128xf32>
    %860 = arith.addf %859, %858 : vector<2x128xf32>
    %861 = arith.divf %859, %860 : vector<2x128xf32>
    %862 = arith.mulf %839, %808 : vector<2x128xf32>
    %863 = arith.mulf %827, %847 : vector<2x128xf32>
    %864 = arith.addf %862, %863 : vector<2x128xf32>
    %865 = arith.mulf %845, %811 : vector<2x128xf32>
    %866 = arith.mulf %833, %849 : vector<2x128xf32>
    %867 = arith.addf %865, %866 : vector<2x128xf32>
    %868 = math.tanh %864 : vector<2x128xf32>
    %869 = arith.mulf %855, %868 : vector<2x128xf32>
    %870 = math.tanh %867 : vector<2x128xf32>
    %871 = arith.mulf %861, %870 : vector<2x128xf32>
    %872 = vector.extract_strided_slice %473 {offsets = [14, 0], sizes = [2, 512], strides = [1, 1]} : vector<16x1024xf32> to vector<2x512xf32>
    %cst_146 = arith.constant dense<0.000000e+00> : vector<2x512xf32>
    %873 = tpu.matmul %869, %474, %cst_146 {dimension_numbers = #tpu.dot_dimension_numbers<[1], [0], [0], [1], [0, 0, 1, 1], [], []>} : vector<2x128xf32>, vector<128x512xf32>, vector<2x512xf32> -> vector<2x512xf32>
    %874 = arith.addf %872, %873 : vector<2x512xf32>
    %875 = vector.extract_strided_slice %473 {offsets = [0, 512], sizes = [2, 512], strides = [1, 1]} : vector<16x1024xf32> to vector<2x512xf32>
    %cst_147 = arith.constant dense<0.000000e+00> : vector<2x512xf32>
    %876 = tpu.matmul %871, %475, %cst_147 {dimension_numbers = #tpu.dot_dimension_numbers<[1], [0], [0], [1], [0, 0, 1, 1], [], []>} : vector<2x128xf32>, vector<128x512xf32>, vector<2x512xf32> -> vector<2x512xf32>
    %877 = arith.addf %875, %876 : vector<2x512xf32>
    %878 = vector.extract_strided_slice %874 {offsets = [0, 0], sizes = [2, 128], strides = [1, 1]} : vector<2x512xf32> to vector<2x128xf32>
    %879 = arith.negf %878 : vector<2x128xf32>
    %880 = math.exp %879 : vector<2x128xf32>
    %cst_148 = arith.constant 1.000000e+00 : f32
    %881 = vector.broadcast %cst_148 : f32 to vector<2x128xf32>
    %882 = arith.addf %881, %880 : vector<2x128xf32>
    %883 = arith.divf %881, %882 : vector<2x128xf32>
    %884 = vector.extract_strided_slice %877 {offsets = [0, 0], sizes = [2, 128], strides = [1, 1]} : vector<2x512xf32> to vector<2x128xf32>
    %885 = arith.negf %884 : vector<2x128xf32>
    %886 = math.exp %885 : vector<2x128xf32>
    %cst_149 = arith.constant 1.000000e+00 : f32
    %887 = vector.broadcast %cst_149 : f32 to vector<2x128xf32>
    %888 = arith.addf %887, %886 : vector<2x128xf32>
    %889 = arith.divf %887, %888 : vector<2x128xf32>
    %890 = vector.extract_strided_slice %874 {offsets = [0, 128], sizes = [2, 128], strides = [1, 1]} : vector<2x512xf32> to vector<2x128xf32>
    %891 = arith.negf %890 : vector<2x128xf32>
    %892 = math.exp %891 : vector<2x128xf32>
    %cst_150 = arith.constant 1.000000e+00 : f32
    %893 = vector.broadcast %cst_150 : f32 to vector<2x128xf32>
    %894 = arith.addf %893, %892 : vector<2x128xf32>
    %895 = arith.divf %893, %894 : vector<2x128xf32>
    %896 = vector.extract_strided_slice %877 {offsets = [0, 128], sizes = [2, 128], strides = [1, 1]} : vector<2x512xf32> to vector<2x128xf32>
    %897 = arith.negf %896 : vector<2x128xf32>
    %898 = math.exp %897 : vector<2x128xf32>
    %cst_151 = arith.constant 1.000000e+00 : f32
    %899 = vector.broadcast %cst_151 : f32 to vector<2x128xf32>
    %900 = arith.addf %899, %898 : vector<2x128xf32>
    %901 = arith.divf %899, %900 : vector<2x128xf32>
    %902 = vector.extract_strided_slice %874 {offsets = [0, 256], sizes = [2, 128], strides = [1, 1]} : vector<2x512xf32> to vector<2x128xf32>
    %903 = math.tanh %902 : vector<2x128xf32>
    %904 = vector.extract_strided_slice %877 {offsets = [0, 256], sizes = [2, 128], strides = [1, 1]} : vector<2x512xf32> to vector<2x128xf32>
    %905 = math.tanh %904 : vector<2x128xf32>
    %906 = vector.extract_strided_slice %874 {offsets = [0, 384], sizes = [2, 128], strides = [1, 1]} : vector<2x512xf32> to vector<2x128xf32>
    %907 = arith.negf %906 : vector<2x128xf32>
    %908 = math.exp %907 : vector<2x128xf32>
    %cst_152 = arith.constant 1.000000e+00 : f32
    %909 = vector.broadcast %cst_152 : f32 to vector<2x128xf32>
    %910 = arith.addf %909, %908 : vector<2x128xf32>
    %911 = arith.divf %909, %910 : vector<2x128xf32>
    %912 = vector.extract_strided_slice %877 {offsets = [0, 384], sizes = [2, 128], strides = [1, 1]} : vector<2x512xf32> to vector<2x128xf32>
    %913 = arith.negf %912 : vector<2x128xf32>
    %914 = math.exp %913 : vector<2x128xf32>
    %cst_153 = arith.constant 1.000000e+00 : f32
    %915 = vector.broadcast %cst_153 : f32 to vector<2x128xf32>
    %916 = arith.addf %915, %914 : vector<2x128xf32>
    %917 = arith.divf %915, %916 : vector<2x128xf32>
    %918 = arith.mulf %895, %864 : vector<2x128xf32>
    %919 = arith.mulf %883, %903 : vector<2x128xf32>
    %920 = arith.addf %918, %919 : vector<2x128xf32>
    %921 = arith.mulf %901, %867 : vector<2x128xf32>
    %922 = arith.mulf %889, %905 : vector<2x128xf32>
    %923 = arith.addf %921, %922 : vector<2x128xf32>
    %924 = math.tanh %920 : vector<2x128xf32>
    %925 = arith.mulf %911, %924 : vector<2x128xf32>
    %926 = math.tanh %923 : vector<2x128xf32>
    %927 = arith.mulf %917, %926 : vector<2x128xf32>
    %928 = tpu.concatenate %533, %927 in 1 : vector<2x128xf32>, vector<2x128xf32> -> vector<2x256xf32>
    %929 = tpu.concatenate %589, %871 in 1 : vector<2x128xf32>, vector<2x128xf32> -> vector<2x256xf32>
    %930 = tpu.concatenate %645, %815 in 1 : vector<2x128xf32>, vector<2x128xf32> -> vector<2x256xf32>
    %931 = tpu.concatenate %701, %759 in 1 : vector<2x128xf32>, vector<2x128xf32> -> vector<2x256xf32>
    %932 = tpu.concatenate %757, %703 in 1 : vector<2x128xf32>, vector<2x128xf32> -> vector<2x256xf32>
    %933 = tpu.concatenate %813, %647 in 1 : vector<2x128xf32>, vector<2x128xf32> -> vector<2x256xf32>
    %934 = tpu.concatenate %869, %591 in 1 : vector<2x128xf32>, vector<2x128xf32> -> vector<2x256xf32>
    %935 = tpu.concatenate %925, %535 in 1 : vector<2x128xf32>, vector<2x128xf32> -> vector<2x256xf32>
    %c0_154 = arith.constant 0 : index
    %c0_155 = arith.constant 0 : index
    %936 = vector.load %arg10[%c0_154, %c0_155] : memref<256x128xf32, #tpu.memory_space<vmem>>, vector<256x128xf32>
    %c0_156 = arith.constant 0 : index
    %c0_157 = arith.constant 0 : index
    %937 = vector.load %arg11[%c0_156, %c0_157] : memref<1x128xf32, #tpu.memory_space<vmem>>, vector<1x128xf32>
    %938 = tpu.iota {dimensions = array<i32: 1>} : vector<8x128xi32>
    %c8_i32 = arith.constant 8 : i32
    %939 = vector.broadcast %c8_i32 : i32 to vector<8x128xi32>
    %940 = arith.cmpi slt, %938, %939 : vector<8x128xi32>
    %cst_158 = arith.constant 0.000000e+00 : f32
    %941 = vector.broadcast %cst_158 : f32 to vector<120x256xf32>
    %942 = vector.extract_strided_slice %928 {offsets = [0, 0], sizes = [1, 256], strides = [1, 1]} : vector<2x256xf32> to vector<1x256xf32>
    %943 = vector.extract_strided_slice %929 {offsets = [0, 0], sizes = [1, 256], strides = [1, 1]} : vector<2x256xf32> to vector<1x256xf32>
    %944 = vector.extract_strided_slice %930 {offsets = [0, 0], sizes = [1, 256], strides = [1, 1]} : vector<2x256xf32> to vector<1x256xf32>
    %945 = vector.extract_strided_slice %931 {offsets = [0, 0], sizes = [1, 256], strides = [1, 1]} : vector<2x256xf32> to vector<1x256xf32>
    %946 = vector.extract_strided_slice %932 {offsets = [0, 0], sizes = [1, 256], strides = [1, 1]} : vector<2x256xf32> to vector<1x256xf32>
    %947 = vector.extract_strided_slice %933 {offsets = [0, 0], sizes = [1, 256], strides = [1, 1]} : vector<2x256xf32> to vector<1x256xf32>
    %948 = vector.extract_strided_slice %934 {offsets = [0, 0], sizes = [1, 256], strides = [1, 1]} : vector<2x256xf32> to vector<1x256xf32>
    %949 = vector.extract_strided_slice %935 {offsets = [0, 0], sizes = [1, 256], strides = [1, 1]} : vector<2x256xf32> to vector<1x256xf32>
    %950 = tpu.concatenate %942, %943, %944, %945, %946, %947, %948, %949 in 0 : vector<1x256xf32>, vector<1x256xf32>, vector<1x256xf32>, vector<1x256xf32>, vector<1x256xf32>, vector<1x256xf32>, vector<1x256xf32>, vector<1x256xf32> -> vector<8x256xf32>
    %951 = tpu.concatenate %950, %941 in 0 : vector<8x256xf32>, vector<120x256xf32> -> vector<128x256xf32>
    %cst_159 = arith.constant dense<0.000000e+00> : vector<8x128xf32>
    %952 = tpu.matmul %950, %951, %cst_159 {dimension_numbers = #tpu.dot_dimension_numbers<[1], [1], [0], [0], [0, 0, 1, 0], [], []>} : vector<8x256xf32>, vector<128x256xf32>, vector<8x128xf32> -> vector<8x128xf32>
    %cst_160 = arith.constant 6.250000e-02 : f32
    %953 = vector.broadcast %cst_160 : f32 to vector<8x128xf32>
    %954 = arith.mulf %952, %953 : vector<8x128xf32>
    %cst_161 = arith.constant -1.000000e+30 : f32
    %955 = vector.broadcast %cst_161 : f32 to vector<8x128xf32>
    %956 = arith.select %940, %954, %955 : vector<8x128xi1>, vector<8x128xf32>
    %cst_162 = arith.constant dense<0xFF800000> : vector<8xf32>
    %957 = vector.multi_reduction <maximumf>, %956, %cst_162 [1] : vector<8x128xf32> to vector<8xf32>
    %958 = vector.shape_cast %957 : vector<8xf32> to vector<8x1xf32>
    %959 = vector.broadcast %958 : vector<8x1xf32> to vector<8x128xf32>
    %960 = arith.subf %956, %959 : vector<8x128xf32>
    %961 = math.exp %960 : vector<8x128xf32>
    %cst_163 = arith.constant dense<0.000000e+00> : vector<8xf32>
    %962 = vector.multi_reduction <add>, %961, %cst_163 [1] : vector<8x128xf32> to vector<8xf32>
    %963 = vector.shape_cast %962 : vector<8xf32> to vector<8x1xf32>
    %964 = vector.broadcast %963 : vector<8x1xf32> to vector<8x128xf32>
    %965 = arith.divf %961, %964 : vector<8x128xf32>
    %c0_164 = arith.constant 0 : index
    %c0_165 = arith.constant 0 : index
    %c0_166 = arith.constant 0 : index
    %966 = vector.load %arg12[%c0_164, %c0_165, %c0_166] : memref<2x8x128xf32, #tpu.memory_space<vmem>>, vector<1x8x128xf32>
    %967 = vector.shape_cast %966 : vector<1x8x128xf32> to vector<8x128xf32>
    %968 = vector.shape_cast %965 : vector<8x128xf32> to vector<1x8x128xf32>
    tpu.vector_store %arg12[%c0_164, %c0_165, %c0_166], %968 {strides = array<i32>} : memref<2x8x128xf32, #tpu.memory_space<vmem>>, vector<1x8x128xf32>,
    %cst_167 = arith.constant dense<0.000000e+00> : vector<128xf32>
    %969 = vector.multi_reduction <add>, %965, %cst_167 [0] : vector<8x128xf32> to vector<128xf32>
    %970 = vector.shape_cast %969 : vector<128xf32> to vector<1x128xf32>
    %cst_168 = arith.constant dense<0.000000e+00> : vector<1x256xf32>
    %971 = tpu.matmul %970, %951, %cst_168 {dimension_numbers = #tpu.dot_dimension_numbers<[1], [0], [0], [1], [0, 0, 1, 1], [], []>} : vector<1x128xf32>, vector<128x256xf32>, vector<1x256xf32> -> vector<1x256xf32>
    %cst_169 = arith.constant dense<0.000000e+00> : vector<1x128xf32>
    %972 = tpu.matmul %971, %936, %cst_169 {dimension_numbers = #tpu.dot_dimension_numbers<[1], [0], [0], [1], [0, 0, 1, 1], [], []>} : vector<1x256xf32>, vector<256x128xf32>, vector<1x128xf32> -> vector<1x128xf32>
    %973 = arith.addf %972, %937 : vector<1x128xf32>
    %974 = vector.extract_strided_slice %928 {offsets = [1, 0], sizes = [1, 256], strides = [1, 1]} : vector<2x256xf32> to vector<1x256xf32>
    %975 = vector.extract_strided_slice %929 {offsets = [1, 0], sizes = [1, 256], strides = [1, 1]} : vector<2x256xf32> to vector<1x256xf32>
    %976 = vector.extract_strided_slice %930 {offsets = [1, 0], sizes = [1, 256], strides = [1, 1]} : vector<2x256xf32> to vector<1x256xf32>
    %977 = vector.extract_strided_slice %931 {offsets = [1, 0], sizes = [1, 256], strides = [1, 1]} : vector<2x256xf32> to vector<1x256xf32>
    %978 = vector.extract_strided_slice %932 {offsets = [1, 0], sizes = [1, 256], strides = [1, 1]} : vector<2x256xf32> to vector<1x256xf32>
    %979 = vector.extract_strided_slice %933 {offsets = [1, 0], sizes = [1, 256], strides = [1, 1]} : vector<2x256xf32> to vector<1x256xf32>
    %980 = vector.extract_strided_slice %934 {offsets = [1, 0], sizes = [1, 256], strides = [1, 1]} : vector<2x256xf32> to vector<1x256xf32>
    %981 = vector.extract_strided_slice %935 {offsets = [1, 0], sizes = [1, 256], strides = [1, 1]} : vector<2x256xf32> to vector<1x256xf32>
    %982 = tpu.concatenate %974, %975, %976, %977, %978, %979, %980, %981 in 0 : vector<1x256xf32>, vector<1x256xf32>, vector<1x256xf32>, vector<1x256xf32>, vector<1x256xf32>, vector<1x256xf32>, vector<1x256xf32>, vector<1x256xf32> -> vector<8x256xf32>
    %983 = tpu.concatenate %982, %941 in 0 : vector<8x256xf32>, vector<120x256xf32> -> vector<128x256xf32>
    %cst_170 = arith.constant dense<0.000000e+00> : vector<8x128xf32>
    %984 = tpu.matmul %982, %983, %cst_170 {dimension_numbers = #tpu.dot_dimension_numbers<[1], [1], [0], [0], [0, 0, 1, 0], [], []>} : vector<8x256xf32>, vector<128x256xf32>, vector<8x128xf32> -> vector<8x128xf32>
    %cst_171 = arith.constant 6.250000e-02 : f32
    %985 = vector.broadcast %cst_171 : f32 to vector<8x128xf32>
    %986 = arith.mulf %984, %985 : vector<8x128xf32>
    %cst_172 = arith.constant -1.000000e+30 : f32
    %987 = vector.broadcast %cst_172 : f32 to vector<8x128xf32>
    %988 = arith.select %940, %986, %987 : vector<8x128xi1>, vector<8x128xf32>
    %cst_173 = arith.constant dense<0xFF800000> : vector<8xf32>
    %989 = vector.multi_reduction <maximumf>, %988, %cst_173 [1] : vector<8x128xf32> to vector<8xf32>
    %990 = vector.shape_cast %989 : vector<8xf32> to vector<8x1xf32>
    %991 = vector.broadcast %990 : vector<8x1xf32> to vector<8x128xf32>
    %992 = arith.subf %988, %991 : vector<8x128xf32>
    %993 = math.exp %992 : vector<8x128xf32>
    %cst_174 = arith.constant dense<0.000000e+00> : vector<8xf32>
    %994 = vector.multi_reduction <add>, %993, %cst_174 [1] : vector<8x128xf32> to vector<8xf32>
    %995 = vector.shape_cast %994 : vector<8xf32> to vector<8x1xf32>
    %996 = vector.broadcast %995 : vector<8x1xf32> to vector<8x128xf32>
    %997 = arith.divf %993, %996 : vector<8x128xf32>
    %c1 = arith.constant 1 : index
    %c0_175 = arith.constant 0 : index
    %c0_176 = arith.constant 0 : index
    %998 = vector.load %arg12[%c1, %c0_175, %c0_176] : memref<2x8x128xf32, #tpu.memory_space<vmem>>, vector<1x8x128xf32>
    %999 = vector.shape_cast %998 : vector<1x8x128xf32> to vector<8x128xf32>
    %1000 = vector.shape_cast %997 : vector<8x128xf32> to vector<1x8x128xf32>
    tpu.vector_store %arg12[%c1, %c0_175, %c0_176], %1000 {strides = array<i32>} : memref<2x8x128xf32, #tpu.memory_space<vmem>>, vector<1x8x128xf32>,
    %cst_177 = arith.constant dense<0.000000e+00> : vector<128xf32>
    %1001 = vector.multi_reduction <add>, %997, %cst_177 [0] : vector<8x128xf32> to vector<128xf32>
    %1002 = vector.shape_cast %1001 : vector<128xf32> to vector<1x128xf32>
    %cst_178 = arith.constant dense<0.000000e+00> : vector<1x256xf32>
    %1003 = tpu.matmul %1002, %983, %cst_178 {dimension_numbers = #tpu.dot_dimension_numbers<[1], [0], [0], [1], [0, 0, 1, 1], [], []>} : vector<1x128xf32>, vector<128x256xf32>, vector<1x256xf32> -> vector<1x256xf32>
    %cst_179 = arith.constant dense<0.000000e+00> : vector<1x128xf32>
    %1004 = tpu.matmul %1003, %936, %cst_179 {dimension_numbers = #tpu.dot_dimension_numbers<[1], [0], [0], [1], [0, 0, 1, 1], [], []>} : vector<1x256xf32>, vector<256x128xf32>, vector<1x128xf32> -> vector<1x128xf32>
    %1005 = arith.addf %1004, %937 : vector<1x128xf32>
    %1006 = tpu.concatenate %973, %1005 in 0 : vector<1x128xf32>, vector<1x128xf32> -> vector<2x128xf32>
    %c0_180 = arith.constant 0 : index
    %c0_181 = arith.constant 0 : index
    %1007 = vector.load %arg13[%c0_180, %c0_181] : memref<2x128xf32, #tpu.memory_space<vmem>>, vector<2x128xf32>
    tpu.vector_store %arg13[%c0_180, %c0_181], %1006 {strides = array<i32>} : memref<2x128xf32, #tpu.memory_space<vmem>>, vector<2x128xf32>,
    return
  }
  func.func @transform_0(%arg0: i32) -> (i32, i32) {
    %c0_i32 = arith.constant 0 : i32
    %c0_i32_0 = arith.constant 0 : i32
    %c0_i32_1 = arith.constant 0 : i32
    return %c0_i32, %c0_i32_0 : i32, i32
  }
  func.func @transform_1(%arg0: i32) -> (i32, i32) {
    %c0_i32 = arith.constant 0 : i32
    %c0_i32_0 = arith.constant 0 : i32
    %c0_i32_1 = arith.constant 0 : i32
    return %c0_i32, %c0_i32_0 : i32, i32
  }
  func.func @transform_2(%arg0: i32) -> (i32, i32) {
    %c0_i32 = arith.constant 0 : i32
    %c0_i32_0 = arith.constant 0 : i32
    %c0_i32_1 = arith.constant 0 : i32
    return %c0_i32, %c0_i32_0 : i32, i32
  }
  func.func @transform_3(%arg0: i32) -> (i32, i32) {
    %c0_i32 = arith.constant 0 : i32
    %c0_i32_0 = arith.constant 0 : i32
    %c0_i32_1 = arith.constant 0 : i32
    return %c0_i32, %c0_i32_0 : i32, i32
  }
  func.func @transform_4(%arg0: i32) -> (i32, i32) {
    %c0_i32 = arith.constant 0 : i32
    %c0_i32_0 = arith.constant 0 : i32
    %c0_i32_1 = arith.constant 0 : i32
    return %c0_i32, %c0_i32_0 : i32, i32
  }
  func.func @transform_5(%arg0: i32) -> (i32, i32) {
    %c0_i32 = arith.constant 0 : i32
    %c0_i32_0 = arith.constant 0 : i32
    %c0_i32_1 = arith.constant 0 : i32
    return %c0_i32, %c0_i32_0 : i32, i32
  }
  func.func @transform_6(%arg0: i32) -> (i32, i32) {
    %c0_i32 = arith.constant 0 : i32
    %c0_i32_0 = arith.constant 0 : i32
    %c0_i32_1 = arith.constant 0 : i32
    return %c0_i32, %c0_i32_0 : i32, i32
  }
  func.func @transform_7(%arg0: i32) -> (i32, i32) {
    %c0_i32 = arith.constant 0 : i32
    %c0_i32_0 = arith.constant 0 : i32
    %c0_i32_1 = arith.constant 0 : i32
    return %c0_i32, %c0_i32_0 : i32, i32
  }
  func.func @transform_8(%arg0: i32) -> (i32, i32) {
    %c0_i32 = arith.constant 0 : i32
    %c0_i32_0 = arith.constant 0 : i32
    %c0_i32_1 = arith.constant 0 : i32
    return %c0_i32, %c0_i32_0 : i32, i32
  }
  func.func @transform_9(%arg0: i32) -> (i32, i32) {
    %c0_i32 = arith.constant 0 : i32
    %c0_i32_0 = arith.constant 0 : i32
    %c0_i32_1 = arith.constant 0 : i32
    return %c0_i32, %c0_i32_0 : i32, i32
  }
  func.func @transform_10(%arg0: i32) -> (i32, i32) {
    %c0_i32 = arith.constant 0 : i32
    %c0_i32_0 = arith.constant 0 : i32
    %c0_i32_1 = arith.constant 0 : i32
    return %c0_i32, %c0_i32_0 : i32, i32
  }
  func.func @transform_11(%arg0: i32) -> (i32, i32, i32) {
    %c0_i32 = arith.constant 0 : i32
    %c0_i32_0 = arith.constant 0 : i32
    %c0_i32_1 = arith.constant 0 : i32
    %c0_i32_2 = arith.constant 0 : i32
    return %c0_i32, %c0_i32_0, %c0_i32_1 : i32, i32, i32
  }
  func.func @transform_12(%arg0: i32) -> (i32, i32) {
    %c0_i32 = arith.constant 0 : i32
    %c0_i32_0 = arith.constant 0 : i32
    %c0_i32_1 = arith.constant 0 : i32
    return %c0_i32, %c0_i32_0 : i32, i32
  }
}

</mosaic_0001>

<llo_original>
// kernel: bilstm_attention_forward.1
$region0: #{bilstm_attention_forward.1}
  #allocation0 [shape = 'u32[]', space=smem, size = 0x4, offset = 0x4, fixed_abs, tag = 'smem constant byte address 0x4 - core index']
  #allocation1 [shape = 'u32[144,128]{1,0:T(1,128)}', space=vmem, size = 0x12000, scoped, tag = 'internal scratch']
  %s0 = inlined_call_operand.vmem [shape: f32[16,128], index: 0, kind: input, shape index: {}]
  %s1 = inlined_call_operand.hbm [shape: f32[128,1024], index: 1, kind: input, shape index: {}]
  %s2 = inlined_call_operand.hbm [shape: f32[128,512], index: 2, kind: input, shape index: {}]
  %s3 = inlined_call_operand.hbm [shape: f32[128,512], index: 3, kind: input, shape index: {}]
  %s4 = inlined_call_operand.vmem [shape: f32[1,1024], index: 4, kind: input, shape index: {}]
  %s5 = inlined_call_operand.hbm [shape: f32[256,1024], index: 5, kind: input, shape index: {}]
  %s6 = inlined_call_operand.hbm [shape: f32[128,512], index: 6, kind: input, shape index: {}]
  %s7 = inlined_call_operand.hbm [shape: f32[128,512], index: 7, kind: input, shape index: {}]
  %s8 = inlined_call_operand.vmem [shape: f32[1,1024], index: 8, kind: input, shape index: {}]
  %s9 = inlined_call_operand.hbm [shape: f32[256,128], index: 9, kind: input, shape index: {}]
  %s10 = inlined_call_operand.vmem [shape: f32[1,128], index: 10, kind: input, shape index: {}]
  %s11 = inlined_call_operand.hbm [shape: f32[2,8,128], index: 11, kind: output, shape index: {0}]
  %s12 = inlined_call_operand.hbm [shape: f32[2,128], index: 12, kind: output, shape index: {1}]
  %13 = xla_tuple %s11, %s12
  %s14 = sld [smem:[#allocation0]]
  $region90: #{bilstm_attention_forward.1} parent=0
    _
  %s16 = ssub.s32 1, %s14
  %s17 = scalar_select 0, %s16, %s14
  $region1: #{bilstm_attention_forward.1} parent=0
    #allocation2 [shape = 'u8[524288]{0}', space=vmem, size = 0x80000, scoped, tag = 'input window, operand 1, single buffered']
    #allocation3 [shape = 's32[1]{0}', space=sflag, size = 0x4, scoped, tag = 'scoped memory for bilstm_attention_forward.1']
    #allocation4 [shape = 's32[1]{0}', space=sflag, size = 0x4, scoped, tag = 'scoped memory for bilstm_attention_forward.1']
    #allocation5 [shape = 'u8[262144]{0}', space=vmem, size = 0x40000, scoped, tag = 'input window, operand 2, single buffered']
    #allocation6 [shape = 's32[1]{0}', space=sflag, size = 0x4, scoped, tag = 'scoped memory for bilstm_attention_forward.1']
    #allocation7 [shape = 'u8[262144]{0}', space=vmem, size = 0x40000, scoped, tag = 'input window, operand 3, single buffered']
    #allocation8 [shape = 'u8[1048576]{0}', space=vmem, size = 0x100000, scoped, tag = 'input window, operand 5, single buffered']
    #allocation9 [shape = 's32[1]{0}', space=sflag, size = 0x4, scoped, tag = 'scoped memory for bilstm_attention_forward.1']
    #allocation10 [shape = 'u8[262144]{0}', space=vmem, size = 0x40000, scoped, tag = 'input window, operand 6, single buffered']
    #allocation11 [shape = 'u8[262144]{0}', space=vmem, size = 0x40000, scoped, tag = 'input window, operand 7, single buffered']
    #allocation12 [shape = 's32[1]{0}', space=sflag, size = 0x4, scoped, tag = 'scoped memory for bilstm_attention_forward.1']
    #allocation13 [shape = 'u8[131072]{0}', space=vmem, size = 0x20000, scoped, tag = 'input window, operand 9, single buffered']
    #allocation14 [shape = 'u8[8192]{0}', space=vmem, size = 0x2000, scoped, tag = 'output window, operand 0, single buffered']
    #allocation15 [shape = 'u8[1024]{0}', space=vmem, size = 0x400, scoped, tag = 'output window, operand 1, single buffered']
    #allocation16 [shape = 's32[1]{0}', space=sflag, size = 0x4, scoped, tag = 'scoped memory for bilstm_attention_forward.1']
    %18 = vsyncpa [#allocation3], 0
    %19 = vsyncpa [#allocation6], 0
    %20 = vsyncpa [#allocation9], 0
    %21 = vsyncpa [#allocation12], 0
    %22 = vsyncpa [#allocation4], 0
    %23 = vsyncpa [#allocation16], 0
    // Predicated region
    $region2: #{bilstm_attention_forward.1} parent=1 // pred_check
      _
    $region3: #{bilstm_attention_forward.1} parent=1 // pred_check_branch
      %25 = sbr.rel (0) target = $region5
    $region4: #{bilstm_attention_forward.1} parent=1 // pred_region
      _
    $region5: #{bilstm_attention_forward.1} parent=1 // pred_fallthru
      _
    // Predicated region
    $region6: #{bilstm_attention_forward.1} parent=1 // pred_check
      _
    $region7: #{bilstm_attention_forward.1} parent=1 // pred_check_branch
      %27 = sbr.rel (0) target = $region9
    $region8: #{bilstm_attention_forward.1} parent=1 // pred_region
      %s29 = ssub.s32 16384, 16384
      %30 = vsyncadd [#allocation3], %s29
      %s31 = sshll.u32 [#allocation2], 4
      %s32 = int_to_ptr.vmem [resolvable:$true] %s31
      %37 = dma.hbm_to_vmem [thread:$0]  %s1, 16384, %s32, [#allocation3], 1024, 1024, 64
    $region9: #{bilstm_attention_forward.1} parent=1 // pred_fallthru
      _
    // Predicated region
    $region10: #{bilstm_attention_forward.1} parent=1 // pred_check
      _
    $region11: #{bilstm_attention_forward.1} parent=1 // pred_check_branch
      %39 = sbr.rel (0) target = $region13
    $region12: #{bilstm_attention_forward.1} parent=1 // pred_region
      %s41 = ssub.s32 8192, 8192
      %42 = vsyncadd [#allocation6], %s41
      %s43 = sshll.u32 [#allocation5], 4
      %s44 = int_to_ptr.vmem [resolvable:$true] %s43
      %49 = dma.hbm_to_vmem [thread:$0]  %s2, 8192, %s44, [#allocation6], 512, 512, 32
    $region13: #{bilstm_attention_forward.1} parent=1 // pred_fallthru
      _
    // Predicated region
    $region14: #{bilstm_attention_forward.1} parent=1 // pred_check
      _
    $region15: #{bilstm_attention_forward.1} parent=1 // pred_check_branch
      %51 = sbr.rel (0) target = $region17
    $region16: #{bilstm_attention_forward.1} parent=1 // pred_region
      %s53 = ssub.s32 8192, 8192
      %54 = vsyncadd [#allocation6], %s53
      %s55 = sshll.u32 [#allocation7], 4
      %s56 = int_to_ptr.vmem [resolvable:$true] %s55
      %61 = dma.hbm_to_vmem [thread:$0]  %s3, 8192, %s56, [#allocation6], 512, 512, 32
    $region17: #{bilstm_attention_forward.1} parent=1 // pred_fallthru
      _
    // Predicated region
    $region18: #{bilstm_attention_forward.1} parent=1 // pred_check
      _
    $region19: #{bilstm_attention_forward.1} parent=1 // pred_check_branch
      %63 = sbr.rel (0) target = $region21
    $region20: #{bilstm_attention_forward.1} parent=1 // pred_region
      _
    $region21: #{bilstm_attention_forward.1} parent=1 // pred_fallthru
      _
    // Predicated region
    $region22: #{bilstm_attention_forward.1} parent=1 // pred_check
      _
    $region23: #{bilstm_attention_forward.1} parent=1 // pred_check_branch
      %65 = sbr.rel (0) target = $region25
    $region24: #{bilstm_attention_forward.1} parent=1 // pred_region
      %s67 = ssub.s32 32768, 32768
      %68 = vsyncadd [#allocation9], %s67
      %s69 = sshll.u32 [#allocation8], 4
      %s70 = int_to_ptr.vmem [resolvable:$true] %s69
      %75 = dma.hbm_to_vmem [thread:$0]  %s5, 32768, %s70, [#allocation9], 1024, 1024, 64
    $region25: #{bilstm_attention_forward.1} parent=1 // pred_fallthru
      _
    // Predicated region
    $region26: #{bilstm_attention_forward.1} parent=1 // pred_check
      _
    $region27: #{bilstm_attention_forward.1} parent=1 // pred_check_branch
      %77 = sbr.rel (0) target = $region29
    $region28: #{bilstm_attention_forward.1} parent=1 // pred_region
      %s79 = ssub.s32 8192, 8192
      %80 = vsyncadd [#allocation9], %s79
      %s81 = sshll.u32 [#allocation10], 4
      %s82 = int_to_ptr.vmem [resolvable:$true] %s81
      %87 = dma.hbm_to_vmem [thread:$0]  %s6, 8192, %s82, [#allocation9], 512, 512, 32
    $region29: #{bilstm_attention_forward.1} parent=1 // pred_fallthru
      _
    // Predicated region
    $region30: #{bilstm_attention_forward.1} parent=1 // pred_check
      _
    $region31: #{bilstm_attention_forward.1} parent=1 // pred_check_branch
      %89 = sbr.rel (0) target = $region33
    $region32: #{bilstm_attention_forward.1} parent=1 // pred_region
      %s91 = ssub.s32 8192, 8192
      %92 = vsyncadd [#allocation12], %s91
      %s93 = sshll.u32 [#allocation11], 4
      %s94 = int_to_ptr.vmem [resolvable:$true] %s93
      %99 = dma.hbm_to_vmem [thread:$0]  %s7, 8192, %s94, [#allocation12], 512, 512, 32
    $region33: #{bilstm_attention_forward.1} parent=1 // pred_fallthru
      _
    // Predicated region
    $region34: #{bilstm_attention_forward.1} parent=1 // pred_check
      _
    $region35: #{bilstm_attention_forward.1} parent=1 // pred_check_branch
      %101 = sbr.rel (0) target = $region37
    $region36: #{bilstm_attention_forward.1} parent=1 // pred_region
      _
    $region37: #{bilstm_attention_forward.1} parent=1 // pred_fallthru
      _
    // Predicated region
    $region38: #{bilstm_attention_forward.1} parent=1 // pred_check
      _
    $region39: #{bilstm_attention_forward.1} parent=1 // pred_check_branch
      %103 = sbr.rel (0) target = $region41
    $region40: #{bilstm_attention_forward.1} parent=1 // pred_region
      %s105 = ssub.s32 4096, 4096
      %106 = vsyncadd [#allocation12], %s105
      %s107 = sshll.u32 [#allocation13], 4
      %s108 = int_to_ptr.vmem [resolvable:$true] %s107
      %113 = dma.hbm_to_vmem [thread:$0]  %s9, 4096, %s108, [#allocation12], 128, 128, 8
    $region41: #{bilstm_attention_forward.1} parent=1 // pred_fallthru
      _
    // Predicated region
    $region42: #{bilstm_attention_forward.1} parent=1 // pred_check
      _
    $region43: #{bilstm_attention_forward.1} parent=1 // pred_check_branch
      %115 = sbr.rel (0) target = $region45
    $region44: #{bilstm_attention_forward.1} parent=1 // pred_region
      _
    $region45: #{bilstm_attention_forward.1} parent=1 // pred_fallthru
      _
    // Predicated region
    $region46: #{bilstm_attention_forward.1} parent=1 // pred_check
      _
    $region47: #{bilstm_attention_forward.1} parent=1 // pred_check_branch
      %117 = sbr.rel (0) target = $region49
    $region48: #{bilstm_attention_forward.1} parent=1 // pred_region
      %118 = dma.done [#allocation3], 16384
    $region49: #{bilstm_attention_forward.1} parent=1 // pred_fallthru
      _
    // Predicated region
    $region50: #{bilstm_attention_forward.1} parent=1 // pred_check
      _
    $region51: #{bilstm_attention_forward.1} parent=1 // pred_check_branch
      %120 = sbr.rel (0) target = $region53
    $region52: #{bilstm_attention_forward.1} parent=1 // pred_region
      %121 = dma.done [#allocation6], 8192
    $region53: #{bilstm_attention_forward.1} parent=1 // pred_fallthru
      _
    // Predicated region
    $region54: #{bilstm_attention_forward.1} parent=1 // pred_check
      _
    $region55: #{bilstm_attention_forward.1} parent=1 // pred_check_branch
      %123 = sbr.rel (0) target = $region57
    $region56: #{bilstm_attention_forward.1} parent=1 // pred_region
      %124 = dma.done [#allocation6], 8192
    $region57: #{bilstm_attention_forward.1} parent=1 // pred_fallthru
      _
    // Predicated region
    $region58: #{bilstm_attention_forward.1} parent=1 // pred_check
      _
    $region59: #{bilstm_attention_forward.1} parent=1 // pred_check_branch
      %126 = sbr.rel (0) target = $region61
    $region60: #{bilstm_attention_forward.1} parent=1 // pred_region
      %127 = dma.done [#allocation9], 32768
    $region61: #{bilstm_attention_forward.1} parent=1 // pred_fallthru
      _
    // Predicated region
    $region62: #{bilstm_attention_forward.1} parent=1 // pred_check
      _
    $region63: #{bilstm_attention_forward.1} parent=1 // pred_check_branch
      %129 = sbr.rel (0) target = $region65
    $region64: #{bilstm_attention_forward.1} parent=1 // pred_region
      %130 = dma.done [#allocation9], 8192
    $region65: #{bilstm_attention_forward.1} parent=1 // pred_fallthru
      _
    // Predicated region
    $region66: #{bilstm_attention_forward.1} parent=1 // pred_check
      _
    $region67: #{bilstm_attention_forward.1} parent=1 // pred_check_branch
      %132 = sbr.rel (0) target = $region69
    $region68: #{bilstm_attention_forward.1} parent=1 // pred_region
      %133 = dma.done [#allocation12], 8192
    $region69: #{bilstm_attention_forward.1} parent=1 // pred_fallthru
      _
    // Predicated region
    $region70: #{bilstm_attention_forward.1} parent=1 // pred_check
      _
    $region71: #{bilstm_attention_forward.1} parent=1 // pred_check_branch
      %135 = sbr.rel (0) target = $region73
    $region72: #{bilstm_attention_forward.1} parent=1 // pred_region
      %136 = dma.done [#allocation12], 4096
    $region73: #{bilstm_attention_forward.1} parent=1 // pred_fallthru
      _
    %v137 = vld [vmem:[%s0] sm:$0xff]
    %v138 = vld [vmem:[%s0 + $0x8] sm:$0xff]
    %v139 = vld [vmem:[#allocation2] sm:$0xff]
    %v140 = vld [vmem:[#allocation2 + $0x8] sm:$0xff]
    %v141 = vld [vmem:[#allocation2 + $0x10] sm:$0xff]
    %v142 = vld [vmem:[#allocation2 + $0x18] sm:$0xff]
    %v143 = vld [vmem:[#allocation2 + $0x20] sm:$0xff]
    %v144 = vld [vmem:[#allocation2 + $0x28] sm:$0xff]
    %v145 = vld [vmem:[#allocation2 + $0x30] sm:$0xff]
    %v146 = vld [vmem:[#allocation2 + $0x38] sm:$0xff]
    %v147 = vld [vmem:[#allocation2 + $0x40] sm:$0xff]
    %v148 = vld [vmem:[#allocation2 + $0x48] sm:$0xff]
    %v149 = vld [vmem:[#allocation2 + $0x50] sm:$0xff]
    %v150 = vld [vmem:[#allocation2 + $0x58] sm:$0xff]
    %v151 = vld [vmem:[#allocation2 + $0x60] sm:$0xff]
    %v152 = vld [vmem:[#allocation2 + $0x68] sm:$0xff]
    %v153 = vld [vmem:[#allocation2 + $0x70] sm:$0xff]
    %v154 = vld [vmem:[#allocation2 + $0x78] sm:$0xff]
    %v155 = vld [vmem:[#allocation2 + $0x80] sm:$0xff]
    %v156 = vld [vmem:[#allocation2 + $0x88] sm:$0xff]
    %v157 = vld [vmem:[#allocation2 + $0x90] sm:$0xff]
    %v158 = vld [vmem:[#allocation2 + $0x98] sm:$0xff]
    %v159 = vld [vmem:[#allocation2 + $0xa0] sm:$0xff]
    %v160 = vld [vmem:[#allocation2 + $0xa8] sm:$0xff]
    %v161 = vld [vmem:[#allocation2 + $0xb0] sm:$0xff]
    %v162 = vld [vmem:[#allocation2 + $0xb8] sm:$0xff]
    %v163 = vld [vmem:[#allocation2 + $0xc0] sm:$0xff]
    %v164 = vld [vmem:[#allocation2 + $0xc8] sm:$0xff]
    %v165 = vld [vmem:[#allocation2 + $0xd0] sm:$0xff]
    %v166 = vld [vmem:[#allocation2 + $0xd8] sm:$0xff]
    %v167 = vld [vmem:[#allocation2 + $0xe0] sm:$0xff]
    %v168 = vld [vmem:[#allocation2 + $0xe8] sm:$0xff]
    %v169 = vld [vmem:[#allocation2 + $0xf0] sm:$0xff]
    %v170 = vld [vmem:[#allocation2 + $0xf8] sm:$0xff]
    %v171 = vld [vmem:[#allocation2 + $0x100] sm:$0xff]
    %v172 = vld [vmem:[#allocation2 + $0x108] sm:$0xff]
    %v173 = vld [vmem:[#allocation2 + $0x110] sm:$0xff]
    %v174 = vld [vmem:[#allocation2 + $0x118] sm:$0xff]
    %v175 = vld [vmem:[#allocation2 + $0x120] sm:$0xff]
    %v176 = vld [vmem:[#allocation2 + $0x128] sm:$0xff]
    %v177 = vld [vmem:[#allocation2 + $0x130] sm:$0xff]
    %v178 = vld [vmem:[#allocation2 + $0x138] sm:$0xff]
    %v179 = vld [vmem:[#allocation2 + $0x140] sm:$0xff]
    %v180 = vld [vmem:[#allocation2 + $0x148] sm:$0xff]
    %v181 = vld [vmem:[#allocation2 + $0x150] sm:$0xff]
    %v182 = vld [vmem:[#allocation2 + $0x158] sm:$0xff]
    %v183 = vld [vmem:[#allocation2 + $0x160] sm:$0xff]
    %v184 = vld [vmem:[#allocation2 + $0x168] sm:$0xff]
    %v185 = vld [vmem:[#allocation2 + $0x170] sm:$0xff]
    %v186 = vld [vmem:[#allocation2 + $0x178] sm:$0xff]
    %v187 = vld [vmem:[#allocation2 + $0x180] sm:$0xff]
    %v188 = vld [vmem:[#allocation2 + $0x188] sm:$0xff]
    %v189 = vld [vmem:[#allocation2 + $0x190] sm:$0xff]
    %v190 = vld [vmem:[#allocation2 + $0x198] sm:$0xff]
    %v191 = vld [vmem:[#allocation2 + $0x1a0] sm:$0xff]
    %v192 = vld [vmem:[#allocation2 + $0x1a8] sm:$0xff]
    %v193 = vld [vmem:[#allocation2 + $0x1b0] sm:$0xff]
    %v194 = vld [vmem:[#allocation2 + $0x1b8] sm:$0xff]
    %v195 = vld [vmem:[#allocation2 + $0x1c0] sm:$0xff]
    %v196 = vld [vmem:[#allocation2 + $0x1c8] sm:$0xff]
    %v197 = vld [vmem:[#allocation2 + $0x1d0] sm:$0xff]
    %v198 = vld [vmem:[#allocation2 + $0x1d8] sm:$0xff]
    %v199 = vld [vmem:[#allocation2 + $0x1e0] sm:$0xff]
    %v200 = vld [vmem:[#allocation2 + $0x1e8] sm:$0xff]
    %v201 = vld [vmem:[#allocation2 + $0x1f0] sm:$0xff]
    %v202 = vld [vmem:[#allocation2 + $0x1f8] sm:$0xff]
    %v203 = vld [vmem:[#allocation2 + $0x200] sm:$0xff]
    %v204 = vld [vmem:[#allocation2 + $0x208] sm:$0xff]
    %v205 = vld [vmem:[#allocation2 + $0x210] sm:$0xff]
    %v206 = vld [vmem:[#allocation2 + $0x218] sm:$0xff]
    %v207 = vld [vmem:[#allocation2 + $0x220] sm:$0xff]
    %v208 = vld [vmem:[#allocation2 + $0x228] sm:$0xff]
    %v209 = vld [vmem:[#allocation2 + $0x230] sm:$0xff]
    %v210 = vld [vmem:[#allocation2 + $0x238] sm:$0xff]
    %v211 = vld [vmem:[#allocation2 + $0x240] sm:$0xff]
    %v212 = vld [vmem:[#allocation2 + $0x248] sm:$0xff]
    %v213 = vld [vmem:[#allocation2 + $0x250] sm:$0xff]
    %v214 = vld [vmem:[#allocation2 + $0x258] sm:$0xff]
    %v215 = vld [vmem:[#allocation2 + $0x260] sm:$0xff]
    %v216 = vld [vmem:[#allocation2 + $0x268] sm:$0xff]
    %v217 = vld [vmem:[#allocation2 + $0x270] sm:$0xff]
    %v218 = vld [vmem:[#allocation2 + $0x278] sm:$0xff]
    %v219 = vld [vmem:[#allocation2 + $0x280] sm:$0xff]
    %v220 = vld [vmem:[#allocation2 + $0x288] sm:$0xff]
    %v221 = vld [vmem:[#allocation2 + $0x290] sm:$0xff]
    %v222 = vld [vmem:[#allocation2 + $0x298] sm:$0xff]
    %v223 = vld [vmem:[#allocation2 + $0x2a0] sm:$0xff]
    %v224 = vld [vmem:[#allocation2 + $0x2a8] sm:$0xff]
    %v225 = vld [vmem:[#allocation2 + $0x2b0] sm:$0xff]
    %v226 = vld [vmem:[#allocation2 + $0x2b8] sm:$0xff]
    %v227 = vld [vmem:[#allocation2 + $0x2c0] sm:$0xff]
    %v228 = vld [vmem:[#allocation2 + $0x2c8] sm:$0xff]
    %v229 = vld [vmem:[#allocation2 + $0x2d0] sm:$0xff]
    %v230 = vld [vmem:[#allocation2 + $0x2d8] sm:$0xff]
    %v231 = vld [vmem:[#allocation2 + $0x2e0] sm:$0xff]
    %v232 = vld [vmem:[#allocation2 + $0x2e8] sm:$0xff]
    %v233 = vld [vmem:[#allocation2 + $0x2f0] sm:$0xff]
    %v234 = vld [vmem:[#allocation2 + $0x2f8] sm:$0xff]
    %v235 = vld [vmem:[#allocation2 + $0x300] sm:$0xff]
    %v236 = vld [vmem:[#allocation2 + $0x308] sm:$0xff]
    %v237 = vld [vmem:[#allocation2 + $0x310] sm:$0xff]
    %v238 = vld [vmem:[#allocation2 + $0x318] sm:$0xff]
    %v239 = vld [vmem:[#allocation2 + $0x320] sm:$0xff]
    %v240 = vld [vmem:[#allocation2 + $0x328] sm:$0xff]
    %v241 = vld [vmem:[#allocation2 + $0x330] sm:$0xff]
    %v242 = vld [vmem:[#allocation2 + $0x338] sm:$0xff]
    %v243 = vld [vmem:[#allocation2 + $0x340] sm:$0xff]
    %v244 = vld [vmem:[#allocation2 + $0x348] sm:$0xff]
    %v245 = vld [vmem:[#allocation2 + $0x350] sm:$0xff]
    %v246 = vld [vmem:[#allocation2 + $0x358] sm:$0xff]
    %v247 = vld [vmem:[#allocation2 + $0x360] sm:$0xff]
    %v248 = vld [vmem:[#allocation2 + $0x368] sm:$0xff]
    %v249 = vld [vmem:[#allocation2 + $0x370] sm:$0xff]
    %v250 = vld [vmem:[#allocation2 + $0x378] sm:$0xff]
    %v251 = vld [vmem:[#allocation2 + $0x380] sm:$0xff]
    %v252 = vld [vmem:[#allocation2 + $0x388] sm:$0xff]
    %v253 = vld [vmem:[#allocation2 + $0x390] sm:$0xff]
    %v254 = vld [vmem:[#allocation2 + $0x398] sm:$0xff]
    %v255 = vld [vmem:[#allocation2 + $0x3a0] sm:$0xff]
    %v256 = vld [vmem:[#allocation2 + $0x3a8] sm:$0xff]
    %v257 = vld [vmem:[#allocation2 + $0x3b0] sm:$0xff]
    %v258 = vld [vmem:[#allocation2 + $0x3b8] sm:$0xff]
    %v259 = vld [vmem:[#allocation2 + $0x3c0] sm:$0xff]
    %v260 = vld [vmem:[#allocation2 + $0x3c8] sm:$0xff]
    %v261 = vld [vmem:[#allocation2 + $0x3d0] sm:$0xff]
    %v262 = vld [vmem:[#allocation2 + $0x3d8] sm:$0xff]
    %v263 = vld [vmem:[#allocation2 + $0x3e0] sm:$0xff]
    %v264 = vld [vmem:[#allocation2 + $0x3e8] sm:$0xff]
    %v265 = vld [vmem:[#allocation2 + $0x3f0] sm:$0xff]
    %v266 = vld [vmem:[#allocation2 + $0x3f8] sm:$0xff]
    %v267 = vld [vmem:[%s4] sm:$0xff]
    %v269 = vlaneseq
    %v270 = vshrl.u32 %v269, 7
    %v271 = vsub.s32 0, %v270
    %v272 = vrot.slane %v267, %v271
    %v273 = vlaneseq
    %v274 = vshrl.u32 %v273, 7
    %v275 = vsub.s32 1, %v274
    %v276 = vrot.slane %v267, %v275
    %v277 = vlaneseq
    %v278 = vshrl.u32 %v277, 7
    %v279 = vsub.s32 2, %v278
    %v280 = vrot.slane %v267, %v279
    %v281 = vlaneseq
    %v282 = vshrl.u32 %v281, 7
    %v283 = vsub.s32 3, %v282
    %v284 = vrot.slane %v267, %v283
    %v285 = vlaneseq
    %v286 = vshrl.u32 %v285, 7
    %v287 = vsub.s32 4, %v286
    %v288 = vrot.slane %v267, %v287
    %v289 = vlaneseq
    %v290 = vshrl.u32 %v289, 7
    %v291 = vsub.s32 5, %v290
    %v292 = vrot.slane %v267, %v291
    %v293 = vlaneseq
    %v294 = vshrl.u32 %v293, 7
    %v295 = vsub.s32 6, %v294
    %v296 = vrot.slane %v267, %v295
    %v297 = vlaneseq
    %v298 = vshrl.u32 %v297, 7
    %v299 = vsub.s32 7, %v298
    %v300 = vrot.slane %v267, %v299
    %309 = vmatprep.subr.mxu0 %v260
    %310 = vmatpush1.msra.mxu0 %v259
    %311 = vmatprep.subr.mxu0 %v252
    %312 = vmatpush1.msra.mxu0 %v251
    %313 = vmatprep.subr.mxu0 %v244
    %314 = vmatpush1.msra.mxu0 %v243
    %315 = vmatprep.subr.mxu0 %v236
    %316 = vmatpush1.msra.mxu0 %v235
    %317 = vmatprep.subr.mxu0 %v228
    %318 = vmatpush1.msra.mxu0 %v227
    %319 = vmatprep.subr.mxu0 %v220
    %320 = vmatpush1.msra.mxu0 %v219
    %321 = vmatprep.subr.mxu0 %v212
    %322 = vmatpush1.msra.mxu0 %v211
    %323 = vmatprep.subr.mxu0 %v204
    %324 = vmatpush1.msra.mxu0 %v203
    %325 = vmatprep.subr.mxu0 %v196
    %326 = vmatpush1.msra.mxu0 %v195
    %327 = vmatprep.subr.mxu0 %v188
    %328 = vmatpush1.msra.mxu0 %v187
    %329 = vmatprep.subr.mxu0 %v180
    %330 = vmatpush1.msra.mxu0 %v179
    %331 = vmatprep.subr.mxu0 %v172
    %332 = vmatpush1.msra.mxu0 %v171
    %333 = vmatprep.subr.mxu0 %v164
    %334 = vmatpush1.msra.mxu0 %v163
    %335 = vmatprep.subr.mxu0 %v156
    %336 = vmatpush1.msra.mxu0 %v155
    %337 = vmatprep.subr.mxu0 %v148
    %338 = vmatpush1.msra.mxu0 %v147
    %339 = vmatprep.subr.mxu0 %v140
    %340 = vmatpush1.msra.mxu0 %v139
    %341 = vmatprep.subr.mxu0 0.0
    %342 = vmatpush2.msra.mxu0 0.0
    %343 = vmatprep.subr.mxu0 0.0
    %344 = vmatpush2.msra.mxu0 0.0
    %345 = vmatprep.subr.mxu0 0.0
    %346 = vmatpush2.msra.mxu0 0.0
    %347 = vmatprep.subr.mxu0 0.0
    %348 = vmatpush2.msra.mxu0 0.0
    %349 = vmatprep.subr.mxu0 0.0
    %350 = vmatpush2.msra.mxu0 0.0
    %351 = vmatprep.subr.mxu0 0.0
    %352 = vmatpush2.msra.mxu0 0.0
    %353 = vmatprep.subr.mxu0 0.0
    %354 = vmatpush2.msra.mxu0 0.0
    %355 = vmatprep.subr.mxu0 0.0
    %356 = vmatpush2.msra.mxu0 0.0
    %357 = vmatprep.subr.mxu0 0.0
    %358 = vmatpush2.msra.mxu0 0.0
    %359 = vmatprep.subr.mxu0 0.0
    %360 = vmatpush2.msra.mxu0 0.0
    %361 = vmatprep.subr.mxu0 0.0
    %362 = vmatpush2.msra.mxu0 0.0
    %363 = vmatprep.subr.mxu0 0.0
    %364 = vmatpush2.msra.mxu0 0.0
    %365 = vmatprep.subr.mxu0 0.0
    %366 = vmatpush2.msra.mxu0 0.0
    %367 = vmatprep.subr.mxu0 0.0
    %368 = vmatpush2.msra.mxu0 0.0
    %369 = vmatprep.subr.mxu0 0.0
    %370 = vmatpush2.msra.mxu0 0.0
    %371 = vmatprep.subr.mxu0 0.0
    %372 = vmatpush2.msra.mxu0 0.0
    %373 = vmatprep.mubr.f32.mxu0 0.0
    %374 = vmatmul.mubr.f32.gmra.mxu0 %v137
    %v375 = vpop.f32.mrf.mxu0
    %v376 = vadd.f32 %v272, %v375
    %v377 = vpop.f32.mrf.mxu0
    %v378 = vadd.f32 %v276, %v377
    %379 = vmatprep.mubr.f32.mxu0 0.0
    %380 = vmatmul.mubr.f32.gmra.mxu0 %v138
    %v381 = vpop.f32.mrf.mxu0
    %v382 = vadd.f32 %v272, %v381
    %v383 = vpop.f32.mrf.mxu0
    %v384 = vadd.f32 %v276, %v383
    %385 = vdwg.mxu0
    %386 = vmatprep.subr.mxu0 %v262
    %387 = vmatpush1.msra.mxu0 %v261
    %388 = vmatprep.subr.mxu0 %v254
    %389 = vmatpush1.msra.mxu0 %v253
    %390 = vmatprep.subr.mxu0 %v246
    %391 = vmatpush1.msra.mxu0 %v245
    %392 = vmatprep.subr.mxu0 %v238
    %393 = vmatpush1.msra.mxu0 %v237
    %394 = vmatprep.subr.mxu0 %v230
    %395 = vmatpush1.msra.mxu0 %v229
    %396 = vmatprep.subr.mxu0 %v222
    %397 = vmatpush1.msra.mxu0 %v221
    %398 = vmatprep.subr.mxu0 %v214
    %399 = vmatpush1.msra.mxu0 %v213
    %400 = vmatprep.subr.mxu0 %v206
    %401 = vmatpush1.msra.mxu0 %v205
    %402 = vmatprep.subr.mxu0 %v198
    %403 = vmatpush1.msra.mxu0 %v197
    %404 = vmatprep.subr.mxu0 %v190
    %405 = vmatpush1.msra.mxu0 %v189
    %406 = vmatprep.subr.mxu0 %v182
    %407 = vmatpush1.msra.mxu0 %v181
    %408 = vmatprep.subr.mxu0 %v174
    %409 = vmatpush1.msra.mxu0 %v173
    %410 = vmatprep.subr.mxu0 %v166
    %411 = vmatpush1.msra.mxu0 %v165
    %412 = vmatprep.subr.mxu0 %v158
    %413 = vmatpush1.msra.mxu0 %v157
    %414 = vmatprep.subr.mxu0 %v150
    %415 = vmatpush1.msra.mxu0 %v149
    %416 = vmatprep.subr.mxu0 %v142
    %417 = vmatpush1.msra.mxu0 %v141
    %418 = vmatprep.subr.mxu0 0.0
    %419 = vmatpush2.msra.mxu0 0.0
    %420 = vmatprep.subr.mxu0 0.0
    %421 = vmatpush2.msra.mxu0 0.0
    %422 = vmatprep.subr.mxu0 0.0
    %423 = vmatpush2.msra.mxu0 0.0
    %424 = vmatprep.subr.mxu0 0.0
    %425 = vmatpush2.msra.mxu0 0.0
    %426 = vmatprep.subr.mxu0 0.0
    %427 = vmatpush2.msra.mxu0 0.0
    %428 = vmatprep.subr.mxu0 0.0
    %429 = vmatpush2.msra.mxu0 0.0
    %430 = vmatprep.subr.mxu0 0.0
    %431 = vmatpush2.msra.mxu0 0.0
    %432 = vmatprep.subr.mxu0 0.0
    %433 = vmatpush2.msra.mxu0 0.0
    %434 = vmatprep.subr.mxu0 0.0
    %435 = vmatpush2.msra.mxu0 0.0
    %436 = vmatprep.subr.mxu0 0.0
    %437 = vmatpush2.msra.mxu0 0.0
    %438 = vmatprep.subr.mxu0 0.0
    %439 = vmatpush2.msra.mxu0 0.0
    %440 = vmatprep.subr.mxu0 0.0
    %441 = vmatpush2.msra.mxu0 0.0
    %442 = vmatprep.subr.mxu0 0.0
    %443 = vmatpush2.msra.mxu0 0.0
    %444 = vmatprep.subr.mxu0 0.0
    %445 = vmatpush2.msra.mxu0 0.0
    %446 = vmatprep.subr.mxu0 0.0
    %447 = vmatpush2.msra.mxu0 0.0
    %448 = vmatprep.subr.mxu0 0.0
    %449 = vmatpush2.msra.mxu0 0.0
    %450 = vmatprep.mubr.f32.mxu0 0.0
    %451 = vmatmul.mubr.f32.gmra.mxu0 %v137
    %v452 = vpop.f32.mrf.mxu0
    %v453 = vadd.f32 %v280, %v452
    %v454 = vpop.f32.mrf.mxu0
    %v455 = vadd.f32 %v284, %v454
    %456 = vmatprep.mubr.f32.mxu0 0.0
    %457 = vmatmul.mubr.f32.gmra.mxu0 %v138
    %v458 = vpop.f32.mrf.mxu0
    %v459 = vadd.f32 %v280, %v458
    %v460 = vpop.f32.mrf.mxu0
    %v461 = vadd.f32 %v284, %v460
    %462 = vdwg.mxu0
    %463 = vmatprep.subr.mxu0 %v264
    %464 = vmatpush1.msra.mxu0 %v263
    %465 = vmatprep.subr.mxu0 %v256
    %466 = vmatpush1.msra.mxu0 %v255
    %467 = vmatprep.subr.mxu0 %v248
    %468 = vmatpush1.msra.mxu0 %v247
    %469 = vmatprep.subr.mxu0 %v240
    %470 = vmatpush1.msra.mxu0 %v239
    %471 = vmatprep.subr.mxu0 %v232
    %472 = vmatpush1.msra.mxu0 %v231
    %473 = vmatprep.subr.mxu0 %v224
    %474 = vmatpush1.msra.mxu0 %v223
    %475 = vmatprep.subr.mxu0 %v216
    %476 = vmatpush1.msra.mxu0 %v215
    %477 = vmatprep.subr.mxu0 %v208
    %478 = vmatpush1.msra.mxu0 %v207
    %479 = vmatprep.subr.mxu0 %v200
    %480 = vmatpush1.msra.mxu0 %v199
    %481 = vmatprep.subr.mxu0 %v192
    %482 = vmatpush1.msra.mxu0 %v191
    %483 = vmatprep.subr.mxu0 %v184
    %484 = vmatpush1.msra.mxu0 %v183
    %485 = vmatprep.subr.mxu0 %v176
    %486 = vmatpush1.msra.mxu0 %v175
    %487 = vmatprep.subr.mxu0 %v168
    %488 = vmatpush1.msra.mxu0 %v167
    %489 = vmatprep.subr.mxu0 %v160
    %490 = vmatpush1.msra.mxu0 %v159
    %491 = vmatprep.subr.mxu0 %v152
    %492 = vmatpush1.msra.mxu0 %v151
    %493 = vmatprep.subr.mxu0 %v144
    %494 = vmatpush1.msra.mxu0 %v143
    %495 = vmatprep.subr.mxu0 0.0
    %496 = vmatpush2.msra.mxu0 0.0
    %497 = vmatprep.subr.mxu0 0.0
    %498 = vmatpush2.msra.mxu0 0.0
    %499 = vmatprep.subr.mxu0 0.0
    %500 = vmatpush2.msra.mxu0 0.0
    %501 = vmatprep.subr.mxu0 0.0
    %502 = vmatpush2.msra.mxu0 0.0
    %503 = vmatprep.subr.mxu0 0.0
    %504 = vmatpush2.msra.mxu0 0.0
    %505 = vmatprep.subr.mxu0 0.0
    %506 = vmatpush2.msra.mxu0 0.0
    %507 = vmatprep.subr.mxu0 0.0
    %508 = vmatpush2.msra.mxu0 0.0
    %509 = vmatprep.subr.mxu0 0.0
    %510 = vmatpush2.msra.mxu0 0.0
    %511 = vmatprep.subr.mxu0 0.0
    %512 = vmatpush2.msra.mxu0 0.0
    %513 = vmatprep.subr.mxu0 0.0
    %514 = vmatpush2.msra.mxu0 0.0
    %515 = vmatprep.subr.mxu0 0.0
    %516 = vmatpush2.msra.mxu0 0.0
    %517 = vmatprep.subr.mxu0 0.0
    %518 = vmatpush2.msra.mxu0 0.0
    %519 = vmatprep.subr.mxu0 0.0
    %520 = vmatpush2.msra.mxu0 0.0
    %521 = vmatprep.subr.mxu0 0.0
    %522 = vmatpush2.msra.mxu0 0.0
    %523 = vmatprep.subr.mxu0 0.0
    %524 = vmatpush2.msra.mxu0 0.0
    %525 = vmatprep.subr.mxu0 0.0
    %526 = vmatpush2.msra.mxu0 0.0
    %527 = vmatprep.mubr.f32.mxu0 0.0
    %528 = vmatmul.mubr.f32.gmra.mxu0 %v137
    %v529 = vpop.f32.mrf.mxu0
    %v530 = vadd.f32 %v288, %v529
    %v531 = vpop.f32.mrf.mxu0
    %v532 = vadd.f32 %v292, %v531
    %533 = vmatprep.mubr.f32.mxu0 0.0
    %534 = vmatmul.mubr.f32.gmra.mxu0 %v138
    %v535 = vpop.f32.mrf.mxu0
    %v536 = vadd.f32 %v288, %v535
    %v537 = vpop.f32.mrf.mxu0
    %v538 = vadd.f32 %v292, %v537
    %539 = vdwg.mxu0
    %540 = vmatprep.subr.mxu0 %v266
    %541 = vmatpush1.msra.mxu0 %v265
    %542 = vmatprep.subr.mxu0 %v258
    %543 = vmatpush1.msra.mxu0 %v257
    %544 = vmatprep.subr.mxu0 %v250
    %545 = vmatpush1.msra.mxu0 %v249
    %546 = vmatprep.subr.mxu0 %v242
    %547 = vmatpush1.msra.mxu0 %v241
    %548 = vmatprep.subr.mxu0 %v234
    %549 = vmatpush1.msra.mxu0 %v233
    %550 = vmatprep.subr.mxu0 %v226
    %551 = vmatpush1.msra.mxu0 %v225
    %552 = vmatprep.subr.mxu0 %v218
    %553 = vmatpush1.msra.mxu0 %v217
    %554 = vmatprep.subr.mxu0 %v210
    %555 = vmatpush1.msra.mxu0 %v209
    %556 = vmatprep.subr.mxu0 %v202
    %557 = vmatpush1.msra.mxu0 %v201
    %558 = vmatprep.subr.mxu0 %v194
    %559 = vmatpush1.msra.mxu0 %v193
    %560 = vmatprep.subr.mxu0 %v186
    %561 = vmatpush1.msra.mxu0 %v185
    %562 = vmatprep.subr.mxu0 %v178
    %563 = vmatpush1.msra.mxu0 %v177
    %564 = vmatprep.subr.mxu0 %v170
    %565 = vmatpush1.msra.mxu0 %v169
    %566 = vmatprep.subr.mxu0 %v162
    %567 = vmatpush1.msra.mxu0 %v161
    %568 = vmatprep.subr.mxu0 %v154
    %569 = vmatpush1.msra.mxu0 %v153
    %570 = vmatprep.subr.mxu0 %v146
    %571 = vmatpush1.msra.mxu0 %v145
    %572 = vmatprep.subr.mxu0 0.0
    %573 = vmatpush2.msra.mxu0 0.0
    %574 = vmatprep.subr.mxu0 0.0
    %575 = vmatpush2.msra.mxu0 0.0
    %576 = vmatprep.subr.mxu0 0.0
    %577 = vmatpush2.msra.mxu0 0.0
    %578 = vmatprep.subr.mxu0 0.0
    %579 = vmatpush2.msra.mxu0 0.0
    %580 = vmatprep.subr.mxu0 0.0
    %581 = vmatpush2.msra.mxu0 0.0
    %582 = vmatprep.subr.mxu0 0.0
    %583 = vmatpush2.msra.mxu0 0.0
    %584 = vmatprep.subr.mxu0 0.0
    %585 = vmatpush2.msra.mxu0 0.0
    %586 = vmatprep.subr.mxu0 0.0
    %587 = vmatpush2.msra.mxu0 0.0
    %588 = vmatprep.subr.mxu0 0.0
    %589 = vmatpush2.msra.mxu0 0.0
    %590 = vmatprep.subr.mxu0 0.0
    %591 = vmatpush2.msra.mxu0 0.0
    %592 = vmatprep.subr.mxu0 0.0
    %593 = vmatpush2.msra.mxu0 0.0
    %594 = vmatprep.subr.mxu0 0.0
    %595 = vmatpush2.msra.mxu0 0.0
    %596 = vmatprep.subr.mxu0 0.0
    %597 = vmatpush2.msra.mxu0 0.0
    %598 = vmatprep.subr.mxu0 0.0
    %599 = vmatpush2.msra.mxu0 0.0
    %600 = vmatprep.subr.mxu0 0.0
    %601 = vmatpush2.msra.mxu0 0.0
    %602 = vmatprep.subr.mxu0 0.0
    %603 = vmatpush2.msra.mxu0 0.0
    %604 = vmatprep.mubr.f32.mxu0 0.0
    %605 = vmatmul.mubr.f32.gmra.mxu0 %v137
    %v606 = vpop.f32.mrf.mxu0
    %v607 = vadd.f32 %v296, %v606
    %v608 = vpop.f32.mrf.mxu0
    %v609 = vadd.f32 %v300, %v608
    %610 = vmatprep.mubr.f32.mxu0 0.0
    %611 = vmatmul.mubr.f32.gmra.mxu0 %v138
    %v612 = vpop.f32.mrf.mxu0
    %v613 = vadd.f32 %v296, %v612
    %v614 = vpop.f32.mrf.mxu0
    %v615 = vadd.f32 %v300, %v614
    %616 = vdwg.mxu0
    %v617 = vld [vmem:[#allocation5] sm:$0xff]
    %v618 = vld [vmem:[#allocation5 + $0x8] sm:$0xff]
    %v619 = vld [vmem:[#allocation5 + $0x10] sm:$0xff]
    %v620 = vld [vmem:[#allocation5 + $0x18] sm:$0xff]
    %v621 = vld [vmem:[#allocation5 + $0x20] sm:$0xff]
    %v622 = vld [vmem:[#allocation5 + $0x28] sm:$0xff]
    %v623 = vld [vmem:[#allocation5 + $0x30] sm:$0xff]
    %v624 = vld [vmem:[#allocation5 + $0x38] sm:$0xff]
    %v625 = vld [vmem:[#allocation5 + $0x40] sm:$0xff]
    %v626 = vld [vmem:[#allocation5 + $0x48] sm:$0xff]
    %v627 = vld [vmem:[#allocation5 + $0x50] sm:$0xff]
    %v628 = vld [vmem:[#allocation5 + $0x58] sm:$0xff]
    %v629 = vld [vmem:[#allocation5 + $0x60] sm:$0xff]
    %v630 = vld [vmem:[#allocation5 + $0x68] sm:$0xff]
    %v631 = vld [vmem:[#allocation5 + $0x70] sm:$0xff]
    %v632 = vld [vmem:[#allocation5 + $0x78] sm:$0xff]
    %v633 = vld [vmem:[#allocation5 + $0x80] sm:$0xff]
    %v634 = vld [vmem:[#allocation5 + $0x88] sm:$0xff]
    %v635 = vld [vmem:[#allocation5 + $0x90] sm:$0xff]
    %v636 = vld [vmem:[#allocation5 + $0x98] sm:$0xff]
    %v637 = vld [vmem:[#allocation5 + $0xa0] sm:$0xff]
    %v638 = vld [vmem:[#allocation5 + $0xa8] sm:$0xff]
    %v639 = vld [vmem:[#allocation5 + $0xb0] sm:$0xff]
    %v640 = vld [vmem:[#allocation5 + $0xb8] sm:$0xff]
    %v641 = vld [vmem:[#allocation5 + $0xc0] sm:$0xff]
    %v642 = vld [vmem:[#allocation5 + $0xc8] sm:$0xff]
    %v643 = vld [vmem:[#allocation5 + $0xd0] sm:$0xff]
    %v644 = vld [vmem:[#allocation5 + $0xd8] sm:$0xff]
    %v645 = vld [vmem:[#allocation5 + $0xe0] sm:$0xff]
    %v646 = vld [vmem:[#allocation5 + $0xe8] sm:$0xff]
    %v647 = vld [vmem:[#allocation5 + $0xf0] sm:$0xff]
    %v648 = vld [vmem:[#allocation5 + $0xf8] sm:$0xff]
    %v649 = vld [vmem:[#allocation5 + $0x100] sm:$0xff]
    %v650 = vld [vmem:[#allocation5 + $0x108] sm:$0xff]
    %v651 = vld [vmem:[#allocation5 + $0x110] sm:$0xff]
    %v652 = vld [vmem:[#allocation5 + $0x118] sm:$0xff]
    %v653 = vld [vmem:[#allocation5 + $0x120] sm:$0xff]
    %v654 = vld [vmem:[#allocation5 + $0x128] sm:$0xff]
    %v655 = vld [vmem:[#allocation5 + $0x130] sm:$0xff]
    %v656 = vld [vmem:[#allocation5 + $0x138] sm:$0xff]
    %v657 = vld [vmem:[#allocation5 + $0x140] sm:$0xff]
    %v658 = vld [vmem:[#allocation5 + $0x148] sm:$0xff]
    %v659 = vld [vmem:[#allocation5 + $0x150] sm:$0xff]
    %v660 = vld [vmem:[#allocation5 + $0x158] sm:$0xff]
    %v661 = vld [vmem:[#allocation5 + $0x160] sm:$0xff]
    %v662 = vld [vmem:[#allocation5 + $0x168] sm:$0xff]
    %v663 = vld [vmem:[#allocation5 + $0x170] sm:$0xff]
    %v664 = vld [vmem:[#allocation5 + $0x178] sm:$0xff]
    %v665 = vld [vmem:[#allocation5 + $0x180] sm:$0xff]
    %v666 = vld [vmem:[#allocation5 + $0x188] sm:$0xff]
    %v667 = vld [vmem:[#allocation5 + $0x190] sm:$0xff]
    %v668 = vld [vmem:[#allocation5 + $0x198] sm:$0xff]
    %v669 = vld [vmem:[#allocation5 + $0x1a0] sm:$0xff]
    %v670 = vld [vmem:[#allocation5 + $0x1a8] sm:$0xff]
    %v671 = vld [vmem:[#allocation5 + $0x1b0] sm:$0xff]
    %v672 = vld [vmem:[#allocation5 + $0x1b8] sm:$0xff]
    %v673 = vld [vmem:[#allocation5 + $0x1c0] sm:$0xff]
    %v674 = vld [vmem:[#allocation5 + $0x1c8] sm:$0xff]
    %v675 = vld [vmem:[#allocation5 + $0x1d0] sm:$0xff]
    %v676 = vld [vmem:[#allocation5 + $0x1d8] sm:$0xff]
    %v677 = vld [vmem:[#allocation5 + $0x1e0] sm:$0xff]
    %v678 = vld [vmem:[#allocation5 + $0x1e8] sm:$0xff]
    %v679 = vld [vmem:[#allocation5 + $0x1f0] sm:$0xff]
    %v680 = vld [vmem:[#allocation5 + $0x1f8] sm:$0xff]
    %v681 = vld [vmem:[#allocation7] sm:$0xff]
    %v682 = vld [vmem:[#allocation7 + $0x8] sm:$0xff]
    %v683 = vld [vmem:[#allocation7 + $0x10] sm:$0xff]
    %v684 = vld [vmem:[#allocation7 + $0x18] sm:$0xff]
    %v685 = vld [vmem:[#allocation7 + $0x20] sm:$0xff]
    %v686 = vld [vmem:[#allocation7 + $0x28] sm:$0xff]
    %v687 = vld [vmem:[#allocation7 + $0x30] sm:$0xff]
    %v688 = vld [vmem:[#allocation7 + $0x38] sm:$0xff]
    %v689 = vld [vmem:[#allocation7 + $0x40] sm:$0xff]
    %v690 = vld [vmem:[#allocation7 + $0x48] sm:$0xff]
    %v691 = vld [vmem:[#allocation7 + $0x50] sm:$0xff]
    %v692 = vld [vmem:[#allocation7 + $0x58] sm:$0xff]
    %v693 = vld [vmem:[#allocation7 + $0x60] sm:$0xff]
    %v694 = vld [vmem:[#allocation7 + $0x68] sm:$0xff]
    %v695 = vld [vmem:[#allocation7 + $0x70] sm:$0xff]
    %v696 = vld [vmem:[#allocation7 + $0x78] sm:$0xff]
    %v697 = vld [vmem:[#allocation7 + $0x80] sm:$0xff]
    %v698 = vld [vmem:[#allocation7 + $0x88] sm:$0xff]
    %v699 = vld [vmem:[#allocation7 + $0x90] sm:$0xff]
    %v700 = vld [vmem:[#allocation7 + $0x98] sm:$0xff]
    %v701 = vld [vmem:[#allocation7 + $0xa0] sm:$0xff]
    %v702 = vld [vmem:[#allocation7 + $0xa8] sm:$0xff]
    %v703 = vld [vmem:[#allocation7 + $0xb0] sm:$0xff]
    %v704 = vld [vmem:[#allocation7 + $0xb8] sm:$0xff]
    %v705 = vld [vmem:[#allocation7 + $0xc0] sm:$0xff]
    %v706 = vld [vmem:[#allocation7 + $0xc8] sm:$0xff]
    %v707 = vld [vmem:[#allocation7 + $0xd0] sm:$0xff]
    %v708 = vld [vmem:[#allocation7 + $0xd8] sm:$0xff]
    %v709 = vld [vmem:[#allocation7 + $0xe0] sm:$0xff]
    %v710 = vld [vmem:[#allocation7 + $0xe8] sm:$0xff]
    %v711 = vld [vmem:[#allocation7 + $0xf0] sm:$0xff]
    %v712 = vld [vmem:[#allocation7 + $0xf8] sm:$0xff]
    %v713 = vld [vmem:[#allocation7 + $0x100] sm:$0xff]
    %v714 = vld [vmem:[#allocation7 + $0x108] sm:$0xff]
    %v715 = vld [vmem:[#allocation7 + $0x110] sm:$0xff]
    %v716 = vld [vmem:[#allocation7 + $0x118] sm:$0xff]
    %v717 = vld [vmem:[#allocation7 + $0x120] sm:$0xff]
    %v718 = vld [vmem:[#allocation7 + $0x128] sm:$0xff]
    %v719 = vld [vmem:[#allocation7 + $0x130] sm:$0xff]
    %v720 = vld [vmem:[#allocation7 + $0x138] sm:$0xff]
    %v721 = vld [vmem:[#allocation7 + $0x140] sm:$0xff]
    %v722 = vld [vmem:[#allocation7 + $0x148] sm:$0xff]
    %v723 = vld [vmem:[#allocation7 + $0x150] sm:$0xff]
    %v724 = vld [vmem:[#allocation7 + $0x158] sm:$0xff]
    %v725 = vld [vmem:[#allocation7 + $0x160] sm:$0xff]
    %v726 = vld [vmem:[#allocation7 + $0x168] sm:$0xff]
    %v727 = vld [vmem:[#allocation7 + $0x170] sm:$0xff]
    %v728 = vld [vmem:[#allocation7 + $0x178] sm:$0xff]
    %v729 = vld [vmem:[#allocation7 + $0x180] sm:$0xff]
    %v730 = vld [vmem:[#allocation7 + $0x188] sm:$0xff]
    %v731 = vld [vmem:[#allocation7 + $0x190] sm:$0xff]
    %v732 = vld [vmem:[#allocation7 + $0x198] sm:$0xff]
    %v733 = vld [vmem:[#allocation7 + $0x1a0] sm:$0xff]
    %v734 = vld [vmem:[#allocation7 + $0x1a8] sm:$0xff]
    %v735 = vld [vmem:[#allocation7 + $0x1b0] sm:$0xff]
    %v736 = vld [vmem:[#allocation7 + $0x1b8] sm:$0xff]
    %v737 = vld [vmem:[#allocation7 + $0x1c0] sm:$0xff]
    %v738 = vld [vmem:[#allocation7 + $0x1c8] sm:$0xff]
    %v739 = vld [vmem:[#allocation7 + $0x1d0] sm:$0xff]
    %v740 = vld [vmem:[#allocation7 + $0x1d8] sm:$0xff]
    %v741 = vld [vmem:[#allocation7 + $0x1e0] sm:$0xff]
    %v742 = vld [vmem:[#allocation7 + $0x1e8] sm:$0xff]
    %v743 = vld [vmem:[#allocation7 + $0x1f0] sm:$0xff]
    %v744 = vld [vmem:[#allocation7 + $0x1f8] sm:$0xff]
    %745 = vmatprep.subr.mxu0 %v678
    %746 = vmatpush1.msra.mxu0 %v677
    %747 = vmatprep.subr.mxu0 %v674
    %748 = vmatpush1.msra.mxu0 %v673
    %749 = vmatprep.subr.mxu0 %v670
    %750 = vmatpush1.msra.mxu0 %v669
    %751 = vmatprep.subr.mxu0 %v666
    %752 = vmatpush1.msra.mxu0 %v665
    %753 = vmatprep.subr.mxu0 %v662
    %754 = vmatpush1.msra.mxu0 %v661
    %755 = vmatprep.subr.mxu0 %v658
    %756 = vmatpush1.msra.mxu0 %v657
    %757 = vmatprep.subr.mxu0 %v654
    %758 = vmatpush1.msra.mxu0 %v653
    %759 = vmatprep.subr.mxu0 %v650
    %760 = vmatpush1.msra.mxu0 %v649
    %761 = vmatprep.subr.mxu0 %v646
    %762 = vmatpush1.msra.mxu0 %v645
    %763 = vmatprep.subr.mxu0 %v642
    %764 = vmatpush1.msra.mxu0 %v641
    %765 = vmatprep.subr.mxu0 %v638
    %766 = vmatpush1.msra.mxu0 %v637
    %767 = vmatprep.subr.mxu0 %v634
    %768 = vmatpush1.msra.mxu0 %v633
    %769 = vmatprep.subr.mxu0 %v630
    %770 = vmatpush1.msra.mxu0 %v629
    %771 = vmatprep.subr.mxu0 %v626
    %772 = vmatpush1.msra.mxu0 %v625
    %773 = vmatprep.subr.mxu0 %v622
    %774 = vmatpush1.msra.mxu0 %v621
    %775 = vmatprep.subr.mxu0 %v618
    %776 = vmatpush1.msra.mxu0 %v617
    %777 = vmatprep.subr.mxu0 0.0
    %778 = vmatpush2.msra.mxu0 0.0
    %779 = vmatprep.subr.mxu0 0.0
    %780 = vmatpush2.msra.mxu0 0.0
    %781 = vmatprep.subr.mxu0 0.0
    %782 = vmatpush2.msra.mxu0 0.0
    %783 = vmatprep.subr.mxu0 0.0
    %784 = vmatpush2.msra.mxu0 0.0
    %785 = vmatprep.subr.mxu0 0.0
    %786 = vmatpush2.msra.mxu0 0.0
    %787 = vmatprep.subr.mxu0 0.0
    %788 = vmatpush2.msra.mxu0 0.0
    %789 = vmatprep.subr.mxu0 0.0
    %790 = vmatpush2.msra.mxu0 0.0
    %791 = vmatprep.subr.mxu0 0.0
    %792 = vmatpush2.msra.mxu0 0.0
    %793 = vmatprep.subr.mxu0 0.0
    %794 = vmatpush2.msra.mxu0 0.0
    %795 = vmatprep.subr.mxu0 0.0
    %796 = vmatpush2.msra.mxu0 0.0
    %797 = vmatprep.subr.mxu0 0.0
    %798 = vmatpush2.msra.mxu0 0.0
    %799 = vmatprep.subr.mxu0 0.0
    %800 = vmatpush2.msra.mxu0 0.0
    %801 = vmatprep.subr.mxu0 0.0
    %802 = vmatpush2.msra.mxu0 0.0
    %803 = vmatprep.subr.mxu0 0.0
    %804 = vmatpush2.msra.mxu0 0.0
    %805 = vmatprep.subr.mxu0 0.0
    %806 = vmatpush2.msra.mxu0 0.0
    %807 = vmatprep.subr.mxu0 0.0
    %808 = vmatpush2.msra.mxu0 0.0
    %809 = vmatprep.mubr.f32.mxu0 0.0
    %810 = vmatmul.mubr.f32.gmra.mxu0 0.0
    %v811 = vpop.f32.mrf.mxu0
    %v812 = vadd.f32 0.0, %v811
    %v813 = vpop.f32.mrf.mxu0
    %v814 = vadd.f32 0.0, %v813
    %815 = vdwg.mxu0
    %816 = vmatprep.subr.mxu0 %v680
    %817 = vmatpush1.msra.mxu0 %v679
    %818 = vmatprep.subr.mxu0 %v676
    %819 = vmatpush1.msra.mxu0 %v675
    %820 = vmatprep.subr.mxu0 %v672
    %821 = vmatpush1.msra.mxu0 %v671
    %822 = vmatprep.subr.mxu0 %v668
    %823 = vmatpush1.msra.mxu0 %v667
    %824 = vmatprep.subr.mxu0 %v664
    %825 = vmatpush1.msra.mxu0 %v663
    %826 = vmatprep.subr.mxu0 %v660
    %827 = vmatpush1.msra.mxu0 %v659
    %828 = vmatprep.subr.mxu0 %v656
    %829 = vmatpush1.msra.mxu0 %v655
    %830 = vmatprep.subr.mxu0 %v652
    %831 = vmatpush1.msra.mxu0 %v651
    %832 = vmatprep.subr.mxu0 %v648
    %833 = vmatpush1.msra.mxu0 %v647
    %834 = vmatprep.subr.mxu0 %v644
    %835 = vmatpush1.msra.mxu0 %v643
    %836 = vmatprep.subr.mxu0 %v640
    %837 = vmatpush1.msra.mxu0 %v639
    %838 = vmatprep.subr.mxu0 %v636
    %839 = vmatpush1.msra.mxu0 %v635
    %840 = vmatprep.subr.mxu0 %v632
    %841 = vmatpush1.msra.mxu0 %v631
    %842 = vmatprep.subr.mxu0 %v628
    %843 = vmatpush1.msra.mxu0 %v627
    %844 = vmatprep.subr.mxu0 %v624
    %845 = vmatpush1.msra.mxu0 %v623
    %846 = vmatprep.subr.mxu0 %v620
    %847 = vmatpush1.msra.mxu0 %v619
    %848 = vmatprep.subr.mxu0 0.0
    %849 = vmatpush2.msra.mxu0 0.0
    %850 = vmatprep.subr.mxu0 0.0
    %851 = vmatpush2.msra.mxu0 0.0
    %852 = vmatprep.subr.mxu0 0.0
    %853 = vmatpush2.msra.mxu0 0.0
    %854 = vmatprep.subr.mxu0 0.0
    %855 = vmatpush2.msra.mxu0 0.0
    %856 = vmatprep.subr.mxu0 0.0
    %857 = vmatpush2.msra.mxu0 0.0
    %858 = vmatprep.subr.mxu0 0.0
    %859 = vmatpush2.msra.mxu0 0.0
    %860 = vmatprep.subr.mxu0 0.0
    %861 = vmatpush2.msra.mxu0 0.0
    %862 = vmatprep.subr.mxu0 0.0
    %863 = vmatpush2.msra.mxu0 0.0
    %864 = vmatprep.subr.mxu0 0.0
    %865 = vmatpush2.msra.mxu0 0.0
    %866 = vmatprep.subr.mxu0 0.0
    %867 = vmatpush2.msra.mxu0 0.0
    %868 = vmatprep.subr.mxu0 0.0
    %869 = vmatpush2.msra.mxu0 0.0
    %870 = vmatprep.subr.mxu0 0.0
    %871 = vmatpush2.msra.mxu0 0.0
    %872 = vmatprep.subr.mxu0 0.0
    %873 = vmatpush2.msra.mxu0 0.0
    %874 = vmatprep.subr.mxu0 0.0
    %875 = vmatpush2.msra.mxu0 0.0
    %876 = vmatprep.subr.mxu0 0.0
    %877 = vmatpush2.msra.mxu0 0.0
    %878 = vmatprep.subr.mxu0 0.0
    %879 = vmatpush2.msra.mxu0 0.0
    %880 = vmatprep.mubr.f32.mxu0 0.0
    %881 = vmatmul.mubr.f32.gmra.mxu0 0.0
    %v882 = vpop.f32.mrf.mxu0
    %v883 = vadd.f32 0.0, %v882
    %v884 = vpop.f32.mrf.mxu0
    %v885 = vadd.f32 0.0, %v884
    %886 = vdwg.mxu0
    %v887 = vadd.f32 %v376, %v812
    %v888 = vadd.f32 %v378, %v814
    %v889 = vadd.f32 %v453, %v883
    %v890 = vadd.f32 %v455, %v885
    %891 = vmatprep.subr.mxu0 %v742
    %892 = vmatpush1.msra.mxu0 %v741
    %893 = vmatprep.subr.mxu0 %v738
    %894 = vmatpush1.msra.mxu0 %v737
    %895 = vmatprep.subr.mxu0 %v734
    %896 = vmatpush1.msra.mxu0 %v733
    %897 = vmatprep.subr.mxu0 %v730
    %898 = vmatpush1.msra.mxu0 %v729
    %899 = vmatprep.subr.mxu0 %v726
    %900 = vmatpush1.msra.mxu0 %v725
    %901 = vmatprep.subr.mxu0 %v722
    %902 = vmatpush1.msra.mxu0 %v721
    %903 = vmatprep.subr.mxu0 %v718
    %904 = vmatpush1.msra.mxu0 %v717
    %905 = vmatprep.subr.mxu0 %v714
    %906 = vmatpush1.msra.mxu0 %v713
    %907 = vmatprep.subr.mxu0 %v710
    %908 = vmatpush1.msra.mxu0 %v709
    %909 = vmatprep.subr.mxu0 %v706
    %910 = vmatpush1.msra.mxu0 %v705
    %911 = vmatprep.subr.mxu0 %v702
    %912 = vmatpush1.msra.mxu0 %v701
    %913 = vmatprep.subr.mxu0 %v698
    %914 = vmatpush1.msra.mxu0 %v697
    %915 = vmatprep.subr.mxu0 %v694
    %916 = vmatpush1.msra.mxu0 %v693
    %917 = vmatprep.subr.mxu0 %v690
    %918 = vmatpush1.msra.mxu0 %v689
    %919 = vmatprep.subr.mxu0 %v686
    %920 = vmatpush1.msra.mxu0 %v685
    %921 = vmatprep.subr.mxu0 %v682
    %922 = vmatpush1.msra.mxu0 %v681
    %923 = vmatprep.subr.mxu0 0.0
    %924 = vmatpush2.msra.mxu0 0.0
    %925 = vmatprep.subr.mxu0 0.0
    %926 = vmatpush2.msra.mxu0 0.0
    %927 = vmatprep.subr.mxu0 0.0
    %928 = vmatpush2.msra.mxu0 0.0
    %929 = vmatprep.subr.mxu0 0.0
    %930 = vmatpush2.msra.mxu0 0.0
    %931 = vmatprep.subr.mxu0 0.0
    %932 = vmatpush2.msra.mxu0 0.0
    %933 = vmatprep.subr.mxu0 0.0
    %934 = vmatpush2.msra.mxu0 0.0
    %935 = vmatprep.subr.mxu0 0.0
    %936 = vmatpush2.msra.mxu0 0.0
    %937 = vmatprep.subr.mxu0 0.0
    %938 = vmatpush2.msra.mxu0 0.0
    %939 = vmatprep.subr.mxu0 0.0
    %940 = vmatpush2.msra.mxu0 0.0
    %941 = vmatprep.subr.mxu0 0.0
    %942 = vmatpush2.msra.mxu0 0.0
    %943 = vmatprep.subr.mxu0 0.0
    %944 = vmatpush2.msra.mxu0 0.0
    %945 = vmatprep.subr.mxu0 0.0
    %946 = vmatpush2.msra.mxu0 0.0
    %947 = vmatprep.subr.mxu0 0.0
    %948 = vmatpush2.msra.mxu0 0.0
    %949 = vmatprep.subr.mxu0 0.0
    %950 = vmatpush2.msra.mxu0 0.0
    %951 = vmatprep.subr.mxu0 0.0
    %952 = vmatpush2.msra.mxu0 0.0
    %953 = vmatprep.subr.mxu0 0.0
    %954 = vmatpush2.msra.mxu0 0.0
    %955 = vmatprep.mubr.f32.mxu0 0.0
    %956 = vmatmul.mubr.f32.gmra.mxu0 0.0
    %v957 = vpop.f32.mrf.mxu0
    %v958 = vadd.f32 0.0, %v957
    %v959 = vpop.f32.mrf.mxu0
    %v960 = vadd.f32 0.0, %v959
    %961 = vdwg.mxu0
    %962 = vmatprep.subr.mxu0 %v744
    %963 = vmatpush1.msra.mxu0 %v743
    %964 = vmatprep.subr.mxu0 %v740
    %965 = vmatpush1.msra.mxu0 %v739
    %966 = vmatprep.subr.mxu0 %v736
    %967 = vmatpush1.msra.mxu0 %v735
    %968 = vmatprep.subr.mxu0 %v732
    %969 = vmatpush1.msra.mxu0 %v731
    %970 = vmatprep.subr.mxu0 %v728
    %971 = vmatpush1.msra.mxu0 %v727
    %972 = vmatprep.subr.mxu0 %v724
    %973 = vmatpush1.msra.mxu0 %v723
    %974 = vmatprep.subr.mxu0 %v720
    %975 = vmatpush1.msra.mxu0 %v719
    %976 = vmatprep.subr.mxu0 %v716
    %977 = vmatpush1.msra.mxu0 %v715
    %978 = vmatprep.subr.mxu0 %v712
    %979 = vmatpush1.msra.mxu0 %v711
    %980 = vmatprep.subr.mxu0 %v708
    %981 = vmatpush1.msra.mxu0 %v707
    %982 = vmatprep.subr.mxu0 %v704
    %983 = vmatpush1.msra.mxu0 %v703
    %984 = vmatprep.subr.mxu0 %v700
    %985 = vmatpush1.msra.mxu0 %v699
    %986 = vmatprep.subr.mxu0 %v696
    %987 = vmatpush1.msra.mxu0 %v695
    %988 = vmatprep.subr.mxu0 %v692
    %989 = vmatpush1.msra.mxu0 %v691
    %990 = vmatprep.subr.mxu0 %v688
    %991 = vmatpush1.msra.mxu0 %v687
    %992 = vmatprep.subr.mxu0 %v684
    %993 = vmatpush1.msra.mxu0 %v683
    %994 = vmatprep.subr.mxu0 0.0
    %995 = vmatpush2.msra.mxu0 0.0
    %996 = vmatprep.subr.mxu0 0.0
    %997 = vmatpush2.msra.mxu0 0.0
    %998 = vmatprep.subr.mxu0 0.0
    %999 = vmatpush2.msra.mxu0 0.0
    %1000 = vmatprep.subr.mxu0 0.0
    %1001 = vmatpush2.msra.mxu0 0.0
    %1002 = vmatprep.subr.mxu0 0.0
    %1003 = vmatpush2.msra.mxu0 0.0
    %1004 = vmatprep.subr.mxu0 0.0
    %1005 = vmatpush2.msra.mxu0 0.0
    %1006 = vmatprep.subr.mxu0 0.0
    %1007 = vmatpush2.msra.mxu0 0.0
    %1008 = vmatprep.subr.mxu0 0.0
    %1009 = vmatpush2.msra.mxu0 0.0
    %1010 = vmatprep.subr.mxu0 0.0
    %1011 = vmatpush2.msra.mxu0 0.0
    %1012 = vmatprep.subr.mxu0 0.0
    %1013 = vmatpush2.msra.mxu0 0.0
    %1014 = vmatprep.subr.mxu0 0.0
    %1015 = vmatpush2.msra.mxu0 0.0
    %1016 = vmatprep.subr.mxu0 0.0
    %1017 = vmatpush2.msra.mxu0 0.0
    %1018 = vmatprep.subr.mxu0 0.0
    %1019 = vmatpush2.msra.mxu0 0.0
    %1020 = vmatprep.subr.mxu0 0.0
    %1021 = vmatpush2.msra.mxu0 0.0
    %1022 = vmatprep.subr.mxu0 0.0
    %1023 = vmatpush2.msra.mxu0 0.0
    %1024 = vmatprep.subr.mxu0 0.0
    %1025 = vmatpush2.msra.mxu0 0.0
    %1026 = vmatprep.mubr.f32.mxu0 0.0
    %1027 = vmatmul.mubr.f32.gmra.mxu0 0.0
    %v1028 = vpop.f32.mrf.mxu0
    %v1029 = vadd.f32 0.0, %v1028
    %v1030 = vpop.f32.mrf.mxu0
    %v1031 = vadd.f32 0.0, %v1030
    %1032 = vdwg.mxu0
    %v1037 = vrot.slane %v958, 2
    %v1038 = vrot.slane %v960, 2
    %v1039 = vrot.slane %v1029, 2
    %v1040 = vrot.slane %v1031, 2
    %v1045 = vadd.f32 %v536, %v1037
    %v1046 = vadd.f32 %v538, %v1038
    %v1047 = vadd.f32 %v613, %v1039
    %v1048 = vadd.f32 %v615, %v1040
    %v1049 = vxor.u32 %v887, 2147483648
    %v1050 = vmul.f32 %v1049, 1.442695
    %v1051 = vpow.pop %v1050
    %v1052 = vadd.f32 %v1051, 1.0
    %v1053 = vrcp.pop %v1052
    %v1054 = vmul.f32 1.0, %v1053
    %v1055 = vxor.u32 %v1045, 2147483648
    %v1056 = vmul.f32 %v1055, 1.442695
    %v1057 = vpow.pop %v1056
    %v1058 = vadd.f32 %v1057, 1.0
    %v1059 = vrcp.pop %v1058
    %v1060 = vmul.f32 1.0, %v1059
    %v1061 = vxor.u32 %v888, 2147483648
    %v1062 = vmul.f32 %v1061, 1.442695
    %v1063 = vpow.pop %v1062
    %v1064 = vadd.f32 %v1063, 1.0
    %v1065 = vrcp.pop %v1064
    %v1066 = vmul.f32 1.0, %v1065
    %v1067 = vxor.u32 %v1046, 2147483648
    %v1068 = vmul.f32 %v1067, 1.442695
    %v1069 = vpow.pop %v1068
    %v1070 = vadd.f32 %v1069, 1.0
    %v1071 = vrcp.pop %v1070
    %v1072 = vmul.f32 1.0, %v1071
    %v1073 = vtanh.pop %v889
    %v1074 = vtanh.pop %v1047
    %v1075 = vxor.u32 %v890, 2147483648
    %v1076 = vmul.f32 %v1075, 1.442695
    %v1077 = vpow.pop %v1076
    %v1078 = vadd.f32 %v1077, 1.0
    %v1079 = vrcp.pop %v1078
    %v1080 = vmul.f32 1.0, %v1079
    %v1081 = vxor.u32 %v1048, 2147483648
    %v1082 = vmul.f32 %v1081, 1.442695
    %v1083 = vpow.pop %v1082
    %v1084 = vadd.f32 %v1083, 1.0
    %v1085 = vrcp.pop %v1084
    %v1086 = vmul.f32 1.0, %v1085
    %v1087 = vmul.f32 %v1066, 0.0
    %v1088 = vmul.f32 %v1054, %v1073
    %v1089 = vadd.f32 %v1087, %v1088
    %v1090 = vmul.f32 %v1072, 0.0
    %v1091 = vmul.f32 %v1060, %v1074
    %v1092 = vadd.f32 %v1090, %v1091
    %v1093 = vtanh.pop %v1089
    %v1094 = vmul.f32 %v1080, %v1093
    %v1095 = vtanh.pop %v1092
    %v1096 = vmul.f32 %v1086, %v1095
    %1097 = vmatprep.subr.mxu0 %v678
    %1098 = vmatpush1.msra.mxu0 %v677
    %1099 = vmatprep.subr.mxu0 %v674
    %1100 = vmatpush1.msra.mxu0 %v673
    %1101 = vmatprep.subr.mxu0 %v670
    %1102 = vmatpush1.msra.mxu0 %v669
    %1103 = vmatprep.subr.mxu0 %v666
    %1104 = vmatpush1.msra.mxu0 %v665
    %1105 = vmatprep.subr.mxu0 %v662
    %1106 = vmatpush1.msra.mxu0 %v661
    %1107 = vmatprep.subr.mxu0 %v658
    %1108 = vmatpush1.msra.mxu0 %v657
    %1109 = vmatprep.subr.mxu0 %v654
    %1110 = vmatpush1.msra.mxu0 %v653
    %1111 = vmatprep.subr.mxu0 %v650
    %1112 = vmatpush1.msra.mxu0 %v649
    %1113 = vmatprep.subr.mxu0 %v646
    %1114 = vmatpush1.msra.mxu0 %v645
    %1115 = vmatprep.subr.mxu0 %v642
    %1116 = vmatpush1.msra.mxu0 %v641
    %1117 = vmatprep.subr.mxu0 %v638
    %1118 = vmatpush1.msra.mxu0 %v637
    %1119 = vmatprep.subr.mxu0 %v634
    %1120 = vmatpush1.msra.mxu0 %v633
    %1121 = vmatprep.subr.mxu0 %v630
    %1122 = vmatpush1.msra.mxu0 %v629
    %1123 = vmatprep.subr.mxu0 %v626
    %1124 = vmatpush1.msra.mxu0 %v625
    %1125 = vmatprep.subr.mxu0 %v622
    %1126 = vmatpush1.msra.mxu0 %v621
    %1127 = vmatprep.subr.mxu0 %v618
    %1128 = vmatpush1.msra.mxu0 %v617
    %1129 = vmatprep.subr.mxu0 0.0
    %1130 = vmatpush2.msra.mxu0 0.0
    %1131 = vmatprep.subr.mxu0 0.0
    %1132 = vmatpush2.msra.mxu0 0.0
    %1133 = vmatprep.subr.mxu0 0.0
    %1134 = vmatpush2.msra.mxu0 0.0
    %1135 = vmatprep.subr.mxu0 0.0
    %1136 = vmatpush2.msra.mxu0 0.0
    %1137 = vmatprep.subr.mxu0 0.0
    %1138 = vmatpush2.msra.mxu0 0.0
    %1139 = vmatprep.subr.mxu0 0.0
    %1140 = vmatpush2.msra.mxu0 0.0
    %1141 = vmatprep.subr.mxu0 0.0
    %1142 = vmatpush2.msra.mxu0 0.0
    %1143 = vmatprep.subr.mxu0 0.0
    %1144 = vmatpush2.msra.mxu0 0.0
    %1145 = vmatprep.subr.mxu0 0.0
    %1146 = vmatpush2.msra.mxu0 0.0
    %1147 = vmatprep.subr.mxu0 0.0
    %1148 = vmatpush2.msra.mxu0 0.0
    %1149 = vmatprep.subr.mxu0 0.0
    %1150 = vmatpush2.msra.mxu0 0.0
    %1151 = vmatprep.subr.mxu0 0.0
    %1152 = vmatpush2.msra.mxu0 0.0
    %1153 = vmatprep.subr.mxu0 0.0
    %1154 = vmatpush2.msra.mxu0 0.0
    %1155 = vmatprep.subr.mxu0 0.0
    %1156 = vmatpush2.msra.mxu0 0.0
    %1157 = vmatprep.subr.mxu0 0.0
    %1158 = vmatpush2.msra.mxu0 0.0
    %1159 = vmatprep.subr.mxu0 0.0
    %1160 = vmatpush2.msra.mxu0 0.0
    %1161 = vmatprep.mubr.f32.mxu0 0.0
    %1162 = vmatmul.mubr.f32.gmra.mxu0 %v1094
    %v1163 = vpop.f32.mrf.mxu0
    %v1164 = vadd.f32 0.0, %v1163
    %v1165 = vpop.f32.mrf.mxu0
    %v1166 = vadd.f32 0.0, %v1165
    %1167 = vdwg.mxu0
    %1168 = vmatprep.subr.mxu0 %v680
    %1169 = vmatpush1.msra.mxu0 %v679
    %1170 = vmatprep.subr.mxu0 %v676
    %1171 = vmatpush1.msra.mxu0 %v675
    %1172 = vmatprep.subr.mxu0 %v672
    %1173 = vmatpush1.msra.mxu0 %v671
    %1174 = vmatprep.subr.mxu0 %v668
    %1175 = vmatpush1.msra.mxu0 %v667
    %1176 = vmatprep.subr.mxu0 %v664
    %1177 = vmatpush1.msra.mxu0 %v663
    %1178 = vmatprep.subr.mxu0 %v660
    %1179 = vmatpush1.msra.mxu0 %v659
    %1180 = vmatprep.subr.mxu0 %v656
    %1181 = vmatpush1.msra.mxu0 %v655
    %1182 = vmatprep.subr.mxu0 %v652
    %1183 = vmatpush1.msra.mxu0 %v651
    %1184 = vmatprep.subr.mxu0 %v648
    %1185 = vmatpush1.msra.mxu0 %v647
    %1186 = vmatprep.subr.mxu0 %v644
    %1187 = vmatpush1.msra.mxu0 %v643
    %1188 = vmatprep.subr.mxu0 %v640
    %1189 = vmatpush1.msra.mxu0 %v639
    %1190 = vmatprep.subr.mxu0 %v636
    %1191 = vmatpush1.msra.mxu0 %v635
    %1192 = vmatprep.subr.mxu0 %v632
    %1193 = vmatpush1.msra.mxu0 %v631
    %1194 = vmatprep.subr.mxu0 %v628
    %1195 = vmatpush1.msra.mxu0 %v627
    %1196 = vmatprep.subr.mxu0 %v624
    %1197 = vmatpush1.msra.mxu0 %v623
    %1198 = vmatprep.subr.mxu0 %v620
    %1199 = vmatpush1.msra.mxu0 %v619
    %1200 = vmatprep.subr.mxu0 0.0
    %1201 = vmatpush2.msra.mxu0 0.0
    %1202 = vmatprep.subr.mxu0 0.0
    %1203 = vmatpush2.msra.mxu0 0.0
    %1204 = vmatprep.subr.mxu0 0.0
    %1205 = vmatpush2.msra.mxu0 0.0
    %1206 = vmatprep.subr.mxu0 0.0
    %1207 = vmatpush2.msra.mxu0 0.0
    %1208 = vmatprep.subr.mxu0 0.0
    %1209 = vmatpush2.msra.mxu0 0.0
    %1210 = vmatprep.subr.mxu0 0.0
    %1211 = vmatpush2.msra.mxu0 0.0
    %1212 = vmatprep.subr.mxu0 0.0
    %1213 = vmatpush2.msra.mxu0 0.0
    %1214 = vmatprep.subr.mxu0 0.0
    %1215 = vmatpush2.msra.mxu0 0.0
    %1216 = vmatprep.subr.mxu0 0.0
    %1217 = vmatpush2.msra.mxu0 0.0
    %1218 = vmatprep.subr.mxu0 0.0
    %1219 = vmatpush2.msra.mxu0 0.0
    %1220 = vmatprep.subr.mxu0 0.0
    %1221 = vmatpush2.msra.mxu0 0.0
    %1222 = vmatprep.subr.mxu0 0.0
    %1223 = vmatpush2.msra.mxu0 0.0
    %1224 = vmatprep.subr.mxu0 0.0
    %1225 = vmatpush2.msra.mxu0 0.0
    %1226 = vmatprep.subr.mxu0 0.0
    %1227 = vmatpush2.msra.mxu0 0.0
    %1228 = vmatprep.subr.mxu0 0.0
    %1229 = vmatpush2.msra.mxu0 0.0
    %1230 = vmatprep.subr.mxu0 0.0
    %1231 = vmatpush2.msra.mxu0 0.0
    %1232 = vmatprep.mubr.f32.mxu0 0.0
    %1233 = vmatmul.mubr.f32.gmra.mxu0 %v1094
    %v1234 = vpop.f32.mrf.mxu0
    %v1235 = vadd.f32 0.0, %v1234
    %v1236 = vpop.f32.mrf.mxu0
    %v1237 = vadd.f32 0.0, %v1236
    %1238 = vdwg.mxu0
    %v1243 = vrot.slane %v1164, 6
    %v1244 = vrot.slane %v1166, 6
    %v1245 = vrot.slane %v1235, 6
    %v1246 = vrot.slane %v1237, 6
    %v1251 = vadd.f32 %v376, %v1243
    %v1252 = vadd.f32 %v378, %v1244
    %v1253 = vadd.f32 %v453, %v1245
    %v1254 = vadd.f32 %v455, %v1246
    %v1256 = vrot.slane %v1096, 6
    %1258 = vmatprep.subr.mxu0 %v742
    %1259 = vmatpush1.msra.mxu0 %v741
    %1260 = vmatprep.subr.mxu0 %v738
    %1261 = vmatpush1.msra.mxu0 %v737
    %1262 = vmatprep.subr.mxu0 %v734
    %1263 = vmatpush1.msra.mxu0 %v733
    %1264 = vmatprep.subr.mxu0 %v730
    %1265 = vmatpush1.msra.mxu0 %v729
    %1266 = vmatprep.subr.mxu0 %v726
    %1267 = vmatpush1.msra.mxu0 %v725
    %1268 = vmatprep.subr.mxu0 %v722
    %1269 = vmatpush1.msra.mxu0 %v721
    %1270 = vmatprep.subr.mxu0 %v718
    %1271 = vmatpush1.msra.mxu0 %v717
    %1272 = vmatprep.subr.mxu0 %v714
    %1273 = vmatpush1.msra.mxu0 %v713
    %1274 = vmatprep.subr.mxu0 %v710
    %1275 = vmatpush1.msra.mxu0 %v709
    %1276 = vmatprep.subr.mxu0 %v706
    %1277 = vmatpush1.msra.mxu0 %v705
    %1278 = vmatprep.subr.mxu0 %v702
    %1279 = vmatpush1.msra.mxu0 %v701
    %1280 = vmatprep.subr.mxu0 %v698
    %1281 = vmatpush1.msra.mxu0 %v697
    %1282 = vmatprep.subr.mxu0 %v694
    %1283 = vmatpush1.msra.mxu0 %v693
    %1284 = vmatprep.subr.mxu0 %v690
    %1285 = vmatpush1.msra.mxu0 %v689
    %1286 = vmatprep.subr.mxu0 %v686
    %1287 = vmatpush1.msra.mxu0 %v685
    %1288 = vmatprep.subr.mxu0 %v682
    %1289 = vmatpush1.msra.mxu0 %v681
    %1290 = vmatprep.subr.mxu0 0.0
    %1291 = vmatpush2.msra.mxu0 0.0
    %1292 = vmatprep.subr.mxu0 0.0
    %1293 = vmatpush2.msra.mxu0 0.0
    %1294 = vmatprep.subr.mxu0 0.0
    %1295 = vmatpush2.msra.mxu0 0.0
    %1296 = vmatprep.subr.mxu0 0.0
    %1297 = vmatpush2.msra.mxu0 0.0
    %1298 = vmatprep.subr.mxu0 0.0
    %1299 = vmatpush2.msra.mxu0 0.0
    %1300 = vmatprep.subr.mxu0 0.0
    %1301 = vmatpush2.msra.mxu0 0.0
    %1302 = vmatprep.subr.mxu0 0.0
    %1303 = vmatpush2.msra.mxu0 0.0
    %1304 = vmatprep.subr.mxu0 0.0
    %1305 = vmatpush2.msra.mxu0 0.0
    %1306 = vmatprep.subr.mxu0 0.0
    %1307 = vmatpush2.msra.mxu0 0.0
    %1308 = vmatprep.subr.mxu0 0.0
    %1309 = vmatpush2.msra.mxu0 0.0
    %1310 = vmatprep.subr.mxu0 0.0
    %1311 = vmatpush2.msra.mxu0 0.0
    %1312 = vmatprep.subr.mxu0 0.0
    %1313 = vmatpush2.msra.mxu0 0.0
    %1314 = vmatprep.subr.mxu0 0.0
    %1315 = vmatpush2.msra.mxu0 0.0
    %1316 = vmatprep.subr.mxu0 0.0
    %1317 = vmatpush2.msra.mxu0 0.0
    %1318 = vmatprep.subr.mxu0 0.0
    %1319 = vmatpush2.msra.mxu0 0.0
    %1320 = vmatprep.subr.mxu0 0.0
    %1321 = vmatpush2.msra.mxu0 0.0
    %1322 = vmatprep.mubr.f32.mxu0 0.0
    %1323 = vmatmul.mubr.f32.gmra.mxu0 %v1256
    %v1324 = vpop.f32.mrf.mxu0
    %v1325 = vadd.f32 0.0, %v1324
    %v1326 = vpop.f32.mrf.mxu0
    %v1327 = vadd.f32 0.0, %v1326
    %1328 = vdwg.mxu0
    %1329 = vmatprep.subr.mxu0 %v744
    %1330 = vmatpush1.msra.mxu0 %v743
    %1331 = vmatprep.subr.mxu0 %v740
    %1332 = vmatpush1.msra.mxu0 %v739
    %1333 = vmatprep.subr.mxu0 %v736
    %1334 = vmatpush1.msra.mxu0 %v735
    %1335 = vmatprep.subr.mxu0 %v732
    %1336 = vmatpush1.msra.mxu0 %v731
    %1337 = vmatprep.subr.mxu0 %v728
    %1338 = vmatpush1.msra.mxu0 %v727
    %1339 = vmatprep.subr.mxu0 %v724
    %1340 = vmatpush1.msra.mxu0 %v723
    %1341 = vmatprep.subr.mxu0 %v720
    %1342 = vmatpush1.msra.mxu0 %v719
    %1343 = vmatprep.subr.mxu0 %v716
    %1344 = vmatpush1.msra.mxu0 %v715
    %1345 = vmatprep.subr.mxu0 %v712
    %1346 = vmatpush1.msra.mxu0 %v711
    %1347 = vmatprep.subr.mxu0 %v708
    %1348 = vmatpush1.msra.mxu0 %v707
    %1349 = vmatprep.subr.mxu0 %v704
    %1350 = vmatpush1.msra.mxu0 %v703
    %1351 = vmatprep.subr.mxu0 %v700
    %1352 = vmatpush1.msra.mxu0 %v699
    %1353 = vmatprep.subr.mxu0 %v696
    %1354 = vmatpush1.msra.mxu0 %v695
    %1355 = vmatprep.subr.mxu0 %v692
    %1356 = vmatpush1.msra.mxu0 %v691
    %1357 = vmatprep.subr.mxu0 %v688
    %1358 = vmatpush1.msra.mxu0 %v687
    %1359 = vmatprep.subr.mxu0 %v684
    %1360 = vmatpush1.msra.mxu0 %v683
    %1361 = vmatprep.subr.mxu0 0.0
    %1362 = vmatpush2.msra.mxu0 0.0
    %1363 = vmatprep.subr.mxu0 0.0
    %1364 = vmatpush2.msra.mxu0 0.0
    %1365 = vmatprep.subr.mxu0 0.0
    %1366 = vmatpush2.msra.mxu0 0.0
    %1367 = vmatprep.subr.mxu0 0.0
    %1368 = vmatpush2.msra.mxu0 0.0
    %1369 = vmatprep.subr.mxu0 0.0
    %1370 = vmatpush2.msra.mxu0 0.0
    %1371 = vmatprep.subr.mxu0 0.0
    %1372 = vmatpush2.msra.mxu0 0.0
    %1373 = vmatprep.subr.mxu0 0.0
    %1374 = vmatpush2.msra.mxu0 0.0
    %1375 = vmatprep.subr.mxu0 0.0
    %1376 = vmatpush2.msra.mxu0 0.0
    %1377 = vmatprep.subr.mxu0 0.0
    %1378 = vmatpush2.msra.mxu0 0.0
    %1379 = vmatprep.subr.mxu0 0.0
    %1380 = vmatpush2.msra.mxu0 0.0
    %1381 = vmatprep.subr.mxu0 0.0
    %1382 = vmatpush2.msra.mxu0 0.0
    %1383 = vmatprep.subr.mxu0 0.0
    %1384 = vmatpush2.msra.mxu0 0.0
    %1385 = vmatprep.subr.mxu0 0.0
    %1386 = vmatpush2.msra.mxu0 0.0
    %1387 = vmatprep.subr.mxu0 0.0
    %1388 = vmatpush2.msra.mxu0 0.0
    %1389 = vmatprep.subr.mxu0 0.0
    %1390 = vmatpush2.msra.mxu0 0.0
    %1391 = vmatprep.subr.mxu0 0.0
    %1392 = vmatpush2.msra.mxu0 0.0
    %1393 = vmatprep.mubr.f32.mxu0 0.0
    %1394 = vmatmul.mubr.f32.gmra.mxu0 %v1256
    %v1395 = vpop.f32.mrf.mxu0
    %v1396 = vadd.f32 0.0, %v1395
    %v1397 = vpop.f32.mrf.mxu0
    %v1398 = vadd.f32 0.0, %v1397
    %1399 = vdwg.mxu0
    %v1404 = vrot.slane %v1325, 4
    %v1405 = vrot.slane %v1327, 4
    %v1406 = vrot.slane %v1396, 4
    %v1407 = vrot.slane %v1398, 4
    %v1412 = vadd.f32 %v536, %v1404
    %v1413 = vadd.f32 %v538, %v1405
    %v1414 = vadd.f32 %v613, %v1406
    %v1415 = vadd.f32 %v615, %v1407
    %v1416 = vxor.u32 %v1251, 2147483648
    %v1417 = vmul.f32 %v1416, 1.442695
    %v1418 = vpow.pop %v1417
    %v1419 = vadd.f32 %v1418, 1.0
    %v1420 = vrcp.pop %v1419
    %v1421 = vmul.f32 1.0, %v1420
    %v1422 = vxor.u32 %v1412, 2147483648
    %v1423 = vmul.f32 %v1422, 1.442695
    %v1424 = vpow.pop %v1423
    %v1425 = vadd.f32 %v1424, 1.0
    %v1426 = vrcp.pop %v1425
    %v1427 = vmul.f32 1.0, %v1426
    %v1428 = vxor.u32 %v1252, 2147483648
    %v1429 = vmul.f32 %v1428, 1.442695
    %v1430 = vpow.pop %v1429
    %v1431 = vadd.f32 %v1430, 1.0
    %v1432 = vrcp.pop %v1431
    %v1433 = vmul.f32 1.0, %v1432
    %v1434 = vxor.u32 %v1413, 2147483648
    %v1435 = vmul.f32 %v1434, 1.442695
    %v1436 = vpow.pop %v1435
    %v1437 = vadd.f32 %v1436, 1.0
    %v1438 = vrcp.pop %v1437
    %v1439 = vmul.f32 1.0, %v1438
    %v1440 = vtanh.pop %v1253
    %v1441 = vtanh.pop %v1414
    %v1442 = vxor.u32 %v1254, 2147483648
    %v1443 = vmul.f32 %v1442, 1.442695
    %v1444 = vpow.pop %v1443
    %v1445 = vadd.f32 %v1444, 1.0
    %v1446 = vrcp.pop %v1445
    %v1447 = vmul.f32 1.0, %v1446
    %v1448 = vxor.u32 %v1415, 2147483648
    %v1449 = vmul.f32 %v1448, 1.442695
    %v1450 = vpow.pop %v1449
    %v1451 = vadd.f32 %v1450, 1.0
    %v1452 = vrcp.pop %v1451
    %v1453 = vmul.f32 1.0, %v1452
    %v1455 = vrot.slane %v1089, 6
    %v1457 = vmul.f32 %v1433, %v1455
    %v1458 = vmul.f32 %v1421, %v1440
    %v1459 = vadd.f32 %v1457, %v1458
    %v1461 = vrot.slane %v1092, 2
    %v1463 = vmul.f32 %v1439, %v1461
    %v1464 = vmul.f32 %v1427, %v1441
    %v1465 = vadd.f32 %v1463, %v1464
    %v1466 = vtanh.pop %v1459
    %v1467 = vmul.f32 %v1447, %v1466
    %v1468 = vtanh.pop %v1465
    %v1469 = vmul.f32 %v1453, %v1468
    %v1471 = vrot.slane %v1467, 2
    %1473 = vmatprep.subr.mxu0 %v678
    %1474 = vmatpush1.msra.mxu0 %v677
    %1475 = vmatprep.subr.mxu0 %v674
    %1476 = vmatpush1.msra.mxu0 %v673
    %1477 = vmatprep.subr.mxu0 %v670
    %1478 = vmatpush1.msra.mxu0 %v669
    %1479 = vmatprep.subr.mxu0 %v666
    %1480 = vmatpush1.msra.mxu0 %v665
    %1481 = vmatprep.subr.mxu0 %v662
    %1482 = vmatpush1.msra.mxu0 %v661
    %1483 = vmatprep.subr.mxu0 %v658
    %1484 = vmatpush1.msra.mxu0 %v657
    %1485 = vmatprep.subr.mxu0 %v654
    %1486 = vmatpush1.msra.mxu0 %v653
    %1487 = vmatprep.subr.mxu0 %v650
    %1488 = vmatpush1.msra.mxu0 %v649
    %1489 = vmatprep.subr.mxu0 %v646
    %1490 = vmatpush1.msra.mxu0 %v645
    %1491 = vmatprep.subr.mxu0 %v642
    %1492 = vmatpush1.msra.mxu0 %v641
    %1493 = vmatprep.subr.mxu0 %v638
    %1494 = vmatpush1.msra.mxu0 %v637
    %1495 = vmatprep.subr.mxu0 %v634
    %1496 = vmatpush1.msra.mxu0 %v633
    %1497 = vmatprep.subr.mxu0 %v630
    %1498 = vmatpush1.msra.mxu0 %v629
    %1499 = vmatprep.subr.mxu0 %v626
    %1500 = vmatpush1.msra.mxu0 %v625
    %1501 = vmatprep.subr.mxu0 %v622
    %1502 = vmatpush1.msra.mxu0 %v621
    %1503 = vmatprep.subr.mxu0 %v618
    %1504 = vmatpush1.msra.mxu0 %v617
    %1505 = vmatprep.subr.mxu0 0.0
    %1506 = vmatpush2.msra.mxu0 0.0
    %1507 = vmatprep.subr.mxu0 0.0
    %1508 = vmatpush2.msra.mxu0 0.0
    %1509 = vmatprep.subr.mxu0 0.0
    %1510 = vmatpush2.msra.mxu0 0.0
    %1511 = vmatprep.subr.mxu0 0.0
    %1512 = vmatpush2.msra.mxu0 0.0
    %1513 = vmatprep.subr.mxu0 0.0
    %1514 = vmatpush2.msra.mxu0 0.0
    %1515 = vmatprep.subr.mxu0 0.0
    %1516 = vmatpush2.msra.mxu0 0.0
    %1517 = vmatprep.subr.mxu0 0.0
    %1518 = vmatpush2.msra.mxu0 0.0
    %1519 = vmatprep.subr.mxu0 0.0
    %1520 = vmatpush2.msra.mxu0 0.0
    %1521 = vmatprep.subr.mxu0 0.0
    %1522 = vmatpush2.msra.mxu0 0.0
    %1523 = vmatprep.subr.mxu0 0.0
    %1524 = vmatpush2.msra.mxu0 0.0
    %1525 = vmatprep.subr.mxu0 0.0
    %1526 = vmatpush2.msra.mxu0 0.0
    %1527 = vmatprep.subr.mxu0 0.0
    %1528 = vmatpush2.msra.mxu0 0.0
    %1529 = vmatprep.subr.mxu0 0.0
    %1530 = vmatpush2.msra.mxu0 0.0
    %1531 = vmatprep.subr.mxu0 0.0
    %1532 = vmatpush2.msra.mxu0 0.0
    %1533 = vmatprep.subr.mxu0 0.0
    %1534 = vmatpush2.msra.mxu0 0.0
    %1535 = vmatprep.subr.mxu0 0.0
    %1536 = vmatpush2.msra.mxu0 0.0
    %1537 = vmatprep.mubr.f32.mxu0 0.0
    %1538 = vmatmul.mubr.f32.gmra.mxu0 %v1471
    %v1539 = vpop.f32.mrf.mxu0
    %v1540 = vadd.f32 0.0, %v1539
    %v1541 = vpop.f32.mrf.mxu0
    %v1542 = vadd.f32 0.0, %v1541
    %1543 = vdwg.mxu0
    %1544 = vmatprep.subr.mxu0 %v680
    %1545 = vmatpush1.msra.mxu0 %v679
    %1546 = vmatprep.subr.mxu0 %v676
    %1547 = vmatpush1.msra.mxu0 %v675
    %1548 = vmatprep.subr.mxu0 %v672
    %1549 = vmatpush1.msra.mxu0 %v671
    %1550 = vmatprep.subr.mxu0 %v668
    %1551 = vmatpush1.msra.mxu0 %v667
    %1552 = vmatprep.subr.mxu0 %v664
    %1553 = vmatpush1.msra.mxu0 %v663
    %1554 = vmatprep.subr.mxu0 %v660
    %1555 = vmatpush1.msra.mxu0 %v659
    %1556 = vmatprep.subr.mxu0 %v656
    %1557 = vmatpush1.msra.mxu0 %v655
    %1558 = vmatprep.subr.mxu0 %v652
    %1559 = vmatpush1.msra.mxu0 %v651
    %1560 = vmatprep.subr.mxu0 %v648
    %1561 = vmatpush1.msra.mxu0 %v647
    %1562 = vmatprep.subr.mxu0 %v644
    %1563 = vmatpush1.msra.mxu0 %v643
    %1564 = vmatprep.subr.mxu0 %v640
    %1565 = vmatpush1.msra.mxu0 %v639
    %1566 = vmatprep.subr.mxu0 %v636
    %1567 = vmatpush1.msra.mxu0 %v635
    %1568 = vmatprep.subr.mxu0 %v632
    %1569 = vmatpush1.msra.mxu0 %v631
    %1570 = vmatprep.subr.mxu0 %v628
    %1571 = vmatpush1.msra.mxu0 %v627
    %1572 = vmatprep.subr.mxu0 %v624
    %1573 = vmatpush1.msra.mxu0 %v623
    %1574 = vmatprep.subr.mxu0 %v620
    %1575 = vmatpush1.msra.mxu0 %v619
    %1576 = vmatprep.subr.mxu0 0.0
    %1577 = vmatpush2.msra.mxu0 0.0
    %1578 = vmatprep.subr.mxu0 0.0
    %1579 = vmatpush2.msra.mxu0 0.0
    %1580 = vmatprep.subr.mxu0 0.0
    %1581 = vmatpush2.msra.mxu0 0.0
    %1582 = vmatprep.subr.mxu0 0.0
    %1583 = vmatpush2.msra.mxu0 0.0
    %1584 = vmatprep.subr.mxu0 0.0
    %1585 = vmatpush2.msra.mxu0 0.0
    %1586 = vmatprep.subr.mxu0 0.0
    %1587 = vmatpush2.msra.mxu0 0.0
    %1588 = vmatprep.subr.mxu0 0.0
    %1589 = vmatpush2.msra.mxu0 0.0
    %1590 = vmatprep.subr.mxu0 0.0
    %1591 = vmatpush2.msra.mxu0 0.0
    %1592 = vmatprep.subr.mxu0 0.0
    %1593 = vmatpush2.msra.mxu0 0.0
    %1594 = vmatprep.subr.mxu0 0.0
    %1595 = vmatpush2.msra.mxu0 0.0
    %1596 = vmatprep.subr.mxu0 0.0
    %1597 = vmatpush2.msra.mxu0 0.0
    %1598 = vmatprep.subr.mxu0 0.0
    %1599 = vmatpush2.msra.mxu0 0.0
    %1600 = vmatprep.subr.mxu0 0.0
    %1601 = vmatpush2.msra.mxu0 0.0
    %1602 = vmatprep.subr.mxu0 0.0
    %1603 = vmatpush2.msra.mxu0 0.0
    %1604 = vmatprep.subr.mxu0 0.0
    %1605 = vmatpush2.msra.mxu0 0.0
    %1606 = vmatprep.subr.mxu0 0.0
    %1607 = vmatpush2.msra.mxu0 0.0
    %1608 = vmatprep.mubr.f32.mxu0 0.0
    %1609 = vmatmul.mubr.f32.gmra.mxu0 %v1471
    %v1610 = vpop.f32.mrf.mxu0
    %v1611 = vadd.f32 0.0, %v1610
    %v1612 = vpop.f32.mrf.mxu0
    %v1613 = vadd.f32 0.0, %v1612
    %1614 = vdwg.mxu0
    %v1619 = vrot.slane %v1540, 4
    %v1620 = vrot.slane %v1542, 4
    %v1621 = vrot.slane %v1611, 4
    %v1622 = vrot.slane %v1613, 4
    %v1627 = vadd.f32 %v376, %v1619
    %v1628 = vadd.f32 %v378, %v1620
    %v1629 = vadd.f32 %v453, %v1621
    %v1630 = vadd.f32 %v455, %v1622
    %v1632 = vrot.slane %v1469, 4
    %1634 = vmatprep.subr.mxu0 %v742
    %1635 = vmatpush1.msra.mxu0 %v741
    %1636 = vmatprep.subr.mxu0 %v738
    %1637 = vmatpush1.msra.mxu0 %v737
    %1638 = vmatprep.subr.mxu0 %v734
    %1639 = vmatpush1.msra.mxu0 %v733
    %1640 = vmatprep.subr.mxu0 %v730
    %1641 = vmatpush1.msra.mxu0 %v729
    %1642 = vmatprep.subr.mxu0 %v726
    %1643 = vmatpush1.msra.mxu0 %v725
    %1644 = vmatprep.subr.mxu0 %v722
    %1645 = vmatpush1.msra.mxu0 %v721
    %1646 = vmatprep.subr.mxu0 %v718
    %1647 = vmatpush1.msra.mxu0 %v717
    %1648 = vmatprep.subr.mxu0 %v714
    %1649 = vmatpush1.msra.mxu0 %v713
    %1650 = vmatprep.subr.mxu0 %v710
    %1651 = vmatpush1.msra.mxu0 %v709
    %1652 = vmatprep.subr.mxu0 %v706
    %1653 = vmatpush1.msra.mxu0 %v705
    %1654 = vmatprep.subr.mxu0 %v702
    %1655 = vmatpush1.msra.mxu0 %v701
    %1656 = vmatprep.subr.mxu0 %v698
    %1657 = vmatpush1.msra.mxu0 %v697
    %1658 = vmatprep.subr.mxu0 %v694
    %1659 = vmatpush1.msra.mxu0 %v693
    %1660 = vmatprep.subr.mxu0 %v690
    %1661 = vmatpush1.msra.mxu0 %v689
    %1662 = vmatprep.subr.mxu0 %v686
    %1663 = vmatpush1.msra.mxu0 %v685
    %1664 = vmatprep.subr.mxu0 %v682
    %1665 = vmatpush1.msra.mxu0 %v681
    %1666 = vmatprep.subr.mxu0 0.0
    %1667 = vmatpush2.msra.mxu0 0.0
    %1668 = vmatprep.subr.mxu0 0.0
    %1669 = vmatpush2.msra.mxu0 0.0
    %1670 = vmatprep.subr.mxu0 0.0
    %1671 = vmatpush2.msra.mxu0 0.0
    %1672 = vmatprep.subr.mxu0 0.0
    %1673 = vmatpush2.msra.mxu0 0.0
    %1674 = vmatprep.subr.mxu0 0.0
    %1675 = vmatpush2.msra.mxu0 0.0
    %1676 = vmatprep.subr.mxu0 0.0
    %1677 = vmatpush2.msra.mxu0 0.0
    %1678 = vmatprep.subr.mxu0 0.0
    %1679 = vmatpush2.msra.mxu0 0.0
    %1680 = vmatprep.subr.mxu0 0.0
    %1681 = vmatpush2.msra.mxu0 0.0
    %1682 = vmatprep.subr.mxu0 0.0
    %1683 = vmatpush2.msra.mxu0 0.0
    %1684 = vmatprep.subr.mxu0 0.0
    %1685 = vmatpush2.msra.mxu0 0.0
    %1686 = vmatprep.subr.mxu0 0.0
    %1687 = vmatpush2.msra.mxu0 0.0
    %1688 = vmatprep.subr.mxu0 0.0
    %1689 = vmatpush2.msra.mxu0 0.0
    %1690 = vmatprep.subr.mxu0 0.0
    %1691 = vmatpush2.msra.mxu0 0.0
    %1692 = vmatprep.subr.mxu0 0.0
    %1693 = vmatpush2.msra.mxu0 0.0
    %1694 = vmatprep.subr.mxu0 0.0
    %1695 = vmatpush2.msra.mxu0 0.0
    %1696 = vmatprep.subr.mxu0 0.0
    %1697 = vmatpush2.msra.mxu0 0.0
    %1698 = vmatprep.mubr.f32.mxu0 0.0
    %1699 = vmatmul.mubr.f32.gmra.mxu0 %v1632
    %v1700 = vpop.f32.mrf.mxu0
    %v1701 = vadd.f32 0.0, %v1700
    %v1702 = vpop.f32.mrf.mxu0
    %v1703 = vadd.f32 0.0, %v1702
    %1704 = vdwg.mxu0
    %1705 = vmatprep.subr.mxu0 %v744
    %1706 = vmatpush1.msra.mxu0 %v743
    %1707 = vmatprep.subr.mxu0 %v740
    %1708 = vmatpush1.msra.mxu0 %v739
    %1709 = vmatprep.subr.mxu0 %v736
    %1710 = vmatpush1.msra.mxu0 %v735
    %1711 = vmatprep.subr.mxu0 %v732
    %1712 = vmatpush1.msra.mxu0 %v731
    %1713 = vmatprep.subr.mxu0 %v728
    %1714 = vmatpush1.msra.mxu0 %v727
    %1715 = vmatprep.subr.mxu0 %v724
    %1716 = vmatpush1.msra.mxu0 %v723
    %1717 = vmatprep.subr.mxu0 %v720
    %1718 = vmatpush1.msra.mxu0 %v719
    %1719 = vmatprep.subr.mxu0 %v716
    %1720 = vmatpush1.msra.mxu0 %v715
    %1721 = vmatprep.subr.mxu0 %v712
    %1722 = vmatpush1.msra.mxu0 %v711
    %1723 = vmatprep.subr.mxu0 %v708
    %1724 = vmatpush1.msra.mxu0 %v707
    %1725 = vmatprep.subr.mxu0 %v704
    %1726 = vmatpush1.msra.mxu0 %v703
    %1727 = vmatprep.subr.mxu0 %v700
    %1728 = vmatpush1.msra.mxu0 %v699
    %1729 = vmatprep.subr.mxu0 %v696
    %1730 = vmatpush1.msra.mxu0 %v695
    %1731 = vmatprep.subr.mxu0 %v692
    %1732 = vmatpush1.msra.mxu0 %v691
    %1733 = vmatprep.subr.mxu0 %v688
    %1734 = vmatpush1.msra.mxu0 %v687
    %1735 = vmatprep.subr.mxu0 %v684
    %1736 = vmatpush1.msra.mxu0 %v683
    %1737 = vmatprep.subr.mxu0 0.0
    %1738 = vmatpush2.msra.mxu0 0.0
    %1739 = vmatprep.subr.mxu0 0.0
    %1740 = vmatpush2.msra.mxu0 0.0
    %1741 = vmatprep.subr.mxu0 0.0
    %1742 = vmatpush2.msra.mxu0 0.0
    %1743 = vmatprep.subr.mxu0 0.0
    %1744 = vmatpush2.msra.mxu0 0.0
    %1745 = vmatprep.subr.mxu0 0.0
    %1746 = vmatpush2.msra.mxu0 0.0
    %1747 = vmatprep.subr.mxu0 0.0
    %1748 = vmatpush2.msra.mxu0 0.0
    %1749 = vmatprep.subr.mxu0 0.0
    %1750 = vmatpush2.msra.mxu0 0.0
    %1751 = vmatprep.subr.mxu0 0.0
    %1752 = vmatpush2.msra.mxu0 0.0
    %1753 = vmatprep.subr.mxu0 0.0
    %1754 = vmatpush2.msra.mxu0 0.0
    %1755 = vmatprep.subr.mxu0 0.0
    %1756 = vmatpush2.msra.mxu0 0.0
    %1757 = vmatprep.subr.mxu0 0.0
    %1758 = vmatpush2.msra.mxu0 0.0
    %1759 = vmatprep.subr.mxu0 0.0
    %1760 = vmatpush2.msra.mxu0 0.0
    %1761 = vmatprep.subr.mxu0 0.0
    %1762 = vmatpush2.msra.mxu0 0.0
    %1763 = vmatprep.subr.mxu0 0.0
    %1764 = vmatpush2.msra.mxu0 0.0
    %1765 = vmatprep.subr.mxu0 0.0
    %1766 = vmatpush2.msra.mxu0 0.0
    %1767 = vmatprep.subr.mxu0 0.0
    %1768 = vmatpush2.msra.mxu0 0.0
    %1769 = vmatprep.mubr.f32.mxu0 0.0
    %1770 = vmatmul.mubr.f32.gmra.mxu0 %v1632
    %v1771 = vpop.f32.mrf.mxu0
    %v1772 = vadd.f32 0.0, %v1771
    %v1773 = vpop.f32.mrf.mxu0
    %v1774 = vadd.f32 0.0, %v1773
    %1775 = vdwg.mxu0
    %v1780 = vrot.slane %v1701, 6
    %v1781 = vrot.slane %v1703, 6
    %v1782 = vrot.slane %v1772, 6
    %v1783 = vrot.slane %v1774, 6
    %v1788 = vadd.f32 %v536, %v1780
    %v1789 = vadd.f32 %v538, %v1781
    %v1790 = vadd.f32 %v613, %v1782
    %v1791 = vadd.f32 %v615, %v1783
    %v1792 = vxor.u32 %v1627, 2147483648
    %v1793 = vmul.f32 %v1792, 1.442695
    %v1794 = vpow.pop %v1793
    %v1795 = vadd.f32 %v1794, 1.0
    %v1796 = vrcp.pop %v1795
    %v1797 = vmul.f32 1.0, %v1796
    %v1798 = vxor.u32 %v1788, 2147483648
    %v1799 = vmul.f32 %v1798, 1.442695
    %v1800 = vpow.pop %v1799
    %v1801 = vadd.f32 %v1800, 1.0
    %v1802 = vrcp.pop %v1801
    %v1803 = vmul.f32 1.0, %v1802
    %v1804 = vxor.u32 %v1628, 2147483648
    %v1805 = vmul.f32 %v1804, 1.442695
    %v1806 = vpow.pop %v1805
    %v1807 = vadd.f32 %v1806, 1.0
    %v1808 = vrcp.pop %v1807
    %v1809 = vmul.f32 1.0, %v1808
    %v1810 = vxor.u32 %v1789, 2147483648
    %v1811 = vmul.f32 %v1810, 1.442695
    %v1812 = vpow.pop %v1811
    %v1813 = vadd.f32 %v1812, 1.0
    %v1814 = vrcp.pop %v1813
    %v1815 = vmul.f32 1.0, %v1814
    %v1816 = vtanh.pop %v1629
    %v1817 = vtanh.pop %v1790
    %v1818 = vxor.u32 %v1630, 2147483648
    %v1819 = vmul.f32 %v1818, 1.442695
    %v1820 = vpow.pop %v1819
    %v1821 = vadd.f32 %v1820, 1.0
    %v1822 = vrcp.pop %v1821
    %v1823 = vmul.f32 1.0, %v1822
    %v1824 = vxor.u32 %v1791, 2147483648
    %v1825 = vmul.f32 %v1824, 1.442695
    %v1826 = vpow.pop %v1825
    %v1827 = vadd.f32 %v1826, 1.0
    %v1828 = vrcp.pop %v1827
    %v1829 = vmul.f32 1.0, %v1828
    %v1831 = vrot.slane %v1459, 6
    %v1833 = vmul.f32 %v1809, %v1831
    %v1834 = vmul.f32 %v1797, %v1816
    %v1835 = vadd.f32 %v1833, %v1834
    %v1837 = vrot.slane %v1465, 2
    %v1839 = vmul.f32 %v1815, %v1837
    %v1840 = vmul.f32 %v1803, %v1817
    %v1841 = vadd.f32 %v1839, %v1840
    %v1842 = vtanh.pop %v1835
    %v1843 = vmul.f32 %v1823, %v1842
    %v1844 = vtanh.pop %v1841
    %v1845 = vmul.f32 %v1829, %v1844
    %v1847 = vrot.slane %v1843, 4
    %1849 = vmatprep.subr.mxu0 %v678
    %1850 = vmatpush1.msra.mxu0 %v677
    %1851 = vmatprep.subr.mxu0 %v674
    %1852 = vmatpush1.msra.mxu0 %v673
    %1853 = vmatprep.subr.mxu0 %v670
    %1854 = vmatpush1.msra.mxu0 %v669
    %1855 = vmatprep.subr.mxu0 %v666
    %1856 = vmatpush1.msra.mxu0 %v665
    %1857 = vmatprep.subr.mxu0 %v662
    %1858 = vmatpush1.msra.mxu0 %v661
    %1859 = vmatprep.subr.mxu0 %v658
    %1860 = vmatpush1.msra.mxu0 %v657
    %1861 = vmatprep.subr.mxu0 %v654
    %1862 = vmatpush1.msra.mxu0 %v653
    %1863 = vmatprep.subr.mxu0 %v650
    %1864 = vmatpush1.msra.mxu0 %v649
    %1865 = vmatprep.subr.mxu0 %v646
    %1866 = vmatpush1.msra.mxu0 %v645
    %1867 = vmatprep.subr.mxu0 %v642
    %1868 = vmatpush1.msra.mxu0 %v641
    %1869 = vmatprep.subr.mxu0 %v638
    %1870 = vmatpush1.msra.mxu0 %v637
    %1871 = vmatprep.subr.mxu0 %v634
    %1872 = vmatpush1.msra.mxu0 %v633
    %1873 = vmatprep.subr.mxu0 %v630
    %1874 = vmatpush1.msra.mxu0 %v629
    %1875 = vmatprep.subr.mxu0 %v626
    %1876 = vmatpush1.msra.mxu0 %v625
    %1877 = vmatprep.subr.mxu0 %v622
    %1878 = vmatpush1.msra.mxu0 %v621
    %1879 = vmatprep.subr.mxu0 %v618
    %1880 = vmatpush1.msra.mxu0 %v617
    %1881 = vmatprep.subr.mxu0 0.0
    %1882 = vmatpush2.msra.mxu0 0.0
    %1883 = vmatprep.subr.mxu0 0.0
    %1884 = vmatpush2.msra.mxu0 0.0
    %1885 = vmatprep.subr.mxu0 0.0
    %1886 = vmatpush2.msra.mxu0 0.0
    %1887 = vmatprep.subr.mxu0 0.0
    %1888 = vmatpush2.msra.mxu0 0.0
    %1889 = vmatprep.subr.mxu0 0.0
    %1890 = vmatpush2.msra.mxu0 0.0
    %1891 = vmatprep.subr.mxu0 0.0
    %1892 = vmatpush2.msra.mxu0 0.0
    %1893 = vmatprep.subr.mxu0 0.0
    %1894 = vmatpush2.msra.mxu0 0.0
    %1895 = vmatprep.subr.mxu0 0.0
    %1896 = vmatpush2.msra.mxu0 0.0
    %1897 = vmatprep.subr.mxu0 0.0
    %1898 = vmatpush2.msra.mxu0 0.0
    %1899 = vmatprep.subr.mxu0 0.0
    %1900 = vmatpush2.msra.mxu0 0.0
    %1901 = vmatprep.subr.mxu0 0.0
    %1902 = vmatpush2.msra.mxu0 0.0
    %1903 = vmatprep.subr.mxu0 0.0
    %1904 = vmatpush2.msra.mxu0 0.0
    %1905 = vmatprep.subr.mxu0 0.0
    %1906 = vmatpush2.msra.mxu0 0.0
    %1907 = vmatprep.subr.mxu0 0.0
    %1908 = vmatpush2.msra.mxu0 0.0
    %1909 = vmatprep.subr.mxu0 0.0
    %1910 = vmatpush2.msra.mxu0 0.0
    %1911 = vmatprep.subr.mxu0 0.0
    %1912 = vmatpush2.msra.mxu0 0.0
    %1913 = vmatprep.mubr.f32.mxu0 0.0
    %1914 = vmatmul.mubr.f32.gmra.mxu0 %v1847
    %v1915 = vpop.f32.mrf.mxu0
    %v1916 = vadd.f32 0.0, %v1915
    %v1917 = vpop.f32.mrf.mxu0
    %v1918 = vadd.f32 0.0, %v1917
    %1919 = vdwg.mxu0
    %1920 = vmatprep.subr.mxu0 %v680
    %1921 = vmatpush1.msra.mxu0 %v679
    %1922 = vmatprep.subr.mxu0 %v676
    %1923 = vmatpush1.msra.mxu0 %v675
    %1924 = vmatprep.subr.mxu0 %v672
    %1925 = vmatpush1.msra.mxu0 %v671
    %1926 = vmatprep.subr.mxu0 %v668
    %1927 = vmatpush1.msra.mxu0 %v667
    %1928 = vmatprep.subr.mxu0 %v664
    %1929 = vmatpush1.msra.mxu0 %v663
    %1930 = vmatprep.subr.mxu0 %v660
    %1931 = vmatpush1.msra.mxu0 %v659
    %1932 = vmatprep.subr.mxu0 %v656
    %1933 = vmatpush1.msra.mxu0 %v655
    %1934 = vmatprep.subr.mxu0 %v652
    %1935 = vmatpush1.msra.mxu0 %v651
    %1936 = vmatprep.subr.mxu0 %v648
    %1937 = vmatpush1.msra.mxu0 %v647
    %1938 = vmatprep.subr.mxu0 %v644
    %1939 = vmatpush1.msra.mxu0 %v643
    %1940 = vmatprep.subr.mxu0 %v640
    %1941 = vmatpush1.msra.mxu0 %v639
    %1942 = vmatprep.subr.mxu0 %v636
    %1943 = vmatpush1.msra.mxu0 %v635
    %1944 = vmatprep.subr.mxu0 %v632
    %1945 = vmatpush1.msra.mxu0 %v631
    %1946 = vmatprep.subr.mxu0 %v628
    %1947 = vmatpush1.msra.mxu0 %v627
    %1948 = vmatprep.subr.mxu0 %v624
    %1949 = vmatpush1.msra.mxu0 %v623
    %1950 = vmatprep.subr.mxu0 %v620
    %1951 = vmatpush1.msra.mxu0 %v619
    %1952 = vmatprep.subr.mxu0 0.0
    %1953 = vmatpush2.msra.mxu0 0.0
    %1954 = vmatprep.subr.mxu0 0.0
    %1955 = vmatpush2.msra.mxu0 0.0
    %1956 = vmatprep.subr.mxu0 0.0
    %1957 = vmatpush2.msra.mxu0 0.0
    %1958 = vmatprep.subr.mxu0 0.0
    %1959 = vmatpush2.msra.mxu0 0.0
    %1960 = vmatprep.subr.mxu0 0.0
    %1961 = vmatpush2.msra.mxu0 0.0
    %1962 = vmatprep.subr.mxu0 0.0
    %1963 = vmatpush2.msra.mxu0 0.0
    %1964 = vmatprep.subr.mxu0 0.0
    %1965 = vmatpush2.msra.mxu0 0.0
    %1966 = vmatprep.subr.mxu0 0.0
    %1967 = vmatpush2.msra.mxu0 0.0
    %1968 = vmatprep.subr.mxu0 0.0
    %1969 = vmatpush2.msra.mxu0 0.0
    %1970 = vmatprep.subr.mxu0 0.0
    %1971 = vmatpush2.msra.mxu0 0.0
    %1972 = vmatprep.subr.mxu0 0.0
    %1973 = vmatpush2.msra.mxu0 0.0
    %1974 = vmatprep.subr.mxu0 0.0
    %1975 = vmatpush2.msra.mxu0 0.0
    %1976 = vmatprep.subr.mxu0 0.0
    %1977 = vmatpush2.msra.mxu0 0.0
    %1978 = vmatprep.subr.mxu0 0.0
    %1979 = vmatpush2.msra.mxu0 0.0
    %1980 = vmatprep.subr.mxu0 0.0
    %1981 = vmatpush2.msra.mxu0 0.0
    %1982 = vmatprep.subr.mxu0 0.0
    %1983 = vmatpush2.msra.mxu0 0.0
    %1984 = vmatprep.mubr.f32.mxu0 0.0
    %1985 = vmatmul.mubr.f32.gmra.mxu0 %v1847
    %v1986 = vpop.f32.mrf.mxu0
    %v1987 = vadd.f32 0.0, %v1986
    %v1988 = vpop.f32.mrf.mxu0
    %v1989 = vadd.f32 0.0, %v1988
    %1990 = vdwg.mxu0
    %v1995 = vrot.slane %v1916, 2
    %v1996 = vrot.slane %v1918, 2
    %v1997 = vrot.slane %v1987, 2
    %v1998 = vrot.slane %v1989, 2
    %v2003 = vadd.f32 %v376, %v1995
    %v2004 = vadd.f32 %v378, %v1996
    %v2005 = vadd.f32 %v453, %v1997
    %v2006 = vadd.f32 %v455, %v1998
    %v2008 = vrot.slane %v1845, 2
    %2010 = vmatprep.subr.mxu0 %v742
    %2011 = vmatpush1.msra.mxu0 %v741
    %2012 = vmatprep.subr.mxu0 %v738
    %2013 = vmatpush1.msra.mxu0 %v737
    %2014 = vmatprep.subr.mxu0 %v734
    %2015 = vmatpush1.msra.mxu0 %v733
    %2016 = vmatprep.subr.mxu0 %v730
    %2017 = vmatpush1.msra.mxu0 %v729
    %2018 = vmatprep.subr.mxu0 %v726
    %2019 = vmatpush1.msra.mxu0 %v725
    %2020 = vmatprep.subr.mxu0 %v722
    %2021 = vmatpush1.msra.mxu0 %v721
    %2022 = vmatprep.subr.mxu0 %v718
    %2023 = vmatpush1.msra.mxu0 %v717
    %2024 = vmatprep.subr.mxu0 %v714
    %2025 = vmatpush1.msra.mxu0 %v713
    %2026 = vmatprep.subr.mxu0 %v710
    %2027 = vmatpush1.msra.mxu0 %v709
    %2028 = vmatprep.subr.mxu0 %v706
    %2029 = vmatpush1.msra.mxu0 %v705
    %2030 = vmatprep.subr.mxu0 %v702
    %2031 = vmatpush1.msra.mxu0 %v701
    %2032 = vmatprep.subr.mxu0 %v698
    %2033 = vmatpush1.msra.mxu0 %v697
    %2034 = vmatprep.subr.mxu0 %v694
    %2035 = vmatpush1.msra.mxu0 %v693
    %2036 = vmatprep.subr.mxu0 %v690
    %2037 = vmatpush1.msra.mxu0 %v689
    %2038 = vmatprep.subr.mxu0 %v686
    %2039 = vmatpush1.msra.mxu0 %v685
    %2040 = vmatprep.subr.mxu0 %v682
    %2041 = vmatpush1.msra.mxu0 %v681
    %2042 = vmatprep.subr.mxu0 0.0
    %2043 = vmatpush2.msra.mxu0 0.0
    %2044 = vmatprep.subr.mxu0 0.0
    %2045 = vmatpush2.msra.mxu0 0.0
    %2046 = vmatprep.subr.mxu0 0.0
    %2047 = vmatpush2.msra.mxu0 0.0
    %2048 = vmatprep.subr.mxu0 0.0
    %2049 = vmatpush2.msra.mxu0 0.0
    %2050 = vmatprep.subr.mxu0 0.0
    %2051 = vmatpush2.msra.mxu0 0.0
    %2052 = vmatprep.subr.mxu0 0.0
    %2053 = vmatpush2.msra.mxu0 0.0
    %2054 = vmatprep.subr.mxu0 0.0
    %2055 = vmatpush2.msra.mxu0 0.0
    %2056 = vmatprep.subr.mxu0 0.0
    %2057 = vmatpush2.msra.mxu0 0.0
    %2058 = vmatprep.subr.mxu0 0.0
    %2059 = vmatpush2.msra.mxu0 0.0
    %2060 = vmatprep.subr.mxu0 0.0
    %2061 = vmatpush2.msra.mxu0 0.0
    %2062 = vmatprep.subr.mxu0 0.0
    %2063 = vmatpush2.msra.mxu0 0.0
    %2064 = vmatprep.subr.mxu0 0.0
    %2065 = vmatpush2.msra.mxu0 0.0
    %2066 = vmatprep.subr.mxu0 0.0
    %2067 = vmatpush2.msra.mxu0 0.0
    %2068 = vmatprep.subr.mxu0 0.0
    %2069 = vmatpush2.msra.mxu0 0.0
    %2070 = vmatprep.subr.mxu0 0.0
    %2071 = vmatpush2.msra.mxu0 0.0
    %2072 = vmatprep.subr.mxu0 0.0
    %2073 = vmatpush2.msra.mxu0 0.0
    %2074 = vmatprep.mubr.f32.mxu0 0.0
    %2075 = vmatmul.mubr.f32.gmra.mxu0 %v2008
    %v2076 = vpop.f32.mrf.mxu0
    %v2077 = vadd.f32 0.0, %v2076
    %v2078 = vpop.f32.mrf.mxu0
    %v2079 = vadd.f32 0.0, %v2078
    %2080 = vdwg.mxu0
    %2081 = vmatprep.subr.mxu0 %v744
    %2082 = vmatpush1.msra.mxu0 %v743
    %2083 = vmatprep.subr.mxu0 %v740
    %2084 = vmatpush1.msra.mxu0 %v739
    %2085 = vmatprep.subr.mxu0 %v736
    %2086 = vmatpush1.msra.mxu0 %v735
    %2087 = vmatprep.subr.mxu0 %v732
    %2088 = vmatpush1.msra.mxu0 %v731
    %2089 = vmatprep.subr.mxu0 %v728
    %2090 = vmatpush1.msra.mxu0 %v727
    %2091 = vmatprep.subr.mxu0 %v724
    %2092 = vmatpush1.msra.mxu0 %v723
    %2093 = vmatprep.subr.mxu0 %v720
    %2094 = vmatpush1.msra.mxu0 %v719
    %2095 = vmatprep.subr.mxu0 %v716
    %2096 = vmatpush1.msra.mxu0 %v715
    %2097 = vmatprep.subr.mxu0 %v712
    %2098 = vmatpush1.msra.mxu0 %v711
    %2099 = vmatprep.subr.mxu0 %v708
    %2100 = vmatpush1.msra.mxu0 %v707
    %2101 = vmatprep.subr.mxu0 %v704
    %2102 = vmatpush1.msra.mxu0 %v703
    %2103 = vmatprep.subr.mxu0 %v700
    %2104 = vmatpush1.msra.mxu0 %v699
    %2105 = vmatprep.subr.mxu0 %v696
    %2106 = vmatpush1.msra.mxu0 %v695
    %2107 = vmatprep.subr.mxu0 %v692
    %2108 = vmatpush1.msra.mxu0 %v691
    %2109 = vmatprep.subr.mxu0 %v688
    %2110 = vmatpush1.msra.mxu0 %v687
    %2111 = vmatprep.subr.mxu0 %v684
    %2112 = vmatpush1.msra.mxu0 %v683
    %2113 = vmatprep.subr.mxu0 0.0
    %2114 = vmatpush2.msra.mxu0 0.0
    %2115 = vmatprep.subr.mxu0 0.0
    %2116 = vmatpush2.msra.mxu0 0.0
    %2117 = vmatprep.subr.mxu0 0.0
    %2118 = vmatpush2.msra.mxu0 0.0
    %2119 = vmatprep.subr.mxu0 0.0
    %2120 = vmatpush2.msra.mxu0 0.0
    %2121 = vmatprep.subr.mxu0 0.0
    %2122 = vmatpush2.msra.mxu0 0.0
    %2123 = vmatprep.subr.mxu0 0.0
    %2124 = vmatpush2.msra.mxu0 0.0
    %2125 = vmatprep.subr.mxu0 0.0
    %2126 = vmatpush2.msra.mxu0 0.0
    %2127 = vmatprep.subr.mxu0 0.0
    %2128 = vmatpush2.msra.mxu0 0.0
    %2129 = vmatprep.subr.mxu0 0.0
    %2130 = vmatpush2.msra.mxu0 0.0
    %2131 = vmatprep.subr.mxu0 0.0
    %2132 = vmatpush2.msra.mxu0 0.0
    %2133 = vmatprep.subr.mxu0 0.0
    %2134 = vmatpush2.msra.mxu0 0.0
    %2135 = vmatprep.subr.mxu0 0.0
    %2136 = vmatpush2.msra.mxu0 0.0
    %2137 = vmatprep.subr.mxu0 0.0
    %2138 = vmatpush2.msra.mxu0 0.0
    %2139 = vmatprep.subr.mxu0 0.0
    %2140 = vmatpush2.msra.mxu0 0.0
    %2141 = vmatprep.subr.mxu0 0.0
    %2142 = vmatpush2.msra.mxu0 0.0
    %2143 = vmatprep.subr.mxu0 0.0
    %2144 = vmatpush2.msra.mxu0 0.0
    %2145 = vmatprep.mubr.f32.mxu0 0.0
    %2146 = vmatmul.mubr.f32.gmra.mxu0 %v2008
    %v2147 = vpop.f32.mrf.mxu0
    %v2148 = vadd.f32 0.0, %v2147
    %v2149 = vpop.f32.mrf.mxu0
    %v2150 = vadd.f32 0.0, %v2149
    %2151 = vdwg.mxu0
    %v2152 = vadd.f32 %v536, %v2077
    %v2153 = vadd.f32 %v538, %v2079
    %v2154 = vadd.f32 %v613, %v2148
    %v2155 = vadd.f32 %v615, %v2150
    %v2156 = vxor.u32 %v2003, 2147483648
    %v2157 = vmul.f32 %v2156, 1.442695
    %v2158 = vpow.pop %v2157
    %v2159 = vadd.f32 %v2158, 1.0
    %v2160 = vrcp.pop %v2159
    %v2161 = vmul.f32 1.0, %v2160
    %v2162 = vxor.u32 %v2152, 2147483648
    %v2163 = vmul.f32 %v2162, 1.442695
    %v2164 = vpow.pop %v2163
    %v2165 = vadd.f32 %v2164, 1.0
    %v2166 = vrcp.pop %v2165
    %v2167 = vmul.f32 1.0, %v2166
    %v2168 = vxor.u32 %v2004, 2147483648
    %v2169 = vmul.f32 %v2168, 1.442695
    %v2170 = vpow.pop %v2169
    %v2171 = vadd.f32 %v2170, 1.0
    %v2172 = vrcp.pop %v2171
    %v2173 = vmul.f32 1.0, %v2172
    %v2174 = vxor.u32 %v2153, 2147483648
    %v2175 = vmul.f32 %v2174, 1.442695
    %v2176 = vpow.pop %v2175
    %v2177 = vadd.f32 %v2176, 1.0
    %v2178 = vrcp.pop %v2177
    %v2179 = vmul.f32 1.0, %v2178
    %v2180 = vtanh.pop %v2005
    %v2181 = vtanh.pop %v2154
    %v2182 = vxor.u32 %v2006, 2147483648
    %v2183 = vmul.f32 %v2182, 1.442695
    %v2184 = vpow.pop %v2183
    %v2185 = vadd.f32 %v2184, 1.0
    %v2186 = vrcp.pop %v2185
    %v2187 = vmul.f32 1.0, %v2186
    %v2188 = vxor.u32 %v2155, 2147483648
    %v2189 = vmul.f32 %v2188, 1.442695
    %v2190 = vpow.pop %v2189
    %v2191 = vadd.f32 %v2190, 1.0
    %v2192 = vrcp.pop %v2191
    %v2193 = vmul.f32 1.0, %v2192
    %v2195 = vrot.slane %v1835, 6
    %v2197 = vmul.f32 %v2173, %v2195
    %v2198 = vmul.f32 %v2161, %v2180
    %v2199 = vadd.f32 %v2197, %v2198
    %v2201 = vrot.slane %v1841, 2
    %v2203 = vmul.f32 %v2179, %v2201
    %v2204 = vmul.f32 %v2167, %v2181
    %v2205 = vadd.f32 %v2203, %v2204
    %v2206 = vtanh.pop %v2199
    %v2207 = vmul.f32 %v2187, %v2206
    %v2208 = vtanh.pop %v2205
    %v2209 = vmul.f32 %v2193, %v2208
    %v2211 = vrot.slane %v2207, 6
    %2213 = vmatprep.subr.mxu0 %v678
    %2214 = vmatpush1.msra.mxu0 %v677
    %2215 = vmatprep.subr.mxu0 %v674
    %2216 = vmatpush1.msra.mxu0 %v673
    %2217 = vmatprep.subr.mxu0 %v670
    %2218 = vmatpush1.msra.mxu0 %v669
    %2219 = vmatprep.subr.mxu0 %v666
    %2220 = vmatpush1.msra.mxu0 %v665
    %2221 = vmatprep.subr.mxu0 %v662
    %2222 = vmatpush1.msra.mxu0 %v661
    %2223 = vmatprep.subr.mxu0 %v658
    %2224 = vmatpush1.msra.mxu0 %v657
    %2225 = vmatprep.subr.mxu0 %v654
    %2226 = vmatpush1.msra.mxu0 %v653
    %2227 = vmatprep.subr.mxu0 %v650
    %2228 = vmatpush1.msra.mxu0 %v649
    %2229 = vmatprep.subr.mxu0 %v646
    %2230 = vmatpush1.msra.mxu0 %v645
    %2231 = vmatprep.subr.mxu0 %v642
    %2232 = vmatpush1.msra.mxu0 %v641
    %2233 = vmatprep.subr.mxu0 %v638
    %2234 = vmatpush1.msra.mxu0 %v637
    %2235 = vmatprep.subr.mxu0 %v634
    %2236 = vmatpush1.msra.mxu0 %v633
    %2237 = vmatprep.subr.mxu0 %v630
    %2238 = vmatpush1.msra.mxu0 %v629
    %2239 = vmatprep.subr.mxu0 %v626
    %2240 = vmatpush1.msra.mxu0 %v625
    %2241 = vmatprep.subr.mxu0 %v622
    %2242 = vmatpush1.msra.mxu0 %v621
    %2243 = vmatprep.subr.mxu0 %v618
    %2244 = vmatpush1.msra.mxu0 %v617
    %2245 = vmatprep.subr.mxu0 0.0
    %2246 = vmatpush2.msra.mxu0 0.0
    %2247 = vmatprep.subr.mxu0 0.0
    %2248 = vmatpush2.msra.mxu0 0.0
    %2249 = vmatprep.subr.mxu0 0.0
    %2250 = vmatpush2.msra.mxu0 0.0
    %2251 = vmatprep.subr.mxu0 0.0
    %2252 = vmatpush2.msra.mxu0 0.0
    %2253 = vmatprep.subr.mxu0 0.0
    %2254 = vmatpush2.msra.mxu0 0.0
    %2255 = vmatprep.subr.mxu0 0.0
    %2256 = vmatpush2.msra.mxu0 0.0
    %2257 = vmatprep.subr.mxu0 0.0
    %2258 = vmatpush2.msra.mxu0 0.0
    %2259 = vmatprep.subr.mxu0 0.0
    %2260 = vmatpush2.msra.mxu0 0.0
    %2261 = vmatprep.subr.mxu0 0.0
    %2262 = vmatpush2.msra.mxu0 0.0
    %2263 = vmatprep.subr.mxu0 0.0
    %2264 = vmatpush2.msra.mxu0 0.0
    %2265 = vmatprep.subr.mxu0 0.0
    %2266 = vmatpush2.msra.mxu0 0.0
    %2267 = vmatprep.subr.mxu0 0.0
    %2268 = vmatpush2.msra.mxu0 0.0
    %2269 = vmatprep.subr.mxu0 0.0
    %2270 = vmatpush2.msra.mxu0 0.0
    %2271 = vmatprep.subr.mxu0 0.0
    %2272 = vmatpush2.msra.mxu0 0.0
    %2273 = vmatprep.subr.mxu0 0.0
    %2274 = vmatpush2.msra.mxu0 0.0
    %2275 = vmatprep.subr.mxu0 0.0
    %2276 = vmatpush2.msra.mxu0 0.0
    %2277 = vmatprep.mubr.f32.mxu0 0.0
    %2278 = vmatmul.mubr.f32.gmra.mxu0 %v2211
    %v2279 = vpop.f32.mrf.mxu0
    %v2280 = vadd.f32 0.0, %v2279
    %v2281 = vpop.f32.mrf.mxu0
    %v2282 = vadd.f32 0.0, %v2281
    %2283 = vdwg.mxu0
    %2284 = vmatprep.subr.mxu0 %v680
    %2285 = vmatpush1.msra.mxu0 %v679
    %2286 = vmatprep.subr.mxu0 %v676
    %2287 = vmatpush1.msra.mxu0 %v675
    %2288 = vmatprep.subr.mxu0 %v672
    %2289 = vmatpush1.msra.mxu0 %v671
    %2290 = vmatprep.subr.mxu0 %v668
    %2291 = vmatpush1.msra.mxu0 %v667
    %2292 = vmatprep.subr.mxu0 %v664
    %2293 = vmatpush1.msra.mxu0 %v663
    %2294 = vmatprep.subr.mxu0 %v660
    %2295 = vmatpush1.msra.mxu0 %v659
    %2296 = vmatprep.subr.mxu0 %v656
    %2297 = vmatpush1.msra.mxu0 %v655
    %2298 = vmatprep.subr.mxu0 %v652
    %2299 = vmatpush1.msra.mxu0 %v651
    %2300 = vmatprep.subr.mxu0 %v648
    %2301 = vmatpush1.msra.mxu0 %v647
    %2302 = vmatprep.subr.mxu0 %v644
    %2303 = vmatpush1.msra.mxu0 %v643
    %2304 = vmatprep.subr.mxu0 %v640
    %2305 = vmatpush1.msra.mxu0 %v639
    %2306 = vmatprep.subr.mxu0 %v636
    %2307 = vmatpush1.msra.mxu0 %v635
    %2308 = vmatprep.subr.mxu0 %v632
    %2309 = vmatpush1.msra.mxu0 %v631
    %2310 = vmatprep.subr.mxu0 %v628
    %2311 = vmatpush1.msra.mxu0 %v627
    %2312 = vmatprep.subr.mxu0 %v624
    %2313 = vmatpush1.msra.mxu0 %v623
    %2314 = vmatprep.subr.mxu0 %v620
    %2315 = vmatpush1.msra.mxu0 %v619
    %2316 = vmatprep.subr.mxu0 0.0
    %2317 = vmatpush2.msra.mxu0 0.0
    %2318 = vmatprep.subr.mxu0 0.0
    %2319 = vmatpush2.msra.mxu0 0.0
    %2320 = vmatprep.subr.mxu0 0.0
    %2321 = vmatpush2.msra.mxu0 0.0
    %2322 = vmatprep.subr.mxu0 0.0
    %2323 = vmatpush2.msra.mxu0 0.0
    %2324 = vmatprep.subr.mxu0 0.0
    %2325 = vmatpush2.msra.mxu0 0.0
    %2326 = vmatprep.subr.mxu0 0.0
    %2327 = vmatpush2.msra.mxu0 0.0
    %2328 = vmatprep.subr.mxu0 0.0
    %2329 = vmatpush2.msra.mxu0 0.0
    %2330 = vmatprep.subr.mxu0 0.0
    %2331 = vmatpush2.msra.mxu0 0.0
    %2332 = vmatprep.subr.mxu0 0.0
    %2333 = vmatpush2.msra.mxu0 0.0
    %2334 = vmatprep.subr.mxu0 0.0
    %2335 = vmatpush2.msra.mxu0 0.0
    %2336 = vmatprep.subr.mxu0 0.0
    %2337 = vmatpush2.msra.mxu0 0.0
    %2338 = vmatprep.subr.mxu0 0.0
    %2339 = vmatpush2.msra.mxu0 0.0
    %2340 = vmatprep.subr.mxu0 0.0
    %2341 = vmatpush2.msra.mxu0 0.0
    %2342 = vmatprep.subr.mxu0 0.0
    %2343 = vmatpush2.msra.mxu0 0.0
    %2344 = vmatprep.subr.mxu0 0.0
    %2345 = vmatpush2.msra.mxu0 0.0
    %2346 = vmatprep.subr.mxu0 0.0
    %2347 = vmatpush2.msra.mxu0 0.0
    %2348 = vmatprep.mubr.f32.mxu0 0.0
    %2349 = vmatmul.mubr.f32.gmra.mxu0 %v2211
    %v2350 = vpop.f32.mrf.mxu0
    %v2351 = vadd.f32 0.0, %v2350
    %v2352 = vpop.f32.mrf.mxu0
    %v2353 = vadd.f32 0.0, %v2352
    %2354 = vdwg.mxu0
    %v2355 = vadd.f32 %v382, %v2280
    %v2356 = vadd.f32 %v384, %v2282
    %v2357 = vadd.f32 %v459, %v2351
    %v2358 = vadd.f32 %v461, %v2353
    %2359 = vmatprep.subr.mxu0 %v742
    %2360 = vmatpush1.msra.mxu0 %v741
    %2361 = vmatprep.subr.mxu0 %v738
    %2362 = vmatpush1.msra.mxu0 %v737
    %2363 = vmatprep.subr.mxu0 %v734
    %2364 = vmatpush1.msra.mxu0 %v733
    %2365 = vmatprep.subr.mxu0 %v730
    %2366 = vmatpush1.msra.mxu0 %v729
    %2367 = vmatprep.subr.mxu0 %v726
    %2368 = vmatpush1.msra.mxu0 %v725
    %2369 = vmatprep.subr.mxu0 %v722
    %2370 = vmatpush1.msra.mxu0 %v721
    %2371 = vmatprep.subr.mxu0 %v718
    %2372 = vmatpush1.msra.mxu0 %v717
    %2373 = vmatprep.subr.mxu0 %v714
    %2374 = vmatpush1.msra.mxu0 %v713
    %2375 = vmatprep.subr.mxu0 %v710
    %2376 = vmatpush1.msra.mxu0 %v709
    %2377 = vmatprep.subr.mxu0 %v706
    %2378 = vmatpush1.msra.mxu0 %v705
    %2379 = vmatprep.subr.mxu0 %v702
    %2380 = vmatpush1.msra.mxu0 %v701
    %2381 = vmatprep.subr.mxu0 %v698
    %2382 = vmatpush1.msra.mxu0 %v697
    %2383 = vmatprep.subr.mxu0 %v694
    %2384 = vmatpush1.msra.mxu0 %v693
    %2385 = vmatprep.subr.mxu0 %v690
    %2386 = vmatpush1.msra.mxu0 %v689
    %2387 = vmatprep.subr.mxu0 %v686
    %2388 = vmatpush1.msra.mxu0 %v685
    %2389 = vmatprep.subr.mxu0 %v682
    %2390 = vmatpush1.msra.mxu0 %v681
    %2391 = vmatprep.subr.mxu0 0.0
    %2392 = vmatpush2.msra.mxu0 0.0
    %2393 = vmatprep.subr.mxu0 0.0
    %2394 = vmatpush2.msra.mxu0 0.0
    %2395 = vmatprep.subr.mxu0 0.0
    %2396 = vmatpush2.msra.mxu0 0.0
    %2397 = vmatprep.subr.mxu0 0.0
    %2398 = vmatpush2.msra.mxu0 0.0
    %2399 = vmatprep.subr.mxu0 0.0
    %2400 = vmatpush2.msra.mxu0 0.0
    %2401 = vmatprep.subr.mxu0 0.0
    %2402 = vmatpush2.msra.mxu0 0.0
    %2403 = vmatprep.subr.mxu0 0.0
    %2404 = vmatpush2.msra.mxu0 0.0
    %2405 = vmatprep.subr.mxu0 0.0
    %2406 = vmatpush2.msra.mxu0 0.0
    %2407 = vmatprep.subr.mxu0 0.0
    %2408 = vmatpush2.msra.mxu0 0.0
    %2409 = vmatprep.subr.mxu0 0.0
    %2410 = vmatpush2.msra.mxu0 0.0
    %2411 = vmatprep.subr.mxu0 0.0
    %2412 = vmatpush2.msra.mxu0 0.0
    %2413 = vmatprep.subr.mxu0 0.0
    %2414 = vmatpush2.msra.mxu0 0.0
    %2415 = vmatprep.subr.mxu0 0.0
    %2416 = vmatpush2.msra.mxu0 0.0
    %2417 = vmatprep.subr.mxu0 0.0
    %2418 = vmatpush2.msra.mxu0 0.0
    %2419 = vmatprep.subr.mxu0 0.0
    %2420 = vmatpush2.msra.mxu0 0.0
    %2421 = vmatprep.subr.mxu0 0.0
    %2422 = vmatpush2.msra.mxu0 0.0
    %2423 = vmatprep.mubr.f32.mxu0 0.0
    %2424 = vmatmul.mubr.f32.gmra.mxu0 %v2209
    %v2425 = vpop.f32.mrf.mxu0
    %v2426 = vadd.f32 0.0, %v2425
    %v2427 = vpop.f32.mrf.mxu0
    %v2428 = vadd.f32 0.0, %v2427
    %2429 = vdwg.mxu0
    %2430 = vmatprep.subr.mxu0 %v744
    %2431 = vmatpush1.msra.mxu0 %v743
    %2432 = vmatprep.subr.mxu0 %v740
    %2433 = vmatpush1.msra.mxu0 %v739
    %2434 = vmatprep.subr.mxu0 %v736
    %2435 = vmatpush1.msra.mxu0 %v735
    %2436 = vmatprep.subr.mxu0 %v732
    %2437 = vmatpush1.msra.mxu0 %v731
    %2438 = vmatprep.subr.mxu0 %v728
    %2439 = vmatpush1.msra.mxu0 %v727
    %2440 = vmatprep.subr.mxu0 %v724
    %2441 = vmatpush1.msra.mxu0 %v723
    %2442 = vmatprep.subr.mxu0 %v720
    %2443 = vmatpush1.msra.mxu0 %v719
    %2444 = vmatprep.subr.mxu0 %v716
    %2445 = vmatpush1.msra.mxu0 %v715
    %2446 = vmatprep.subr.mxu0 %v712
    %2447 = vmatpush1.msra.mxu0 %v711
    %2448 = vmatprep.subr.mxu0 %v708
    %2449 = vmatpush1.msra.mxu0 %v707
    %2450 = vmatprep.subr.mxu0 %v704
    %2451 = vmatpush1.msra.mxu0 %v703
    %2452 = vmatprep.subr.mxu0 %v700
    %2453 = vmatpush1.msra.mxu0 %v699
    %2454 = vmatprep.subr.mxu0 %v696
    %2455 = vmatpush1.msra.mxu0 %v695
    %2456 = vmatprep.subr.mxu0 %v692
    %2457 = vmatpush1.msra.mxu0 %v691
    %2458 = vmatprep.subr.mxu0 %v688
    %2459 = vmatpush1.msra.mxu0 %v687
    %2460 = vmatprep.subr.mxu0 %v684
    %2461 = vmatpush1.msra.mxu0 %v683
    %2462 = vmatprep.subr.mxu0 0.0
    %2463 = vmatpush2.msra.mxu0 0.0
    %2464 = vmatprep.subr.mxu0 0.0
    %2465 = vmatpush2.msra.mxu0 0.0
    %2466 = vmatprep.subr.mxu0 0.0
    %2467 = vmatpush2.msra.mxu0 0.0
    %2468 = vmatprep.subr.mxu0 0.0
    %2469 = vmatpush2.msra.mxu0 0.0
    %2470 = vmatprep.subr.mxu0 0.0
    %2471 = vmatpush2.msra.mxu0 0.0
    %2472 = vmatprep.subr.mxu0 0.0
    %2473 = vmatpush2.msra.mxu0 0.0
    %2474 = vmatprep.subr.mxu0 0.0
    %2475 = vmatpush2.msra.mxu0 0.0
    %2476 = vmatprep.subr.mxu0 0.0
    %2477 = vmatpush2.msra.mxu0 0.0
    %2478 = vmatprep.subr.mxu0 0.0
    %2479 = vmatpush2.msra.mxu0 0.0
    %2480 = vmatprep.subr.mxu0 0.0
    %2481 = vmatpush2.msra.mxu0 0.0
    %2482 = vmatprep.subr.mxu0 0.0
    %2483 = vmatpush2.msra.mxu0 0.0
    %2484 = vmatprep.subr.mxu0 0.0
    %2485 = vmatpush2.msra.mxu0 0.0
    %2486 = vmatprep.subr.mxu0 0.0
    %2487 = vmatpush2.msra.mxu0 0.0
    %2488 = vmatprep.subr.mxu0 0.0
    %2489 = vmatpush2.msra.mxu0 0.0
    %2490 = vmatprep.subr.mxu0 0.0
    %2491 = vmatpush2.msra.mxu0 0.0
    %2492 = vmatprep.subr.mxu0 0.0
    %2493 = vmatpush2.msra.mxu0 0.0
    %2494 = vmatprep.mubr.f32.mxu0 0.0
    %2495 = vmatmul.mubr.f32.gmra.mxu0 %v2209
    %v2496 = vpop.f32.mrf.mxu0
    %v2497 = vadd.f32 0.0, %v2496
    %v2498 = vpop.f32.mrf.mxu0
    %v2499 = vadd.f32 0.0, %v2498
    %2500 = vdwg.mxu0
    %v2505 = vrot.slane %v2426, 2
    %v2506 = vrot.slane %v2428, 2
    %v2507 = vrot.slane %v2497, 2
    %v2508 = vrot.slane %v2499, 2
    %v2513 = vadd.f32 %v530, %v2505
    %v2514 = vadd.f32 %v532, %v2506
    %v2515 = vadd.f32 %v607, %v2507
    %v2516 = vadd.f32 %v609, %v2508
    %v2517 = vxor.u32 %v2355, 2147483648
    %v2518 = vmul.f32 %v2517, 1.442695
    %v2519 = vpow.pop %v2518
    %v2520 = vadd.f32 %v2519, 1.0
    %v2521 = vrcp.pop %v2520
    %v2522 = vmul.f32 1.0, %v2521
    %v2523 = vxor.u32 %v2513, 2147483648
    %v2524 = vmul.f32 %v2523, 1.442695
    %v2525 = vpow.pop %v2524
    %v2526 = vadd.f32 %v2525, 1.0
    %v2527 = vrcp.pop %v2526
    %v2528 = vmul.f32 1.0, %v2527
    %v2529 = vxor.u32 %v2356, 2147483648
    %v2530 = vmul.f32 %v2529, 1.442695
    %v2531 = vpow.pop %v2530
    %v2532 = vadd.f32 %v2531, 1.0
    %v2533 = vrcp.pop %v2532
    %v2534 = vmul.f32 1.0, %v2533
    %v2535 = vxor.u32 %v2514, 2147483648
    %v2536 = vmul.f32 %v2535, 1.442695
    %v2537 = vpow.pop %v2536
    %v2538 = vadd.f32 %v2537, 1.0
    %v2539 = vrcp.pop %v2538
    %v2540 = vmul.f32 1.0, %v2539
    %v2541 = vtanh.pop %v2357
    %v2542 = vtanh.pop %v2515
    %v2543 = vxor.u32 %v2358, 2147483648
    %v2544 = vmul.f32 %v2543, 1.442695
    %v2545 = vpow.pop %v2544
    %v2546 = vadd.f32 %v2545, 1.0
    %v2547 = vrcp.pop %v2546
    %v2548 = vmul.f32 1.0, %v2547
    %v2549 = vxor.u32 %v2516, 2147483648
    %v2550 = vmul.f32 %v2549, 1.442695
    %v2551 = vpow.pop %v2550
    %v2552 = vadd.f32 %v2551, 1.0
    %v2553 = vrcp.pop %v2552
    %v2554 = vmul.f32 1.0, %v2553
    %v2556 = vrot.slane %v2199, 6
    %v2558 = vmul.f32 %v2534, %v2556
    %v2559 = vmul.f32 %v2522, %v2541
    %v2560 = vadd.f32 %v2558, %v2559
    %v2562 = vrot.slane %v2205, 2
    %v2564 = vmul.f32 %v2540, %v2562
    %v2565 = vmul.f32 %v2528, %v2542
    %v2566 = vadd.f32 %v2564, %v2565
    %v2567 = vtanh.pop %v2560
    %v2568 = vmul.f32 %v2548, %v2567
    %v2569 = vtanh.pop %v2566
    %v2570 = vmul.f32 %v2554, %v2569
    %2571 = vmatprep.subr.mxu0 %v678
    %2572 = vmatpush1.msra.mxu0 %v677
    %2573 = vmatprep.subr.mxu0 %v674
    %2574 = vmatpush1.msra.mxu0 %v673
    %2575 = vmatprep.subr.mxu0 %v670
    %2576 = vmatpush1.msra.mxu0 %v669
    %2577 = vmatprep.subr.mxu0 %v666
    %2578 = vmatpush1.msra.mxu0 %v665
    %2579 = vmatprep.subr.mxu0 %v662
    %2580 = vmatpush1.msra.mxu0 %v661
    %2581 = vmatprep.subr.mxu0 %v658
    %2582 = vmatpush1.msra.mxu0 %v657
    %2583 = vmatprep.subr.mxu0 %v654
    %2584 = vmatpush1.msra.mxu0 %v653
    %2585 = vmatprep.subr.mxu0 %v650
    %2586 = vmatpush1.msra.mxu0 %v649
    %2587 = vmatprep.subr.mxu0 %v646
    %2588 = vmatpush1.msra.mxu0 %v645
    %2589 = vmatprep.subr.mxu0 %v642
    %2590 = vmatpush1.msra.mxu0 %v641
    %2591 = vmatprep.subr.mxu0 %v638
    %2592 = vmatpush1.msra.mxu0 %v637
    %2593 = vmatprep.subr.mxu0 %v634
    %2594 = vmatpush1.msra.mxu0 %v633
    %2595 = vmatprep.subr.mxu0 %v630
    %2596 = vmatpush1.msra.mxu0 %v629
    %2597 = vmatprep.subr.mxu0 %v626
    %2598 = vmatpush1.msra.mxu0 %v625
    %2599 = vmatprep.subr.mxu0 %v622
    %2600 = vmatpush1.msra.mxu0 %v621
    %2601 = vmatprep.subr.mxu0 %v618
    %2602 = vmatpush1.msra.mxu0 %v617
    %2603 = vmatprep.subr.mxu0 0.0
    %2604 = vmatpush2.msra.mxu0 0.0
    %2605 = vmatprep.subr.mxu0 0.0
    %2606 = vmatpush2.msra.mxu0 0.0
    %2607 = vmatprep.subr.mxu0 0.0
    %2608 = vmatpush2.msra.mxu0 0.0
    %2609 = vmatprep.subr.mxu0 0.0
    %2610 = vmatpush2.msra.mxu0 0.0
    %2611 = vmatprep.subr.mxu0 0.0
    %2612 = vmatpush2.msra.mxu0 0.0
    %2613 = vmatprep.subr.mxu0 0.0
    %2614 = vmatpush2.msra.mxu0 0.0
    %2615 = vmatprep.subr.mxu0 0.0
    %2616 = vmatpush2.msra.mxu0 0.0
    %2617 = vmatprep.subr.mxu0 0.0
    %2618 = vmatpush2.msra.mxu0 0.0
    %2619 = vmatprep.subr.mxu0 0.0
    %2620 = vmatpush2.msra.mxu0 0.0
    %2621 = vmatprep.subr.mxu0 0.0
    %2622 = vmatpush2.msra.mxu0 0.0
    %2623 = vmatprep.subr.mxu0 0.0
    %2624 = vmatpush2.msra.mxu0 0.0
    %2625 = vmatprep.subr.mxu0 0.0
    %2626 = vmatpush2.msra.mxu0 0.0
    %2627 = vmatprep.subr.mxu0 0.0
    %2628 = vmatpush2.msra.mxu0 0.0
    %2629 = vmatprep.subr.mxu0 0.0
    %2630 = vmatpush2.msra.mxu0 0.0
    %2631 = vmatprep.subr.mxu0 0.0
    %2632 = vmatpush2.msra.mxu0 0.0
    %2633 = vmatprep.subr.mxu0 0.0
    %2634 = vmatpush2.msra.mxu0 0.0
    %2635 = vmatprep.mubr.f32.mxu0 0.0
    %2636 = vmatmul.mubr.f32.gmra.mxu0 %v2568
    %v2637 = vpop.f32.mrf.mxu0
    %v2638 = vadd.f32 0.0, %v2637
    %v2639 = vpop.f32.mrf.mxu0
    %v2640 = vadd.f32 0.0, %v2639
    %2641 = vdwg.mxu0
    %2642 = vmatprep.subr.mxu0 %v680
    %2643 = vmatpush1.msra.mxu0 %v679
    %2644 = vmatprep.subr.mxu0 %v676
    %2645 = vmatpush1.msra.mxu0 %v675
    %2646 = vmatprep.subr.mxu0 %v672
    %2647 = vmatpush1.msra.mxu0 %v671
    %2648 = vmatprep.subr.mxu0 %v668
    %2649 = vmatpush1.msra.mxu0 %v667
    %2650 = vmatprep.subr.mxu0 %v664
    %2651 = vmatpush1.msra.mxu0 %v663
    %2652 = vmatprep.subr.mxu0 %v660
    %2653 = vmatpush1.msra.mxu0 %v659
    %2654 = vmatprep.subr.mxu0 %v656
    %2655 = vmatpush1.msra.mxu0 %v655
    %2656 = vmatprep.subr.mxu0 %v652
    %2657 = vmatpush1.msra.mxu0 %v651
    %2658 = vmatprep.subr.mxu0 %v648
    %2659 = vmatpush1.msra.mxu0 %v647
    %2660 = vmatprep.subr.mxu0 %v644
    %2661 = vmatpush1.msra.mxu0 %v643
    %2662 = vmatprep.subr.mxu0 %v640
    %2663 = vmatpush1.msra.mxu0 %v639
    %2664 = vmatprep.subr.mxu0 %v636
    %2665 = vmatpush1.msra.mxu0 %v635
    %2666 = vmatprep.subr.mxu0 %v632
    %2667 = vmatpush1.msra.mxu0 %v631
    %2668 = vmatprep.subr.mxu0 %v628
    %2669 = vmatpush1.msra.mxu0 %v627
    %2670 = vmatprep.subr.mxu0 %v624
    %2671 = vmatpush1.msra.mxu0 %v623
    %2672 = vmatprep.subr.mxu0 %v620
    %2673 = vmatpush1.msra.mxu0 %v619
    %2674 = vmatprep.subr.mxu0 0.0
    %2675 = vmatpush2.msra.mxu0 0.0
    %2676 = vmatprep.subr.mxu0 0.0
    %2677 = vmatpush2.msra.mxu0 0.0
    %2678 = vmatprep.subr.mxu0 0.0
    %2679 = vmatpush2.msra.mxu0 0.0
    %2680 = vmatprep.subr.mxu0 0.0
    %2681 = vmatpush2.msra.mxu0 0.0
    %2682 = vmatprep.subr.mxu0 0.0
    %2683 = vmatpush2.msra.mxu0 0.0
    %2684 = vmatprep.subr.mxu0 0.0
    %2685 = vmatpush2.msra.mxu0 0.0
    %2686 = vmatprep.subr.mxu0 0.0
    %2687 = vmatpush2.msra.mxu0 0.0
    %2688 = vmatprep.subr.mxu0 0.0
    %2689 = vmatpush2.msra.mxu0 0.0
    %2690 = vmatprep.subr.mxu0 0.0
    %2691 = vmatpush2.msra.mxu0 0.0
    %2692 = vmatprep.subr.mxu0 0.0
    %2693 = vmatpush2.msra.mxu0 0.0
    %2694 = vmatprep.subr.mxu0 0.0
    %2695 = vmatpush2.msra.mxu0 0.0
    %2696 = vmatprep.subr.mxu0 0.0
    %2697 = vmatpush2.msra.mxu0 0.0
    %2698 = vmatprep.subr.mxu0 0.0
    %2699 = vmatpush2.msra.mxu0 0.0
    %2700 = vmatprep.subr.mxu0 0.0
    %2701 = vmatpush2.msra.mxu0 0.0
    %2702 = vmatprep.subr.mxu0 0.0
    %2703 = vmatpush2.msra.mxu0 0.0
    %2704 = vmatprep.subr.mxu0 0.0
    %2705 = vmatpush2.msra.mxu0 0.0
    %2706 = vmatprep.mubr.f32.mxu0 0.0
    %2707 = vmatmul.mubr.f32.gmra.mxu0 %v2568
    %v2708 = vpop.f32.mrf.mxu0
    %v2709 = vadd.f32 0.0, %v2708
    %v2710 = vpop.f32.mrf.mxu0
    %v2711 = vadd.f32 0.0, %v2710
    %2712 = vdwg.mxu0
    %v2717 = vrot.slane %v2638, 6
    %v2718 = vrot.slane %v2640, 6
    %v2719 = vrot.slane %v2709, 6
    %v2720 = vrot.slane %v2711, 6
    %v2725 = vadd.f32 %v382, %v2717
    %v2726 = vadd.f32 %v384, %v2718
    %v2727 = vadd.f32 %v459, %v2719
    %v2728 = vadd.f32 %v461, %v2720
    %v2730 = vrot.slane %v2570, 6
    %2732 = vmatprep.subr.mxu0 %v742
    %2733 = vmatpush1.msra.mxu0 %v741
    %2734 = vmatprep.subr.mxu0 %v738
    %2735 = vmatpush1.msra.mxu0 %v737
    %2736 = vmatprep.subr.mxu0 %v734
    %2737 = vmatpush1.msra.mxu0 %v733
    %2738 = vmatprep.subr.mxu0 %v730
    %2739 = vmatpush1.msra.mxu0 %v729
    %2740 = vmatprep.subr.mxu0 %v726
    %2741 = vmatpush1.msra.mxu0 %v725
    %2742 = vmatprep.subr.mxu0 %v722
    %2743 = vmatpush1.msra.mxu0 %v721
    %2744 = vmatprep.subr.mxu0 %v718
    %2745 = vmatpush1.msra.mxu0 %v717
    %2746 = vmatprep.subr.mxu0 %v714
    %2747 = vmatpush1.msra.mxu0 %v713
    %2748 = vmatprep.subr.mxu0 %v710
    %2749 = vmatpush1.msra.mxu0 %v709
    %2750 = vmatprep.subr.mxu0 %v706
    %2751 = vmatpush1.msra.mxu0 %v705
    %2752 = vmatprep.subr.mxu0 %v702
    %2753 = vmatpush1.msra.mxu0 %v701
    %2754 = vmatprep.subr.mxu0 %v698
    %2755 = vmatpush1.msra.mxu0 %v697
    %2756 = vmatprep.subr.mxu0 %v694
    %2757 = vmatpush1.msra.mxu0 %v693
    %2758 = vmatprep.subr.mxu0 %v690
    %2759 = vmatpush1.msra.mxu0 %v689
    %2760 = vmatprep.subr.mxu0 %v686
    %2761 = vmatpush1.msra.mxu0 %v685
    %2762 = vmatprep.subr.mxu0 %v682
    %2763 = vmatpush1.msra.mxu0 %v681
    %2764 = vmatprep.subr.mxu0 0.0
    %2765 = vmatpush2.msra.mxu0 0.0
    %2766 = vmatprep.subr.mxu0 0.0
    %2767 = vmatpush2.msra.mxu0 0.0
    %2768 = vmatprep.subr.mxu0 0.0
    %2769 = vmatpush2.msra.mxu0 0.0
    %2770 = vmatprep.subr.mxu0 0.0
    %2771 = vmatpush2.msra.mxu0 0.0
    %2772 = vmatprep.subr.mxu0 0.0
    %2773 = vmatpush2.msra.mxu0 0.0
    %2774 = vmatprep.subr.mxu0 0.0
    %2775 = vmatpush2.msra.mxu0 0.0
    %2776 = vmatprep.subr.mxu0 0.0
    %2777 = vmatpush2.msra.mxu0 0.0
    %2778 = vmatprep.subr.mxu0 0.0
    %2779 = vmatpush2.msra.mxu0 0.0
    %2780 = vmatprep.subr.mxu0 0.0
    %2781 = vmatpush2.msra.mxu0 0.0
    %2782 = vmatprep.subr.mxu0 0.0
    %2783 = vmatpush2.msra.mxu0 0.0
    %2784 = vmatprep.subr.mxu0 0.0
    %2785 = vmatpush2.msra.mxu0 0.0
    %2786 = vmatprep.subr.mxu0 0.0
    %2787 = vmatpush2.msra.mxu0 0.0
    %2788 = vmatprep.subr.mxu0 0.0
    %2789 = vmatpush2.msra.mxu0 0.0
    %2790 = vmatprep.subr.mxu0 0.0
    %2791 = vmatpush2.msra.mxu0 0.0
    %2792 = vmatprep.subr.mxu0 0.0
    %2793 = vmatpush2.msra.mxu0 0.0
    %2794 = vmatprep.subr.mxu0 0.0
    %2795 = vmatpush2.msra.mxu0 0.0
    %2796 = vmatprep.mubr.f32.mxu0 0.0
    %2797 = vmatmul.mubr.f32.gmra.mxu0 %v2730
    %v2798 = vpop.f32.mrf.mxu0
    %v2799 = vadd.f32 0.0, %v2798
    %v2800 = vpop.f32.mrf.mxu0
    %v2801 = vadd.f32 0.0, %v2800
    %2802 = vdwg.mxu0
    %2803 = vmatprep.subr.mxu0 %v744
    %2804 = vmatpush1.msra.mxu0 %v743
    %2805 = vmatprep.subr.mxu0 %v740
    %2806 = vmatpush1.msra.mxu0 %v739
    %2807 = vmatprep.subr.mxu0 %v736
    %2808 = vmatpush1.msra.mxu0 %v735
    %2809 = vmatprep.subr.mxu0 %v732
    %2810 = vmatpush1.msra.mxu0 %v731
    %2811 = vmatprep.subr.mxu0 %v728
    %2812 = vmatpush1.msra.mxu0 %v727
    %2813 = vmatprep.subr.mxu0 %v724
    %2814 = vmatpush1.msra.mxu0 %v723
    %2815 = vmatprep.subr.mxu0 %v720
    %2816 = vmatpush1.msra.mxu0 %v719
    %2817 = vmatprep.subr.mxu0 %v716
    %2818 = vmatpush1.msra.mxu0 %v715
    %2819 = vmatprep.subr.mxu0 %v712
    %2820 = vmatpush1.msra.mxu0 %v711
    %2821 = vmatprep.subr.mxu0 %v708
    %2822 = vmatpush1.msra.mxu0 %v707
    %2823 = vmatprep.subr.mxu0 %v704
    %2824 = vmatpush1.msra.mxu0 %v703
    %2825 = vmatprep.subr.mxu0 %v700
    %2826 = vmatpush1.msra.mxu0 %v699
    %2827 = vmatprep.subr.mxu0 %v696
    %2828 = vmatpush1.msra.mxu0 %v695
    %2829 = vmatprep.subr.mxu0 %v692
    %2830 = vmatpush1.msra.mxu0 %v691
    %2831 = vmatprep.subr.mxu0 %v688
    %2832 = vmatpush1.msra.mxu0 %v687
    %2833 = vmatprep.subr.mxu0 %v684
    %2834 = vmatpush1.msra.mxu0 %v683
    %2835 = vmatprep.subr.mxu0 0.0
    %2836 = vmatpush2.msra.mxu0 0.0
    %2837 = vmatprep.subr.mxu0 0.0
    %2838 = vmatpush2.msra.mxu0 0.0
    %2839 = vmatprep.subr.mxu0 0.0
    %2840 = vmatpush2.msra.mxu0 0.0
    %2841 = vmatprep.subr.mxu0 0.0
    %2842 = vmatpush2.msra.mxu0 0.0
    %2843 = vmatprep.subr.mxu0 0.0
    %2844 = vmatpush2.msra.mxu0 0.0
    %2845 = vmatprep.subr.mxu0 0.0
    %2846 = vmatpush2.msra.mxu0 0.0
    %2847 = vmatprep.subr.mxu0 0.0
    %2848 = vmatpush2.msra.mxu0 0.0
    %2849 = vmatprep.subr.mxu0 0.0
    %2850 = vmatpush2.msra.mxu0 0.0
    %2851 = vmatprep.subr.mxu0 0.0
    %2852 = vmatpush2.msra.mxu0 0.0
    %2853 = vmatprep.subr.mxu0 0.0
    %2854 = vmatpush2.msra.mxu0 0.0
    %2855 = vmatprep.subr.mxu0 0.0
    %2856 = vmatpush2.msra.mxu0 0.0
    %2857 = vmatprep.subr.mxu0 0.0
    %2858 = vmatpush2.msra.mxu0 0.0
    %2859 = vmatprep.subr.mxu0 0.0
    %2860 = vmatpush2.msra.mxu0 0.0
    %2861 = vmatprep.subr.mxu0 0.0
    %2862 = vmatpush2.msra.mxu0 0.0
    %2863 = vmatprep.subr.mxu0 0.0
    %2864 = vmatpush2.msra.mxu0 0.0
    %2865 = vmatprep.subr.mxu0 0.0
    %2866 = vmatpush2.msra.mxu0 0.0
    %2867 = vmatprep.mubr.f32.mxu0 0.0
    %2868 = vmatmul.mubr.f32.gmra.mxu0 %v2730
    %v2869 = vpop.f32.mrf.mxu0
    %v2870 = vadd.f32 0.0, %v2869
    %v2871 = vpop.f32.mrf.mxu0
    %v2872 = vadd.f32 0.0, %v2871
    %2873 = vdwg.mxu0
    %v2878 = vrot.slane %v2799, 4
    %v2879 = vrot.slane %v2801, 4
    %v2880 = vrot.slane %v2870, 4
    %v2881 = vrot.slane %v2872, 4
    %v2886 = vadd.f32 %v530, %v2878
    %v2887 = vadd.f32 %v532, %v2879
    %v2888 = vadd.f32 %v607, %v2880
    %v2889 = vadd.f32 %v609, %v2881
    %v2890 = vxor.u32 %v2725, 2147483648
    %v2891 = vmul.f32 %v2890, 1.442695
    %v2892 = vpow.pop %v2891
    %v2893 = vadd.f32 %v2892, 1.0
    %v2894 = vrcp.pop %v2893
    %v2895 = vmul.f32 1.0, %v2894
    %v2896 = vxor.u32 %v2886, 2147483648
    %v2897 = vmul.f32 %v2896, 1.442695
    %v2898 = vpow.pop %v2897
    %v2899 = vadd.f32 %v2898, 1.0
    %v2900 = vrcp.pop %v2899
    %v2901 = vmul.f32 1.0, %v2900
    %v2902 = vxor.u32 %v2726, 2147483648
    %v2903 = vmul.f32 %v2902, 1.442695
    %v2904 = vpow.pop %v2903
    %v2905 = vadd.f32 %v2904, 1.0
    %v2906 = vrcp.pop %v2905
    %v2907 = vmul.f32 1.0, %v2906
    %v2908 = vxor.u32 %v2887, 2147483648
    %v2909 = vmul.f32 %v2908, 1.442695
    %v2910 = vpow.pop %v2909
    %v2911 = vadd.f32 %v2910, 1.0
    %v2912 = vrcp.pop %v2911
    %v2913 = vmul.f32 1.0, %v2912
    %v2914 = vtanh.pop %v2727
    %v2915 = vtanh.pop %v2888
    %v2916 = vxor.u32 %v2728, 2147483648
    %v2917 = vmul.f32 %v2916, 1.442695
    %v2918 = vpow.pop %v2917
    %v2919 = vadd.f32 %v2918, 1.0
    %v2920 = vrcp.pop %v2919
    %v2921 = vmul.f32 1.0, %v2920
    %v2922 = vxor.u32 %v2889, 2147483648
    %v2923 = vmul.f32 %v2922, 1.442695
    %v2924 = vpow.pop %v2923
    %v2925 = vadd.f32 %v2924, 1.0
    %v2926 = vrcp.pop %v2925
    %v2927 = vmul.f32 1.0, %v2926
    %v2929 = vrot.slane %v2560, 6
    %v2931 = vmul.f32 %v2907, %v2929
    %v2932 = vmul.f32 %v2895, %v2914
    %v2933 = vadd.f32 %v2931, %v2932
    %v2935 = vrot.slane %v2566, 2
    %v2937 = vmul.f32 %v2913, %v2935
    %v2938 = vmul.f32 %v2901, %v2915
    %v2939 = vadd.f32 %v2937, %v2938
    %v2940 = vtanh.pop %v2933
    %v2941 = vmul.f32 %v2921, %v2940
    %v2942 = vtanh.pop %v2939
    %v2943 = vmul.f32 %v2927, %v2942
    %v2945 = vrot.slane %v2941, 2
    %2947 = vmatprep.subr.mxu0 %v678
    %2948 = vmatpush1.msra.mxu0 %v677
    %2949 = vmatprep.subr.mxu0 %v674
    %2950 = vmatpush1.msra.mxu0 %v673
    %2951 = vmatprep.subr.mxu0 %v670
    %2952 = vmatpush1.msra.mxu0 %v669
    %2953 = vmatprep.subr.mxu0 %v666
    %2954 = vmatpush1.msra.mxu0 %v665
    %2955 = vmatprep.subr.mxu0 %v662
    %2956 = vmatpush1.msra.mxu0 %v661
    %2957 = vmatprep.subr.mxu0 %v658
    %2958 = vmatpush1.msra.mxu0 %v657
    %2959 = vmatprep.subr.mxu0 %v654
    %2960 = vmatpush1.msra.mxu0 %v653
    %2961 = vmatprep.subr.mxu0 %v650
    %2962 = vmatpush1.msra.mxu0 %v649
    %2963 = vmatprep.subr.mxu0 %v646
    %2964 = vmatpush1.msra.mxu0 %v645
    %2965 = vmatprep.subr.mxu0 %v642
    %2966 = vmatpush1.msra.mxu0 %v641
    %2967 = vmatprep.subr.mxu0 %v638
    %2968 = vmatpush1.msra.mxu0 %v637
    %2969 = vmatprep.subr.mxu0 %v634
    %2970 = vmatpush1.msra.mxu0 %v633
    %2971 = vmatprep.subr.mxu0 %v630
    %2972 = vmatpush1.msra.mxu0 %v629
    %2973 = vmatprep.subr.mxu0 %v626
    %2974 = vmatpush1.msra.mxu0 %v625
    %2975 = vmatprep.subr.mxu0 %v622
    %2976 = vmatpush1.msra.mxu0 %v621
    %2977 = vmatprep.subr.mxu0 %v618
    %2978 = vmatpush1.msra.mxu0 %v617
    %2979 = vmatprep.subr.mxu0 0.0
    %2980 = vmatpush2.msra.mxu0 0.0
    %2981 = vmatprep.subr.mxu0 0.0
    %2982 = vmatpush2.msra.mxu0 0.0
    %2983 = vmatprep.subr.mxu0 0.0
    %2984 = vmatpush2.msra.mxu0 0.0
    %2985 = vmatprep.subr.mxu0 0.0
    %2986 = vmatpush2.msra.mxu0 0.0
    %2987 = vmatprep.subr.mxu0 0.0
    %2988 = vmatpush2.msra.mxu0 0.0
    %2989 = vmatprep.subr.mxu0 0.0
    %2990 = vmatpush2.msra.mxu0 0.0
    %2991 = vmatprep.subr.mxu0 0.0
    %2992 = vmatpush2.msra.mxu0 0.0
    %2993 = vmatprep.subr.mxu0 0.0
    %2994 = vmatpush2.msra.mxu0 0.0
    %2995 = vmatprep.subr.mxu0 0.0
    %2996 = vmatpush2.msra.mxu0 0.0
    %2997 = vmatprep.subr.mxu0 0.0
    %2998 = vmatpush2.msra.mxu0 0.0
    %2999 = vmatprep.subr.mxu0 0.0
    %3000 = vmatpush2.msra.mxu0 0.0
    %3001 = vmatprep.subr.mxu0 0.0
    %3002 = vmatpush2.msra.mxu0 0.0
    %3003 = vmatprep.subr.mxu0 0.0
    %3004 = vmatpush2.msra.mxu0 0.0
    %3005 = vmatprep.subr.mxu0 0.0
    %3006 = vmatpush2.msra.mxu0 0.0
    %3007 = vmatprep.subr.mxu0 0.0
    %3008 = vmatpush2.msra.mxu0 0.0
    %3009 = vmatprep.subr.mxu0 0.0
    %3010 = vmatpush2.msra.mxu0 0.0
    %3011 = vmatprep.mubr.f32.mxu0 0.0
    %3012 = vmatmul.mubr.f32.gmra.mxu0 %v2945
    %v3013 = vpop.f32.mrf.mxu0
    %v3014 = vadd.f32 0.0, %v3013
    %v3015 = vpop.f32.mrf.mxu0
    %v3016 = vadd.f32 0.0, %v3015
    %3017 = vdwg.mxu0
    %3018 = vmatprep.subr.mxu0 %v680
    %3019 = vmatpush1.msra.mxu0 %v679
    %3020 = vmatprep.subr.mxu0 %v676
    %3021 = vmatpush1.msra.mxu0 %v675
    %3022 = vmatprep.subr.mxu0 %v672
    %3023 = vmatpush1.msra.mxu0 %v671
    %3024 = vmatprep.subr.mxu0 %v668
    %3025 = vmatpush1.msra.mxu0 %v667
    %3026 = vmatprep.subr.mxu0 %v664
    %3027 = vmatpush1.msra.mxu0 %v663
    %3028 = vmatprep.subr.mxu0 %v660
    %3029 = vmatpush1.msra.mxu0 %v659
    %3030 = vmatprep.subr.mxu0 %v656
    %3031 = vmatpush1.msra.mxu0 %v655
    %3032 = vmatprep.subr.mxu0 %v652
    %3033 = vmatpush1.msra.mxu0 %v651
    %3034 = vmatprep.subr.mxu0 %v648
    %3035 = vmatpush1.msra.mxu0 %v647
    %3036 = vmatprep.subr.mxu0 %v644
    %3037 = vmatpush1.msra.mxu0 %v643
    %3038 = vmatprep.subr.mxu0 %v640
    %3039 = vmatpush1.msra.mxu0 %v639
    %3040 = vmatprep.subr.mxu0 %v636
    %3041 = vmatpush1.msra.mxu0 %v635
    %3042 = vmatprep.subr.mxu0 %v632
    %3043 = vmatpush1.msra.mxu0 %v631
    %3044 = vmatprep.subr.mxu0 %v628
    %3045 = vmatpush1.msra.mxu0 %v627
    %3046 = vmatprep.subr.mxu0 %v624
    %3047 = vmatpush1.msra.mxu0 %v623
    %3048 = vmatprep.subr.mxu0 %v620
    %3049 = vmatpush1.msra.mxu0 %v619
    %3050 = vmatprep.subr.mxu0 0.0
    %3051 = vmatpush2.msra.mxu0 0.0
    %3052 = vmatprep.subr.mxu0 0.0
    %3053 = vmatpush2.msra.mxu0 0.0
    %3054 = vmatprep.subr.mxu0 0.0
    %3055 = vmatpush2.msra.mxu0 0.0
    %3056 = vmatprep.subr.mxu0 0.0
    %3057 = vmatpush2.msra.mxu0 0.0
    %3058 = vmatprep.subr.mxu0 0.0
    %3059 = vmatpush2.msra.mxu0 0.0
    %3060 = vmatprep.subr.mxu0 0.0
    %3061 = vmatpush2.msra.mxu0 0.0
    %3062 = vmatprep.subr.mxu0 0.0
    %3063 = vmatpush2.msra.mxu0 0.0
    %3064 = vmatprep.subr.mxu0 0.0
    %3065 = vmatpush2.msra.mxu0 0.0
    %3066 = vmatprep.subr.mxu0 0.0
    %3067 = vmatpush2.msra.mxu0 0.0
    %3068 = vmatprep.subr.mxu0 0.0
    %3069 = vmatpush2.msra.mxu0 0.0
    %3070 = vmatprep.subr.mxu0 0.0
    %3071 = vmatpush2.msra.mxu0 0.0
    %3072 = vmatprep.subr.mxu0 0.0
    %3073 = vmatpush2.msra.mxu0 0.0
    %3074 = vmatprep.subr.mxu0 0.0
    %3075 = vmatpush2.msra.mxu0 0.0
    %3076 = vmatprep.subr.mxu0 0.0
    %3077 = vmatpush2.msra.mxu0 0.0
    %3078 = vmatprep.subr.mxu0 0.0
    %3079 = vmatpush2.msra.mxu0 0.0
    %3080 = vmatprep.subr.mxu0 0.0
    %3081 = vmatpush2.msra.mxu0 0.0
    %3082 = vmatprep.mubr.f32.mxu0 0.0
    %3083 = vmatmul.mubr.f32.gmra.mxu0 %v2945
    %v3084 = vpop.f32.mrf.mxu0
    %v3085 = vadd.f32 0.0, %v3084
    %v3086 = vpop.f32.mrf.mxu0
    %v3087 = vadd.f32 0.0, %v3086
    %3088 = vdwg.mxu0
    %v3093 = vrot.slane %v3014, 4
    %v3094 = vrot.slane %v3016, 4
    %v3095 = vrot.slane %v3085, 4
    %v3096 = vrot.slane %v3087, 4
    %v3101 = vadd.f32 %v382, %v3093
    %v3102 = vadd.f32 %v384, %v3094
    %v3103 = vadd.f32 %v459, %v3095
    %v3104 = vadd.f32 %v461, %v3096
    %v3106 = vrot.slane %v2943, 4
    %3108 = vmatprep.subr.mxu0 %v742
    %3109 = vmatpush1.msra.mxu0 %v741
    %3110 = vmatprep.subr.mxu0 %v738
    %3111 = vmatpush1.msra.mxu0 %v737
    %3112 = vmatprep.subr.mxu0 %v734
    %3113 = vmatpush1.msra.mxu0 %v733
    %3114 = vmatprep.subr.mxu0 %v730
    %3115 = vmatpush1.msra.mxu0 %v729
    %3116 = vmatprep.subr.mxu0 %v726
    %3117 = vmatpush1.msra.mxu0 %v725
    %3118 = vmatprep.subr.mxu0 %v722
    %3119 = vmatpush1.msra.mxu0 %v721
    %3120 = vmatprep.subr.mxu0 %v718
    %3121 = vmatpush1.msra.mxu0 %v717
    %3122 = vmatprep.subr.mxu0 %v714
    %3123 = vmatpush1.msra.mxu0 %v713
    %3124 = vmatprep.subr.mxu0 %v710
    %3125 = vmatpush1.msra.mxu0 %v709
    %3126 = vmatprep.subr.mxu0 %v706
    %3127 = vmatpush1.msra.mxu0 %v705
    %3128 = vmatprep.subr.mxu0 %v702
    %3129 = vmatpush1.msra.mxu0 %v701
    %3130 = vmatprep.subr.mxu0 %v698
    %3131 = vmatpush1.msra.mxu0 %v697
    %3132 = vmatprep.subr.mxu0 %v694
    %3133 = vmatpush1.msra.mxu0 %v693
    %3134 = vmatprep.subr.mxu0 %v690
    %3135 = vmatpush1.msra.mxu0 %v689
    %3136 = vmatprep.subr.mxu0 %v686
    %3137 = vmatpush1.msra.mxu0 %v685
    %3138 = vmatprep.subr.mxu0 %v682
    %3139 = vmatpush1.msra.mxu0 %v681
    %3140 = vmatprep.subr.mxu0 0.0
    %3141 = vmatpush2.msra.mxu0 0.0
    %3142 = vmatprep.subr.mxu0 0.0
    %3143 = vmatpush2.msra.mxu0 0.0
    %3144 = vmatprep.subr.mxu0 0.0
    %3145 = vmatpush2.msra.mxu0 0.0
    %3146 = vmatprep.subr.mxu0 0.0
    %3147 = vmatpush2.msra.mxu0 0.0
    %3148 = vmatprep.subr.mxu0 0.0
    %3149 = vmatpush2.msra.mxu0 0.0
    %3150 = vmatprep.subr.mxu0 0.0
    %3151 = vmatpush2.msra.mxu0 0.0
    %3152 = vmatprep.subr.mxu0 0.0
    %3153 = vmatpush2.msra.mxu0 0.0
    %3154 = vmatprep.subr.mxu0 0.0
    %3155 = vmatpush2.msra.mxu0 0.0
    %3156 = vmatprep.subr.mxu0 0.0
    %3157 = vmatpush2.msra.mxu0 0.0
    %3158 = vmatprep.subr.mxu0 0.0
    %3159 = vmatpush2.msra.mxu0 0.0
    %3160 = vmatprep.subr.mxu0 0.0
    %3161 = vmatpush2.msra.mxu0 0.0
    %3162 = vmatprep.subr.mxu0 0.0
    %3163 = vmatpush2.msra.mxu0 0.0
    %3164 = vmatprep.subr.mxu0 0.0
    %3165 = vmatpush2.msra.mxu0 0.0
    %3166 = vmatprep.subr.mxu0 0.0
    %3167 = vmatpush2.msra.mxu0 0.0
    %3168 = vmatprep.subr.mxu0 0.0
    %3169 = vmatpush2.msra.mxu0 0.0
    %3170 = vmatprep.subr.mxu0 0.0
    %3171 = vmatpush2.msra.mxu0 0.0
    %3172 = vmatprep.mubr.f32.mxu0 0.0
    %3173 = vmatmul.mubr.f32.gmra.mxu0 %v3106
    %v3174 = vpop.f32.mrf.mxu0
    %v3175 = vadd.f32 0.0, %v3174
    %v3176 = vpop.f32.mrf.mxu0
    %v3177 = vadd.f32 0.0, %v3176
    %3178 = vdwg.mxu0
    %3179 = vmatprep.subr.mxu0 %v744
    %3180 = vmatpush1.msra.mxu0 %v743
    %3181 = vmatprep.subr.mxu0 %v740
    %3182 = vmatpush1.msra.mxu0 %v739
    %3183 = vmatprep.subr.mxu0 %v736
    %3184 = vmatpush1.msra.mxu0 %v735
    %3185 = vmatprep.subr.mxu0 %v732
    %3186 = vmatpush1.msra.mxu0 %v731
    %3187 = vmatprep.subr.mxu0 %v728
    %3188 = vmatpush1.msra.mxu0 %v727
    %3189 = vmatprep.subr.mxu0 %v724
    %3190 = vmatpush1.msra.mxu0 %v723
    %3191 = vmatprep.subr.mxu0 %v720
    %3192 = vmatpush1.msra.mxu0 %v719
    %3193 = vmatprep.subr.mxu0 %v716
    %3194 = vmatpush1.msra.mxu0 %v715
    %3195 = vmatprep.subr.mxu0 %v712
    %3196 = vmatpush1.msra.mxu0 %v711
    %3197 = vmatprep.subr.mxu0 %v708
    %3198 = vmatpush1.msra.mxu0 %v707
    %3199 = vmatprep.subr.mxu0 %v704
    %3200 = vmatpush1.msra.mxu0 %v703
    %3201 = vmatprep.subr.mxu0 %v700
    %3202 = vmatpush1.msra.mxu0 %v699
    %3203 = vmatprep.subr.mxu0 %v696
    %3204 = vmatpush1.msra.mxu0 %v695
    %3205 = vmatprep.subr.mxu0 %v692
    %3206 = vmatpush1.msra.mxu0 %v691
    %3207 = vmatprep.subr.mxu0 %v688
    %3208 = vmatpush1.msra.mxu0 %v687
    %3209 = vmatprep.subr.mxu0 %v684
    %3210 = vmatpush1.msra.mxu0 %v683
    %3211 = vmatprep.subr.mxu0 0.0
    %3212 = vmatpush2.msra.mxu0 0.0
    %3213 = vmatprep.subr.mxu0 0.0
    %3214 = vmatpush2.msra.mxu0 0.0
    %3215 = vmatprep.subr.mxu0 0.0
    %3216 = vmatpush2.msra.mxu0 0.0
    %3217 = vmatprep.subr.mxu0 0.0
    %3218 = vmatpush2.msra.mxu0 0.0
    %3219 = vmatprep.subr.mxu0 0.0
    %3220 = vmatpush2.msra.mxu0 0.0
    %3221 = vmatprep.subr.mxu0 0.0
    %3222 = vmatpush2.msra.mxu0 0.0
    %3223 = vmatprep.subr.mxu0 0.0
    %3224 = vmatpush2.msra.mxu0 0.0
    %3225 = vmatprep.subr.mxu0 0.0
    %3226 = vmatpush2.msra.mxu0 0.0
    %3227 = vmatprep.subr.mxu0 0.0
    %3228 = vmatpush2.msra.mxu0 0.0
    %3229 = vmatprep.subr.mxu0 0.0
    %3230 = vmatpush2.msra.mxu0 0.0
    %3231 = vmatprep.subr.mxu0 0.0
    %3232 = vmatpush2.msra.mxu0 0.0
    %3233 = vmatprep.subr.mxu0 0.0
    %3234 = vmatpush2.msra.mxu0 0.0
    %3235 = vmatprep.subr.mxu0 0.0
    %3236 = vmatpush2.msra.mxu0 0.0
    %3237 = vmatprep.subr.mxu0 0.0
    %3238 = vmatpush2.msra.mxu0 0.0
    %3239 = vmatprep.subr.mxu0 0.0
    %3240 = vmatpush2.msra.mxu0 0.0
    %3241 = vmatprep.subr.mxu0 0.0
    %3242 = vmatpush2.msra.mxu0 0.0
    %3243 = vmatprep.mubr.f32.mxu0 0.0
    %3244 = vmatmul.mubr.f32.gmra.mxu0 %v3106
    %v3245 = vpop.f32.mrf.mxu0
    %v3246 = vadd.f32 0.0, %v3245
    %v3247 = vpop.f32.mrf.mxu0
    %v3248 = vadd.f32 0.0, %v3247
    %3249 = vdwg.mxu0
    %v3254 = vrot.slane %v3175, 6
    %v3255 = vrot.slane %v3177, 6
    %v3256 = vrot.slane %v3246, 6
    %v3257 = vrot.slane %v3248, 6
    %v3262 = vadd.f32 %v530, %v3254
    %v3263 = vadd.f32 %v532, %v3255
    %v3264 = vadd.f32 %v607, %v3256
    %v3265 = vadd.f32 %v609, %v3257
    %v3266 = vxor.u32 %v3101, 2147483648
    %v3267 = vmul.f32 %v3266, 1.442695
    %v3268 = vpow.pop %v3267
    %v3269 = vadd.f32 %v3268, 1.0
    %v3270 = vrcp.pop %v3269
    %v3271 = vmul.f32 1.0, %v3270
    %v3272 = vxor.u32 %v3262, 2147483648
    %v3273 = vmul.f32 %v3272, 1.442695
    %v3274 = vpow.pop %v3273
    %v3275 = vadd.f32 %v3274, 1.0
    %v3276 = vrcp.pop %v3275
    %v3277 = vmul.f32 1.0, %v3276
    %v3278 = vxor.u32 %v3102, 2147483648
    %v3279 = vmul.f32 %v3278, 1.442695
    %v3280 = vpow.pop %v3279
    %v3281 = vadd.f32 %v3280, 1.0
    %v3282 = vrcp.pop %v3281
    %v3283 = vmul.f32 1.0, %v3282
    %v3284 = vxor.u32 %v3263, 2147483648
    %v3285 = vmul.f32 %v3284, 1.442695
    %v3286 = vpow.pop %v3285
    %v3287 = vadd.f32 %v3286, 1.0
    %v3288 = vrcp.pop %v3287
    %v3289 = vmul.f32 1.0, %v3288
    %v3290 = vtanh.pop %v3103
    %v3291 = vtanh.pop %v3264
    %v3292 = vxor.u32 %v3104, 2147483648
    %v3293 = vmul.f32 %v3292, 1.442695
    %v3294 = vpow.pop %v3293
    %v3295 = vadd.f32 %v3294, 1.0
    %v3296 = vrcp.pop %v3295
    %v3297 = vmul.f32 1.0, %v3296
    %v3298 = vxor.u32 %v3265, 2147483648
    %v3299 = vmul.f32 %v3298, 1.442695
    %v3300 = vpow.pop %v3299
    %v3301 = vadd.f32 %v3300, 1.0
    %v3302 = vrcp.pop %v3301
    %v3303 = vmul.f32 1.0, %v3302
    %v3305 = vrot.slane %v2933, 6
    %v3307 = vmul.f32 %v3283, %v3305
    %v3308 = vmul.f32 %v3271, %v3290
    %v3309 = vadd.f32 %v3307, %v3308
    %v3311 = vrot.slane %v2939, 2
    %v3313 = vmul.f32 %v3289, %v3311
    %v3314 = vmul.f32 %v3277, %v3291
    %v3315 = vadd.f32 %v3313, %v3314
    %v3316 = vtanh.pop %v3309
    %v3317 = vmul.f32 %v3297, %v3316
    %v3318 = vtanh.pop %v3315
    %v3319 = vmul.f32 %v3303, %v3318
    %v3321 = vrot.slane %v3317, 4
    %3323 = vmatprep.subr.mxu0 %v678
    %3324 = vmatpush1.msra.mxu0 %v677
    %3325 = vmatprep.subr.mxu0 %v674
    %3326 = vmatpush1.msra.mxu0 %v673
    %3327 = vmatprep.subr.mxu0 %v670
    %3328 = vmatpush1.msra.mxu0 %v669
    %3329 = vmatprep.subr.mxu0 %v666
    %3330 = vmatpush1.msra.mxu0 %v665
    %3331 = vmatprep.subr.mxu0 %v662
    %3332 = vmatpush1.msra.mxu0 %v661
    %3333 = vmatprep.subr.mxu0 %v658
    %3334 = vmatpush1.msra.mxu0 %v657
    %3335 = vmatprep.subr.mxu0 %v654
    %3336 = vmatpush1.msra.mxu0 %v653
    %3337 = vmatprep.subr.mxu0 %v650
    %3338 = vmatpush1.msra.mxu0 %v649
    %3339 = vmatprep.subr.mxu0 %v646
    %3340 = vmatpush1.msra.mxu0 %v645
    %3341 = vmatprep.subr.mxu0 %v642
    %3342 = vmatpush1.msra.mxu0 %v641
    %3343 = vmatprep.subr.mxu0 %v638
    %3344 = vmatpush1.msra.mxu0 %v637
    %3345 = vmatprep.subr.mxu0 %v634
    %3346 = vmatpush1.msra.mxu0 %v633
    %3347 = vmatprep.subr.mxu0 %v630
    %3348 = vmatpush1.msra.mxu0 %v629
    %3349 = vmatprep.subr.mxu0 %v626
    %3350 = vmatpush1.msra.mxu0 %v625
    %3351 = vmatprep.subr.mxu0 %v622
    %3352 = vmatpush1.msra.mxu0 %v621
    %3353 = vmatprep.subr.mxu0 %v618
    %3354 = vmatpush1.msra.mxu0 %v617
    %3355 = vmatprep.subr.mxu0 0.0
    %3356 = vmatpush2.msra.mxu0 0.0
    %3357 = vmatprep.subr.mxu0 0.0
    %3358 = vmatpush2.msra.mxu0 0.0
    %3359 = vmatprep.subr.mxu0 0.0
    %3360 = vmatpush2.msra.mxu0 0.0
    %3361 = vmatprep.subr.mxu0 0.0
    %3362 = vmatpush2.msra.mxu0 0.0
    %3363 = vmatprep.subr.mxu0 0.0
    %3364 = vmatpush2.msra.mxu0 0.0
    %3365 = vmatprep.subr.mxu0 0.0
    %3366 = vmatpush2.msra.mxu0 0.0
    %3367 = vmatprep.subr.mxu0 0.0
    %3368 = vmatpush2.msra.mxu0 0.0
    %3369 = vmatprep.subr.mxu0 0.0
    %3370 = vmatpush2.msra.mxu0 0.0
    %3371 = vmatprep.subr.mxu0 0.0
    %3372 = vmatpush2.msra.mxu0 0.0
    %3373 = vmatprep.subr.mxu0 0.0
    %3374 = vmatpush2.msra.mxu0 0.0
    %3375 = vmatprep.subr.mxu0 0.0
    %3376 = vmatpush2.msra.mxu0 0.0
    %3377 = vmatprep.subr.mxu0 0.0
    %3378 = vmatpush2.msra.mxu0 0.0
    %3379 = vmatprep.subr.mxu0 0.0
    %3380 = vmatpush2.msra.mxu0 0.0
    %3381 = vmatprep.subr.mxu0 0.0
    %3382 = vmatpush2.msra.mxu0 0.0
    %3383 = vmatprep.subr.mxu0 0.0
    %3384 = vmatpush2.msra.mxu0 0.0
    %3385 = vmatprep.subr.mxu0 0.0
    %3386 = vmatpush2.msra.mxu0 0.0
    %3387 = vmatprep.mubr.f32.mxu0 0.0
    %3388 = vmatmul.mubr.f32.gmra.mxu0 %v3321
    %v3389 = vpop.f32.mrf.mxu0
    %v3390 = vadd.f32 0.0, %v3389
    %v3391 = vpop.f32.mrf.mxu0
    %v3392 = vadd.f32 0.0, %v3391
    %3393 = vdwg.mxu0
    %3394 = vmatprep.subr.mxu0 %v680
    %3395 = vmatpush1.msra.mxu0 %v679
    %3396 = vmatprep.subr.mxu0 %v676
    %3397 = vmatpush1.msra.mxu0 %v675
    %3398 = vmatprep.subr.mxu0 %v672
    %3399 = vmatpush1.msra.mxu0 %v671
    %3400 = vmatprep.subr.mxu0 %v668
    %3401 = vmatpush1.msra.mxu0 %v667
    %3402 = vmatprep.subr.mxu0 %v664
    %3403 = vmatpush1.msra.mxu0 %v663
    %3404 = vmatprep.subr.mxu0 %v660
    %3405 = vmatpush1.msra.mxu0 %v659
    %3406 = vmatprep.subr.mxu0 %v656
    %3407 = vmatpush1.msra.mxu0 %v655
    %3408 = vmatprep.subr.mxu0 %v652
    %3409 = vmatpush1.msra.mxu0 %v651
    %3410 = vmatprep.subr.mxu0 %v648
    %3411 = vmatpush1.msra.mxu0 %v647
    %3412 = vmatprep.subr.mxu0 %v644
    %3413 = vmatpush1.msra.mxu0 %v643
    %3414 = vmatprep.subr.mxu0 %v640
    %3415 = vmatpush1.msra.mxu0 %v639
    %3416 = vmatprep.subr.mxu0 %v636
    %3417 = vmatpush1.msra.mxu0 %v635
    %3418 = vmatprep.subr.mxu0 %v632
    %3419 = vmatpush1.msra.mxu0 %v631
    %3420 = vmatprep.subr.mxu0 %v628
    %3421 = vmatpush1.msra.mxu0 %v627
    %3422 = vmatprep.subr.mxu0 %v624
    %3423 = vmatpush1.msra.mxu0 %v623
    %3424 = vmatprep.subr.mxu0 %v620
    %3425 = vmatpush1.msra.mxu0 %v619
    %3426 = vmatprep.subr.mxu0 0.0
    %3427 = vmatpush2.msra.mxu0 0.0
    %3428 = vmatprep.subr.mxu0 0.0
    %3429 = vmatpush2.msra.mxu0 0.0
    %3430 = vmatprep.subr.mxu0 0.0
    %3431 = vmatpush2.msra.mxu0 0.0
    %3432 = vmatprep.subr.mxu0 0.0
    %3433 = vmatpush2.msra.mxu0 0.0
    %3434 = vmatprep.subr.mxu0 0.0
    %3435 = vmatpush2.msra.mxu0 0.0
    %3436 = vmatprep.subr.mxu0 0.0
    %3437 = vmatpush2.msra.mxu0 0.0
    %3438 = vmatprep.subr.mxu0 0.0
    %3439 = vmatpush2.msra.mxu0 0.0
    %3440 = vmatprep.subr.mxu0 0.0
    %3441 = vmatpush2.msra.mxu0 0.0
    %3442 = vmatprep.subr.mxu0 0.0
    %3443 = vmatpush2.msra.mxu0 0.0
    %3444 = vmatprep.subr.mxu0 0.0
    %3445 = vmatpush2.msra.mxu0 0.0
    %3446 = vmatprep.subr.mxu0 0.0
    %3447 = vmatpush2.msra.mxu0 0.0
    %3448 = vmatprep.subr.mxu0 0.0
    %3449 = vmatpush2.msra.mxu0 0.0
    %3450 = vmatprep.subr.mxu0 0.0
    %3451 = vmatpush2.msra.mxu0 0.0
    %3452 = vmatprep.subr.mxu0 0.0
    %3453 = vmatpush2.msra.mxu0 0.0
    %3454 = vmatprep.subr.mxu0 0.0
    %3455 = vmatpush2.msra.mxu0 0.0
    %3456 = vmatprep.subr.mxu0 0.0
    %3457 = vmatpush2.msra.mxu0 0.0
    %3458 = vmatprep.mubr.f32.mxu0 0.0
    %3459 = vmatmul.mubr.f32.gmra.mxu0 %v3321
    %v3460 = vpop.f32.mrf.mxu0
    %v3461 = vadd.f32 0.0, %v3460
    %v3462 = vpop.f32.mrf.mxu0
    %v3463 = vadd.f32 0.0, %v3462
    %3464 = vdwg.mxu0
    %v3469 = vrot.slane %v3390, 2
    %v3470 = vrot.slane %v3392, 2
    %v3471 = vrot.slane %v3461, 2
    %v3472 = vrot.slane %v3463, 2
    %v3477 = vadd.f32 %v382, %v3469
    %v3478 = vadd.f32 %v384, %v3470
    %v3479 = vadd.f32 %v459, %v3471
    %v3480 = vadd.f32 %v461, %v3472
    %v3482 = vrot.slane %v3319, 2
    %3484 = vmatprep.subr.mxu0 %v742
    %3485 = vmatpush1.msra.mxu0 %v741
    %3486 = vmatprep.subr.mxu0 %v738
    %3487 = vmatpush1.msra.mxu0 %v737
    %3488 = vmatprep.subr.mxu0 %v734
    %3489 = vmatpush1.msra.mxu0 %v733
    %3490 = vmatprep.subr.mxu0 %v730
    %3491 = vmatpush1.msra.mxu0 %v729
    %3492 = vmatprep.subr.mxu0 %v726
    %3493 = vmatpush1.msra.mxu0 %v725
    %3494 = vmatprep.subr.mxu0 %v722
    %3495 = vmatpush1.msra.mxu0 %v721
    %3496 = vmatprep.subr.mxu0 %v718
    %3497 = vmatpush1.msra.mxu0 %v717
    %3498 = vmatprep.subr.mxu0 %v714
    %3499 = vmatpush1.msra.mxu0 %v713
    %3500 = vmatprep.subr.mxu0 %v710
    %3501 = vmatpush1.msra.mxu0 %v709
    %3502 = vmatprep.subr.mxu0 %v706
    %3503 = vmatpush1.msra.mxu0 %v705
    %3504 = vmatprep.subr.mxu0 %v702
    %3505 = vmatpush1.msra.mxu0 %v701
    %3506 = vmatprep.subr.mxu0 %v698
    %3507 = vmatpush1.msra.mxu0 %v697
    %3508 = vmatprep.subr.mxu0 %v694
    %3509 = vmatpush1.msra.mxu0 %v693
    %3510 = vmatprep.subr.mxu0 %v690
    %3511 = vmatpush1.msra.mxu0 %v689
    %3512 = vmatprep.subr.mxu0 %v686
    %3513 = vmatpush1.msra.mxu0 %v685
    %3514 = vmatprep.subr.mxu0 %v682
    %3515 = vmatpush1.msra.mxu0 %v681
    %3516 = vmatprep.subr.mxu0 0.0
    %3517 = vmatpush2.msra.mxu0 0.0
    %3518 = vmatprep.subr.mxu0 0.0
    %3519 = vmatpush2.msra.mxu0 0.0
    %3520 = vmatprep.subr.mxu0 0.0
    %3521 = vmatpush2.msra.mxu0 0.0
    %3522 = vmatprep.subr.mxu0 0.0
    %3523 = vmatpush2.msra.mxu0 0.0
    %3524 = vmatprep.subr.mxu0 0.0
    %3525 = vmatpush2.msra.mxu0 0.0
    %3526 = vmatprep.subr.mxu0 0.0
    %3527 = vmatpush2.msra.mxu0 0.0
    %3528 = vmatprep.subr.mxu0 0.0
    %3529 = vmatpush2.msra.mxu0 0.0
    %3530 = vmatprep.subr.mxu0 0.0
    %3531 = vmatpush2.msra.mxu0 0.0
    %3532 = vmatprep.subr.mxu0 0.0
    %3533 = vmatpush2.msra.mxu0 0.0
    %3534 = vmatprep.subr.mxu0 0.0
    %3535 = vmatpush2.msra.mxu0 0.0
    %3536 = vmatprep.subr.mxu0 0.0
    %3537 = vmatpush2.msra.mxu0 0.0
    %3538 = vmatprep.subr.mxu0 0.0
    %3539 = vmatpush2.msra.mxu0 0.0
    %3540 = vmatprep.subr.mxu0 0.0
    %3541 = vmatpush2.msra.mxu0 0.0
    %3542 = vmatprep.subr.mxu0 0.0
    %3543 = vmatpush2.msra.mxu0 0.0
    %3544 = vmatprep.subr.mxu0 0.0
    %3545 = vmatpush2.msra.mxu0 0.0
    %3546 = vmatprep.subr.mxu0 0.0
    %3547 = vmatpush2.msra.mxu0 0.0
    %3548 = vmatprep.mubr.f32.mxu0 0.0
    %3549 = vmatmul.mubr.f32.gmra.mxu0 %v3482
    %v3550 = vpop.f32.mrf.mxu0
    %v3551 = vadd.f32 0.0, %v3550
    %v3552 = vpop.f32.mrf.mxu0
    %v3553 = vadd.f32 0.0, %v3552
    %3554 = vdwg.mxu0
    %3555 = vmatprep.subr.mxu0 %v744
    %3556 = vmatpush1.msra.mxu0 %v743
    %3557 = vmatprep.subr.mxu0 %v740
    %3558 = vmatpush1.msra.mxu0 %v739
    %3559 = vmatprep.subr.mxu0 %v736
    %3560 = vmatpush1.msra.mxu0 %v735
    %3561 = vmatprep.subr.mxu0 %v732
    %3562 = vmatpush1.msra.mxu0 %v731
    %3563 = vmatprep.subr.mxu0 %v728
    %3564 = vmatpush1.msra.mxu0 %v727
    %3565 = vmatprep.subr.mxu0 %v724
    %3566 = vmatpush1.msra.mxu0 %v723
    %3567 = vmatprep.subr.mxu0 %v720
    %3568 = vmatpush1.msra.mxu0 %v719
    %3569 = vmatprep.subr.mxu0 %v716
    %3570 = vmatpush1.msra.mxu0 %v715
    %3571 = vmatprep.subr.mxu0 %v712
    %3572 = vmatpush1.msra.mxu0 %v711
    %3573 = vmatprep.subr.mxu0 %v708
    %3574 = vmatpush1.msra.mxu0 %v707
    %3575 = vmatprep.subr.mxu0 %v704
    %3576 = vmatpush1.msra.mxu0 %v703
    %3577 = vmatprep.subr.mxu0 %v700
    %3578 = vmatpush1.msra.mxu0 %v699
    %3579 = vmatprep.subr.mxu0 %v696
    %3580 = vmatpush1.msra.mxu0 %v695
    %3581 = vmatprep.subr.mxu0 %v692
    %3582 = vmatpush1.msra.mxu0 %v691
    %3583 = vmatprep.subr.mxu0 %v688
    %3584 = vmatpush1.msra.mxu0 %v687
    %3585 = vmatprep.subr.mxu0 %v684
    %3586 = vmatpush1.msra.mxu0 %v683
    %3587 = vmatprep.subr.mxu0 0.0
    %3588 = vmatpush2.msra.mxu0 0.0
    %3589 = vmatprep.subr.mxu0 0.0
    %3590 = vmatpush2.msra.mxu0 0.0
    %3591 = vmatprep.subr.mxu0 0.0
    %3592 = vmatpush2.msra.mxu0 0.0
    %3593 = vmatprep.subr.mxu0 0.0
    %3594 = vmatpush2.msra.mxu0 0.0
    %3595 = vmatprep.subr.mxu0 0.0
    %3596 = vmatpush2.msra.mxu0 0.0
    %3597 = vmatprep.subr.mxu0 0.0
    %3598 = vmatpush2.msra.mxu0 0.0
    %3599 = vmatprep.subr.mxu0 0.0
    %3600 = vmatpush2.msra.mxu0 0.0
    %3601 = vmatprep.subr.mxu0 0.0
    %3602 = vmatpush2.msra.mxu0 0.0
    %3603 = vmatprep.subr.mxu0 0.0
    %3604 = vmatpush2.msra.mxu0 0.0
    %3605 = vmatprep.subr.mxu0 0.0
    %3606 = vmatpush2.msra.mxu0 0.0
    %3607 = vmatprep.subr.mxu0 0.0
    %3608 = vmatpush2.msra.mxu0 0.0
    %3609 = vmatprep.subr.mxu0 0.0
    %3610 = vmatpush2.msra.mxu0 0.0
    %3611 = vmatprep.subr.mxu0 0.0
    %3612 = vmatpush2.msra.mxu0 0.0
    %3613 = vmatprep.subr.mxu0 0.0
    %3614 = vmatpush2.msra.mxu0 0.0
    %3615 = vmatprep.subr.mxu0 0.0
    %3616 = vmatpush2.msra.mxu0 0.0
    %3617 = vmatprep.subr.mxu0 0.0
    %3618 = vmatpush2.msra.mxu0 0.0
    %3619 = vmatprep.mubr.f32.mxu0 0.0
    %3620 = vmatmul.mubr.f32.gmra.mxu0 %v3482
    %v3621 = vpop.f32.mrf.mxu0
    %v3622 = vadd.f32 0.0, %v3621
    %v3623 = vpop.f32.mrf.mxu0
    %v3624 = vadd.f32 0.0, %v3623
    %3625 = vdwg.mxu0
    %v3626 = vadd.f32 %v530, %v3551
    %v3627 = vadd.f32 %v532, %v3553
    %v3628 = vadd.f32 %v607, %v3622
    %v3629 = vadd.f32 %v609, %v3624
    %v3630 = vxor.u32 %v3477, 2147483648
    %v3631 = vmul.f32 %v3630, 1.442695
    %v3632 = vpow.pop %v3631
    %v3633 = vadd.f32 %v3632, 1.0
    %v3634 = vrcp.pop %v3633
    %v3635 = vmul.f32 1.0, %v3634
    %v3636 = vxor.u32 %v3626, 2147483648
    %v3637 = vmul.f32 %v3636, 1.442695
    %v3638 = vpow.pop %v3637
    %v3639 = vadd.f32 %v3638, 1.0
    %v3640 = vrcp.pop %v3639
    %v3641 = vmul.f32 1.0, %v3640
    %v3642 = vxor.u32 %v3478, 2147483648
    %v3643 = vmul.f32 %v3642, 1.442695
    %v3644 = vpow.pop %v3643
    %v3645 = vadd.f32 %v3644, 1.0
    %v3646 = vrcp.pop %v3645
    %v3647 = vmul.f32 1.0, %v3646
    %v3648 = vxor.u32 %v3627, 2147483648
    %v3649 = vmul.f32 %v3648, 1.442695
    %v3650 = vpow.pop %v3649
    %v3651 = vadd.f32 %v3650, 1.0
    %v3652 = vrcp.pop %v3651
    %v3653 = vmul.f32 1.0, %v3652
    %v3654 = vtanh.pop %v3479
    %v3655 = vtanh.pop %v3628
    %v3656 = vxor.u32 %v3480, 2147483648
    %v3657 = vmul.f32 %v3656, 1.442695
    %v3658 = vpow.pop %v3657
    %v3659 = vadd.f32 %v3658, 1.0
    %v3660 = vrcp.pop %v3659
    %v3661 = vmul.f32 1.0, %v3660
    %v3662 = vxor.u32 %v3629, 2147483648
    %v3663 = vmul.f32 %v3662, 1.442695
    %v3664 = vpow.pop %v3663
    %v3665 = vadd.f32 %v3664, 1.0
    %v3666 = vrcp.pop %v3665
    %v3667 = vmul.f32 1.0, %v3666
    %v3669 = vrot.slane %v3309, 6
    %v3671 = vmul.f32 %v3647, %v3669
    %v3672 = vmul.f32 %v3635, %v3654
    %v3673 = vadd.f32 %v3671, %v3672
    %v3675 = vrot.slane %v3315, 2
    %v3677 = vmul.f32 %v3653, %v3675
    %v3678 = vmul.f32 %v3641, %v3655
    %v3679 = vadd.f32 %v3677, %v3678
    %v3680 = vtanh.pop %v3673
    %v3681 = vmul.f32 %v3661, %v3680
    %v3682 = vtanh.pop %v3679
    %v3683 = vmul.f32 %v3667, %v3682
    %vm3684 = vcmask 1041408
    %v3685 = vsel %vm3684, %v1094, %v1467
    %v3686 = vsel %vm3684, %v3683, %v3319
    %vm3687 = vcmask 1043456
    %v3688 = vsel %vm3687, %v3685, %v1843
    %v3689 = vsel %vm3687, %v3686, %v2943
    %vm3690 = vcmask 1045504
    %v3691 = vsel %vm3690, %v3688, %v2207
    %v3692 = vsel %vm3690, %v3689, %v2570
    %v3693 = vsel %vm3684, %v2568, %v2941
    %v3694 = vsel %vm3684, %v2209, %v1845
    %v3695 = vsel %vm3687, %v3693, %v3317
    %v3696 = vsel %vm3687, %v3694, %v1469
    %v3697 = vsel %vm3690, %v3695, %v3681
    %v3698 = vsel %vm3690, %v3696, %v1096
    %v3699 = vld [vmem:[#allocation8] sm:$0xff]
    %v3700 = vld [vmem:[#allocation8 + $0x8] sm:$0xff]
    %v3701 = vld [vmem:[#allocation8 + $0x10] sm:$0xff]
    %v3702 = vld [vmem:[#allocation8 + $0x18] sm:$0xff]
    %v3703 = vld [vmem:[#allocation8 + $0x20] sm:$0xff]
    %v3704 = vld [vmem:[#allocation8 + $0x28] sm:$0xff]
    %v3705 = vld [vmem:[#allocation8 + $0x30] sm:$0xff]
    %v3706 = vld [vmem:[#allocation8 + $0x38] sm:$0xff]
    %v3707 = vld [vmem:[#allocation8 + $0x40] sm:$0xff]
    %v3708 = vld [vmem:[#allocation8 + $0x48] sm:$0xff]
    %v3709 = vld [vmem:[#allocation8 + $0x50] sm:$0xff]
    %v3710 = vld [vmem:[#allocation8 + $0x58] sm:$0xff]
    %v3711 = vld [vmem:[#allocation8 + $0x60] sm:$0xff]
    %v3712 = vld [vmem:[#allocation8 + $0x68] sm:$0xff]
    %v3713 = vld [vmem:[#allocation8 + $0x70] sm:$0xff]
    %v3714 = vld [vmem:[#allocation8 + $0x78] sm:$0xff]
    %v3715 = vld [vmem:[#allocation8 + $0x80] sm:$0xff]
    %v3716 = vld [vmem:[#allocation8 + $0x88] sm:$0xff]
    %v3717 = vld [vmem:[#allocation8 + $0x90] sm:$0xff]
    %v3718 = vld [vmem:[#allocation8 + $0x98] sm:$0xff]
    %v3719 = vld [vmem:[#allocation8 + $0xa0] sm:$0xff]
    %v3720 = vld [vmem:[#allocation8 + $0xa8] sm:$0xff]
    %v3721 = vld [vmem:[#allocation8 + $0xb0] sm:$0xff]
    %v3722 = vld [vmem:[#allocation8 + $0xb8] sm:$0xff]
    %v3723 = vld [vmem:[#allocation8 + $0xc0] sm:$0xff]
    %v3724 = vld [vmem:[#allocation8 + $0xc8] sm:$0xff]
    %v3725 = vld [vmem:[#allocation8 + $0xd0] sm:$0xff]
    %v3726 = vld [vmem:[#allocation8 + $0xd8] sm:$0xff]
    %v3727 = vld [vmem:[#allocation8 + $0xe0] sm:$0xff]
    %v3728 = vld [vmem:[#allocation8 + $0xe8] sm:$0xff]
    %v3729 = vld [vmem:[#allocation8 + $0xf0] sm:$0xff]
    %v3730 = vld [vmem:[#allocation8 + $0xf8] sm:$0xff]
    %v3731 = vld [vmem:[#allocation8 + $0x100] sm:$0xff]
    %v3732 = vld [vmem:[#allocation8 + $0x108] sm:$0xff]
    %v3733 = vld [vmem:[#allocation8 + $0x110] sm:$0xff]
    %v3734 = vld [vmem:[#allocation8 + $0x118] sm:$0xff]
    %v3735 = vld [vmem:[#allocation8 + $0x120] sm:$0xff]
    %v3736 = vld [vmem:[#allocation8 + $0x128] sm:$0xff]
    %v3737 = vld [vmem:[#allocation8 + $0x130] sm:$0xff]
    %v3738 = vld [vmem:[#allocation8 + $0x138] sm:$0xff]
    %v3739 = vld [vmem:[#allocation8 + $0x140] sm:$0xff]
    %v3740 = vld [vmem:[#allocation8 + $0x148] sm:$0xff]
    %v3741 = vld [vmem:[#allocation8 + $0x150] sm:$0xff]
    %v3742 = vld [vmem:[#allocation8 + $0x158] sm:$0xff]
    %v3743 = vld [vmem:[#allocation8 + $0x160] sm:$0xff]
    %v3744 = vld [vmem:[#allocation8 + $0x168] sm:$0xff]
    %v3745 = vld [vmem:[#allocation8 + $0x170] sm:$0xff]
    %v3746 = vld [vmem:[#allocation8 + $0x178] sm:$0xff]
    %v3747 = vld [vmem:[#allocation8 + $0x180] sm:$0xff]
    %v3748 = vld [vmem:[#allocation8 + $0x188] sm:$0xff]
    %v3749 = vld [vmem:[#allocation8 + $0x190] sm:$0xff]
    %v3750 = vld [vmem:[#allocation8 + $0x198] sm:$0xff]
    %v3751 = vld [vmem:[#allocation8 + $0x1a0] sm:$0xff]
    %v3752 = vld [vmem:[#allocation8 + $0x1a8] sm:$0xff]
    %v3753 = vld [vmem:[#allocation8 + $0x1b0] sm:$0xff]
    %v3754 = vld [vmem:[#allocation8 + $0x1b8] sm:$0xff]
    %v3755 = vld [vmem:[#allocation8 + $0x1c0] sm:$0xff]
    %v3756 = vld [vmem:[#allocation8 + $0x1c8] sm:$0xff]
    %v3757 = vld [vmem:[#allocation8 + $0x1d0] sm:$0xff]
    %v3758 = vld [vmem:[#allocation8 + $0x1d8] sm:$0xff]
    %v3759 = vld [vmem:[#allocation8 + $0x1e0] sm:$0xff]
    %v3760 = vld [vmem:[#allocation8 + $0x1e8] sm:$0xff]
    %v3761 = vld [vmem:[#allocation8 + $0x1f0] sm:$0xff]
    %v3762 = vld [vmem:[#allocation8 + $0x1f8] sm:$0xff]
    %v3763 = vld [vmem:[#allocation8 + $0x200] sm:$0xff]
    %v3764 = vld [vmem:[#allocation8 + $0x208] sm:$0xff]
    %v3765 = vld [vmem:[#allocation8 + $0x210] sm:$0xff]
    %v3766 = vld [vmem:[#allocation8 + $0x218] sm:$0xff]
    %v3767 = vld [vmem:[#allocation8 + $0x220] sm:$0xff]
    %v3768 = vld [vmem:[#allocation8 + $0x228] sm:$0xff]
    %v3769 = vld [vmem:[#allocation8 + $0x230] sm:$0xff]
    %v3770 = vld [vmem:[#allocation8 + $0x238] sm:$0xff]
    %v3771 = vld [vmem:[#allocation8 + $0x240] sm:$0xff]
    %v3772 = vld [vmem:[#allocation8 + $0x248] sm:$0xff]
    %v3773 = vld [vmem:[#allocation8 + $0x250] sm:$0xff]
    %v3774 = vld [vmem:[#allocation8 + $0x258] sm:$0xff]
    %v3775 = vld [vmem:[#allocation8 + $0x260] sm:$0xff]
    %v3776 = vld [vmem:[#allocation8 + $0x268] sm:$0xff]
    %v3777 = vld [vmem:[#allocation8 + $0x270] sm:$0xff]
    %v3778 = vld [vmem:[#allocation8 + $0x278] sm:$0xff]
    %v3779 = vld [vmem:[#allocation8 + $0x280] sm:$0xff]
    %v3780 = vld [vmem:[#allocation8 + $0x288] sm:$0xff]
    %v3781 = vld [vmem:[#allocation8 + $0x290] sm:$0xff]
    %v3782 = vld [vmem:[#allocation8 + $0x298] sm:$0xff]
    %v3783 = vld [vmem:[#allocation8 + $0x2a0] sm:$0xff]
    %v3784 = vld [vmem:[#allocation8 + $0x2a8] sm:$0xff]
    %v3785 = vld [vmem:[#allocation8 + $0x2b0] sm:$0xff]
    %v3786 = vld [vmem:[#allocation8 + $0x2b8] sm:$0xff]
    %v3787 = vld [vmem:[#allocation8 + $0x2c0] sm:$0xff]
    %v3788 = vld [vmem:[#allocation8 + $0x2c8] sm:$0xff]
    %v3789 = vld [vmem:[#allocation8 + $0x2d0] sm:$0xff]
    %v3790 = vld [vmem:[#allocation8 + $0x2d8] sm:$0xff]
    %v3791 = vld [vmem:[#allocation8 + $0x2e0] sm:$0xff]
    %v3792 = vld [vmem:[#allocation8 + $0x2e8] sm:$0xff]
    %v3793 = vld [vmem:[#allocation8 + $0x2f0] sm:$0xff]
    %v3794 = vld [vmem:[#allocation8 + $0x2f8] sm:$0xff]
    %v3795 = vld [vmem:[#allocation8 + $0x300] sm:$0xff]
    %v3796 = vld [vmem:[#allocation8 + $0x308] sm:$0xff]
    %v3797 = vld [vmem:[#allocation8 + $0x310] sm:$0xff]
    %v3798 = vld [vmem:[#allocation8 + $0x318] sm:$0xff]
    %v3799 = vld [vmem:[#allocation8 + $0x320] sm:$0xff]
    %v3800 = vld [vmem:[#allocation8 + $0x328] sm:$0xff]
    %v3801 = vld [vmem:[#allocation8 + $0x330] sm:$0xff]
    %v3802 = vld [vmem:[#allocation8 + $0x338] sm:$0xff]
    %v3803 = vld [vmem:[#allocation8 + $0x340] sm:$0xff]
    %v3804 = vld [vmem:[#allocation8 + $0x348] sm:$0xff]
    %v3805 = vld [vmem:[#allocation8 + $0x350] sm:$0xff]
    %v3806 = vld [vmem:[#allocation8 + $0x358] sm:$0xff]
    %v3807 = vld [vmem:[#allocation8 + $0x360] sm:$0xff]
    %v3808 = vld [vmem:[#allocation8 + $0x368] sm:$0xff]
    %v3809 = vld [vmem:[#allocation8 + $0x370] sm:$0xff]
    %v3810 = vld [vmem:[#allocation8 + $0x378] sm:$0xff]
    %v3811 = vld [vmem:[#allocation8 + $0x380] sm:$0xff]
    %v3812 = vld [vmem:[#allocation8 + $0x388] sm:$0xff]
    %v3813 = vld [vmem:[#allocation8 + $0x390] sm:$0xff]
    %v3814 = vld [vmem:[#allocation8 + $0x398] sm:$0xff]
    %v3815 = vld [vmem:[#allocation8 + $0x3a0] sm:$0xff]
    %v3816 = vld [vmem:[#allocation8 + $0x3a8] sm:$0xff]
    %v3817 = vld [vmem:[#allocation8 + $0x3b0] sm:$0xff]
    %v3818 = vld [vmem:[#allocation8 + $0x3b8] sm:$0xff]
    %v3819 = vld [vmem:[#allocation8 + $0x3c0] sm:$0xff]
    %v3820 = vld [vmem:[#allocation8 + $0x3c8] sm:$0xff]
    %v3821 = vld [vmem:[#allocation8 + $0x3d0] sm:$0xff]
    %v3822 = vld [vmem:[#allocation8 + $0x3d8] sm:$0xff]
    %v3823 = vld [vmem:[#allocation8 + $0x3e0] sm:$0xff]
    %v3824 = vld [vmem:[#allocation8 + $0x3e8] sm:$0xff]
    %v3825 = vld [vmem:[#allocation8 + $0x3f0] sm:$0xff]
    %v3826 = vld [vmem:[#allocation8 + $0x3f8] sm:$0xff]
    %v3827 = vld [vmem:[#allocation8 + $0x400] sm:$0xff]
    %v3828 = vld [vmem:[#allocation8 + $0x408] sm:$0xff]
    %v3829 = vld [vmem:[#allocation8 + $0x410] sm:$0xff]
    %v3830 = vld [vmem:[#allocation8 + $0x418] sm:$0xff]
    %v3831 = vld [vmem:[#allocation8 + $0x420] sm:$0xff]
    %v3832 = vld [vmem:[#allocation8 + $0x428] sm:$0xff]
    %v3833 = vld [vmem:[#allocation8 + $0x430] sm:$0xff]
    %v3834 = vld [vmem:[#allocation8 + $0x438] sm:$0xff]
    %v3835 = vld [vmem:[#allocation8 + $0x440] sm:$0xff]
    %v3836 = vld [vmem:[#allocation8 + $0x448] sm:$0xff]
    %v3837 = vld [vmem:[#allocation8 + $0x450] sm:$0xff]
    %v3838 = vld [vmem:[#allocation8 + $0x458] sm:$0xff]
    %v3839 = vld [vmem:[#allocation8 + $0x460] sm:$0xff]
    %v3840 = vld [vmem:[#allocation8 + $0x468] sm:$0xff]
    %v3841 = vld [vmem:[#allocation8 + $0x470] sm:$0xff]
    %v3842 = vld [vmem:[#allocation8 + $0x478] sm:$0xff]
    %v3843 = vld [vmem:[#allocation8 + $0x480] sm:$0xff]
    %v3844 = vld [vmem:[#allocation8 + $0x488] sm:$0xff]
    %v3845 = vld [vmem:[#allocation8 + $0x490] sm:$0xff]
    %v3846 = vld [vmem:[#allocation8 + $0x498] sm:$0xff]
    %v3847 = vld [vmem:[#allocation8 + $0x4a0] sm:$0xff]
    %v3848 = vld [vmem:[#allocation8 + $0x4a8] sm:$0xff]
    %v3849 = vld [vmem:[#allocation8 + $0x4b0] sm:$0xff]
    %v3850 = vld [vmem:[#allocation8 + $0x4b8] sm:$0xff]
    %v3851 = vld [vmem:[#allocation8 + $0x4c0] sm:$0xff]
    %v3852 = vld [vmem:[#allocation8 + $0x4c8] sm:$0xff]
    %v3853 = vld [vmem:[#allocation8 + $0x4d0] sm:$0xff]
    %v3854 = vld [vmem:[#allocation8 + $0x4d8] sm:$0xff]
    %v3855 = vld [vmem:[#allocation8 + $0x4e0] sm:$0xff]
    %v3856 = vld [vmem:[#allocation8 + $0x4e8] sm:$0xff]
    %v3857 = vld [vmem:[#allocation8 + $0x4f0] sm:$0xff]
    %v3858 = vld [vmem:[#allocation8 + $0x4f8] sm:$0xff]
    %v3859 = vld [vmem:[#allocation8 + $0x500] sm:$0xff]
    %v3860 = vld [vmem:[#allocation8 + $0x508] sm:$0xff]
    %v3861 = vld [vmem:[#allocation8 + $0x510] sm:$0xff]
    %v3862 = vld [vmem:[#allocation8 + $0x518] sm:$0xff]
    %v3863 = vld [vmem:[#allocation8 + $0x520] sm:$0xff]
    %v3864 = vld [vmem:[#allocation8 + $0x528] sm:$0xff]
    %v3865 = vld [vmem:[#allocation8 + $0x530] sm:$0xff]
    %v3866 = vld [vmem:[#allocation8 + $0x538] sm:$0xff]
    %v3867 = vld [vmem:[#allocation8 + $0x540] sm:$0xff]
    %v3868 = vld [vmem:[#allocation8 + $0x548] sm:$0xff]
    %v3869 = vld [vmem:[#allocation8 + $0x550] sm:$0xff]
    %v3870 = vld [vmem:[#allocation8 + $0x558] sm:$0xff]
    %v3871 = vld [vmem:[#allocation8 + $0x560] sm:$0xff]
    %v3872 = vld [vmem:[#allocation8 + $0x568] sm:$0xff]
    %v3873 = vld [vmem:[#allocation8 + $0x570] sm:$0xff]
    %v3874 = vld [vmem:[#allocation8 + $0x578] sm:$0xff]
    %v3875 = vld [vmem:[#allocation8 + $0x580] sm:$0xff]
    %v3876 = vld [vmem:[#allocation8 + $0x588] sm:$0xff]
    %v3877 = vld [vmem:[#allocation8 + $0x590] sm:$0xff]
    %v3878 = vld [vmem:[#allocation8 + $0x598] sm:$0xff]
    %v3879 = vld [vmem:[#allocation8 + $0x5a0] sm:$0xff]
    %v3880 = vld [vmem:[#allocation8 + $0x5a8] sm:$0xff]
    %v3881 = vld [vmem:[#allocation8 + $0x5b0] sm:$0xff]
    %v3882 = vld [vmem:[#allocation8 + $0x5b8] sm:$0xff]
    %v3883 = vld [vmem:[#allocation8 + $0x5c0] sm:$0xff]
    %v3884 = vld [vmem:[#allocation8 + $0x5c8] sm:$0xff]
    %v3885 = vld [vmem:[#allocation8 + $0x5d0] sm:$0xff]
    %v3886 = vld [vmem:[#allocation8 + $0x5d8] sm:$0xff]
    %v3887 = vld [vmem:[#allocation8 + $0x5e0] sm:$0xff]
    %v3888 = vld [vmem:[#allocation8 + $0x5e8] sm:$0xff]
    %v3889 = vld [vmem:[#allocation8 + $0x5f0] sm:$0xff]
    %v3890 = vld [vmem:[#allocation8 + $0x5f8] sm:$0xff]
    %v3891 = vld [vmem:[#allocation8 + $0x600] sm:$0xff]
    %v3892 = vld [vmem:[#allocation8 + $0x608] sm:$0xff]
    %v3893 = vld [vmem:[#allocation8 + $0x610] sm:$0xff]
    %v3894 = vld [vmem:[#allocation8 + $0x618] sm:$0xff]
    %v3895 = vld [vmem:[#allocation8 + $0x620] sm:$0xff]
    %v3896 = vld [vmem:[#allocation8 + $0x628] sm:$0xff]
    %v3897 = vld [vmem:[#allocation8 + $0x630] sm:$0xff]
    %v3898 = vld [vmem:[#allocation8 + $0x638] sm:$0xff]
    %v3899 = vld [vmem:[#allocation8 + $0x640] sm:$0xff]
    %v3900 = vld [vmem:[#allocation8 + $0x648] sm:$0xff]
    %v3901 = vld [vmem:[#allocation8 + $0x650] sm:$0xff]
    %v3902 = vld [vmem:[#allocation8 + $0x658] sm:$0xff]
    %v3903 = vld [vmem:[#allocation8 + $0x660] sm:$0xff]
    %v3904 = vld [vmem:[#allocation8 + $0x668] sm:$0xff]
    %v3905 = vld [vmem:[#allocation8 + $0x670] sm:$0xff]
    %v3906 = vld [vmem:[#allocation8 + $0x678] sm:$0xff]
    %v3907 = vld [vmem:[#allocation8 + $0x680] sm:$0xff]
    %v3908 = vld [vmem:[#allocation8 + $0x688] sm:$0xff]
    %v3909 = vld [vmem:[#allocation8 + $0x690] sm:$0xff]
    %v3910 = vld [vmem:[#allocation8 + $0x698] sm:$0xff]
    %v3911 = vld [vmem:[#allocation8 + $0x6a0] sm:$0xff]
    %v3912 = vld [vmem:[#allocation8 + $0x6a8] sm:$0xff]
    %v3913 = vld [vmem:[#allocation8 + $0x6b0] sm:$0xff]
    %v3914 = vld [vmem:[#allocation8 + $0x6b8] sm:$0xff]
    %v3915 = vld [vmem:[#allocation8 + $0x6c0] sm:$0xff]
    %v3916 = vld [vmem:[#allocation8 + $0x6c8] sm:$0xff]
    %v3917 = vld [vmem:[#allocation8 + $0x6d0] sm:$0xff]
    %v3918 = vld [vmem:[#allocation8 + $0x6d8] sm:$0xff]
    %v3919 = vld [vmem:[#allocation8 + $0x6e0] sm:$0xff]
    %v3920 = vld [vmem:[#allocation8 + $0x6e8] sm:$0xff]
    %v3921 = vld [vmem:[#allocation8 + $0x6f0] sm:$0xff]
    %v3922 = vld [vmem:[#allocation8 + $0x6f8] sm:$0xff]
    %v3923 = vld [vmem:[#allocation8 + $0x700] sm:$0xff]
    %v3924 = vld [vmem:[#allocation8 + $0x708] sm:$0xff]
    %v3925 = vld [vmem:[#allocation8 + $0x710] sm:$0xff]
    %v3926 = vld [vmem:[#allocation8 + $0x718] sm:$0xff]
    %v3927 = vld [vmem:[#allocation8 + $0x720] sm:$0xff]
    %v3928 = vld [vmem:[#allocation8 + $0x728] sm:$0xff]
    %v3929 = vld [vmem:[#allocation8 + $0x730] sm:$0xff]
    %v3930 = vld [vmem:[#allocation8 + $0x738] sm:$0xff]
    %v3931 = vld [vmem:[#allocation8 + $0x740] sm:$0xff]
    %v3932 = vld [vmem:[#allocation8 + $0x748] sm:$0xff]
    %v3933 = vld [vmem:[#allocation8 + $0x750] sm:$0xff]
    %v3934 = vld [vmem:[#allocation8 + $0x758] sm:$0xff]
    %v3935 = vld [vmem:[#allocation8 + $0x760] sm:$0xff]
    %v3936 = vld [vmem:[#allocation8 + $0x768] sm:$0xff]
    %v3937 = vld [vmem:[#allocation8 + $0x770] sm:$0xff]
    %v3938 = vld [vmem:[#allocation8 + $0x778] sm:$0xff]
    %v3939 = vld [vmem:[#allocation8 + $0x780] sm:$0xff]
    %v3940 = vld [vmem:[#allocation8 + $0x788] sm:$0xff]
    %v3941 = vld [vmem:[#allocation8 + $0x790] sm:$0xff]
    %v3942 = vld [vmem:[#allocation8 + $0x798] sm:$0xff]
    %v3943 = vld [vmem:[#allocation8 + $0x7a0] sm:$0xff]
    %v3944 = vld [vmem:[#allocation8 + $0x7a8] sm:$0xff]
    %v3945 = vld [vmem:[#allocation8 + $0x7b0] sm:$0xff]
    %v3946 = vld [vmem:[#allocation8 + $0x7b8] sm:$0xff]
    %v3947 = vld [vmem:[#allocation8 + $0x7c0] sm:$0xff]
    %v3948 = vld [vmem:[#allocation8 + $0x7c8] sm:$0xff]
    %v3949 = vld [vmem:[#allocation8 + $0x7d0] sm:$0xff]
    %v3950 = vld [vmem:[#allocation8 + $0x7d8] sm:$0xff]
    %v3951 = vld [vmem:[#allocation8 + $0x7e0] sm:$0xff]
    %v3952 = vld [vmem:[#allocation8 + $0x7e8] sm:$0xff]
    %v3953 = vld [vmem:[#allocation8 + $0x7f0] sm:$0xff]
    %v3954 = vld [vmem:[#allocation8 + $0x7f8] sm:$0xff]
    %v3955 = vld [vmem:[%s8] sm:$0xff]
    %v3957 = vlaneseq
    %v3958 = vshrl.u32 %v3957, 7
    %v3959 = vsub.s32 0, %v3958
    %v3960 = vrot.slane %v3955, %v3959
    %v3961 = vlaneseq
    %v3962 = vshrl.u32 %v3961, 7
    %v3963 = vsub.s32 1, %v3962
    %v3964 = vrot.slane %v3955, %v3963
    %v3965 = vlaneseq
    %v3966 = vshrl.u32 %v3965, 7
    %v3967 = vsub.s32 2, %v3966
    %v3968 = vrot.slane %v3955, %v3967
    %v3969 = vlaneseq
    %v3970 = vshrl.u32 %v3969, 7
    %v3971 = vsub.s32 3, %v3970
    %v3972 = vrot.slane %v3955, %v3971
    %v3973 = vlaneseq
    %v3974 = vshrl.u32 %v3973, 7
    %v3975 = vsub.s32 4, %v3974
    %v3976 = vrot.slane %v3955, %v3975
    %v3977 = vlaneseq
    %v3978 = vshrl.u32 %v3977, 7
    %v3979 = vsub.s32 5, %v3978
    %v3980 = vrot.slane %v3955, %v3979
    %v3981 = vlaneseq
    %v3982 = vshrl.u32 %v3981, 7
    %v3983 = vsub.s32 6, %v3982
    %v3984 = vrot.slane %v3955, %v3983
    %v3985 = vlaneseq
    %v3986 = vshrl.u32 %v3985, 7
    %v3987 = vsub.s32 7, %v3986
    %v3988 = vrot.slane %v3955, %v3987
    %3997 = vmatprep.subr.mxu0 %v3820
    %3998 = vmatpush1.msra.mxu0 %v3819
    %3999 = vmatprep.subr.mxu0 %v3812
    %4000 = vmatpush1.msra.mxu0 %v3811
    %4001 = vmatprep.subr.mxu0 %v3804
    %4002 = vmatpush1.msra.mxu0 %v3803
    %4003 = vmatprep.subr.mxu0 %v3796
    %4004 = vmatpush1.msra.mxu0 %v3795
    %4005 = vmatprep.subr.mxu0 %v3788
    %4006 = vmatpush1.msra.mxu0 %v3787
    %4007 = vmatprep.subr.mxu0 %v3780
    %4008 = vmatpush1.msra.mxu0 %v3779
    %4009 = vmatprep.subr.mxu0 %v3772
    %4010 = vmatpush1.msra.mxu0 %v3771
    %4011 = vmatprep.subr.mxu0 %v3764
    %4012 = vmatpush1.msra.mxu0 %v3763
    %4013 = vmatprep.subr.mxu0 %v3756
    %4014 = vmatpush1.msra.mxu0 %v3755
    %4015 = vmatprep.subr.mxu0 %v3748
    %4016 = vmatpush1.msra.mxu0 %v3747
    %4017 = vmatprep.subr.mxu0 %v3740
    %4018 = vmatpush1.msra.mxu0 %v3739
    %4019 = vmatprep.subr.mxu0 %v3732
    %4020 = vmatpush1.msra.mxu0 %v3731
    %4021 = vmatprep.subr.mxu0 %v3724
    %4022 = vmatpush1.msra.mxu0 %v3723
    %4023 = vmatprep.subr.mxu0 %v3716
    %4024 = vmatpush1.msra.mxu0 %v3715
    %4025 = vmatprep.subr.mxu0 %v3708
    %4026 = vmatpush1.msra.mxu0 %v3707
    %4027 = vmatprep.subr.mxu0 %v3700
    %4028 = vmatpush1.msra.mxu0 %v3699
    %4029 = vmatprep.subr.mxu0 %v3948
    %4030 = vmatpush2.msra.mxu0 %v3947
    %4031 = vmatprep.subr.mxu0 %v3940
    %4032 = vmatpush2.msra.mxu0 %v3939
    %4033 = vmatprep.subr.mxu0 %v3932
    %4034 = vmatpush2.msra.mxu0 %v3931
    %4035 = vmatprep.subr.mxu0 %v3924
    %4036 = vmatpush2.msra.mxu0 %v3923
    %4037 = vmatprep.subr.mxu0 %v3916
    %4038 = vmatpush2.msra.mxu0 %v3915
    %4039 = vmatprep.subr.mxu0 %v3908
    %4040 = vmatpush2.msra.mxu0 %v3907
    %4041 = vmatprep.subr.mxu0 %v3900
    %4042 = vmatpush2.msra.mxu0 %v3899
    %4043 = vmatprep.subr.mxu0 %v3892
    %4044 = vmatpush2.msra.mxu0 %v3891
    %4045 = vmatprep.subr.mxu0 %v3884
    %4046 = vmatpush2.msra.mxu0 %v3883
    %4047 = vmatprep.subr.mxu0 %v3876
    %4048 = vmatpush2.msra.mxu0 %v3875
    %4049 = vmatprep.subr.mxu0 %v3868
    %4050 = vmatpush2.msra.mxu0 %v3867
    %4051 = vmatprep.subr.mxu0 %v3860
    %4052 = vmatpush2.msra.mxu0 %v3859
    %4053 = vmatprep.subr.mxu0 %v3852
    %4054 = vmatpush2.msra.mxu0 %v3851
    %4055 = vmatprep.subr.mxu0 %v3844
    %4056 = vmatpush2.msra.mxu0 %v3843
    %4057 = vmatprep.subr.mxu0 %v3836
    %4058 = vmatpush2.msra.mxu0 %v3835
    %4059 = vmatprep.subr.mxu0 %v3828
    %4060 = vmatpush2.msra.mxu0 %v3827
    %4061 = vmatprep.mubr.f32.mxu0 %v3692
    %4062 = vmatmul.mubr.f32.gmra.mxu0 %v3691
    %v4063 = vpop.f32.mrf.mxu0
    %v4064 = vadd.f32 %v3960, %v4063
    %v4065 = vpop.f32.mrf.mxu0
    %v4066 = vadd.f32 %v3964, %v4065
    %4067 = vmatprep.mubr.f32.mxu0 %v3698
    %4068 = vmatmul.mubr.f32.gmra.mxu0 %v3697
    %v4069 = vpop.f32.mrf.mxu0
    %v4070 = vadd.f32 %v3960, %v4069
    %v4071 = vpop.f32.mrf.mxu0
    %v4072 = vadd.f32 %v3964, %v4071
    %4073 = vdwg.mxu0
    %4074 = vmatprep.subr.mxu0 %v3822
    %4075 = vmatpush1.msra.mxu0 %v3821
    %4076 = vmatprep.subr.mxu0 %v3814
    %4077 = vmatpush1.msra.mxu0 %v3813
    %4078 = vmatprep.subr.mxu0 %v3806
    %4079 = vmatpush1.msra.mxu0 %v3805
    %4080 = vmatprep.subr.mxu0 %v3798
    %4081 = vmatpush1.msra.mxu0 %v3797
    %4082 = vmatprep.subr.mxu0 %v3790
    %4083 = vmatpush1.msra.mxu0 %v3789
    %4084 = vmatprep.subr.mxu0 %v3782
    %4085 = vmatpush1.msra.mxu0 %v3781
    %4086 = vmatprep.subr.mxu0 %v3774
    %4087 = vmatpush1.msra.mxu0 %v3773
    %4088 = vmatprep.subr.mxu0 %v3766
    %4089 = vmatpush1.msra.mxu0 %v3765
    %4090 = vmatprep.subr.mxu0 %v3758
    %4091 = vmatpush1.msra.mxu0 %v3757
    %4092 = vmatprep.subr.mxu0 %v3750
    %4093 = vmatpush1.msra.mxu0 %v3749
    %4094 = vmatprep.subr.mxu0 %v3742
    %4095 = vmatpush1.msra.mxu0 %v3741
    %4096 = vmatprep.subr.mxu0 %v3734
    %4097 = vmatpush1.msra.mxu0 %v3733
    %4098 = vmatprep.subr.mxu0 %v3726
    %4099 = vmatpush1.msra.mxu0 %v3725
    %4100 = vmatprep.subr.mxu0 %v3718
    %4101 = vmatpush1.msra.mxu0 %v3717
    %4102 = vmatprep.subr.mxu0 %v3710
    %4103 = vmatpush1.msra.mxu0 %v3709
    %4104 = vmatprep.subr.mxu0 %v3702
    %4105 = vmatpush1.msra.mxu0 %v3701
    %4106 = vmatprep.subr.mxu0 %v3950
    %4107 = vmatpush2.msra.mxu0 %v3949
    %4108 = vmatprep.subr.mxu0 %v3942
    %4109 = vmatpush2.msra.mxu0 %v3941
    %4110 = vmatprep.subr.mxu0 %v3934
    %4111 = vmatpush2.msra.mxu0 %v3933
    %4112 = vmatprep.subr.mxu0 %v3926
    %4113 = vmatpush2.msra.mxu0 %v3925
    %4114 = vmatprep.subr.mxu0 %v3918
    %4115 = vmatpush2.msra.mxu0 %v3917
    %4116 = vmatprep.subr.mxu0 %v3910
    %4117 = vmatpush2.msra.mxu0 %v3909
    %4118 = vmatprep.subr.mxu0 %v3902
    %4119 = vmatpush2.msra.mxu0 %v3901
    %4120 = vmatprep.subr.mxu0 %v3894
    %4121 = vmatpush2.msra.mxu0 %v3893
    %4122 = vmatprep.subr.mxu0 %v3886
    %4123 = vmatpush2.msra.mxu0 %v3885
    %4124 = vmatprep.subr.mxu0 %v3878
    %4125 = vmatpush2.msra.mxu0 %v3877
    %4126 = vmatprep.subr.mxu0 %v3870
    %4127 = vmatpush2.msra.mxu0 %v3869
    %4128 = vmatprep.subr.mxu0 %v3862
    %4129 = vmatpush2.msra.mxu0 %v3861
    %4130 = vmatprep.subr.mxu0 %v3854
    %4131 = vmatpush2.msra.mxu0 %v3853
    %4132 = vmatprep.subr.mxu0 %v3846
    %4133 = vmatpush2.msra.mxu0 %v3845
    %4134 = vmatprep.subr.mxu0 %v3838
    %4135 = vmatpush2.msra.mxu0 %v3837
    %4136 = vmatprep.subr.mxu0 %v3830
    %4137 = vmatpush2.msra.mxu0 %v3829
    %4138 = vmatprep.mubr.f32.mxu0 %v3692
    %4139 = vmatmul.mubr.f32.gmra.mxu0 %v3691
    %v4140 = vpop.f32.mrf.mxu0
    %v4141 = vadd.f32 %v3968, %v4140
    %v4142 = vpop.f32.mrf.mxu0
    %v4143 = vadd.f32 %v3972, %v4142
    %4144 = vmatprep.mubr.f32.mxu0 %v3698
    %4145 = vmatmul.mubr.f32.gmra.mxu0 %v3697
    %v4146 = vpop.f32.mrf.mxu0
    %v4147 = vadd.f32 %v3968, %v4146
    %v4148 = vpop.f32.mrf.mxu0
    %v4149 = vadd.f32 %v3972, %v4148
    %4150 = vdwg.mxu0
    %4151 = vmatprep.subr.mxu0 %v3824
    %4152 = vmatpush1.msra.mxu0 %v3823
    %4153 = vmatprep.subr.mxu0 %v3816
    %4154 = vmatpush1.msra.mxu0 %v3815
    %4155 = vmatprep.subr.mxu0 %v3808
    %4156 = vmatpush1.msra.mxu0 %v3807
    %4157 = vmatprep.subr.mxu0 %v3800
    %4158 = vmatpush1.msra.mxu0 %v3799
    %4159 = vmatprep.subr.mxu0 %v3792
    %4160 = vmatpush1.msra.mxu0 %v3791
    %4161 = vmatprep.subr.mxu0 %v3784
    %4162 = vmatpush1.msra.mxu0 %v3783
    %4163 = vmatprep.subr.mxu0 %v3776
    %4164 = vmatpush1.msra.mxu0 %v3775
    %4165 = vmatprep.subr.mxu0 %v3768
    %4166 = vmatpush1.msra.mxu0 %v3767
    %4167 = vmatprep.subr.mxu0 %v3760
    %4168 = vmatpush1.msra.mxu0 %v3759
    %4169 = vmatprep.subr.mxu0 %v3752
    %4170 = vmatpush1.msra.mxu0 %v3751
    %4171 = vmatprep.subr.mxu0 %v3744
    %4172 = vmatpush1.msra.mxu0 %v3743
    %4173 = vmatprep.subr.mxu0 %v3736
    %4174 = vmatpush1.msra.mxu0 %v3735
    %4175 = vmatprep.subr.mxu0 %v3728
    %4176 = vmatpush1.msra.mxu0 %v3727
    %4177 = vmatprep.subr.mxu0 %v3720
    %4178 = vmatpush1.msra.mxu0 %v3719
    %4179 = vmatprep.subr.mxu0 %v3712
    %4180 = vmatpush1.msra.mxu0 %v3711
    %4181 = vmatprep.subr.mxu0 %v3704
    %4182 = vmatpush1.msra.mxu0 %v3703
    %4183 = vmatprep.subr.mxu0 %v3952
    %4184 = vmatpush2.msra.mxu0 %v3951
    %4185 = vmatprep.subr.mxu0 %v3944
    %4186 = vmatpush2.msra.mxu0 %v3943
    %4187 = vmatprep.subr.mxu0 %v3936
    %4188 = vmatpush2.msra.mxu0 %v3935
    %4189 = vmatprep.subr.mxu0 %v3928
    %4190 = vmatpush2.msra.mxu0 %v3927
    %4191 = vmatprep.subr.mxu0 %v3920
    %4192 = vmatpush2.msra.mxu0 %v3919
    %4193 = vmatprep.subr.mxu0 %v3912
    %4194 = vmatpush2.msra.mxu0 %v3911
    %4195 = vmatprep.subr.mxu0 %v3904
    %4196 = vmatpush2.msra.mxu0 %v3903
    %4197 = vmatprep.subr.mxu0 %v3896
    %4198 = vmatpush2.msra.mxu0 %v3895
    %4199 = vmatprep.subr.mxu0 %v3888
    %4200 = vmatpush2.msra.mxu0 %v3887
    %4201 = vmatprep.subr.mxu0 %v3880
    %4202 = vmatpush2.msra.mxu0 %v3879
    %4203 = vmatprep.subr.mxu0 %v3872
    %4204 = vmatpush2.msra.mxu0 %v3871
    %4205 = vmatprep.subr.mxu0 %v3864
    %4206 = vmatpush2.msra.mxu0 %v3863
    %4207 = vmatprep.subr.mxu0 %v3856
    %4208 = vmatpush2.msra.mxu0 %v3855
    %4209 = vmatprep.subr.mxu0 %v3848
    %4210 = vmatpush2.msra.mxu0 %v3847
    %4211 = vmatprep.subr.mxu0 %v3840
    %4212 = vmatpush2.msra.mxu0 %v3839
    %4213 = vmatprep.subr.mxu0 %v3832
    %4214 = vmatpush2.msra.mxu0 %v3831
    %4215 = vmatprep.mubr.f32.mxu0 %v3692
    %4216 = vmatmul.mubr.f32.gmra.mxu0 %v3691
    %v4217 = vpop.f32.mrf.mxu0
    %v4218 = vadd.f32 %v3976, %v4217
    %v4219 = vpop.f32.mrf.mxu0
    %v4220 = vadd.f32 %v3980, %v4219
    %4221 = vmatprep.mubr.f32.mxu0 %v3698
    %4222 = vmatmul.mubr.f32.gmra.mxu0 %v3697
    %v4223 = vpop.f32.mrf.mxu0
    %v4224 = vadd.f32 %v3976, %v4223
    %v4225 = vpop.f32.mrf.mxu0
    %v4226 = vadd.f32 %v3980, %v4225
    %4227 = vdwg.mxu0
    %4228 = vmatprep.subr.mxu0 %v3826
    %4229 = vmatpush1.msra.mxu0 %v3825
    %4230 = vmatprep.subr.mxu0 %v3818
    %4231 = vmatpush1.msra.mxu0 %v3817
    %4232 = vmatprep.subr.mxu0 %v3810
    %4233 = vmatpush1.msra.mxu0 %v3809
    %4234 = vmatprep.subr.mxu0 %v3802
    %4235 = vmatpush1.msra.mxu0 %v3801
    %4236 = vmatprep.subr.mxu0 %v3794
    %4237 = vmatpush1.msra.mxu0 %v3793
    %4238 = vmatprep.subr.mxu0 %v3786
    %4239 = vmatpush1.msra.mxu0 %v3785
    %4240 = vmatprep.subr.mxu0 %v3778
    %4241 = vmatpush1.msra.mxu0 %v3777
    %4242 = vmatprep.subr.mxu0 %v3770
    %4243 = vmatpush1.msra.mxu0 %v3769
    %4244 = vmatprep.subr.mxu0 %v3762
    %4245 = vmatpush1.msra.mxu0 %v3761
    %4246 = vmatprep.subr.mxu0 %v3754
    %4247 = vmatpush1.msra.mxu0 %v3753
    %4248 = vmatprep.subr.mxu0 %v3746
    %4249 = vmatpush1.msra.mxu0 %v3745
    %4250 = vmatprep.subr.mxu0 %v3738
    %4251 = vmatpush1.msra.mxu0 %v3737
    %4252 = vmatprep.subr.mxu0 %v3730
    %4253 = vmatpush1.msra.mxu0 %v3729
    %4254 = vmatprep.subr.mxu0 %v3722
    %4255 = vmatpush1.msra.mxu0 %v3721
    %4256 = vmatprep.subr.mxu0 %v3714
    %4257 = vmatpush1.msra.mxu0 %v3713
    %4258 = vmatprep.subr.mxu0 %v3706
    %4259 = vmatpush1.msra.mxu0 %v3705
    %4260 = vmatprep.subr.mxu0 %v3954
    %4261 = vmatpush2.msra.mxu0 %v3953
    %4262 = vmatprep.subr.mxu0 %v3946
    %4263 = vmatpush2.msra.mxu0 %v3945
    %4264 = vmatprep.subr.mxu0 %v3938
    %4265 = vmatpush2.msra.mxu0 %v3937
    %4266 = vmatprep.subr.mxu0 %v3930
    %4267 = vmatpush2.msra.mxu0 %v3929
    %4268 = vmatprep.subr.mxu0 %v3922
    %4269 = vmatpush2.msra.mxu0 %v3921
    %4270 = vmatprep.subr.mxu0 %v3914
    %4271 = vmatpush2.msra.mxu0 %v3913
    %4272 = vmatprep.subr.mxu0 %v3906
    %4273 = vmatpush2.msra.mxu0 %v3905
    %4274 = vmatprep.subr.mxu0 %v3898
    %4275 = vmatpush2.msra.mxu0 %v3897
    %4276 = vmatprep.subr.mxu0 %v3890
    %4277 = vmatpush2.msra.mxu0 %v3889
    %4278 = vmatprep.subr.mxu0 %v3882
    %4279 = vmatpush2.msra.mxu0 %v3881
    %4280 = vmatprep.subr.mxu0 %v3874
    %4281 = vmatpush2.msra.mxu0 %v3873
    %4282 = vmatprep.subr.mxu0 %v3866
    %4283 = vmatpush2.msra.mxu0 %v3865
    %4284 = vmatprep.subr.mxu0 %v3858
    %4285 = vmatpush2.msra.mxu0 %v3857
    %4286 = vmatprep.subr.mxu0 %v3850
    %4287 = vmatpush2.msra.mxu0 %v3849
    %4288 = vmatprep.subr.mxu0 %v3842
    %4289 = vmatpush2.msra.mxu0 %v3841
    %4290 = vmatprep.subr.mxu0 %v3834
    %4291 = vmatpush2.msra.mxu0 %v3833
    %4292 = vmatprep.mubr.f32.mxu0 %v3692
    %4293 = vmatmul.mubr.f32.gmra.mxu0 %v3691
    %v4294 = vpop.f32.mrf.mxu0
    %v4295 = vadd.f32 %v3984, %v4294
    %v4296 = vpop.f32.mrf.mxu0
    %v4297 = vadd.f32 %v3988, %v4296
    %4298 = vmatprep.mubr.f32.mxu0 %v3698
    %4299 = vmatmul.mubr.f32.gmra.mxu0 %v3697
    %v4300 = vpop.f32.mrf.mxu0
    %v4301 = vadd.f32 %v3984, %v4300
    %v4302 = vpop.f32.mrf.mxu0
    %v4303 = vadd.f32 %v3988, %v4302
    %4304 = vdwg.mxu0
    %v4305 = vld [vmem:[#allocation10] sm:$0xff]
    %v4306 = vld [vmem:[#allocation10 + $0x8] sm:$0xff]
    %v4307 = vld [vmem:[#allocation10 + $0x10] sm:$0xff]
    %v4308 = vld [vmem:[#allocation10 + $0x18] sm:$0xff]
    %v4309 = vld [vmem:[#allocation10 + $0x20] sm:$0xff]
    %v4310 = vld [vmem:[#allocation10 + $0x28] sm:$0xff]
    %v4311 = vld [vmem:[#allocation10 + $0x30] sm:$0xff]
    %v4312 = vld [vmem:[#allocation10 + $0x38] sm:$0xff]
    %v4313 = vld [vmem:[#allocation10 + $0x40] sm:$0xff]
    %v4314 = vld [vmem:[#allocation10 + $0x48] sm:$0xff]
    %v4315 = vld [vmem:[#allocation10 + $0x50] sm:$0xff]
    %v4316 = vld [vmem:[#allocation10 + $0x58] sm:$0xff]
    %v4317 = vld [vmem:[#allocation10 + $0x60] sm:$0xff]
    %v4318 = vld [vmem:[#allocation10 + $0x68] sm:$0xff]
    %v4319 = vld [vmem:[#allocation10 + $0x70] sm:$0xff]
    %v4320 = vld [vmem:[#allocation10 + $0x78] sm:$0xff]
    %v4321 = vld [vmem:[#allocation10 + $0x80] sm:$0xff]
    %v4322 = vld [vmem:[#allocation10 + $0x88] sm:$0xff]
    %v4323 = vld [vmem:[#allocation10 + $0x90] sm:$0xff]
    %v4324 = vld [vmem:[#allocation10 + $0x98] sm:$0xff]
    %v4325 = vld [vmem:[#allocation10 + $0xa0] sm:$0xff]
    %v4326 = vld [vmem:[#allocation10 + $0xa8] sm:$0xff]
    %v4327 = vld [vmem:[#allocation10 + $0xb0] sm:$0xff]
    %v4328 = vld [vmem:[#allocation10 + $0xb8] sm:$0xff]
    %v4329 = vld [vmem:[#allocation10 + $0xc0] sm:$0xff]
    %v4330 = vld [vmem:[#allocation10 + $0xc8] sm:$0xff]
    %v4331 = vld [vmem:[#allocation10 + $0xd0] sm:$0xff]
    %v4332 = vld [vmem:[#allocation10 + $0xd8] sm:$0xff]
    %v4333 = vld [vmem:[#allocation10 + $0xe0] sm:$0xff]
    %v4334 = vld [vmem:[#allocation10 + $0xe8] sm:$0xff]
    %v4335 = vld [vmem:[#allocation10 + $0xf0] sm:$0xff]
    %v4336 = vld [vmem:[#allocation10 + $0xf8] sm:$0xff]
    %v4337 = vld [vmem:[#allocation10 + $0x100] sm:$0xff]
    %v4338 = vld [vmem:[#allocation10 + $0x108] sm:$0xff]
    %v4339 = vld [vmem:[#allocation10 + $0x110] sm:$0xff]
    %v4340 = vld [vmem:[#allocation10 + $0x118] sm:$0xff]
    %v4341 = vld [vmem:[#allocation10 + $0x120] sm:$0xff]
    %v4342 = vld [vmem:[#allocation10 + $0x128] sm:$0xff]
    %v4343 = vld [vmem:[#allocation10 + $0x130] sm:$0xff]
    %v4344 = vld [vmem:[#allocation10 + $0x138] sm:$0xff]
    %v4345 = vld [vmem:[#allocation10 + $0x140] sm:$0xff]
    %v4346 = vld [vmem:[#allocation10 + $0x148] sm:$0xff]
    %v4347 = vld [vmem:[#allocation10 + $0x150] sm:$0xff]
    %v4348 = vld [vmem:[#allocation10 + $0x158] sm:$0xff]
    %v4349 = vld [vmem:[#allocation10 + $0x160] sm:$0xff]
    %v4350 = vld [vmem:[#allocation10 + $0x168] sm:$0xff]
    %v4351 = vld [vmem:[#allocation10 + $0x170] sm:$0xff]
    %v4352 = vld [vmem:[#allocation10 + $0x178] sm:$0xff]
    %v4353 = vld [vmem:[#allocation10 + $0x180] sm:$0xff]
    %v4354 = vld [vmem:[#allocation10 + $0x188] sm:$0xff]
    %v4355 = vld [vmem:[#allocation10 + $0x190] sm:$0xff]
    %v4356 = vld [vmem:[#allocation10 + $0x198] sm:$0xff]
    %v4357 = vld [vmem:[#allocation10 + $0x1a0] sm:$0xff]
    %v4358 = vld [vmem:[#allocation10 + $0x1a8] sm:$0xff]
    %v4359 = vld [vmem:[#allocation10 + $0x1b0] sm:$0xff]
    %v4360 = vld [vmem:[#allocation10 + $0x1b8] sm:$0xff]
    %v4361 = vld [vmem:[#allocation10 + $0x1c0] sm:$0xff]
    %v4362 = vld [vmem:[#allocation10 + $0x1c8] sm:$0xff]
    %v4363 = vld [vmem:[#allocation10 + $0x1d0] sm:$0xff]
    %v4364 = vld [vmem:[#allocation10 + $0x1d8] sm:$0xff]
    %v4365 = vld [vmem:[#allocation10 + $0x1e0] sm:$0xff]
    %v4366 = vld [vmem:[#allocation10 + $0x1e8] sm:$0xff]
    %v4367 = vld [vmem:[#allocation10 + $0x1f0] sm:$0xff]
    %v4368 = vld [vmem:[#allocation10 + $0x1f8] sm:$0xff]
    %v4369 = vld [vmem:[#allocation11] sm:$0xff]
    %v4370 = vld [vmem:[#allocation11 + $0x8] sm:$0xff]
    %v4371 = vld [vmem:[#allocation11 + $0x10] sm:$0xff]
    %v4372 = vld [vmem:[#allocation11 + $0x18] sm:$0xff]
    %v4373 = vld [vmem:[#allocation11 + $0x20] sm:$0xff]
    %v4374 = vld [vmem:[#allocation11 + $0x28] sm:$0xff]
    %v4375 = vld [vmem:[#allocation11 + $0x30] sm:$0xff]
    %v4376 = vld [vmem:[#allocation11 + $0x38] sm:$0xff]
    %v4377 = vld [vmem:[#allocation11 + $0x40] sm:$0xff]
    %v4378 = vld [vmem:[#allocation11 + $0x48] sm:$0xff]
    %v4379 = vld [vmem:[#allocation11 + $0x50] sm:$0xff]
    %v4380 = vld [vmem:[#allocation11 + $0x58] sm:$0xff]
    %v4381 = vld [vmem:[#allocation11 + $0x60] sm:$0xff]
    %v4382 = vld [vmem:[#allocation11 + $0x68] sm:$0xff]
    %v4383 = vld [vmem:[#allocation11 + $0x70] sm:$0xff]
    %v4384 = vld [vmem:[#allocation11 + $0x78] sm:$0xff]
    %v4385 = vld [vmem:[#allocation11 + $0x80] sm:$0xff]
    %v4386 = vld [vmem:[#allocation11 + $0x88] sm:$0xff]
    %v4387 = vld [vmem:[#allocation11 + $0x90] sm:$0xff]
    %v4388 = vld [vmem:[#allocation11 + $0x98] sm:$0xff]
    %v4389 = vld [vmem:[#allocation11 + $0xa0] sm:$0xff]
    %v4390 = vld [vmem:[#allocation11 + $0xa8] sm:$0xff]
    %v4391 = vld [vmem:[#allocation11 + $0xb0] sm:$0xff]
    %v4392 = vld [vmem:[#allocation11 + $0xb8] sm:$0xff]
    %v4393 = vld [vmem:[#allocation11 + $0xc0] sm:$0xff]
    %v4394 = vld [vmem:[#allocation11 + $0xc8] sm:$0xff]
    %v4395 = vld [vmem:[#allocation11 + $0xd0] sm:$0xff]
    %v4396 = vld [vmem:[#allocation11 + $0xd8] sm:$0xff]
    %v4397 = vld [vmem:[#allocation11 + $0xe0] sm:$0xff]
    %v4398 = vld [vmem:[#allocation11 + $0xe8] sm:$0xff]
    %v4399 = vld [vmem:[#allocation11 + $0xf0] sm:$0xff]
    %v4400 = vld [vmem:[#allocation11 + $0xf8] sm:$0xff]
    %v4401 = vld [vmem:[#allocation11 + $0x100] sm:$0xff]
    %v4402 = vld [vmem:[#allocation11 + $0x108] sm:$0xff]
    %v4403 = vld [vmem:[#allocation11 + $0x110] sm:$0xff]
    %v4404 = vld [vmem:[#allocation11 + $0x118] sm:$0xff]
    %v4405 = vld [vmem:[#allocation11 + $0x120] sm:$0xff]
    %v4406 = vld [vmem:[#allocation11 + $0x128] sm:$0xff]
    %v4407 = vld [vmem:[#allocation11 + $0x130] sm:$0xff]
    %v4408 = vld [vmem:[#allocation11 + $0x138] sm:$0xff]
    %v4409 = vld [vmem:[#allocation11 + $0x140] sm:$0xff]
    %v4410 = vld [vmem:[#allocation11 + $0x148] sm:$0xff]
    %v4411 = vld [vmem:[#allocation11 + $0x150] sm:$0xff]
    %v4412 = vld [vmem:[#allocation11 + $0x158] sm:$0xff]
    %v4413 = vld [vmem:[#allocation11 + $0x160] sm:$0xff]
    %v4414 = vld [vmem:[#allocation11 + $0x168] sm:$0xff]
    %v4415 = vld [vmem:[#allocation11 + $0x170] sm:$0xff]
    %v4416 = vld [vmem:[#allocation11 + $0x178] sm:$0xff]
    %v4417 = vld [vmem:[#allocation11 + $0x180] sm:$0xff]
    %v4418 = vld [vmem:[#allocation11 + $0x188] sm:$0xff]
    %v4419 = vld [vmem:[#allocation11 + $0x190] sm:$0xff]
    %v4420 = vld [vmem:[#allocation11 + $0x198] sm:$0xff]
    %v4421 = vld [vmem:[#allocation11 + $0x1a0] sm:$0xff]
    %v4422 = vld [vmem:[#allocation11 + $0x1a8] sm:$0xff]
    %v4423 = vld [vmem:[#allocation11 + $0x1b0] sm:$0xff]
    %v4424 = vld [vmem:[#allocation11 + $0x1b8] sm:$0xff]
    %v4425 = vld [vmem:[#allocation11 + $0x1c0] sm:$0xff]
    %v4426 = vld [vmem:[#allocation11 + $0x1c8] sm:$0xff]
    %v4427 = vld [vmem:[#allocation11 + $0x1d0] sm:$0xff]
    %v4428 = vld [vmem:[#allocation11 + $0x1d8] sm:$0xff]
    %v4429 = vld [vmem:[#allocation11 + $0x1e0] sm:$0xff]
    %v4430 = vld [vmem:[#allocation11 + $0x1e8] sm:$0xff]
    %v4431 = vld [vmem:[#allocation11 + $0x1f0] sm:$0xff]
    %v4432 = vld [vmem:[#allocation11 + $0x1f8] sm:$0xff]
    %4433 = vmatprep.subr.mxu0 %v4366
    %4434 = vmatpush1.msra.mxu0 %v4365
    %4435 = vmatprep.subr.mxu0 %v4362
    %4436 = vmatpush1.msra.mxu0 %v4361
    %4437 = vmatprep.subr.mxu0 %v4358
    %4438 = vmatpush1.msra.mxu0 %v4357
    %4439 = vmatprep.subr.mxu0 %v4354
    %4440 = vmatpush1.msra.mxu0 %v4353
    %4441 = vmatprep.subr.mxu0 %v4350
    %4442 = vmatpush1.msra.mxu0 %v4349
    %4443 = vmatprep.subr.mxu0 %v4346
    %4444 = vmatpush1.msra.mxu0 %v4345
    %4445 = vmatprep.subr.mxu0 %v4342
    %4446 = vmatpush1.msra.mxu0 %v4341
    %4447 = vmatprep.subr.mxu0 %v4338
    %4448 = vmatpush1.msra.mxu0 %v4337
    %4449 = vmatprep.subr.mxu0 %v4334
    %4450 = vmatpush1.msra.mxu0 %v4333
    %4451 = vmatprep.subr.mxu0 %v4330
    %4452 = vmatpush1.msra.mxu0 %v4329
    %4453 = vmatprep.subr.mxu0 %v4326
    %4454 = vmatpush1.msra.mxu0 %v4325
    %4455 = vmatprep.subr.mxu0 %v4322
    %4456 = vmatpush1.msra.mxu0 %v4321
    %4457 = vmatprep.subr.mxu0 %v4318
    %4458 = vmatpush1.msra.mxu0 %v4317
    %4459 = vmatprep.subr.mxu0 %v4314
    %4460 = vmatpush1.msra.mxu0 %v4313
    %4461 = vmatprep.subr.mxu0 %v4310
    %4462 = vmatpush1.msra.mxu0 %v4309
    %4463 = vmatprep.subr.mxu0 %v4306
    %4464 = vmatpush1.msra.mxu0 %v4305
    %4465 = vmatprep.subr.mxu0 0.0
    %4466 = vmatpush2.msra.mxu0 0.0
    %4467 = vmatprep.subr.mxu0 0.0
    %4468 = vmatpush2.msra.mxu0 0.0
    %4469 = vmatprep.subr.mxu0 0.0
    %4470 = vmatpush2.msra.mxu0 0.0
    %4471 = vmatprep.subr.mxu0 0.0
    %4472 = vmatpush2.msra.mxu0 0.0
    %4473 = vmatprep.subr.mxu0 0.0
    %4474 = vmatpush2.msra.mxu0 0.0
    %4475 = vmatprep.subr.mxu0 0.0
    %4476 = vmatpush2.msra.mxu0 0.0
    %4477 = vmatprep.subr.mxu0 0.0
    %4478 = vmatpush2.msra.mxu0 0.0
    %4479 = vmatprep.subr.mxu0 0.0
    %4480 = vmatpush2.msra.mxu0 0.0
    %4481 = vmatprep.subr.mxu0 0.0
    %4482 = vmatpush2.msra.mxu0 0.0
    %4483 = vmatprep.subr.mxu0 0.0
    %4484 = vmatpush2.msra.mxu0 0.0
    %4485 = vmatprep.subr.mxu0 0.0
    %4486 = vmatpush2.msra.mxu0 0.0
    %4487 = vmatprep.subr.mxu0 0.0
    %4488 = vmatpush2.msra.mxu0 0.0
    %4489 = vmatprep.subr.mxu0 0.0
    %4490 = vmatpush2.msra.mxu0 0.0
    %4491 = vmatprep.subr.mxu0 0.0
    %4492 = vmatpush2.msra.mxu0 0.0
    %4493 = vmatprep.subr.mxu0 0.0
    %4494 = vmatpush2.msra.mxu0 0.0
    %4495 = vmatprep.subr.mxu0 0.0
    %4496 = vmatpush2.msra.mxu0 0.0
    %4497 = vmatprep.mubr.f32.mxu0 0.0
    %4498 = vmatmul.mubr.f32.gmra.mxu0 0.0
    %v4499 = vpop.f32.mrf.mxu0
    %v4500 = vadd.f32 0.0, %v4499
    %v4501 = vpop.f32.mrf.mxu0
    %v4502 = vadd.f32 0.0, %v4501
    %4503 = vdwg.mxu0
    %4504 = vmatprep.subr.mxu0 %v4368
    %4505 = vmatpush1.msra.mxu0 %v4367
    %4506 = vmatprep.subr.mxu0 %v4364
    %4507 = vmatpush1.msra.mxu0 %v4363
    %4508 = vmatprep.subr.mxu0 %v4360
    %4509 = vmatpush1.msra.mxu0 %v4359
    %4510 = vmatprep.subr.mxu0 %v4356
    %4511 = vmatpush1.msra.mxu0 %v4355
    %4512 = vmatprep.subr.mxu0 %v4352
    %4513 = vmatpush1.msra.mxu0 %v4351
    %4514 = vmatprep.subr.mxu0 %v4348
    %4515 = vmatpush1.msra.mxu0 %v4347
    %4516 = vmatprep.subr.mxu0 %v4344
    %4517 = vmatpush1.msra.mxu0 %v4343
    %4518 = vmatprep.subr.mxu0 %v4340
    %4519 = vmatpush1.msra.mxu0 %v4339
    %4520 = vmatprep.subr.mxu0 %v4336
    %4521 = vmatpush1.msra.mxu0 %v4335
    %4522 = vmatprep.subr.mxu0 %v4332
    %4523 = vmatpush1.msra.mxu0 %v4331
    %4524 = vmatprep.subr.mxu0 %v4328
    %4525 = vmatpush1.msra.mxu0 %v4327
    %4526 = vmatprep.subr.mxu0 %v4324
    %4527 = vmatpush1.msra.mxu0 %v4323
    %4528 = vmatprep.subr.mxu0 %v4320
    %4529 = vmatpush1.msra.mxu0 %v4319
    %4530 = vmatprep.subr.mxu0 %v4316
    %4531 = vmatpush1.msra.mxu0 %v4315
    %4532 = vmatprep.subr.mxu0 %v4312
    %4533 = vmatpush1.msra.mxu0 %v4311
    %4534 = vmatprep.subr.mxu0 %v4308
    %4535 = vmatpush1.msra.mxu0 %v4307
    %4536 = vmatprep.subr.mxu0 0.0
    %4537 = vmatpush2.msra.mxu0 0.0
    %4538 = vmatprep.subr.mxu0 0.0
    %4539 = vmatpush2.msra.mxu0 0.0
    %4540 = vmatprep.subr.mxu0 0.0
    %4541 = vmatpush2.msra.mxu0 0.0
    %4542 = vmatprep.subr.mxu0 0.0
    %4543 = vmatpush2.msra.mxu0 0.0
    %4544 = vmatprep.subr.mxu0 0.0
    %4545 = vmatpush2.msra.mxu0 0.0
    %4546 = vmatprep.subr.mxu0 0.0
    %4547 = vmatpush2.msra.mxu0 0.0
    %4548 = vmatprep.subr.mxu0 0.0
    %4549 = vmatpush2.msra.mxu0 0.0
    %4550 = vmatprep.subr.mxu0 0.0
    %4551 = vmatpush2.msra.mxu0 0.0
    %4552 = vmatprep.subr.mxu0 0.0
    %4553 = vmatpush2.msra.mxu0 0.0
    %4554 = vmatprep.subr.mxu0 0.0
    %4555 = vmatpush2.msra.mxu0 0.0
    %4556 = vmatprep.subr.mxu0 0.0
    %4557 = vmatpush2.msra.mxu0 0.0
    %4558 = vmatprep.subr.mxu0 0.0
    %4559 = vmatpush2.msra.mxu0 0.0
    %4560 = vmatprep.subr.mxu0 0.0
    %4561 = vmatpush2.msra.mxu0 0.0
    %4562 = vmatprep.subr.mxu0 0.0
    %4563 = vmatpush2.msra.mxu0 0.0
    %4564 = vmatprep.subr.mxu0 0.0
    %4565 = vmatpush2.msra.mxu0 0.0
    %4566 = vmatprep.subr.mxu0 0.0
    %4567 = vmatpush2.msra.mxu0 0.0
    %4568 = vmatprep.mubr.f32.mxu0 0.0
    %4569 = vmatmul.mubr.f32.gmra.mxu0 0.0
    %v4570 = vpop.f32.mrf.mxu0
    %v4571 = vadd.f32 0.0, %v4570
    %v4572 = vpop.f32.mrf.mxu0
    %v4573 = vadd.f32 0.0, %v4572
    %4574 = vdwg.mxu0
    %v4575 = vadd.f32 %v4064, %v4500
    %v4576 = vadd.f32 %v4066, %v4502
    %v4577 = vadd.f32 %v4141, %v4571
    %v4578 = vadd.f32 %v4143, %v4573
    %4579 = vmatprep.subr.mxu0 %v4430
    %4580 = vmatpush1.msra.mxu0 %v4429
    %4581 = vmatprep.subr.mxu0 %v4426
    %4582 = vmatpush1.msra.mxu0 %v4425
    %4583 = vmatprep.subr.mxu0 %v4422
    %4584 = vmatpush1.msra.mxu0 %v4421
    %4585 = vmatprep.subr.mxu0 %v4418
    %4586 = vmatpush1.msra.mxu0 %v4417
    %4587 = vmatprep.subr.mxu0 %v4414
    %4588 = vmatpush1.msra.mxu0 %v4413
    %4589 = vmatprep.subr.mxu0 %v4410
    %4590 = vmatpush1.msra.mxu0 %v4409
    %4591 = vmatprep.subr.mxu0 %v4406
    %4592 = vmatpush1.msra.mxu0 %v4405
    %4593 = vmatprep.subr.mxu0 %v4402
    %4594 = vmatpush1.msra.mxu0 %v4401
    %4595 = vmatprep.subr.mxu0 %v4398
    %4596 = vmatpush1.msra.mxu0 %v4397
    %4597 = vmatprep.subr.mxu0 %v4394
    %4598 = vmatpush1.msra.mxu0 %v4393
    %4599 = vmatprep.subr.mxu0 %v4390
    %4600 = vmatpush1.msra.mxu0 %v4389
    %4601 = vmatprep.subr.mxu0 %v4386
    %4602 = vmatpush1.msra.mxu0 %v4385
    %4603 = vmatprep.subr.mxu0 %v4382
    %4604 = vmatpush1.msra.mxu0 %v4381
    %4605 = vmatprep.subr.mxu0 %v4378
    %4606 = vmatpush1.msra.mxu0 %v4377
    %4607 = vmatprep.subr.mxu0 %v4374
    %4608 = vmatpush1.msra.mxu0 %v4373
    %4609 = vmatprep.subr.mxu0 %v4370
    %4610 = vmatpush1.msra.mxu0 %v4369
    %4611 = vmatprep.subr.mxu0 0.0
    %4612 = vmatpush2.msra.mxu0 0.0
    %4613 = vmatprep.subr.mxu0 0.0
    %4614 = vmatpush2.msra.mxu0 0.0
    %4615 = vmatprep.subr.mxu0 0.0
    %4616 = vmatpush2.msra.mxu0 0.0
    %4617 = vmatprep.subr.mxu0 0.0
    %4618 = vmatpush2.msra.mxu0 0.0
    %4619 = vmatprep.subr.mxu0 0.0
    %4620 = vmatpush2.msra.mxu0 0.0
    %4621 = vmatprep.subr.mxu0 0.0
    %4622 = vmatpush2.msra.mxu0 0.0
    %4623 = vmatprep.subr.mxu0 0.0
    %4624 = vmatpush2.msra.mxu0 0.0
    %4625 = vmatprep.subr.mxu0 0.0
    %4626 = vmatpush2.msra.mxu0 0.0
    %4627 = vmatprep.subr.mxu0 0.0
    %4628 = vmatpush2.msra.mxu0 0.0
    %4629 = vmatprep.subr.mxu0 0.0
    %4630 = vmatpush2.msra.mxu0 0.0
    %4631 = vmatprep.subr.mxu0 0.0
    %4632 = vmatpush2.msra.mxu0 0.0
    %4633 = vmatprep.subr.mxu0 0.0
    %4634 = vmatpush2.msra.mxu0 0.0
    %4635 = vmatprep.subr.mxu0 0.0
    %4636 = vmatpush2.msra.mxu0 0.0
    %4637 = vmatprep.subr.mxu0 0.0
    %4638 = vmatpush2.msra.mxu0 0.0
    %4639 = vmatprep.subr.mxu0 0.0
    %4640 = vmatpush2.msra.mxu0 0.0
    %4641 = vmatprep.subr.mxu0 0.0
    %4642 = vmatpush2.msra.mxu0 0.0
    %4643 = vmatprep.mubr.f32.mxu0 0.0
    %4644 = vmatmul.mubr.f32.gmra.mxu0 0.0
    %v4645 = vpop.f32.mrf.mxu0
    %v4646 = vadd.f32 0.0, %v4645
    %v4647 = vpop.f32.mrf.mxu0
    %v4648 = vadd.f32 0.0, %v4647
    %4649 = vdwg.mxu0
    %4650 = vmatprep.subr.mxu0 %v4432
    %4651 = vmatpush1.msra.mxu0 %v4431
    %4652 = vmatprep.subr.mxu0 %v4428
    %4653 = vmatpush1.msra.mxu0 %v4427
    %4654 = vmatprep.subr.mxu0 %v4424
    %4655 = vmatpush1.msra.mxu0 %v4423
    %4656 = vmatprep.subr.mxu0 %v4420
    %4657 = vmatpush1.msra.mxu0 %v4419
    %4658 = vmatprep.subr.mxu0 %v4416
    %4659 = vmatpush1.msra.mxu0 %v4415
    %4660 = vmatprep.subr.mxu0 %v4412
    %4661 = vmatpush1.msra.mxu0 %v4411
    %4662 = vmatprep.subr.mxu0 %v4408
    %4663 = vmatpush1.msra.mxu0 %v4407
    %4664 = vmatprep.subr.mxu0 %v4404
    %4665 = vmatpush1.msra.mxu0 %v4403
    %4666 = vmatprep.subr.mxu0 %v4400
    %4667 = vmatpush1.msra.mxu0 %v4399
    %4668 = vmatprep.subr.mxu0 %v4396
    %4669 = vmatpush1.msra.mxu0 %v4395
    %4670 = vmatprep.subr.mxu0 %v4392
    %4671 = vmatpush1.msra.mxu0 %v4391
    %4672 = vmatprep.subr.mxu0 %v4388
    %4673 = vmatpush1.msra.mxu0 %v4387
    %4674 = vmatprep.subr.mxu0 %v4384
    %4675 = vmatpush1.msra.mxu0 %v4383
    %4676 = vmatprep.subr.mxu0 %v4380
    %4677 = vmatpush1.msra.mxu0 %v4379
    %4678 = vmatprep.subr.mxu0 %v4376
    %4679 = vmatpush1.msra.mxu0 %v4375
    %4680 = vmatprep.subr.mxu0 %v4372
    %4681 = vmatpush1.msra.mxu0 %v4371
    %4682 = vmatprep.subr.mxu0 0.0
    %4683 = vmatpush2.msra.mxu0 0.0
    %4684 = vmatprep.subr.mxu0 0.0
    %4685 = vmatpush2.msra.mxu0 0.0
    %4686 = vmatprep.subr.mxu0 0.0
    %4687 = vmatpush2.msra.mxu0 0.0
    %4688 = vmatprep.subr.mxu0 0.0
    %4689 = vmatpush2.msra.mxu0 0.0
    %4690 = vmatprep.subr.mxu0 0.0
    %4691 = vmatpush2.msra.mxu0 0.0
    %4692 = vmatprep.subr.mxu0 0.0
    %4693 = vmatpush2.msra.mxu0 0.0
    %4694 = vmatprep.subr.mxu0 0.0
    %4695 = vmatpush2.msra.mxu0 0.0
    %4696 = vmatprep.subr.mxu0 0.0
    %4697 = vmatpush2.msra.mxu0 0.0
    %4698 = vmatprep.subr.mxu0 0.0
    %4699 = vmatpush2.msra.mxu0 0.0
    %4700 = vmatprep.subr.mxu0 0.0
    %4701 = vmatpush2.msra.mxu0 0.0
    %4702 = vmatprep.subr.mxu0 0.0
    %4703 = vmatpush2.msra.mxu0 0.0
    %4704 = vmatprep.subr.mxu0 0.0
    %4705 = vmatpush2.msra.mxu0 0.0
    %4706 = vmatprep.subr.mxu0 0.0
    %4707 = vmatpush2.msra.mxu0 0.0
    %4708 = vmatprep.subr.mxu0 0.0
    %4709 = vmatpush2.msra.mxu0 0.0
    %4710 = vmatprep.subr.mxu0 0.0
    %4711 = vmatpush2.msra.mxu0 0.0
    %4712 = vmatprep.subr.mxu0 0.0
    %4713 = vmatpush2.msra.mxu0 0.0
    %4714 = vmatprep.mubr.f32.mxu0 0.0
    %4715 = vmatmul.mubr.f32.gmra.mxu0 0.0
    %v4716 = vpop.f32.mrf.mxu0
    %v4717 = vadd.f32 0.0, %v4716
    %v4718 = vpop.f32.mrf.mxu0
    %v4719 = vadd.f32 0.0, %v4718
    %4720 = vdwg.mxu0
    %v4725 = vrot.slane %v4646, 2
    %v4726 = vrot.slane %v4648, 2
    %v4727 = vrot.slane %v4717, 2
    %v4728 = vrot.slane %v4719, 2
    %v4733 = vadd.f32 %v4224, %v4725
    %v4734 = vadd.f32 %v4226, %v4726
    %v4735 = vadd.f32 %v4301, %v4727
    %v4736 = vadd.f32 %v4303, %v4728
    %v4737 = vxor.u32 %v4575, 2147483648
    %v4738 = vmul.f32 %v4737, 1.442695
    %v4739 = vpow.pop %v4738
    %v4740 = vadd.f32 %v4739, 1.0
    %v4741 = vrcp.pop %v4740
    %v4742 = vmul.f32 1.0, %v4741
    %v4743 = vxor.u32 %v4733, 2147483648
    %v4744 = vmul.f32 %v4743, 1.442695
    %v4745 = vpow.pop %v4744
    %v4746 = vadd.f32 %v4745, 1.0
    %v4747 = vrcp.pop %v4746
    %v4748 = vmul.f32 1.0, %v4747
    %v4749 = vxor.u32 %v4576, 2147483648
    %v4750 = vmul.f32 %v4749, 1.442695
    %v4751 = vpow.pop %v4750
    %v4752 = vadd.f32 %v4751, 1.0
    %v4753 = vrcp.pop %v4752
    %v4754 = vmul.f32 1.0, %v4753
    %v4755 = vxor.u32 %v4734, 2147483648
    %v4756 = vmul.f32 %v4755, 1.442695
    %v4757 = vpow.pop %v4756
    %v4758 = vadd.f32 %v4757, 1.0
    %v4759 = vrcp.pop %v4758
    %v4760 = vmul.f32 1.0, %v4759
    %v4761 = vtanh.pop %v4577
    %v4762 = vtanh.pop %v4735
    %v4763 = vxor.u32 %v4578, 2147483648
    %v4764 = vmul.f32 %v4763, 1.442695
    %v4765 = vpow.pop %v4764
    %v4766 = vadd.f32 %v4765, 1.0
    %v4767 = vrcp.pop %v4766
    %v4768 = vmul.f32 1.0, %v4767
    %v4769 = vxor.u32 %v4736, 2147483648
    %v4770 = vmul.f32 %v4769, 1.442695
    %v4771 = vpow.pop %v4770
    %v4772 = vadd.f32 %v4771, 1.0
    %v4773 = vrcp.pop %v4772
    %v4774 = vmul.f32 1.0, %v4773
    %v4775 = vmul.f32 %v4754, 0.0
    %v4776 = vmul.f32 %v4742, %v4761
    %v4777 = vadd.f32 %v4775, %v4776
    %v4778 = vmul.f32 %v4760, 0.0
    %v4779 = vmul.f32 %v4748, %v4762
    %v4780 = vadd.f32 %v4778, %v4779
    %v4781 = vtanh.pop %v4777
    %v4782 = vmul.f32 %v4768, %v4781
    %v4783 = vtanh.pop %v4780
    %v4784 = vmul.f32 %v4774, %v4783
    %4785 = vmatprep.subr.mxu0 %v4366
    %4786 = vmatpush1.msra.mxu0 %v4365
    %4787 = vmatprep.subr.mxu0 %v4362
    %4788 = vmatpush1.msra.mxu0 %v4361
    %4789 = vmatprep.subr.mxu0 %v4358
    %4790 = vmatpush1.msra.mxu0 %v4357
    %4791 = vmatprep.subr.mxu0 %v4354
    %4792 = vmatpush1.msra.mxu0 %v4353
    %4793 = vmatprep.subr.mxu0 %v4350
    %4794 = vmatpush1.msra.mxu0 %v4349
    %4795 = vmatprep.subr.mxu0 %v4346
    %4796 = vmatpush1.msra.mxu0 %v4345
    %4797 = vmatprep.subr.mxu0 %v4342
    %4798 = vmatpush1.msra.mxu0 %v4341
    %4799 = vmatprep.subr.mxu0 %v4338
    %4800 = vmatpush1.msra.mxu0 %v4337
    %4801 = vmatprep.subr.mxu0 %v4334
    %4802 = vmatpush1.msra.mxu0 %v4333
    %4803 = vmatprep.subr.mxu0 %v4330
    %4804 = vmatpush1.msra.mxu0 %v4329
    %4805 = vmatprep.subr.mxu0 %v4326
    %4806 = vmatpush1.msra.mxu0 %v4325
    %4807 = vmatprep.subr.mxu0 %v4322
    %4808 = vmatpush1.msra.mxu0 %v4321
    %4809 = vmatprep.subr.mxu0 %v4318
    %4810 = vmatpush1.msra.mxu0 %v4317
    %4811 = vmatprep.subr.mxu0 %v4314
    %4812 = vmatpush1.msra.mxu0 %v4313
    %4813 = vmatprep.subr.mxu0 %v4310
    %4814 = vmatpush1.msra.mxu0 %v4309
    %4815 = vmatprep.subr.mxu0 %v4306
    %4816 = vmatpush1.msra.mxu0 %v4305
    %4817 = vmatprep.subr.mxu0 0.0
    %4818 = vmatpush2.msra.mxu0 0.0
    %4819 = vmatprep.subr.mxu0 0.0
    %4820 = vmatpush2.msra.mxu0 0.0
    %4821 = vmatprep.subr.mxu0 0.0
    %4822 = vmatpush2.msra.mxu0 0.0
    %4823 = vmatprep.subr.mxu0 0.0
    %4824 = vmatpush2.msra.mxu0 0.0
    %4825 = vmatprep.subr.mxu0 0.0
    %4826 = vmatpush2.msra.mxu0 0.0
    %4827 = vmatprep.subr.mxu0 0.0
    %4828 = vmatpush2.msra.mxu0 0.0
    %4829 = vmatprep.subr.mxu0 0.0
    %4830 = vmatpush2.msra.mxu0 0.0
    %4831 = vmatprep.subr.mxu0 0.0
    %4832 = vmatpush2.msra.mxu0 0.0
    %4833 = vmatprep.subr.mxu0 0.0
    %4834 = vmatpush2.msra.mxu0 0.0
    %4835 = vmatprep.subr.mxu0 0.0
    %4836 = vmatpush2.msra.mxu0 0.0
    %4837 = vmatprep.subr.mxu0 0.0
    %4838 = vmatpush2.msra.mxu0 0.0
    %4839 = vmatprep.subr.mxu0 0.0
    %4840 = vmatpush2.msra.mxu0 0.0
    %4841 = vmatprep.subr.mxu0 0.0
    %4842 = vmatpush2.msra.mxu0 0.0
    %4843 = vmatprep.subr.mxu0 0.0
    %4844 = vmatpush2.msra.mxu0 0.0
    %4845 = vmatprep.subr.mxu0 0.0
    %4846 = vmatpush2.msra.mxu0 0.0
    %4847 = vmatprep.subr.mxu0 0.0
    %4848 = vmatpush2.msra.mxu0 0.0
    %4849 = vmatprep.mubr.f32.mxu0 0.0
    %4850 = vmatmul.mubr.f32.gmra.mxu0 %v4782
    %v4851 = vpop.f32.mrf.mxu0
    %v4852 = vadd.f32 0.0, %v4851
    %v4853 = vpop.f32.mrf.mxu0
    %v4854 = vadd.f32 0.0, %v4853
    %4855 = vdwg.mxu0
    %4856 = vmatprep.subr.mxu0 %v4368
    %4857 = vmatpush1.msra.mxu0 %v4367
    %4858 = vmatprep.subr.mxu0 %v4364
    %4859 = vmatpush1.msra.mxu0 %v4363
    %4860 = vmatprep.subr.mxu0 %v4360
    %4861 = vmatpush1.msra.mxu0 %v4359
    %4862 = vmatprep.subr.mxu0 %v4356
    %4863 = vmatpush1.msra.mxu0 %v4355
    %4864 = vmatprep.subr.mxu0 %v4352
    %4865 = vmatpush1.msra.mxu0 %v4351
    %4866 = vmatprep.subr.mxu0 %v4348
    %4867 = vmatpush1.msra.mxu0 %v4347
    %4868 = vmatprep.subr.mxu0 %v4344
    %4869 = vmatpush1.msra.mxu0 %v4343
    %4870 = vmatprep.subr.mxu0 %v4340
    %4871 = vmatpush1.msra.mxu0 %v4339
    %4872 = vmatprep.subr.mxu0 %v4336
    %4873 = vmatpush1.msra.mxu0 %v4335
    %4874 = vmatprep.subr.mxu0 %v4332
    %4875 = vmatpush1.msra.mxu0 %v4331
    %4876 = vmatprep.subr.mxu0 %v4328
    %4877 = vmatpush1.msra.mxu0 %v4327
    %4878 = vmatprep.subr.mxu0 %v4324
    %4879 = vmatpush1.msra.mxu0 %v4323
    %4880 = vmatprep.subr.mxu0 %v4320
    %4881 = vmatpush1.msra.mxu0 %v4319
    %4882 = vmatprep.subr.mxu0 %v4316
    %4883 = vmatpush1.msra.mxu0 %v4315
    %4884 = vmatprep.subr.mxu0 %v4312
    %4885 = vmatpush1.msra.mxu0 %v4311
    %4886 = vmatprep.subr.mxu0 %v4308
    %4887 = vmatpush1.msra.mxu0 %v4307
    %4888 = vmatprep.subr.mxu0 0.0
    %4889 = vmatpush2.msra.mxu0 0.0
    %4890 = vmatprep.subr.mxu0 0.0
    %4891 = vmatpush2.msra.mxu0 0.0
    %4892 = vmatprep.subr.mxu0 0.0
    %4893 = vmatpush2.msra.mxu0 0.0
    %4894 = vmatprep.subr.mxu0 0.0
    %4895 = vmatpush2.msra.mxu0 0.0
    %4896 = vmatprep.subr.mxu0 0.0
    %4897 = vmatpush2.msra.mxu0 0.0
    %4898 = vmatprep.subr.mxu0 0.0
    %4899 = vmatpush2.msra.mxu0 0.0
    %4900 = vmatprep.subr.mxu0 0.0
    %4901 = vmatpush2.msra.mxu0 0.0
    %4902 = vmatprep.subr.mxu0 0.0
    %4903 = vmatpush2.msra.mxu0 0.0
    %4904 = vmatprep.subr.mxu0 0.0
    %4905 = vmatpush2.msra.mxu0 0.0
    %4906 = vmatprep.subr.mxu0 0.0
    %4907 = vmatpush2.msra.mxu0 0.0
    %4908 = vmatprep.subr.mxu0 0.0
    %4909 = vmatpush2.msra.mxu0 0.0
    %4910 = vmatprep.subr.mxu0 0.0
    %4911 = vmatpush2.msra.mxu0 0.0
    %4912 = vmatprep.subr.mxu0 0.0
    %4913 = vmatpush2.msra.mxu0 0.0
    %4914 = vmatprep.subr.mxu0 0.0
    %4915 = vmatpush2.msra.mxu0 0.0
    %4916 = vmatprep.subr.mxu0 0.0
    %4917 = vmatpush2.msra.mxu0 0.0
    %4918 = vmatprep.subr.mxu0 0.0
    %4919 = vmatpush2.msra.mxu0 0.0
    %4920 = vmatprep.mubr.f32.mxu0 0.0
    %4921 = vmatmul.mubr.f32.gmra.mxu0 %v4782
    %v4922 = vpop.f32.mrf.mxu0
    %v4923 = vadd.f32 0.0, %v4922
    %v4924 = vpop.f32.mrf.mxu0
    %v4925 = vadd.f32 0.0, %v4924
    %4926 = vdwg.mxu0
    %v4931 = vrot.slane %v4852, 6
    %v4932 = vrot.slane %v4854, 6
    %v4933 = vrot.slane %v4923, 6
    %v4934 = vrot.slane %v4925, 6
    %v4939 = vadd.f32 %v4064, %v4931
    %v4940 = vadd.f32 %v4066, %v4932
    %v4941 = vadd.f32 %v4141, %v4933
    %v4942 = vadd.f32 %v4143, %v4934
    %v4944 = vrot.slane %v4784, 6
    %4946 = vmatprep.subr.mxu0 %v4430
    %4947 = vmatpush1.msra.mxu0 %v4429
    %4948 = vmatprep.subr.mxu0 %v4426
    %4949 = vmatpush1.msra.mxu0 %v4425
    %4950 = vmatprep.subr.mxu0 %v4422
    %4951 = vmatpush1.msra.mxu0 %v4421
    %4952 = vmatprep.subr.mxu0 %v4418
    %4953 = vmatpush1.msra.mxu0 %v4417
    %4954 = vmatprep.subr.mxu0 %v4414
    %4955 = vmatpush1.msra.mxu0 %v4413
    %4956 = vmatprep.subr.mxu0 %v4410
    %4957 = vmatpush1.msra.mxu0 %v4409
    %4958 = vmatprep.subr.mxu0 %v4406
    %4959 = vmatpush1.msra.mxu0 %v4405
    %4960 = vmatprep.subr.mxu0 %v4402
    %4961 = vmatpush1.msra.mxu0 %v4401
    %4962 = vmatprep.subr.mxu0 %v4398
    %4963 = vmatpush1.msra.mxu0 %v4397
    %4964 = vmatprep.subr.mxu0 %v4394
    %4965 = vmatpush1.msra.mxu0 %v4393
    %4966 = vmatprep.subr.mxu0 %v4390
    %4967 = vmatpush1.msra.mxu0 %v4389
    %4968 = vmatprep.subr.mxu0 %v4386
    %4969 = vmatpush1.msra.mxu0 %v4385
    %4970 = vmatprep.subr.mxu0 %v4382
    %4971 = vmatpush1.msra.mxu0 %v4381
    %4972 = vmatprep.subr.mxu0 %v4378
    %4973 = vmatpush1.msra.mxu0 %v4377
    %4974 = vmatprep.subr.mxu0 %v4374
    %4975 = vmatpush1.msra.mxu0 %v4373
    %4976 = vmatprep.subr.mxu0 %v4370
    %4977 = vmatpush1.msra.mxu0 %v4369
    %4978 = vmatprep.subr.mxu0 0.0
    %4979 = vmatpush2.msra.mxu0 0.0
    %4980 = vmatprep.subr.mxu0 0.0
    %4981 = vmatpush2.msra.mxu0 0.0
    %4982 = vmatprep.subr.mxu0 0.0
    %4983 = vmatpush2.msra.mxu0 0.0
    %4984 = vmatprep.subr.mxu0 0.0
    %4985 = vmatpush2.msra.mxu0 0.0
    %4986 = vmatprep.subr.mxu0 0.0
    %4987 = vmatpush2.msra.mxu0 0.0
    %4988 = vmatprep.subr.mxu0 0.0
    %4989 = vmatpush2.msra.mxu0 0.0
    %4990 = vmatprep.subr.mxu0 0.0
    %4991 = vmatpush2.msra.mxu0 0.0
    %4992 = vmatprep.subr.mxu0 0.0
    %4993 = vmatpush2.msra.mxu0 0.0
    %4994 = vmatprep.subr.mxu0 0.0
    %4995 = vmatpush2.msra.mxu0 0.0
    %4996 = vmatprep.subr.mxu0 0.0
    %4997 = vmatpush2.msra.mxu0 0.0
    %4998 = vmatprep.subr.mxu0 0.0
    %4999 = vmatpush2.msra.mxu0 0.0
    %5000 = vmatprep.subr.mxu0 0.0
    %5001 = vmatpush2.msra.mxu0 0.0
    %5002 = vmatprep.subr.mxu0 0.0
    %5003 = vmatpush2.msra.mxu0 0.0
    %5004 = vmatprep.subr.mxu0 0.0
    %5005 = vmatpush2.msra.mxu0 0.0
    %5006 = vmatprep.subr.mxu0 0.0
    %5007 = vmatpush2.msra.mxu0 0.0
    %5008 = vmatprep.subr.mxu0 0.0
    %5009 = vmatpush2.msra.mxu0 0.0
    %5010 = vmatprep.mubr.f32.mxu0 0.0
    %5011 = vmatmul.mubr.f32.gmra.mxu0 %v4944
    %v5012 = vpop.f32.mrf.mxu0
    %v5013 = vadd.f32 0.0, %v5012
    %v5014 = vpop.f32.mrf.mxu0
    %v5015 = vadd.f32 0.0, %v5014
    %5016 = vdwg.mxu0
    %5017 = vmatprep.subr.mxu0 %v4432
    %5018 = vmatpush1.msra.mxu0 %v4431
    %5019 = vmatprep.subr.mxu0 %v4428
    %5020 = vmatpush1.msra.mxu0 %v4427
    %5021 = vmatprep.subr.mxu0 %v4424
    %5022 = vmatpush1.msra.mxu0 %v4423
    %5023 = vmatprep.subr.mxu0 %v4420
    %5024 = vmatpush1.msra.mxu0 %v4419
    %5025 = vmatprep.subr.mxu0 %v4416
    %5026 = vmatpush1.msra.mxu0 %v4415
    %5027 = vmatprep.subr.mxu0 %v4412
    %5028 = vmatpush1.msra.mxu0 %v4411
    %5029 = vmatprep.subr.mxu0 %v4408
    %5030 = vmatpush1.msra.mxu0 %v4407
    %5031 = vmatprep.subr.mxu0 %v4404
    %5032 = vmatpush1.msra.mxu0 %v4403
    %5033 = vmatprep.subr.mxu0 %v4400
    %5034 = vmatpush1.msra.mxu0 %v4399
    %5035 = vmatprep.subr.mxu0 %v4396
    %5036 = vmatpush1.msra.mxu0 %v4395
    %5037 = vmatprep.subr.mxu0 %v4392
    %5038 = vmatpush1.msra.mxu0 %v4391
    %5039 = vmatprep.subr.mxu0 %v4388
    %5040 = vmatpush1.msra.mxu0 %v4387
    %5041 = vmatprep.subr.mxu0 %v4384
    %5042 = vmatpush1.msra.mxu0 %v4383
    %5043 = vmatprep.subr.mxu0 %v4380
    %5044 = vmatpush1.msra.mxu0 %v4379
    %5045 = vmatprep.subr.mxu0 %v4376
    %5046 = vmatpush1.msra.mxu0 %v4375
    %5047 = vmatprep.subr.mxu0 %v4372
    %5048 = vmatpush1.msra.mxu0 %v4371
    %5049 = vmatprep.subr.mxu0 0.0
    %5050 = vmatpush2.msra.mxu0 0.0
    %5051 = vmatprep.subr.mxu0 0.0
    %5052 = vmatpush2.msra.mxu0 0.0
    %5053 = vmatprep.subr.mxu0 0.0
    %5054 = vmatpush2.msra.mxu0 0.0
    %5055 = vmatprep.subr.mxu0 0.0
    %5056 = vmatpush2.msra.mxu0 0.0
    %5057 = vmatprep.subr.mxu0 0.0
    %5058 = vmatpush2.msra.mxu0 0.0
    %5059 = vmatprep.subr.mxu0 0.0
    %5060 = vmatpush2.msra.mxu0 0.0
    %5061 = vmatprep.subr.mxu0 0.0
    %5062 = vmatpush2.msra.mxu0 0.0
    %5063 = vmatprep.subr.mxu0 0.0
    %5064 = vmatpush2.msra.mxu0 0.0
    %5065 = vmatprep.subr.mxu0 0.0
    %5066 = vmatpush2.msra.mxu0 0.0
    %5067 = vmatprep.subr.mxu0 0.0
    %5068 = vmatpush2.msra.mxu0 0.0
    %5069 = vmatprep.subr.mxu0 0.0
    %5070 = vmatpush2.msra.mxu0 0.0
    %5071 = vmatprep.subr.mxu0 0.0
    %5072 = vmatpush2.msra.mxu0 0.0
    %5073 = vmatprep.subr.mxu0 0.0
    %5074 = vmatpush2.msra.mxu0 0.0
    %5075 = vmatprep.subr.mxu0 0.0
    %5076 = vmatpush2.msra.mxu0 0.0
    %5077 = vmatprep.subr.mxu0 0.0
    %5078 = vmatpush2.msra.mxu0 0.0
    %5079 = vmatprep.subr.mxu0 0.0
    %5080 = vmatpush2.msra.mxu0 0.0
    %5081 = vmatprep.mubr.f32.mxu0 0.0
    %5082 = vmatmul.mubr.f32.gmra.mxu0 %v4944
    %v5083 = vpop.f32.mrf.mxu0
    %v5084 = vadd.f32 0.0, %v5083
    %v5085 = vpop.f32.mrf.mxu0
    %v5086 = vadd.f32 0.0, %v5085
    %5087 = vdwg.mxu0
    %v5092 = vrot.slane %v5013, 4
    %v5093 = vrot.slane %v5015, 4
    %v5094 = vrot.slane %v5084, 4
    %v5095 = vrot.slane %v5086, 4
    %v5100 = vadd.f32 %v4224, %v5092
    %v5101 = vadd.f32 %v4226, %v5093
    %v5102 = vadd.f32 %v4301, %v5094
    %v5103 = vadd.f32 %v4303, %v5095
    %v5104 = vxor.u32 %v4939, 2147483648
    %v5105 = vmul.f32 %v5104, 1.442695
    %v5106 = vpow.pop %v5105
    %v5107 = vadd.f32 %v5106, 1.0
    %v5108 = vrcp.pop %v5107
    %v5109 = vmul.f32 1.0, %v5108
    %v5110 = vxor.u32 %v5100, 2147483648
    %v5111 = vmul.f32 %v5110, 1.442695
    %v5112 = vpow.pop %v5111
    %v5113 = vadd.f32 %v5112, 1.0
    %v5114 = vrcp.pop %v5113
    %v5115 = vmul.f32 1.0, %v5114
    %v5116 = vxor.u32 %v4940, 2147483648
    %v5117 = vmul.f32 %v5116, 1.442695
    %v5118 = vpow.pop %v5117
    %v5119 = vadd.f32 %v5118, 1.0
    %v5120 = vrcp.pop %v5119
    %v5121 = vmul.f32 1.0, %v5120
    %v5122 = vxor.u32 %v5101, 2147483648
    %v5123 = vmul.f32 %v5122, 1.442695
    %v5124 = vpow.pop %v5123
    %v5125 = vadd.f32 %v5124, 1.0
    %v5126 = vrcp.pop %v5125
    %v5127 = vmul.f32 1.0, %v5126
    %v5128 = vtanh.pop %v4941
    %v5129 = vtanh.pop %v5102
    %v5130 = vxor.u32 %v4942, 2147483648
    %v5131 = vmul.f32 %v5130, 1.442695
    %v5132 = vpow.pop %v5131
    %v5133 = vadd.f32 %v5132, 1.0
    %v5134 = vrcp.pop %v5133
    %v5135 = vmul.f32 1.0, %v5134
    %v5136 = vxor.u32 %v5103, 2147483648
    %v5137 = vmul.f32 %v5136, 1.442695
    %v5138 = vpow.pop %v5137
    %v5139 = vadd.f32 %v5138, 1.0
    %v5140 = vrcp.pop %v5139
    %v5141 = vmul.f32 1.0, %v5140
    %v5143 = vrot.slane %v4777, 6
    %v5145 = vmul.f32 %v5121, %v5143
    %v5146 = vmul.f32 %v5109, %v5128
    %v5147 = vadd.f32 %v5145, %v5146
    %v5149 = vrot.slane %v4780, 2
    %v5151 = vmul.f32 %v5127, %v5149
    %v5152 = vmul.f32 %v5115, %v5129
    %v5153 = vadd.f32 %v5151, %v5152
    %v5154 = vtanh.pop %v5147
    %v5155 = vmul.f32 %v5135, %v5154
    %v5156 = vtanh.pop %v5153
    %v5157 = vmul.f32 %v5141, %v5156
    %v5159 = vrot.slane %v5155, 2
    %5161 = vmatprep.subr.mxu0 %v4366
    %5162 = vmatpush1.msra.mxu0 %v4365
    %5163 = vmatprep.subr.mxu0 %v4362
    %5164 = vmatpush1.msra.mxu0 %v4361
    %5165 = vmatprep.subr.mxu0 %v4358
    %5166 = vmatpush1.msra.mxu0 %v4357
    %5167 = vmatprep.subr.mxu0 %v4354
    %5168 = vmatpush1.msra.mxu0 %v4353
    %5169 = vmatprep.subr.mxu0 %v4350
    %5170 = vmatpush1.msra.mxu0 %v4349
    %5171 = vmatprep.subr.mxu0 %v4346
    %5172 = vmatpush1.msra.mxu0 %v4345
    %5173 = vmatprep.subr.mxu0 %v4342
    %5174 = vmatpush1.msra.mxu0 %v4341
    %5175 = vmatprep.subr.mxu0 %v4338
    %5176 = vmatpush1.msra.mxu0 %v4337
    %5177 = vmatprep.subr.mxu0 %v4334
    %5178 = vmatpush1.msra.mxu0 %v4333
    %5179 = vmatprep.subr.mxu0 %v4330
    %5180 = vmatpush1.msra.mxu0 %v4329
    %5181 = vmatprep.subr.mxu0 %v4326
    %5182 = vmatpush1.msra.mxu0 %v4325
    %5183 = vmatprep.subr.mxu0 %v4322
    %5184 = vmatpush1.msra.mxu0 %v4321
    %5185 = vmatprep.subr.mxu0 %v4318
    %5186 = vmatpush1.msra.mxu0 %v4317
    %5187 = vmatprep.subr.mxu0 %v4314
    %5188 = vmatpush1.msra.mxu0 %v4313
    %5189 = vmatprep.subr.mxu0 %v4310
    %5190 = vmatpush1.msra.mxu0 %v4309
    %5191 = vmatprep.subr.mxu0 %v4306
    %5192 = vmatpush1.msra.mxu0 %v4305
    %5193 = vmatprep.subr.mxu0 0.0
    %5194 = vmatpush2.msra.mxu0 0.0
    %5195 = vmatprep.subr.mxu0 0.0
    %5196 = vmatpush2.msra.mxu0 0.0
    %5197 = vmatprep.subr.mxu0 0.0
    %5198 = vmatpush2.msra.mxu0 0.0
    %5199 = vmatprep.subr.mxu0 0.0
    %5200 = vmatpush2.msra.mxu0 0.0
    %5201 = vmatprep.subr.mxu0 0.0
    %5202 = vmatpush2.msra.mxu0 0.0
    %5203 = vmatprep.subr.mxu0 0.0
    %5204 = vmatpush2.msra.mxu0 0.0
    %5205 = vmatprep.subr.mxu0 0.0
    %5206 = vmatpush2.msra.mxu0 0.0
    %5207 = vmatprep.subr.mxu0 0.0
    %5208 = vmatpush2.msra.mxu0 0.0
    %5209 = vmatprep.subr.mxu0 0.0
    %5210 = vmatpush2.msra.mxu0 0.0
    %5211 = vmatprep.subr.mxu0 0.0
    %5212 = vmatpush2.msra.mxu0 0.0
    %5213 = vmatprep.subr.mxu0 0.0
    %5214 = vmatpush2.msra.mxu0 0.0
    %5215 = vmatprep.subr.mxu0 0.0
    %5216 = vmatpush2.msra.mxu0 0.0
    %5217 = vmatprep.subr.mxu0 0.0
    %5218 = vmatpush2.msra.mxu0 0.0
    %5219 = vmatprep.subr.mxu0 0.0
    %5220 = vmatpush2.msra.mxu0 0.0
    %5221 = vmatprep.subr.mxu0 0.0
    %5222 = vmatpush2.msra.mxu0 0.0
    %5223 = vmatprep.subr.mxu0 0.0
    %5224 = vmatpush2.msra.mxu0 0.0
    %5225 = vmatprep.mubr.f32.mxu0 0.0
    %5226 = vmatmul.mubr.f32.gmra.mxu0 %v5159
    %v5227 = vpop.f32.mrf.mxu0
    %v5228 = vadd.f32 0.0, %v5227
    %v5229 = vpop.f32.mrf.mxu0
    %v5230 = vadd.f32 0.0, %v5229
    %5231 = vdwg.mxu0
    %5232 = vmatprep.subr.mxu0 %v4368
    %5233 = vmatpush1.msra.mxu0 %v4367
    %5234 = vmatprep.subr.mxu0 %v4364
    %5235 = vmatpush1.msra.mxu0 %v4363
    %5236 = vmatprep.subr.mxu0 %v4360
    %5237 = vmatpush1.msra.mxu0 %v4359
    %5238 = vmatprep.subr.mxu0 %v4356
    %5239 = vmatpush1.msra.mxu0 %v4355
    %5240 = vmatprep.subr.mxu0 %v4352
    %5241 = vmatpush1.msra.mxu0 %v4351
    %5242 = vmatprep.subr.mxu0 %v4348
    %5243 = vmatpush1.msra.mxu0 %v4347
    %5244 = vmatprep.subr.mxu0 %v4344
    %5245 = vmatpush1.msra.mxu0 %v4343
    %5246 = vmatprep.subr.mxu0 %v4340
    %5247 = vmatpush1.msra.mxu0 %v4339
    %5248 = vmatprep.subr.mxu0 %v4336
    %5249 = vmatpush1.msra.mxu0 %v4335
    %5250 = vmatprep.subr.mxu0 %v4332
    %5251 = vmatpush1.msra.mxu0 %v4331
    %5252 = vmatprep.subr.mxu0 %v4328
    %5253 = vmatpush1.msra.mxu0 %v4327
    %5254 = vmatprep.subr.mxu0 %v4324
    %5255 = vmatpush1.msra.mxu0 %v4323
    %5256 = vmatprep.subr.mxu0 %v4320
    %5257 = vmatpush1.msra.mxu0 %v4319
    %5258 = vmatprep.subr.mxu0 %v4316
    %5259 = vmatpush1.msra.mxu0 %v4315
    %5260 = vmatprep.subr.mxu0 %v4312
    %5261 = vmatpush1.msra.mxu0 %v4311
    %5262 = vmatprep.subr.mxu0 %v4308
    %5263 = vmatpush1.msra.mxu0 %v4307
    %5264 = vmatprep.subr.mxu0 0.0
    %5265 = vmatpush2.msra.mxu0 0.0
    %5266 = vmatprep.subr.mxu0 0.0
    %5267 = vmatpush2.msra.mxu0 0.0
    %5268 = vmatprep.subr.mxu0 0.0
    %5269 = vmatpush2.msra.mxu0 0.0
    %5270 = vmatprep.subr.mxu0 0.0
    %5271 = vmatpush2.msra.mxu0 0.0
    %5272 = vmatprep.subr.mxu0 0.0
    %5273 = vmatpush2.msra.mxu0 0.0
    %5274 = vmatprep.subr.mxu0 0.0
    %5275 = vmatpush2.msra.mxu0 0.0
    %5276 = vmatprep.subr.mxu0 0.0
    %5277 = vmatpush2.msra.mxu0 0.0
    %5278 = vmatprep.subr.mxu0 0.0
    %5279 = vmatpush2.msra.mxu0 0.0
    %5280 = vmatprep.subr.mxu0 0.0
    %5281 = vmatpush2.msra.mxu0 0.0
    %5282 = vmatprep.subr.mxu0 0.0
    %5283 = vmatpush2.msra.mxu0 0.0
    %5284 = vmatprep.subr.mxu0 0.0
    %5285 = vmatpush2.msra.mxu0 0.0
    %5286 = vmatprep.subr.mxu0 0.0
    %5287 = vmatpush2.msra.mxu0 0.0
    %5288 = vmatprep.subr.mxu0 0.0
    %5289 = vmatpush2.msra.mxu0 0.0
    %5290 = vmatprep.subr.mxu0 0.0
    %5291 = vmatpush2.msra.mxu0 0.0
    %5292 = vmatprep.subr.mxu0 0.0
    %5293 = vmatpush2.msra.mxu0 0.0
    %5294 = vmatprep.subr.mxu0 0.0
    %5295 = vmatpush2.msra.mxu0 0.0
    %5296 = vmatprep.mubr.f32.mxu0 0.0
    %5297 = vmatmul.mubr.f32.gmra.mxu0 %v5159
    %v5298 = vpop.f32.mrf.mxu0
    %v5299 = vadd.f32 0.0, %v5298
    %v5300 = vpop.f32.mrf.mxu0
    %v5301 = vadd.f32 0.0, %v5300
    %5302 = vdwg.mxu0
    %v5307 = vrot.slane %v5228, 4
    %v5308 = vrot.slane %v5230, 4
    %v5309 = vrot.slane %v5299, 4
    %v5310 = vrot.slane %v5301, 4
    %v5315 = vadd.f32 %v4064, %v5307
    %v5316 = vadd.f32 %v4066, %v5308
    %v5317 = vadd.f32 %v4141, %v5309
    %v5318 = vadd.f32 %v4143, %v5310
    %v5320 = vrot.slane %v5157, 4
    %5322 = vmatprep.subr.mxu0 %v4430
    %5323 = vmatpush1.msra.mxu0 %v4429
    %5324 = vmatprep.subr.mxu0 %v4426
    %5325 = vmatpush1.msra.mxu0 %v4425
    %5326 = vmatprep.subr.mxu0 %v4422
    %5327 = vmatpush1.msra.mxu0 %v4421
    %5328 = vmatprep.subr.mxu0 %v4418
    %5329 = vmatpush1.msra.mxu0 %v4417
    %5330 = vmatprep.subr.mxu0 %v4414
    %5331 = vmatpush1.msra.mxu0 %v4413
    %5332 = vmatprep.subr.mxu0 %v4410
    %5333 = vmatpush1.msra.mxu0 %v4409
    %5334 = vmatprep.subr.mxu0 %v4406
    %5335 = vmatpush1.msra.mxu0 %v4405
    %5336 = vmatprep.subr.mxu0 %v4402
    %5337 = vmatpush1.msra.mxu0 %v4401
    %5338 = vmatprep.subr.mxu0 %v4398
    %5339 = vmatpush1.msra.mxu0 %v4397
    %5340 = vmatprep.subr.mxu0 %v4394
    %5341 = vmatpush1.msra.mxu0 %v4393
    %5342 = vmatprep.subr.mxu0 %v4390
    %5343 = vmatpush1.msra.mxu0 %v4389
    %5344 = vmatprep.subr.mxu0 %v4386
    %5345 = vmatpush1.msra.mxu0 %v4385
    %5346 = vmatprep.subr.mxu0 %v4382
    %5347 = vmatpush1.msra.mxu0 %v4381
    %5348 = vmatprep.subr.mxu0 %v4378
    %5349 = vmatpush1.msra.mxu0 %v4377
    %5350 = vmatprep.subr.mxu0 %v4374
    %5351 = vmatpush1.msra.mxu0 %v4373
    %5352 = vmatprep.subr.mxu0 %v4370
    %5353 = vmatpush1.msra.mxu0 %v4369
    %5354 = vmatprep.subr.mxu0 0.0
    %5355 = vmatpush2.msra.mxu0 0.0
    %5356 = vmatprep.subr.mxu0 0.0
    %5357 = vmatpush2.msra.mxu0 0.0
    %5358 = vmatprep.subr.mxu0 0.0
    %5359 = vmatpush2.msra.mxu0 0.0
    %5360 = vmatprep.subr.mxu0 0.0
    %5361 = vmatpush2.msra.mxu0 0.0
    %5362 = vmatprep.subr.mxu0 0.0
    %5363 = vmatpush2.msra.mxu0 0.0
    %5364 = vmatprep.subr.mxu0 0.0
    %5365 = vmatpush2.msra.mxu0 0.0
    %5366 = vmatprep.subr.mxu0 0.0
    %5367 = vmatpush2.msra.mxu0 0.0
    %5368 = vmatprep.subr.mxu0 0.0
    %5369 = vmatpush2.msra.mxu0 0.0
    %5370 = vmatprep.subr.mxu0 0.0
    %5371 = vmatpush2.msra.mxu0 0.0
    %5372 = vmatprep.subr.mxu0 0.0
    %5373 = vmatpush2.msra.mxu0 0.0
    %5374 = vmatprep.subr.mxu0 0.0
    %5375 = vmatpush2.msra.mxu0 0.0
    %5376 = vmatprep.subr.mxu0 0.0
    %5377 = vmatpush2.msra.mxu0 0.0
    %5378 = vmatprep.subr.mxu0 0.0
    %5379 = vmatpush2.msra.mxu0 0.0
    %5380 = vmatprep.subr.mxu0 0.0
    %5381 = vmatpush2.msra.mxu0 0.0
    %5382 = vmatprep.subr.mxu0 0.0
    %5383 = vmatpush2.msra.mxu0 0.0
    %5384 = vmatprep.subr.mxu0 0.0
    %5385 = vmatpush2.msra.mxu0 0.0
    %5386 = vmatprep.mubr.f32.mxu0 0.0
    %5387 = vmatmul.mubr.f32.gmra.mxu0 %v5320
    %v5388 = vpop.f32.mrf.mxu0
    %v5389 = vadd.f32 0.0, %v5388
    %v5390 = vpop.f32.mrf.mxu0
    %v5391 = vadd.f32 0.0, %v5390
    %5392 = vdwg.mxu0
    %5393 = vmatprep.subr.mxu0 %v4432
    %5394 = vmatpush1.msra.mxu0 %v4431
    %5395 = vmatprep.subr.mxu0 %v4428
    %5396 = vmatpush1.msra.mxu0 %v4427
    %5397 = vmatprep.subr.mxu0 %v4424
    %5398 = vmatpush1.msra.mxu0 %v4423
    %5399 = vmatprep.subr.mxu0 %v4420
    %5400 = vmatpush1.msra.mxu0 %v4419
    %5401 = vmatprep.subr.mxu0 %v4416
    %5402 = vmatpush1.msra.mxu0 %v4415
    %5403 = vmatprep.subr.mxu0 %v4412
    %5404 = vmatpush1.msra.mxu0 %v4411
    %5405 = vmatprep.subr.mxu0 %v4408
    %5406 = vmatpush1.msra.mxu0 %v4407
    %5407 = vmatprep.subr.mxu0 %v4404
    %5408 = vmatpush1.msra.mxu0 %v4403
    %5409 = vmatprep.subr.mxu0 %v4400
    %5410 = vmatpush1.msra.mxu0 %v4399
    %5411 = vmatprep.subr.mxu0 %v4396
    %5412 = vmatpush1.msra.mxu0 %v4395
    %5413 = vmatprep.subr.mxu0 %v4392
    %5414 = vmatpush1.msra.mxu0 %v4391
    %5415 = vmatprep.subr.mxu0 %v4388
    %5416 = vmatpush1.msra.mxu0 %v4387
    %5417 = vmatprep.subr.mxu0 %v4384
    %5418 = vmatpush1.msra.mxu0 %v4383
    %5419 = vmatprep.subr.mxu0 %v4380
    %5420 = vmatpush1.msra.mxu0 %v4379
    %5421 = vmatprep.subr.mxu0 %v4376
    %5422 = vmatpush1.msra.mxu0 %v4375
    %5423 = vmatprep.subr.mxu0 %v4372
    %5424 = vmatpush1.msra.mxu0 %v4371
    %5425 = vmatprep.subr.mxu0 0.0
    %5426 = vmatpush2.msra.mxu0 0.0
    %5427 = vmatprep.subr.mxu0 0.0
    %5428 = vmatpush2.msra.mxu0 0.0
    %5429 = vmatprep.subr.mxu0 0.0
    %5430 = vmatpush2.msra.mxu0 0.0
    %5431 = vmatprep.subr.mxu0 0.0
    %5432 = vmatpush2.msra.mxu0 0.0
    %5433 = vmatprep.subr.mxu0 0.0
    %5434 = vmatpush2.msra.mxu0 0.0
    %5435 = vmatprep.subr.mxu0 0.0
    %5436 = vmatpush2.msra.mxu0 0.0
    %5437 = vmatprep.subr.mxu0 0.0
    %5438 = vmatpush2.msra.mxu0 0.0
    %5439 = vmatprep.subr.mxu0 0.0
    %5440 = vmatpush2.msra.mxu0 0.0
    %5441 = vmatprep.subr.mxu0 0.0
    %5442 = vmatpush2.msra.mxu0 0.0
    %5443 = vmatprep.subr.mxu0 0.0
    %5444 = vmatpush2.msra.mxu0 0.0
    %5445 = vmatprep.subr.mxu0 0.0
    %5446 = vmatpush2.msra.mxu0 0.0
    %5447 = vmatprep.subr.mxu0 0.0
    %5448 = vmatpush2.msra.mxu0 0.0
    %5449 = vmatprep.subr.mxu0 0.0
    %5450 = vmatpush2.msra.mxu0 0.0
    %5451 = vmatprep.subr.mxu0 0.0
    %5452 = vmatpush2.msra.mxu0 0.0
    %5453 = vmatprep.subr.mxu0 0.0
    %5454 = vmatpush2.msra.mxu0 0.0
    %5455 = vmatprep.subr.mxu0 0.0
    %5456 = vmatpush2.msra.mxu0 0.0
    %5457 = vmatprep.mubr.f32.mxu0 0.0
    %5458 = vmatmul.mubr.f32.gmra.mxu0 %v5320
    %v5459 = vpop.f32.mrf.mxu0
    %v5460 = vadd.f32 0.0, %v5459
    %v5461 = vpop.f32.mrf.mxu0
    %v5462 = vadd.f32 0.0, %v5461
    %5463 = vdwg.mxu0
    %v5468 = vrot.slane %v5389, 6
    %v5469 = vrot.slane %v5391, 6
    %v5470 = vrot.slane %v5460, 6
    %v5471 = vrot.slane %v5462, 6
    %v5476 = vadd.f32 %v4224, %v5468
    %v5477 = vadd.f32 %v4226, %v5469
    %v5478 = vadd.f32 %v4301, %v5470
    %v5479 = vadd.f32 %v4303, %v5471
    %v5480 = vxor.u32 %v5315, 2147483648
    %v5481 = vmul.f32 %v5480, 1.442695
    %v5482 = vpow.pop %v5481
    %v5483 = vadd.f32 %v5482, 1.0
    %v5484 = vrcp.pop %v5483
    %v5485 = vmul.f32 1.0, %v5484
    %v5486 = vxor.u32 %v5476, 2147483648
    %v5487 = vmul.f32 %v5486, 1.442695
    %v5488 = vpow.pop %v5487
    %v5489 = vadd.f32 %v5488, 1.0
    %v5490 = vrcp.pop %v5489
    %v5491 = vmul.f32 1.0, %v5490
    %v5492 = vxor.u32 %v5316, 2147483648
    %v5493 = vmul.f32 %v5492, 1.442695
    %v5494 = vpow.pop %v5493
    %v5495 = vadd.f32 %v5494, 1.0
    %v5496 = vrcp.pop %v5495
    %v5497 = vmul.f32 1.0, %v5496
    %v5498 = vxor.u32 %v5477, 2147483648
    %v5499 = vmul.f32 %v5498, 1.442695
    %v5500 = vpow.pop %v5499
    %v5501 = vadd.f32 %v5500, 1.0
    %v5502 = vrcp.pop %v5501
    %v5503 = vmul.f32 1.0, %v5502
    %v5504 = vtanh.pop %v5317
    %v5505 = vtanh.pop %v5478
    %v5506 = vxor.u32 %v5318, 2147483648
    %v5507 = vmul.f32 %v5506, 1.442695
    %v5508 = vpow.pop %v5507
    %v5509 = vadd.f32 %v5508, 1.0
    %v5510 = vrcp.pop %v5509
    %v5511 = vmul.f32 1.0, %v5510
    %v5512 = vxor.u32 %v5479, 2147483648
    %v5513 = vmul.f32 %v5512, 1.442695
    %v5514 = vpow.pop %v5513
    %v5515 = vadd.f32 %v5514, 1.0
    %v5516 = vrcp.pop %v5515
    %v5517 = vmul.f32 1.0, %v5516
    %v5519 = vrot.slane %v5147, 6
    %v5521 = vmul.f32 %v5497, %v5519
    %v5522 = vmul.f32 %v5485, %v5504
    %v5523 = vadd.f32 %v5521, %v5522
    %v5525 = vrot.slane %v5153, 2
    %v5527 = vmul.f32 %v5503, %v5525
    %v5528 = vmul.f32 %v5491, %v5505
    %v5529 = vadd.f32 %v5527, %v5528
    %v5530 = vtanh.pop %v5523
    %v5531 = vmul.f32 %v5511, %v5530
    %v5532 = vtanh.pop %v5529
    %v5533 = vmul.f32 %v5517, %v5532
    %v5535 = vrot.slane %v5531, 4
    %5537 = vmatprep.subr.mxu0 %v4366
    %5538 = vmatpush1.msra.mxu0 %v4365
    %5539 = vmatprep.subr.mxu0 %v4362
    %5540 = vmatpush1.msra.mxu0 %v4361
    %5541 = vmatprep.subr.mxu0 %v4358
    %5542 = vmatpush1.msra.mxu0 %v4357
    %5543 = vmatprep.subr.mxu0 %v4354
    %5544 = vmatpush1.msra.mxu0 %v4353
    %5545 = vmatprep.subr.mxu0 %v4350
    %5546 = vmatpush1.msra.mxu0 %v4349
    %5547 = vmatprep.subr.mxu0 %v4346
    %5548 = vmatpush1.msra.mxu0 %v4345
    %5549 = vmatprep.subr.mxu0 %v4342
    %5550 = vmatpush1.msra.mxu0 %v4341
    %5551 = vmatprep.subr.mxu0 %v4338
    %5552 = vmatpush1.msra.mxu0 %v4337
    %5553 = vmatprep.subr.mxu0 %v4334
    %5554 = vmatpush1.msra.mxu0 %v4333
    %5555 = vmatprep.subr.mxu0 %v4330
    %5556 = vmatpush1.msra.mxu0 %v4329
    %5557 = vmatprep.subr.mxu0 %v4326
    %5558 = vmatpush1.msra.mxu0 %v4325
    %5559 = vmatprep.subr.mxu0 %v4322
    %5560 = vmatpush1.msra.mxu0 %v4321
    %5561 = vmatprep.subr.mxu0 %v4318
    %5562 = vmatpush1.msra.mxu0 %v4317
    %5563 = vmatprep.subr.mxu0 %v4314
    %5564 = vmatpush1.msra.mxu0 %v4313
    %5565 = vmatprep.subr.mxu0 %v4310
    %5566 = vmatpush1.msra.mxu0 %v4309
    %5567 = vmatprep.subr.mxu0 %v4306
    %5568 = vmatpush1.msra.mxu0 %v4305
    %5569 = vmatprep.subr.mxu0 0.0
    %5570 = vmatpush2.msra.mxu0 0.0
    %5571 = vmatprep.subr.mxu0 0.0
    %5572 = vmatpush2.msra.mxu0 0.0
    %5573 = vmatprep.subr.mxu0 0.0
    %5574 = vmatpush2.msra.mxu0 0.0
    %5575 = vmatprep.subr.mxu0 0.0
    %5576 = vmatpush2.msra.mxu0 0.0
    %5577 = vmatprep.subr.mxu0 0.0
    %5578 = vmatpush2.msra.mxu0 0.0
    %5579 = vmatprep.subr.mxu0 0.0
    %5580 = vmatpush2.msra.mxu0 0.0
    %5581 = vmatprep.subr.mxu0 0.0
    %5582 = vmatpush2.msra.mxu0 0.0
    %5583 = vmatprep.subr.mxu0 0.0
    %5584 = vmatpush2.msra.mxu0 0.0
    %5585 = vmatprep.subr.mxu0 0.0
    %5586 = vmatpush2.msra.mxu0 0.0
    %5587 = vmatprep.subr.mxu0 0.0
    %5588 = vmatpush2.msra.mxu0 0.0
    %5589 = vmatprep.subr.mxu0 0.0
    %5590 = vmatpush2.msra.mxu0 0.0
    %5591 = vmatprep.subr.mxu0 0.0
    %5592 = vmatpush2.msra.mxu0 0.0
    %5593 = vmatprep.subr.mxu0 0.0
    %5594 = vmatpush2.msra.mxu0 0.0
    %5595 = vmatprep.subr.mxu0 0.0
    %5596 = vmatpush2.msra.mxu0 0.0
    %5597 = vmatprep.subr.mxu0 0.0
    %5598 = vmatpush2.msra.mxu0 0.0
    %5599 = vmatprep.subr.mxu0 0.0
    %5600 = vmatpush2.msra.mxu0 0.0
    %5601 = vmatprep.mubr.f32.mxu0 0.0
    %5602 = vmatmul.mubr.f32.gmra.mxu0 %v5535
    %v5603 = vpop.f32.mrf.mxu0
    %v5604 = vadd.f32 0.0, %v5603
    %v5605 = vpop.f32.mrf.mxu0
    %v5606 = vadd.f32 0.0, %v5605
    %5607 = vdwg.mxu0
    %5608 = vmatprep.subr.mxu0 %v4368
    %5609 = vmatpush1.msra.mxu0 %v4367
    %5610 = vmatprep.subr.mxu0 %v4364
    %5611 = vmatpush1.msra.mxu0 %v4363
    %5612 = vmatprep.subr.mxu0 %v4360
    %5613 = vmatpush1.msra.mxu0 %v4359
    %5614 = vmatprep.subr.mxu0 %v4356
    %5615 = vmatpush1.msra.mxu0 %v4355
    %5616 = vmatprep.subr.mxu0 %v4352
    %5617 = vmatpush1.msra.mxu0 %v4351
    %5618 = vmatprep.subr.mxu0 %v4348
    %5619 = vmatpush1.msra.mxu0 %v4347
    %5620 = vmatprep.subr.mxu0 %v4344
    %5621 = vmatpush1.msra.mxu0 %v4343
    %5622 = vmatprep.subr.mxu0 %v4340
    %5623 = vmatpush1.msra.mxu0 %v4339
    %5624 = vmatprep.subr.mxu0 %v4336
    %5625 = vmatpush1.msra.mxu0 %v4335
    %5626 = vmatprep.subr.mxu0 %v4332
    %5627 = vmatpush1.msra.mxu0 %v4331
    %5628 = vmatprep.subr.mxu0 %v4328
    %5629 = vmatpush1.msra.mxu0 %v4327
    %5630 = vmatprep.subr.mxu0 %v4324
    %5631 = vmatpush1.msra.mxu0 %v4323
    %5632 = vmatprep.subr.mxu0 %v4320
    %5633 = vmatpush1.msra.mxu0 %v4319
    %5634 = vmatprep.subr.mxu0 %v4316
    %5635 = vmatpush1.msra.mxu0 %v4315
    %5636 = vmatprep.subr.mxu0 %v4312
    %5637 = vmatpush1.msra.mxu0 %v4311
    %5638 = vmatprep.subr.mxu0 %v4308
    %5639 = vmatpush1.msra.mxu0 %v4307
    %5640 = vmatprep.subr.mxu0 0.0
    %5641 = vmatpush2.msra.mxu0 0.0
    %5642 = vmatprep.subr.mxu0 0.0
    %5643 = vmatpush2.msra.mxu0 0.0
    %5644 = vmatprep.subr.mxu0 0.0
    %5645 = vmatpush2.msra.mxu0 0.0
    %5646 = vmatprep.subr.mxu0 0.0
    %5647 = vmatpush2.msra.mxu0 0.0
    %5648 = vmatprep.subr.mxu0 0.0
    %5649 = vmatpush2.msra.mxu0 0.0
    %5650 = vmatprep.subr.mxu0 0.0
    %5651 = vmatpush2.msra.mxu0 0.0
    %5652 = vmatprep.subr.mxu0 0.0
    %5653 = vmatpush2.msra.mxu0 0.0
    %5654 = vmatprep.subr.mxu0 0.0
    %5655 = vmatpush2.msra.mxu0 0.0
    %5656 = vmatprep.subr.mxu0 0.0
    %5657 = vmatpush2.msra.mxu0 0.0
    %5658 = vmatprep.subr.mxu0 0.0
    %5659 = vmatpush2.msra.mxu0 0.0
    %5660 = vmatprep.subr.mxu0 0.0
    %5661 = vmatpush2.msra.mxu0 0.0
    %5662 = vmatprep.subr.mxu0 0.0
    %5663 = vmatpush2.msra.mxu0 0.0
    %5664 = vmatprep.subr.mxu0 0.0
    %5665 = vmatpush2.msra.mxu0 0.0
    %5666 = vmatprep.subr.mxu0 0.0
    %5667 = vmatpush2.msra.mxu0 0.0
    %5668 = vmatprep.subr.mxu0 0.0
    %5669 = vmatpush2.msra.mxu0 0.0
    %5670 = vmatprep.subr.mxu0 0.0
    %5671 = vmatpush2.msra.mxu0 0.0
    %5672 = vmatprep.mubr.f32.mxu0 0.0
    %5673 = vmatmul.mubr.f32.gmra.mxu0 %v5535
    %v5674 = vpop.f32.mrf.mxu0
    %v5675 = vadd.f32 0.0, %v5674
    %v5676 = vpop.f32.mrf.mxu0
    %v5677 = vadd.f32 0.0, %v5676
    %5678 = vdwg.mxu0
    %v5683 = vrot.slane %v5604, 2
    %v5684 = vrot.slane %v5606, 2
    %v5685 = vrot.slane %v5675, 2
    %v5686 = vrot.slane %v5677, 2
    %v5691 = vadd.f32 %v4064, %v5683
    %v5692 = vadd.f32 %v4066, %v5684
    %v5693 = vadd.f32 %v4141, %v5685
    %v5694 = vadd.f32 %v4143, %v5686
    %v5696 = vrot.slane %v5533, 2
    %5698 = vmatprep.subr.mxu0 %v4430
    %5699 = vmatpush1.msra.mxu0 %v4429
    %5700 = vmatprep.subr.mxu0 %v4426
    %5701 = vmatpush1.msra.mxu0 %v4425
    %5702 = vmatprep.subr.mxu0 %v4422
    %5703 = vmatpush1.msra.mxu0 %v4421
    %5704 = vmatprep.subr.mxu0 %v4418
    %5705 = vmatpush1.msra.mxu0 %v4417
    %5706 = vmatprep.subr.mxu0 %v4414
    %5707 = vmatpush1.msra.mxu0 %v4413
    %5708 = vmatprep.subr.mxu0 %v4410
    %5709 = vmatpush1.msra.mxu0 %v4409
    %5710 = vmatprep.subr.mxu0 %v4406
    %5711 = vmatpush1.msra.mxu0 %v4405
    %5712 = vmatprep.subr.mxu0 %v4402
    %5713 = vmatpush1.msra.mxu0 %v4401
    %5714 = vmatprep.subr.mxu0 %v4398
    %5715 = vmatpush1.msra.mxu0 %v4397
    %5716 = vmatprep.subr.mxu0 %v4394
    %5717 = vmatpush1.msra.mxu0 %v4393
    %5718 = vmatprep.subr.mxu0 %v4390
    %5719 = vmatpush1.msra.mxu0 %v4389
    %5720 = vmatprep.subr.mxu0 %v4386
    %5721 = vmatpush1.msra.mxu0 %v4385
    %5722 = vmatprep.subr.mxu0 %v4382
    %5723 = vmatpush1.msra.mxu0 %v4381
    %5724 = vmatprep.subr.mxu0 %v4378
    %5725 = vmatpush1.msra.mxu0 %v4377
    %5726 = vmatprep.subr.mxu0 %v4374
    %5727 = vmatpush1.msra.mxu0 %v4373
    %5728 = vmatprep.subr.mxu0 %v4370
    %5729 = vmatpush1.msra.mxu0 %v4369
    %5730 = vmatprep.subr.mxu0 0.0
    %5731 = vmatpush2.msra.mxu0 0.0
    %5732 = vmatprep.subr.mxu0 0.0
    %5733 = vmatpush2.msra.mxu0 0.0
    %5734 = vmatprep.subr.mxu0 0.0
    %5735 = vmatpush2.msra.mxu0 0.0
    %5736 = vmatprep.subr.mxu0 0.0
    %5737 = vmatpush2.msra.mxu0 0.0
    %5738 = vmatprep.subr.mxu0 0.0
    %5739 = vmatpush2.msra.mxu0 0.0
    %5740 = vmatprep.subr.mxu0 0.0
    %5741 = vmatpush2.msra.mxu0 0.0
    %5742 = vmatprep.subr.mxu0 0.0
    %5743 = vmatpush2.msra.mxu0 0.0
    %5744 = vmatprep.subr.mxu0 0.0
    %5745 = vmatpush2.msra.mxu0 0.0
    %5746 = vmatprep.subr.mxu0 0.0
    %5747 = vmatpush2.msra.mxu0 0.0
    %5748 = vmatprep.subr.mxu0 0.0
    %5749 = vmatpush2.msra.mxu0 0.0
    %5750 = vmatprep.subr.mxu0 0.0
    %5751 = vmatpush2.msra.mxu0 0.0
    %5752 = vmatprep.subr.mxu0 0.0
    %5753 = vmatpush2.msra.mxu0 0.0
    %5754 = vmatprep.subr.mxu0 0.0
    %5755 = vmatpush2.msra.mxu0 0.0
    %5756 = vmatprep.subr.mxu0 0.0
    %5757 = vmatpush2.msra.mxu0 0.0
    %5758 = vmatprep.subr.mxu0 0.0
    %5759 = vmatpush2.msra.mxu0 0.0
    %5760 = vmatprep.subr.mxu0 0.0
    %5761 = vmatpush2.msra.mxu0 0.0
    %5762 = vmatprep.mubr.f32.mxu0 0.0
    %5763 = vmatmul.mubr.f32.gmra.mxu0 %v5696
    %v5764 = vpop.f32.mrf.mxu0
    %v5765 = vadd.f32 0.0, %v5764
    %v5766 = vpop.f32.mrf.mxu0
    %v5767 = vadd.f32 0.0, %v5766
    %5768 = vdwg.mxu0
    %5769 = vmatprep.subr.mxu0 %v4432
    %5770 = vmatpush1.msra.mxu0 %v4431
    %5771 = vmatprep.subr.mxu0 %v4428
    %5772 = vmatpush1.msra.mxu0 %v4427
    %5773 = vmatprep.subr.mxu0 %v4424
    %5774 = vmatpush1.msra.mxu0 %v4423
    %5775 = vmatprep.subr.mxu0 %v4420
    %5776 = vmatpush1.msra.mxu0 %v4419
    %5777 = vmatprep.subr.mxu0 %v4416
    %5778 = vmatpush1.msra.mxu0 %v4415
    %5779 = vmatprep.subr.mxu0 %v4412
    %5780 = vmatpush1.msra.mxu0 %v4411
    %5781 = vmatprep.subr.mxu0 %v4408
    %5782 = vmatpush1.msra.mxu0 %v4407
    %5783 = vmatprep.subr.mxu0 %v4404
    %5784 = vmatpush1.msra.mxu0 %v4403
    %5785 = vmatprep.subr.mxu0 %v4400
    %5786 = vmatpush1.msra.mxu0 %v4399
    %5787 = vmatprep.subr.mxu0 %v4396
    %5788 = vmatpush1.msra.mxu0 %v4395
    %5789 = vmatprep.subr.mxu0 %v4392
    %5790 = vmatpush1.msra.mxu0 %v4391
    %5791 = vmatprep.subr.mxu0 %v4388
    %5792 = vmatpush1.msra.mxu0 %v4387
    %5793 = vmatprep.subr.mxu0 %v4384
    %5794 = vmatpush1.msra.mxu0 %v4383
    %5795 = vmatprep.subr.mxu0 %v4380
    %5796 = vmatpush1.msra.mxu0 %v4379
    %5797 = vmatprep.subr.mxu0 %v4376
    %5798 = vmatpush1.msra.mxu0 %v4375
    %5799 = vmatprep.subr.mxu0 %v4372
    %5800 = vmatpush1.msra.mxu0 %v4371
    %5801 = vmatprep.subr.mxu0 0.0
    %5802 = vmatpush2.msra.mxu0 0.0
    %5803 = vmatprep.subr.mxu0 0.0
    %5804 = vmatpush2.msra.mxu0 0.0
    %5805 = vmatprep.subr.mxu0 0.0
    %5806 = vmatpush2.msra.mxu0 0.0
    %5807 = vmatprep.subr.mxu0 0.0
    %5808 = vmatpush2.msra.mxu0 0.0
    %5809 = vmatprep.subr.mxu0 0.0
    %5810 = vmatpush2.msra.mxu0 0.0
    %5811 = vmatprep.subr.mxu0 0.0
    %5812 = vmatpush2.msra.mxu0 0.0
    %5813 = vmatprep.subr.mxu0 0.0
    %5814 = vmatpush2.msra.mxu0 0.0
    %5815 = vmatprep.subr.mxu0 0.0
    %5816 = vmatpush2.msra.mxu0 0.0
    %5817 = vmatprep.subr.mxu0 0.0
    %5818 = vmatpush2.msra.mxu0 0.0
    %5819 = vmatprep.subr.mxu0 0.0
    %5820 = vmatpush2.msra.mxu0 0.0
    %5821 = vmatprep.subr.mxu0 0.0
    %5822 = vmatpush2.msra.mxu0 0.0
    %5823 = vmatprep.subr.mxu0 0.0
    %5824 = vmatpush2.msra.mxu0 0.0
    %5825 = vmatprep.subr.mxu0 0.0
    %5826 = vmatpush2.msra.mxu0 0.0
    %5827 = vmatprep.subr.mxu0 0.0
    %5828 = vmatpush2.msra.mxu0 0.0
    %5829 = vmatprep.subr.mxu0 0.0
    %5830 = vmatpush2.msra.mxu0 0.0
    %5831 = vmatprep.subr.mxu0 0.0
    %5832 = vmatpush2.msra.mxu0 0.0
    %5833 = vmatprep.mubr.f32.mxu0 0.0
    %5834 = vmatmul.mubr.f32.gmra.mxu0 %v5696
    %v5835 = vpop.f32.mrf.mxu0
    %v5836 = vadd.f32 0.0, %v5835
    %v5837 = vpop.f32.mrf.mxu0
    %v5838 = vadd.f32 0.0, %v5837
    %5839 = vdwg.mxu0
    %v5840 = vadd.f32 %v4224, %v5765
    %v5841 = vadd.f32 %v4226, %v5767
    %v5842 = vadd.f32 %v4301, %v5836
    %v5843 = vadd.f32 %v4303, %v5838
    %v5844 = vxor.u32 %v5691, 2147483648
    %v5845 = vmul.f32 %v5844, 1.442695
    %v5846 = vpow.pop %v5845
    %v5847 = vadd.f32 %v5846, 1.0
    %v5848 = vrcp.pop %v5847
    %v5849 = vmul.f32 1.0, %v5848
    %v5850 = vxor.u32 %v5840, 2147483648
    %v5851 = vmul.f32 %v5850, 1.442695
    %v5852 = vpow.pop %v5851
    %v5853 = vadd.f32 %v5852, 1.0
    %v5854 = vrcp.pop %v5853
    %v5855 = vmul.f32 1.0, %v5854
    %v5856 = vxor.u32 %v5692, 2147483648
    %v5857 = vmul.f32 %v5856, 1.442695
    %v5858 = vpow.pop %v5857
    %v5859 = vadd.f32 %v5858, 1.0
    %v5860 = vrcp.pop %v5859
    %v5861 = vmul.f32 1.0, %v5860
    %v5862 = vxor.u32 %v5841, 2147483648
    %v5863 = vmul.f32 %v5862, 1.442695
    %v5864 = vpow.pop %v5863
    %v5865 = vadd.f32 %v5864, 1.0
    %v5866 = vrcp.pop %v5865
    %v5867 = vmul.f32 1.0, %v5866
    %v5868 = vtanh.pop %v5693
    %v5869 = vtanh.pop %v5842
    %v5870 = vxor.u32 %v5694, 2147483648
    %v5871 = vmul.f32 %v5870, 1.442695
    %v5872 = vpow.pop %v5871
    %v5873 = vadd.f32 %v5872, 1.0
    %v5874 = vrcp.pop %v5873
    %v5875 = vmul.f32 1.0, %v5874
    %v5876 = vxor.u32 %v5843, 2147483648
    %v5877 = vmul.f32 %v5876, 1.442695
    %v5878 = vpow.pop %v5877
    %v5879 = vadd.f32 %v5878, 1.0
    %v5880 = vrcp.pop %v5879
    %v5881 = vmul.f32 1.0, %v5880
    %v5883 = vrot.slane %v5523, 6
    %v5885 = vmul.f32 %v5861, %v5883
    %v5886 = vmul.f32 %v5849, %v5868
    %v5887 = vadd.f32 %v5885, %v5886
    %v5889 = vrot.slane %v5529, 2
    %v5891 = vmul.f32 %v5867, %v5889
    %v5892 = vmul.f32 %v5855, %v5869
    %v5893 = vadd.f32 %v5891, %v5892
    %v5894 = vtanh.pop %v5887
    %v5895 = vmul.f32 %v5875, %v5894
    %v5896 = vtanh.pop %v5893
    %v5897 = vmul.f32 %v5881, %v5896
    %v5899 = vrot.slane %v5895, 6
    %5901 = vmatprep.subr.mxu0 %v4366
    %5902 = vmatpush1.msra.mxu0 %v4365
    %5903 = vmatprep.subr.mxu0 %v4362
    %5904 = vmatpush1.msra.mxu0 %v4361
    %5905 = vmatprep.subr.mxu0 %v4358
    %5906 = vmatpush1.msra.mxu0 %v4357
    %5907 = vmatprep.subr.mxu0 %v4354
    %5908 = vmatpush1.msra.mxu0 %v4353
    %5909 = vmatprep.subr.mxu0 %v4350
    %5910 = vmatpush1.msra.mxu0 %v4349
    %5911 = vmatprep.subr.mxu0 %v4346
    %5912 = vmatpush1.msra.mxu0 %v4345
    %5913 = vmatprep.subr.mxu0 %v4342
    %5914 = vmatpush1.msra.mxu0 %v4341
    %5915 = vmatprep.subr.mxu0 %v4338
    %5916 = vmatpush1.msra.mxu0 %v4337
    %5917 = vmatprep.subr.mxu0 %v4334
    %5918 = vmatpush1.msra.mxu0 %v4333
    %5919 = vmatprep.subr.mxu0 %v4330
    %5920 = vmatpush1.msra.mxu0 %v4329
    %5921 = vmatprep.subr.mxu0 %v4326
    %5922 = vmatpush1.msra.mxu0 %v4325
    %5923 = vmatprep.subr.mxu0 %v4322
    %5924 = vmatpush1.msra.mxu0 %v4321
    %5925 = vmatprep.subr.mxu0 %v4318
    %5926 = vmatpush1.msra.mxu0 %v4317
    %5927 = vmatprep.subr.mxu0 %v4314
    %5928 = vmatpush1.msra.mxu0 %v4313
    %5929 = vmatprep.subr.mxu0 %v4310
    %5930 = vmatpush1.msra.mxu0 %v4309
    %5931 = vmatprep.subr.mxu0 %v4306
    %5932 = vmatpush1.msra.mxu0 %v4305
    %5933 = vmatprep.subr.mxu0 0.0
    %5934 = vmatpush2.msra.mxu0 0.0
    %5935 = vmatprep.subr.mxu0 0.0
    %5936 = vmatpush2.msra.mxu0 0.0
    %5937 = vmatprep.subr.mxu0 0.0
    %5938 = vmatpush2.msra.mxu0 0.0
    %5939 = vmatprep.subr.mxu0 0.0
    %5940 = vmatpush2.msra.mxu0 0.0
    %5941 = vmatprep.subr.mxu0 0.0
    %5942 = vmatpush2.msra.mxu0 0.0
    %5943 = vmatprep.subr.mxu0 0.0
    %5944 = vmatpush2.msra.mxu0 0.0
    %5945 = vmatprep.subr.mxu0 0.0
    %5946 = vmatpush2.msra.mxu0 0.0
    %5947 = vmatprep.subr.mxu0 0.0
    %5948 = vmatpush2.msra.mxu0 0.0
    %5949 = vmatprep.subr.mxu0 0.0
    %5950 = vmatpush2.msra.mxu0 0.0
    %5951 = vmatprep.subr.mxu0 0.0
    %5952 = vmatpush2.msra.mxu0 0.0
    %5953 = vmatprep.subr.mxu0 0.0
    %5954 = vmatpush2.msra.mxu0 0.0
    %5955 = vmatprep.subr.mxu0 0.0
    %5956 = vmatpush2.msra.mxu0 0.0
    %5957 = vmatprep.subr.mxu0 0.0
    %5958 = vmatpush2.msra.mxu0 0.0
    %5959 = vmatprep.subr.mxu0 0.0
    %5960 = vmatpush2.msra.mxu0 0.0
    %5961 = vmatprep.subr.mxu0 0.0
    %5962 = vmatpush2.msra.mxu0 0.0
    %5963 = vmatprep.subr.mxu0 0.0
    %5964 = vmatpush2.msra.mxu0 0.0
    %5965 = vmatprep.mubr.f32.mxu0 0.0
    %5966 = vmatmul.mubr.f32.gmra.mxu0 %v5899
    %v5967 = vpop.f32.mrf.mxu0
    %v5968 = vadd.f32 0.0, %v5967
    %v5969 = vpop.f32.mrf.mxu0
    %v5970 = vadd.f32 0.0, %v5969
    %5971 = vdwg.mxu0
    %5972 = vmatprep.subr.mxu0 %v4368
    %5973 = vmatpush1.msra.mxu0 %v4367
    %5974 = vmatprep.subr.mxu0 %v4364
    %5975 = vmatpush1.msra.mxu0 %v4363
    %5976 = vmatprep.subr.mxu0 %v4360
    %5977 = vmatpush1.msra.mxu0 %v4359
    %5978 = vmatprep.subr.mxu0 %v4356
    %5979 = vmatpush1.msra.mxu0 %v4355
    %5980 = vmatprep.subr.mxu0 %v4352
    %5981 = vmatpush1.msra.mxu0 %v4351
    %5982 = vmatprep.subr.mxu0 %v4348
    %5983 = vmatpush1.msra.mxu0 %v4347
    %5984 = vmatprep.subr.mxu0 %v4344
    %5985 = vmatpush1.msra.mxu0 %v4343
    %5986 = vmatprep.subr.mxu0 %v4340
    %5987 = vmatpush1.msra.mxu0 %v4339
    %5988 = vmatprep.subr.mxu0 %v4336
    %5989 = vmatpush1.msra.mxu0 %v4335
    %5990 = vmatprep.subr.mxu0 %v4332
    %5991 = vmatpush1.msra.mxu0 %v4331
    %5992 = vmatprep.subr.mxu0 %v4328
    %5993 = vmatpush1.msra.mxu0 %v4327
    %5994 = vmatprep.subr.mxu0 %v4324
    %5995 = vmatpush1.msra.mxu0 %v4323
    %5996 = vmatprep.subr.mxu0 %v4320
    %5997 = vmatpush1.msra.mxu0 %v4319
    %5998 = vmatprep.subr.mxu0 %v4316
    %5999 = vmatpush1.msra.mxu0 %v4315
    %6000 = vmatprep.subr.mxu0 %v4312
    %6001 = vmatpush1.msra.mxu0 %v4311
    %6002 = vmatprep.subr.mxu0 %v4308
    %6003 = vmatpush1.msra.mxu0 %v4307
    %6004 = vmatprep.subr.mxu0 0.0
    %6005 = vmatpush2.msra.mxu0 0.0
    %6006 = vmatprep.subr.mxu0 0.0
    %6007 = vmatpush2.msra.mxu0 0.0
    %6008 = vmatprep.subr.mxu0 0.0
    %6009 = vmatpush2.msra.mxu0 0.0
    %6010 = vmatprep.subr.mxu0 0.0
    %6011 = vmatpush2.msra.mxu0 0.0
    %6012 = vmatprep.subr.mxu0 0.0
    %6013 = vmatpush2.msra.mxu0 0.0
    %6014 = vmatprep.subr.mxu0 0.0
    %6015 = vmatpush2.msra.mxu0 0.0
    %6016 = vmatprep.subr.mxu0 0.0
    %6017 = vmatpush2.msra.mxu0 0.0
    %6018 = vmatprep.subr.mxu0 0.0
    %6019 = vmatpush2.msra.mxu0 0.0
    %6020 = vmatprep.subr.mxu0 0.0
    %6021 = vmatpush2.msra.mxu0 0.0
    %6022 = vmatprep.subr.mxu0 0.0
    %6023 = vmatpush2.msra.mxu0 0.0
    %6024 = vmatprep.subr.mxu0 0.0
    %6025 = vmatpush2.msra.mxu0 0.0
    %6026 = vmatprep.subr.mxu0 0.0
    %6027 = vmatpush2.msra.mxu0 0.0
    %6028 = vmatprep.subr.mxu0 0.0
    %6029 = vmatpush2.msra.mxu0 0.0
    %6030 = vmatprep.subr.mxu0 0.0
    %6031 = vmatpush2.msra.mxu0 0.0
    %6032 = vmatprep.subr.mxu0 0.0
    %6033 = vmatpush2.msra.mxu0 0.0
    %6034 = vmatprep.subr.mxu0 0.0
    %6035 = vmatpush2.msra.mxu0 0.0
    %6036 = vmatprep.mubr.f32.mxu0 0.0
    %6037 = vmatmul.mubr.f32.gmra.mxu0 %v5899
    %v6038 = vpop.f32.mrf.mxu0
    %v6039 = vadd.f32 0.0, %v6038
    %v6040 = vpop.f32.mrf.mxu0
    %v6041 = vadd.f32 0.0, %v6040
    %6042 = vdwg.mxu0
    %v6043 = vadd.f32 %v4070, %v5968
    %v6044 = vadd.f32 %v4072, %v5970
    %v6045 = vadd.f32 %v4147, %v6039
    %v6046 = vadd.f32 %v4149, %v6041
    %6047 = vmatprep.subr.mxu0 %v4430
    %6048 = vmatpush1.msra.mxu0 %v4429
    %6049 = vmatprep.subr.mxu0 %v4426
    %6050 = vmatpush1.msra.mxu0 %v4425
    %6051 = vmatprep.subr.mxu0 %v4422
    %6052 = vmatpush1.msra.mxu0 %v4421
    %6053 = vmatprep.subr.mxu0 %v4418
    %6054 = vmatpush1.msra.mxu0 %v4417
    %6055 = vmatprep.subr.mxu0 %v4414
    %6056 = vmatpush1.msra.mxu0 %v4413
    %6057 = vmatprep.subr.mxu0 %v4410
    %6058 = vmatpush1.msra.mxu0 %v4409
    %6059 = vmatprep.subr.mxu0 %v4406
    %6060 = vmatpush1.msra.mxu0 %v4405
    %6061 = vmatprep.subr.mxu0 %v4402
    %6062 = vmatpush1.msra.mxu0 %v4401
    %6063 = vmatprep.subr.mxu0 %v4398
    %6064 = vmatpush1.msra.mxu0 %v4397
    %6065 = vmatprep.subr.mxu0 %v4394
    %6066 = vmatpush1.msra.mxu0 %v4393
    %6067 = vmatprep.subr.mxu0 %v4390
    %6068 = vmatpush1.msra.mxu0 %v4389
    %6069 = vmatprep.subr.mxu0 %v4386
    %6070 = vmatpush1.msra.mxu0 %v4385
    %6071 = vmatprep.subr.mxu0 %v4382
    %6072 = vmatpush1.msra.mxu0 %v4381
    %6073 = vmatprep.subr.mxu0 %v4378
    %6074 = vmatpush1.msra.mxu0 %v4377
    %6075 = vmatprep.subr.mxu0 %v4374
    %6076 = vmatpush1.msra.mxu0 %v4373
    %6077 = vmatprep.subr.mxu0 %v4370
    %6078 = vmatpush1.msra.mxu0 %v4369
    %6079 = vmatprep.subr.mxu0 0.0
    %6080 = vmatpush2.msra.mxu0 0.0
    %6081 = vmatprep.subr.mxu0 0.0
    %6082 = vmatpush2.msra.mxu0 0.0
    %6083 = vmatprep.subr.mxu0 0.0
    %6084 = vmatpush2.msra.mxu0 0.0
    %6085 = vmatprep.subr.mxu0 0.0
    %6086 = vmatpush2.msra.mxu0 0.0
    %6087 = vmatprep.subr.mxu0 0.0
    %6088 = vmatpush2.msra.mxu0 0.0
    %6089 = vmatprep.subr.mxu0 0.0
    %6090 = vmatpush2.msra.mxu0 0.0
    %6091 = vmatprep.subr.mxu0 0.0
    %6092 = vmatpush2.msra.mxu0 0.0
    %6093 = vmatprep.subr.mxu0 0.0
    %6094 = vmatpush2.msra.mxu0 0.0
    %6095 = vmatprep.subr.mxu0 0.0
    %6096 = vmatpush2.msra.mxu0 0.0
    %6097 = vmatprep.subr.mxu0 0.0
    %6098 = vmatpush2.msra.mxu0 0.0
    %6099 = vmatprep.subr.mxu0 0.0
    %6100 = vmatpush2.msra.mxu0 0.0
    %6101 = vmatprep.subr.mxu0 0.0
    %6102 = vmatpush2.msra.mxu0 0.0
    %6103 = vmatprep.subr.mxu0 0.0
    %6104 = vmatpush2.msra.mxu0 0.0
    %6105 = vmatprep.subr.mxu0 0.0
    %6106 = vmatpush2.msra.mxu0 0.0
    %6107 = vmatprep.subr.mxu0 0.0
    %6108 = vmatpush2.msra.mxu0 0.0
    %6109 = vmatprep.subr.mxu0 0.0
    %6110 = vmatpush2.msra.mxu0 0.0
    %6111 = vmatprep.mubr.f32.mxu0 0.0
    %6112 = vmatmul.mubr.f32.gmra.mxu0 %v5897
    %v6113 = vpop.f32.mrf.mxu0
    %v6114 = vadd.f32 0.0, %v6113
    %v6115 = vpop.f32.mrf.mxu0
    %v6116 = vadd.f32 0.0, %v6115
    %6117 = vdwg.mxu0
    %6118 = vmatprep.subr.mxu0 %v4432
    %6119 = vmatpush1.msra.mxu0 %v4431
    %6120 = vmatprep.subr.mxu0 %v4428
    %6121 = vmatpush1.msra.mxu0 %v4427
    %6122 = vmatprep.subr.mxu0 %v4424
    %6123 = vmatpush1.msra.mxu0 %v4423
    %6124 = vmatprep.subr.mxu0 %v4420
    %6125 = vmatpush1.msra.mxu0 %v4419
    %6126 = vmatprep.subr.mxu0 %v4416
    %6127 = vmatpush1.msra.mxu0 %v4415
    %6128 = vmatprep.subr.mxu0 %v4412
    %6129 = vmatpush1.msra.mxu0 %v4411
    %6130 = vmatprep.subr.mxu0 %v4408
    %6131 = vmatpush1.msra.mxu0 %v4407
    %6132 = vmatprep.subr.mxu0 %v4404
    %6133 = vmatpush1.msra.mxu0 %v4403
    %6134 = vmatprep.subr.mxu0 %v4400
    %6135 = vmatpush1.msra.mxu0 %v4399
    %6136 = vmatprep.subr.mxu0 %v4396
    %6137 = vmatpush1.msra.mxu0 %v4395
    %6138 = vmatprep.subr.mxu0 %v4392
    %6139 = vmatpush1.msra.mxu0 %v4391
    %6140 = vmatprep.subr.mxu0 %v4388
    %6141 = vmatpush1.msra.mxu0 %v4387
    %6142 = vmatprep.subr.mxu0 %v4384
    %6143 = vmatpush1.msra.mxu0 %v4383
    %6144 = vmatprep.subr.mxu0 %v4380
    %6145 = vmatpush1.msra.mxu0 %v4379
    %6146 = vmatprep.subr.mxu0 %v4376
    %6147 = vmatpush1.msra.mxu0 %v4375
    %6148 = vmatprep.subr.mxu0 %v4372
    %6149 = vmatpush1.msra.mxu0 %v4371
    %6150 = vmatprep.subr.mxu0 0.0
    %6151 = vmatpush2.msra.mxu0 0.0
    %6152 = vmatprep.subr.mxu0 0.0
    %6153 = vmatpush2.msra.mxu0 0.0
    %6154 = vmatprep.subr.mxu0 0.0
    %6155 = vmatpush2.msra.mxu0 0.0
    %6156 = vmatprep.subr.mxu0 0.0
    %6157 = vmatpush2.msra.mxu0 0.0
    %6158 = vmatprep.subr.mxu0 0.0
    %6159 = vmatpush2.msra.mxu0 0.0
    %6160 = vmatprep.subr.mxu0 0.0
    %6161 = vmatpush2.msra.mxu0 0.0
    %6162 = vmatprep.subr.mxu0 0.0
    %6163 = vmatpush2.msra.mxu0 0.0
    %6164 = vmatprep.subr.mxu0 0.0
    %6165 = vmatpush2.msra.mxu0 0.0
    %6166 = vmatprep.subr.mxu0 0.0
    %6167 = vmatpush2.msra.mxu0 0.0
    %6168 = vmatprep.subr.mxu0 0.0
    %6169 = vmatpush2.msra.mxu0 0.0
    %6170 = vmatprep.subr.mxu0 0.0
    %6171 = vmatpush2.msra.mxu0 0.0
    %6172 = vmatprep.subr.mxu0 0.0
    %6173 = vmatpush2.msra.mxu0 0.0
    %6174 = vmatprep.subr.mxu0 0.0
    %6175 = vmatpush2.msra.mxu0 0.0
    %6176 = vmatprep.subr.mxu0 0.0
    %6177 = vmatpush2.msra.mxu0 0.0
    %6178 = vmatprep.subr.mxu0 0.0
    %6179 = vmatpush2.msra.mxu0 0.0
    %6180 = vmatprep.subr.mxu0 0.0
    %6181 = vmatpush2.msra.mxu0 0.0
    %6182 = vmatprep.mubr.f32.mxu0 0.0
    %6183 = vmatmul.mubr.f32.gmra.mxu0 %v5897
    %v6184 = vpop.f32.mrf.mxu0
    %v6185 = vadd.f32 0.0, %v6184
    %v6186 = vpop.f32.mrf.mxu0
    %v6187 = vadd.f32 0.0, %v6186
    %6188 = vdwg.mxu0
    %v6193 = vrot.slane %v6114, 2
    %v6194 = vrot.slane %v6116, 2
    %v6195 = vrot.slane %v6185, 2
    %v6196 = vrot.slane %v6187, 2
    %v6201 = vadd.f32 %v4218, %v6193
    %v6202 = vadd.f32 %v4220, %v6194
    %v6203 = vadd.f32 %v4295, %v6195
    %v6204 = vadd.f32 %v4297, %v6196
    %v6205 = vxor.u32 %v6043, 2147483648
    %v6206 = vmul.f32 %v6205, 1.442695
    %v6207 = vpow.pop %v6206
    %v6208 = vadd.f32 %v6207, 1.0
    %v6209 = vrcp.pop %v6208
    %v6210 = vmul.f32 1.0, %v6209
    %v6211 = vxor.u32 %v6201, 2147483648
    %v6212 = vmul.f32 %v6211, 1.442695
    %v6213 = vpow.pop %v6212
    %v6214 = vadd.f32 %v6213, 1.0
    %v6215 = vrcp.pop %v6214
    %v6216 = vmul.f32 1.0, %v6215
    %v6217 = vxor.u32 %v6044, 2147483648
    %v6218 = vmul.f32 %v6217, 1.442695
    %v6219 = vpow.pop %v6218
    %v6220 = vadd.f32 %v6219, 1.0
    %v6221 = vrcp.pop %v6220
    %v6222 = vmul.f32 1.0, %v6221
    %v6223 = vxor.u32 %v6202, 2147483648
    %v6224 = vmul.f32 %v6223, 1.442695
    %v6225 = vpow.pop %v6224
    %v6226 = vadd.f32 %v6225, 1.0
    %v6227 = vrcp.pop %v6226
    %v6228 = vmul.f32 1.0, %v6227
    %v6229 = vtanh.pop %v6045
    %v6230 = vtanh.pop %v6203
    %v6231 = vxor.u32 %v6046, 2147483648
    %v6232 = vmul.f32 %v6231, 1.442695
    %v6233 = vpow.pop %v6232
    %v6234 = vadd.f32 %v6233, 1.0
    %v6235 = vrcp.pop %v6234
    %v6236 = vmul.f32 1.0, %v6235
    %v6237 = vxor.u32 %v6204, 2147483648
    %v6238 = vmul.f32 %v6237, 1.442695
    %v6239 = vpow.pop %v6238
    %v6240 = vadd.f32 %v6239, 1.0
    %v6241 = vrcp.pop %v6240
    %v6242 = vmul.f32 1.0, %v6241
    %v6244 = vrot.slane %v5887, 6
    %v6246 = vmul.f32 %v6222, %v6244
    %v6247 = vmul.f32 %v6210, %v6229
    %v6248 = vadd.f32 %v6246, %v6247
    %v6250 = vrot.slane %v5893, 2
    %v6252 = vmul.f32 %v6228, %v6250
    %v6253 = vmul.f32 %v6216, %v6230
    %v6254 = vadd.f32 %v6252, %v6253
    %v6255 = vtanh.pop %v6248
    %v6256 = vmul.f32 %v6236, %v6255
    %v6257 = vtanh.pop %v6254
    %v6258 = vmul.f32 %v6242, %v6257
    %6259 = vmatprep.subr.mxu0 %v4366
    %6260 = vmatpush1.msra.mxu0 %v4365
    %6261 = vmatprep.subr.mxu0 %v4362
    %6262 = vmatpush1.msra.mxu0 %v4361
    %6263 = vmatprep.subr.mxu0 %v4358
    %6264 = vmatpush1.msra.mxu0 %v4357
    %6265 = vmatprep.subr.mxu0 %v4354
    %6266 = vmatpush1.msra.mxu0 %v4353
    %6267 = vmatprep.subr.mxu0 %v4350
    %6268 = vmatpush1.msra.mxu0 %v4349
    %6269 = vmatprep.subr.mxu0 %v4346
    %6270 = vmatpush1.msra.mxu0 %v4345
    %6271 = vmatprep.subr.mxu0 %v4342
    %6272 = vmatpush1.msra.mxu0 %v4341
    %6273 = vmatprep.subr.mxu0 %v4338
    %6274 = vmatpush1.msra.mxu0 %v4337
    %6275 = vmatprep.subr.mxu0 %v4334
    %6276 = vmatpush1.msra.mxu0 %v4333
    %6277 = vmatprep.subr.mxu0 %v4330
    %6278 = vmatpush1.msra.mxu0 %v4329
    %6279 = vmatprep.subr.mxu0 %v4326
    %6280 = vmatpush1.msra.mxu0 %v4325
    %6281 = vmatprep.subr.mxu0 %v4322
    %6282 = vmatpush1.msra.mxu0 %v4321
    %6283 = vmatprep.subr.mxu0 %v4318
    %6284 = vmatpush1.msra.mxu0 %v4317
    %6285 = vmatprep.subr.mxu0 %v4314
    %6286 = vmatpush1.msra.mxu0 %v4313
    %6287 = vmatprep.subr.mxu0 %v4310
    %6288 = vmatpush1.msra.mxu0 %v4309
    %6289 = vmatprep.subr.mxu0 %v4306
    %6290 = vmatpush1.msra.mxu0 %v4305
    %6291 = vmatprep.subr.mxu0 0.0
    %6292 = vmatpush2.msra.mxu0 0.0
    %6293 = vmatprep.subr.mxu0 0.0
    %6294 = vmatpush2.msra.mxu0 0.0
    %6295 = vmatprep.subr.mxu0 0.0
    %6296 = vmatpush2.msra.mxu0 0.0
    %6297 = vmatprep.subr.mxu0 0.0
    %6298 = vmatpush2.msra.mxu0 0.0
    %6299 = vmatprep.subr.mxu0 0.0
    %6300 = vmatpush2.msra.mxu0 0.0
    %6301 = vmatprep.subr.mxu0 0.0
    %6302 = vmatpush2.msra.mxu0 0.0
    %6303 = vmatprep.subr.mxu0 0.0
    %6304 = vmatpush2.msra.mxu0 0.0
    %6305 = vmatprep.subr.mxu0 0.0
    %6306 = vmatpush2.msra.mxu0 0.0
    %6307 = vmatprep.subr.mxu0 0.0
    %6308 = vmatpush2.msra.mxu0 0.0
    %6309 = vmatprep.subr.mxu0 0.0
    %6310 = vmatpush2.msra.mxu0 0.0
    %6311 = vmatprep.subr.mxu0 0.0
    %6312 = vmatpush2.msra.mxu0 0.0
    %6313 = vmatprep.subr.mxu0 0.0
    %6314 = vmatpush2.msra.mxu0 0.0
    %6315 = vmatprep.subr.mxu0 0.0
    %6316 = vmatpush2.msra.mxu0 0.0
    %6317 = vmatprep.subr.mxu0 0.0
    %6318 = vmatpush2.msra.mxu0 0.0
    %6319 = vmatprep.subr.mxu0 0.0
    %6320 = vmatpush2.msra.mxu0 0.0
    %6321 = vmatprep.subr.mxu0 0.0
    %6322 = vmatpush2.msra.mxu0 0.0
    %6323 = vmatprep.mubr.f32.mxu0 0.0
    %6324 = vmatmul.mubr.f32.gmra.mxu0 %v6256
    %v6325 = vpop.f32.mrf.mxu0
    %v6326 = vadd.f32 0.0, %v6325
    %v6327 = vpop.f32.mrf.mxu0
    %v6328 = vadd.f32 0.0, %v6327
    %6329 = vdwg.mxu0
    %6330 = vmatprep.subr.mxu0 %v4368
    %6331 = vmatpush1.msra.mxu0 %v4367
    %6332 = vmatprep.subr.mxu0 %v4364
    %6333 = vmatpush1.msra.mxu0 %v4363
    %6334 = vmatprep.subr.mxu0 %v4360
    %6335 = vmatpush1.msra.mxu0 %v4359
    %6336 = vmatprep.subr.mxu0 %v4356
    %6337 = vmatpush1.msra.mxu0 %v4355
    %6338 = vmatprep.subr.mxu0 %v4352
    %6339 = vmatpush1.msra.mxu0 %v4351
    %6340 = vmatprep.subr.mxu0 %v4348
    %6341 = vmatpush1.msra.mxu0 %v4347
    %6342 = vmatprep.subr.mxu0 %v4344
    %6343 = vmatpush1.msra.mxu0 %v4343
    %6344 = vmatprep.subr.mxu0 %v4340
    %6345 = vmatpush1.msra.mxu0 %v4339
    %6346 = vmatprep.subr.mxu0 %v4336
    %6347 = vmatpush1.msra.mxu0 %v4335
    %6348 = vmatprep.subr.mxu0 %v4332
    %6349 = vmatpush1.msra.mxu0 %v4331
    %6350 = vmatprep.subr.mxu0 %v4328
    %6351 = vmatpush1.msra.mxu0 %v4327
    %6352 = vmatprep.subr.mxu0 %v4324
    %6353 = vmatpush1.msra.mxu0 %v4323
    %6354 = vmatprep.subr.mxu0 %v4320
    %6355 = vmatpush1.msra.mxu0 %v4319
    %6356 = vmatprep.subr.mxu0 %v4316
    %6357 = vmatpush1.msra.mxu0 %v4315
    %6358 = vmatprep.subr.mxu0 %v4312
    %6359 = vmatpush1.msra.mxu0 %v4311
    %6360 = vmatprep.subr.mxu0 %v4308
    %6361 = vmatpush1.msra.mxu0 %v4307
    %6362 = vmatprep.subr.mxu0 0.0
    %6363 = vmatpush2.msra.mxu0 0.0
    %6364 = vmatprep.subr.mxu0 0.0
    %6365 = vmatpush2.msra.mxu0 0.0
    %6366 = vmatprep.subr.mxu0 0.0
    %6367 = vmatpush2.msra.mxu0 0.0
    %6368 = vmatprep.subr.mxu0 0.0
    %6369 = vmatpush2.msra.mxu0 0.0
    %6370 = vmatprep.subr.mxu0 0.0
    %6371 = vmatpush2.msra.mxu0 0.0
    %6372 = vmatprep.subr.mxu0 0.0
    %6373 = vmatpush2.msra.mxu0 0.0
    %6374 = vmatprep.subr.mxu0 0.0
    %6375 = vmatpush2.msra.mxu0 0.0
    %6376 = vmatprep.subr.mxu0 0.0
    %6377 = vmatpush2.msra.mxu0 0.0
    %6378 = vmatprep.subr.mxu0 0.0
    %6379 = vmatpush2.msra.mxu0 0.0
    %6380 = vmatprep.subr.mxu0 0.0
    %6381 = vmatpush2.msra.mxu0 0.0
    %6382 = vmatprep.subr.mxu0 0.0
    %6383 = vmatpush2.msra.mxu0 0.0
    %6384 = vmatprep.subr.mxu0 0.0
    %6385 = vmatpush2.msra.mxu0 0.0
    %6386 = vmatprep.subr.mxu0 0.0
    %6387 = vmatpush2.msra.mxu0 0.0
    %6388 = vmatprep.subr.mxu0 0.0
    %6389 = vmatpush2.msra.mxu0 0.0
    %6390 = vmatprep.subr.mxu0 0.0
    %6391 = vmatpush2.msra.mxu0 0.0
    %6392 = vmatprep.subr.mxu0 0.0
    %6393 = vmatpush2.msra.mxu0 0.0
    %6394 = vmatprep.mubr.f32.mxu0 0.0
    %6395 = vmatmul.mubr.f32.gmra.mxu0 %v6256
    %v6396 = vpop.f32.mrf.mxu0
    %v6397 = vadd.f32 0.0, %v6396
    %v6398 = vpop.f32.mrf.mxu0
    %v6399 = vadd.f32 0.0, %v6398
    %6400 = vdwg.mxu0
    %v6405 = vrot.slane %v6326, 6
    %v6406 = vrot.slane %v6328, 6
    %v6407 = vrot.slane %v6397, 6
    %v6408 = vrot.slane %v6399, 6
    %v6413 = vadd.f32 %v4070, %v6405
    %v6414 = vadd.f32 %v4072, %v6406
    %v6415 = vadd.f32 %v4147, %v6407
    %v6416 = vadd.f32 %v4149, %v6408
    %v6418 = vrot.slane %v6258, 6
    %6420 = vmatprep.subr.mxu0 %v4430
    %6421 = vmatpush1.msra.mxu0 %v4429
    %6422 = vmatprep.subr.mxu0 %v4426
    %6423 = vmatpush1.msra.mxu0 %v4425
    %6424 = vmatprep.subr.mxu0 %v4422
    %6425 = vmatpush1.msra.mxu0 %v4421
    %6426 = vmatprep.subr.mxu0 %v4418
    %6427 = vmatpush1.msra.mxu0 %v4417
    %6428 = vmatprep.subr.mxu0 %v4414
    %6429 = vmatpush1.msra.mxu0 %v4413
    %6430 = vmatprep.subr.mxu0 %v4410
    %6431 = vmatpush1.msra.mxu0 %v4409
    %6432 = vmatprep.subr.mxu0 %v4406
    %6433 = vmatpush1.msra.mxu0 %v4405
    %6434 = vmatprep.subr.mxu0 %v4402
    %6435 = vmatpush1.msra.mxu0 %v4401
    %6436 = vmatprep.subr.mxu0 %v4398
    %6437 = vmatpush1.msra.mxu0 %v4397
    %6438 = vmatprep.subr.mxu0 %v4394
    %6439 = vmatpush1.msra.mxu0 %v4393
    %6440 = vmatprep.subr.mxu0 %v4390
    %6441 = vmatpush1.msra.mxu0 %v4389
    %6442 = vmatprep.subr.mxu0 %v4386
    %6443 = vmatpush1.msra.mxu0 %v4385
    %6444 = vmatprep.subr.mxu0 %v4382
    %6445 = vmatpush1.msra.mxu0 %v4381
    %6446 = vmatprep.subr.mxu0 %v4378
    %6447 = vmatpush1.msra.mxu0 %v4377
    %6448 = vmatprep.subr.mxu0 %v4374
    %6449 = vmatpush1.msra.mxu0 %v4373
    %6450 = vmatprep.subr.mxu0 %v4370
    %6451 = vmatpush1.msra.mxu0 %v4369
    %6452 = vmatprep.subr.mxu0 0.0
    %6453 = vmatpush2.msra.mxu0 0.0
    %6454 = vmatprep.subr.mxu0 0.0
    %6455 = vmatpush2.msra.mxu0 0.0
    %6456 = vmatprep.subr.mxu0 0.0
    %6457 = vmatpush2.msra.mxu0 0.0
    %6458 = vmatprep.subr.mxu0 0.0
    %6459 = vmatpush2.msra.mxu0 0.0
    %6460 = vmatprep.subr.mxu0 0.0
    %6461 = vmatpush2.msra.mxu0 0.0
    %6462 = vmatprep.subr.mxu0 0.0
    %6463 = vmatpush2.msra.mxu0 0.0
    %6464 = vmatprep.subr.mxu0 0.0
    %6465 = vmatpush2.msra.mxu0 0.0
    %6466 = vmatprep.subr.mxu0 0.0
    %6467 = vmatpush2.msra.mxu0 0.0
    %6468 = vmatprep.subr.mxu0 0.0
    %6469 = vmatpush2.msra.mxu0 0.0
    %6470 = vmatprep.subr.mxu0 0.0
    %6471 = vmatpush2.msra.mxu0 0.0
    %6472 = vmatprep.subr.mxu0 0.0
    %6473 = vmatpush2.msra.mxu0 0.0
    %6474 = vmatprep.subr.mxu0 0.0
    %6475 = vmatpush2.msra.mxu0 0.0
    %6476 = vmatprep.subr.mxu0 0.0
    %6477 = vmatpush2.msra.mxu0 0.0
    %6478 = vmatprep.subr.mxu0 0.0
    %6479 = vmatpush2.msra.mxu0 0.0
    %6480 = vmatprep.subr.mxu0 0.0
    %6481 = vmatpush2.msra.mxu0 0.0
    %6482 = vmatprep.subr.mxu0 0.0
    %6483 = vmatpush2.msra.mxu0 0.0
    %6484 = vmatprep.mubr.f32.mxu0 0.0
    %6485 = vmatmul.mubr.f32.gmra.mxu0 %v6418
    %v6486 = vpop.f32.mrf.mxu0
    %v6487 = vadd.f32 0.0, %v6486
    %v6488 = vpop.f32.mrf.mxu0
    %v6489 = vadd.f32 0.0, %v6488
    %6490 = vdwg.mxu0
    %6491 = vmatprep.subr.mxu0 %v4432
    %6492 = vmatpush1.msra.mxu0 %v4431
    %6493 = vmatprep.subr.mxu0 %v4428
    %6494 = vmatpush1.msra.mxu0 %v4427
    %6495 = vmatprep.subr.mxu0 %v4424
    %6496 = vmatpush1.msra.mxu0 %v4423
    %6497 = vmatprep.subr.mxu0 %v4420
    %6498 = vmatpush1.msra.mxu0 %v4419
    %6499 = vmatprep.subr.mxu0 %v4416
    %6500 = vmatpush1.msra.mxu0 %v4415
    %6501 = vmatprep.subr.mxu0 %v4412
    %6502 = vmatpush1.msra.mxu0 %v4411
    %6503 = vmatprep.subr.mxu0 %v4408
    %6504 = vmatpush1.msra.mxu0 %v4407
    %6505 = vmatprep.subr.mxu0 %v4404
    %6506 = vmatpush1.msra.mxu0 %v4403
    %6507 = vmatprep.subr.mxu0 %v4400
    %6508 = vmatpush1.msra.mxu0 %v4399
    %6509 = vmatprep.subr.mxu0 %v4396
    %6510 = vmatpush1.msra.mxu0 %v4395
    %6511 = vmatprep.subr.mxu0 %v4392
    %6512 = vmatpush1.msra.mxu0 %v4391
    %6513 = vmatprep.subr.mxu0 %v4388
    %6514 = vmatpush1.msra.mxu0 %v4387
    %6515 = vmatprep.subr.mxu0 %v4384
    %6516 = vmatpush1.msra.mxu0 %v4383
    %6517 = vmatprep.subr.mxu0 %v4380
    %6518 = vmatpush1.msra.mxu0 %v4379
    %6519 = vmatprep.subr.mxu0 %v4376
    %6520 = vmatpush1.msra.mxu0 %v4375
    %6521 = vmatprep.subr.mxu0 %v4372
    %6522 = vmatpush1.msra.mxu0 %v4371
    %6523 = vmatprep.subr.mxu0 0.0
    %6524 = vmatpush2.msra.mxu0 0.0
    %6525 = vmatprep.subr.mxu0 0.0
    %6526 = vmatpush2.msra.mxu0 0.0
    %6527 = vmatprep.subr.mxu0 0.0
    %6528 = vmatpush2.msra.mxu0 0.0
    %6529 = vmatprep.subr.mxu0 0.0
    %6530 = vmatpush2.msra.mxu0 0.0
    %6531 = vmatprep.subr.mxu0 0.0
    %6532 = vmatpush2.msra.mxu0 0.0
    %6533 = vmatprep.subr.mxu0 0.0
    %6534 = vmatpush2.msra.mxu0 0.0
    %6535 = vmatprep.subr.mxu0 0.0
    %6536 = vmatpush2.msra.mxu0 0.0
    %6537 = vmatprep.subr.mxu0 0.0
    %6538 = vmatpush2.msra.mxu0 0.0
    %6539 = vmatprep.subr.mxu0 0.0
    %6540 = vmatpush2.msra.mxu0 0.0
    %6541 = vmatprep.subr.mxu0 0.0
    %6542 = vmatpush2.msra.mxu0 0.0
    %6543 = vmatprep.subr.mxu0 0.0
    %6544 = vmatpush2.msra.mxu0 0.0
    %6545 = vmatprep.subr.mxu0 0.0
    %6546 = vmatpush2.msra.mxu0 0.0
    %6547 = vmatprep.subr.mxu0 0.0
    %6548 = vmatpush2.msra.mxu0 0.0
    %6549 = vmatprep.subr.mxu0 0.0
    %6550 = vmatpush2.msra.mxu0 0.0
    %6551 = vmatprep.subr.mxu0 0.0
    %6552 = vmatpush2.msra.mxu0 0.0
    %6553 = vmatprep.subr.mxu0 0.0
    %6554 = vmatpush2.msra.mxu0 0.0
    %6555 = vmatprep.mubr.f32.mxu0 0.0
    %6556 = vmatmul.mubr.f32.gmra.mxu0 %v6418
    %v6557 = vpop.f32.mrf.mxu0
    %v6558 = vadd.f32 0.0, %v6557
    %v6559 = vpop.f32.mrf.mxu0
    %v6560 = vadd.f32 0.0, %v6559
    %6561 = vdwg.mxu0
    %v6566 = vrot.slane %v6487, 4
    %v6567 = vrot.slane %v6489, 4
    %v6568 = vrot.slane %v6558, 4
    %v6569 = vrot.slane %v6560, 4
    %v6574 = vadd.f32 %v4218, %v6566
    %v6575 = vadd.f32 %v4220, %v6567
    %v6576 = vadd.f32 %v4295, %v6568
    %v6577 = vadd.f32 %v4297, %v6569
    %v6578 = vxor.u32 %v6413, 2147483648
    %v6579 = vmul.f32 %v6578, 1.442695
    %v6580 = vpow.pop %v6579
    %v6581 = vadd.f32 %v6580, 1.0
    %v6582 = vrcp.pop %v6581
    %v6583 = vmul.f32 1.0, %v6582
    %v6584 = vxor.u32 %v6574, 2147483648
    %v6585 = vmul.f32 %v6584, 1.442695
    %v6586 = vpow.pop %v6585
    %v6587 = vadd.f32 %v6586, 1.0
    %v6588 = vrcp.pop %v6587
    %v6589 = vmul.f32 1.0, %v6588
    %v6590 = vxor.u32 %v6414, 2147483648
    %v6591 = vmul.f32 %v6590, 1.442695
    %v6592 = vpow.pop %v6591
    %v6593 = vadd.f32 %v6592, 1.0
    %v6594 = vrcp.pop %v6593
    %v6595 = vmul.f32 1.0, %v6594
    %v6596 = vxor.u32 %v6575, 2147483648
    %v6597 = vmul.f32 %v6596, 1.442695
    %v6598 = vpow.pop %v6597
    %v6599 = vadd.f32 %v6598, 1.0
    %v6600 = vrcp.pop %v6599
    %v6601 = vmul.f32 1.0, %v6600
    %v6602 = vtanh.pop %v6415
    %v6603 = vtanh.pop %v6576
    %v6604 = vxor.u32 %v6416, 2147483648
    %v6605 = vmul.f32 %v6604, 1.442695
    %v6606 = vpow.pop %v6605
    %v6607 = vadd.f32 %v6606, 1.0
    %v6608 = vrcp.pop %v6607
    %v6609 = vmul.f32 1.0, %v6608
    %v6610 = vxor.u32 %v6577, 2147483648
    %v6611 = vmul.f32 %v6610, 1.442695
    %v6612 = vpow.pop %v6611
    %v6613 = vadd.f32 %v6612, 1.0
    %v6614 = vrcp.pop %v6613
    %v6615 = vmul.f32 1.0, %v6614
    %v6617 = vrot.slane %v6248, 6
    %v6619 = vmul.f32 %v6595, %v6617
    %v6620 = vmul.f32 %v6583, %v6602
    %v6621 = vadd.f32 %v6619, %v6620
    %v6623 = vrot.slane %v6254, 2
    %v6625 = vmul.f32 %v6601, %v6623
    %v6626 = vmul.f32 %v6589, %v6603
    %v6627 = vadd.f32 %v6625, %v6626
    %v6628 = vtanh.pop %v6621
    %v6629 = vmul.f32 %v6609, %v6628
    %v6630 = vtanh.pop %v6627
    %v6631 = vmul.f32 %v6615, %v6630
    %v6633 = vrot.slane %v6629, 2
    %6635 = vmatprep.subr.mxu0 %v4366
    %6636 = vmatpush1.msra.mxu0 %v4365
    %6637 = vmatprep.subr.mxu0 %v4362
    %6638 = vmatpush1.msra.mxu0 %v4361
    %6639 = vmatprep.subr.mxu0 %v4358
    %6640 = vmatpush1.msra.mxu0 %v4357
    %6641 = vmatprep.subr.mxu0 %v4354
    %6642 = vmatpush1.msra.mxu0 %v4353
    %6643 = vmatprep.subr.mxu0 %v4350
    %6644 = vmatpush1.msra.mxu0 %v4349
    %6645 = vmatprep.subr.mxu0 %v4346
    %6646 = vmatpush1.msra.mxu0 %v4345
    %6647 = vmatprep.subr.mxu0 %v4342
    %6648 = vmatpush1.msra.mxu0 %v4341
    %6649 = vmatprep.subr.mxu0 %v4338
    %6650 = vmatpush1.msra.mxu0 %v4337
    %6651 = vmatprep.subr.mxu0 %v4334
    %6652 = vmatpush1.msra.mxu0 %v4333
    %6653 = vmatprep.subr.mxu0 %v4330
    %6654 = vmatpush1.msra.mxu0 %v4329
    %6655 = vmatprep.subr.mxu0 %v4326
    %6656 = vmatpush1.msra.mxu0 %v4325
    %6657 = vmatprep.subr.mxu0 %v4322
    %6658 = vmatpush1.msra.mxu0 %v4321
    %6659 = vmatprep.subr.mxu0 %v4318
    %6660 = vmatpush1.msra.mxu0 %v4317
    %6661 = vmatprep.subr.mxu0 %v4314
    %6662 = vmatpush1.msra.mxu0 %v4313
    %6663 = vmatprep.subr.mxu0 %v4310
    %6664 = vmatpush1.msra.mxu0 %v4309
    %6665 = vmatprep.subr.mxu0 %v4306
    %6666 = vmatpush1.msra.mxu0 %v4305
    %6667 = vmatprep.subr.mxu0 0.0
    %6668 = vmatpush2.msra.mxu0 0.0
    %6669 = vmatprep.subr.mxu0 0.0
    %6670 = vmatpush2.msra.mxu0 0.0
    %6671 = vmatprep.subr.mxu0 0.0
    %6672 = vmatpush2.msra.mxu0 0.0
    %6673 = vmatprep.subr.mxu0 0.0
    %6674 = vmatpush2.msra.mxu0 0.0
    %6675 = vmatprep.subr.mxu0 0.0
    %6676 = vmatpush2.msra.mxu0 0.0
    %6677 = vmatprep.subr.mxu0 0.0
    %6678 = vmatpush2.msra.mxu0 0.0
    %6679 = vmatprep.subr.mxu0 0.0
    %6680 = vmatpush2.msra.mxu0 0.0
    %6681 = vmatprep.subr.mxu0 0.0
    %6682 = vmatpush2.msra.mxu0 0.0
    %6683 = vmatprep.subr.mxu0 0.0
    %6684 = vmatpush2.msra.mxu0 0.0
    %6685 = vmatprep.subr.mxu0 0.0
    %6686 = vmatpush2.msra.mxu0 0.0
    %6687 = vmatprep.subr.mxu0 0.0
    %6688 = vmatpush2.msra.mxu0 0.0
    %6689 = vmatprep.subr.mxu0 0.0
    %6690 = vmatpush2.msra.mxu0 0.0
    %6691 = vmatprep.subr.mxu0 0.0
    %6692 = vmatpush2.msra.mxu0 0.0
    %6693 = vmatprep.subr.mxu0 0.0
    %6694 = vmatpush2.msra.mxu0 0.0
    %6695 = vmatprep.subr.mxu0 0.0
    %6696 = vmatpush2.msra.mxu0 0.0
    %6697 = vmatprep.subr.mxu0 0.0
    %6698 = vmatpush2.msra.mxu0 0.0
    %6699 = vmatprep.mubr.f32.mxu0 0.0
    %6700 = vmatmul.mubr.f32.gmra.mxu0 %v6633
    %v6701 = vpop.f32.mrf.mxu0
    %v6702 = vadd.f32 0.0, %v6701
    %v6703 = vpop.f32.mrf.mxu0
    %v6704 = vadd.f32 0.0, %v6703
    %6705 = vdwg.mxu0
    %6706 = vmatprep.subr.mxu0 %v4368
    %6707 = vmatpush1.msra.mxu0 %v4367
    %6708 = vmatprep.subr.mxu0 %v4364
    %6709 = vmatpush1.msra.mxu0 %v4363
    %6710 = vmatprep.subr.mxu0 %v4360
    %6711 = vmatpush1.msra.mxu0 %v4359
    %6712 = vmatprep.subr.mxu0 %v4356
    %6713 = vmatpush1.msra.mxu0 %v4355
    %6714 = vmatprep.subr.mxu0 %v4352
    %6715 = vmatpush1.msra.mxu0 %v4351
    %6716 = vmatprep.subr.mxu0 %v4348
    %6717 = vmatpush1.msra.mxu0 %v4347
    %6718 = vmatprep.subr.mxu0 %v4344
    %6719 = vmatpush1.msra.mxu0 %v4343
    %6720 = vmatprep.subr.mxu0 %v4340
    %6721 = vmatpush1.msra.mxu0 %v4339
    %6722 = vmatprep.subr.mxu0 %v4336
    %6723 = vmatpush1.msra.mxu0 %v4335
    %6724 = vmatprep.subr.mxu0 %v4332
    %6725 = vmatpush1.msra.mxu0 %v4331
    %6726 = vmatprep.subr.mxu0 %v4328
    %6727 = vmatpush1.msra.mxu0 %v4327
    %6728 = vmatprep.subr.mxu0 %v4324
    %6729 = vmatpush1.msra.mxu0 %v4323
    %6730 = vmatprep.subr.mxu0 %v4320
    %6731 = vmatpush1.msra.mxu0 %v4319
    %6732 = vmatprep.subr.mxu0 %v4316
    %6733 = vmatpush1.msra.mxu0 %v4315
    %6734 = vmatprep.subr.mxu0 %v4312
    %6735 = vmatpush1.msra.mxu0 %v4311
    %6736 = vmatprep.subr.mxu0 %v4308
    %6737 = vmatpush1.msra.mxu0 %v4307
    %6738 = vmatprep.subr.mxu0 0.0
    %6739 = vmatpush2.msra.mxu0 0.0
    %6740 = vmatprep.subr.mxu0 0.0
    %6741 = vmatpush2.msra.mxu0 0.0
    %6742 = vmatprep.subr.mxu0 0.0
    %6743 = vmatpush2.msra.mxu0 0.0
    %6744 = vmatprep.subr.mxu0 0.0
    %6745 = vmatpush2.msra.mxu0 0.0
    %6746 = vmatprep.subr.mxu0 0.0
    %6747 = vmatpush2.msra.mxu0 0.0
    %6748 = vmatprep.subr.mxu0 0.0
    %6749 = vmatpush2.msra.mxu0 0.0
    %6750 = vmatprep.subr.mxu0 0.0
    %6751 = vmatpush2.msra.mxu0 0.0
    %6752 = vmatprep.subr.mxu0 0.0
    %6753 = vmatpush2.msra.mxu0 0.0
    %6754 = vmatprep.subr.mxu0 0.0
    %6755 = vmatpush2.msra.mxu0 0.0
    %6756 = vmatprep.subr.mxu0 0.0
    %6757 = vmatpush2.msra.mxu0 0.0
    %6758 = vmatprep.subr.mxu0 0.0
    %6759 = vmatpush2.msra.mxu0 0.0
    %6760 = vmatprep.subr.mxu0 0.0
    %6761 = vmatpush2.msra.mxu0 0.0
    %6762 = vmatprep.subr.mxu0 0.0
    %6763 = vmatpush2.msra.mxu0 0.0
    %6764 = vmatprep.subr.mxu0 0.0
    %6765 = vmatpush2.msra.mxu0 0.0
    %6766 = vmatprep.subr.mxu0 0.0
    %6767 = vmatpush2.msra.mxu0 0.0
    %6768 = vmatprep.subr.mxu0 0.0
    %6769 = vmatpush2.msra.mxu0 0.0
    %6770 = vmatprep.mubr.f32.mxu0 0.0
    %6771 = vmatmul.mubr.f32.gmra.mxu0 %v6633
    %v6772 = vpop.f32.mrf.mxu0
    %v6773 = vadd.f32 0.0, %v6772
    %v6774 = vpop.f32.mrf.mxu0
    %v6775 = vadd.f32 0.0, %v6774
    %6776 = vdwg.mxu0
    %v6781 = vrot.slane %v6702, 4
    %v6782 = vrot.slane %v6704, 4
    %v6783 = vrot.slane %v6773, 4
    %v6784 = vrot.slane %v6775, 4
    %v6789 = vadd.f32 %v4070, %v6781
    %v6790 = vadd.f32 %v4072, %v6782
    %v6791 = vadd.f32 %v4147, %v6783
    %v6792 = vadd.f32 %v4149, %v6784
    %v6794 = vrot.slane %v6631, 4
    %6796 = vmatprep.subr.mxu0 %v4430
    %6797 = vmatpush1.msra.mxu0 %v4429
    %6798 = vmatprep.subr.mxu0 %v4426
    %6799 = vmatpush1.msra.mxu0 %v4425
    %6800 = vmatprep.subr.mxu0 %v4422
    %6801 = vmatpush1.msra.mxu0 %v4421
    %6802 = vmatprep.subr.mxu0 %v4418
    %6803 = vmatpush1.msra.mxu0 %v4417
    %6804 = vmatprep.subr.mxu0 %v4414
    %6805 = vmatpush1.msra.mxu0 %v4413
    %6806 = vmatprep.subr.mxu0 %v4410
    %6807 = vmatpush1.msra.mxu0 %v4409
    %6808 = vmatprep.subr.mxu0 %v4406
    %6809 = vmatpush1.msra.mxu0 %v4405
    %6810 = vmatprep.subr.mxu0 %v4402
    %6811 = vmatpush1.msra.mxu0 %v4401
    %6812 = vmatprep.subr.mxu0 %v4398
    %6813 = vmatpush1.msra.mxu0 %v4397
    %6814 = vmatprep.subr.mxu0 %v4394
    %6815 = vmatpush1.msra.mxu0 %v4393
    %6816 = vmatprep.subr.mxu0 %v4390
    %6817 = vmatpush1.msra.mxu0 %v4389
    %6818 = vmatprep.subr.mxu0 %v4386
    %6819 = vmatpush1.msra.mxu0 %v4385
    %6820 = vmatprep.subr.mxu0 %v4382
    %6821 = vmatpush1.msra.mxu0 %v4381
    %6822 = vmatprep.subr.mxu0 %v4378
    %6823 = vmatpush1.msra.mxu0 %v4377
    %6824 = vmatprep.subr.mxu0 %v4374
    %6825 = vmatpush1.msra.mxu0 %v4373
    %6826 = vmatprep.subr.mxu0 %v4370
    %6827 = vmatpush1.msra.mxu0 %v4369
    %6828 = vmatprep.subr.mxu0 0.0
    %6829 = vmatpush2.msra.mxu0 0.0
    %6830 = vmatprep.subr.mxu0 0.0
    %6831 = vmatpush2.msra.mxu0 0.0
    %6832 = vmatprep.subr.mxu0 0.0
    %6833 = vmatpush2.msra.mxu0 0.0
    %6834 = vmatprep.subr.mxu0 0.0
    %6835 = vmatpush2.msra.mxu0 0.0
    %6836 = vmatprep.subr.mxu0 0.0
    %6837 = vmatpush2.msra.mxu0 0.0
    %6838 = vmatprep.subr.mxu0 0.0
    %6839 = vmatpush2.msra.mxu0 0.0
    %6840 = vmatprep.subr.mxu0 0.0
    %6841 = vmatpush2.msra.mxu0 0.0
    %6842 = vmatprep.subr.mxu0 0.0
    %6843 = vmatpush2.msra.mxu0 0.0
    %6844 = vmatprep.subr.mxu0 0.0
    %6845 = vmatpush2.msra.mxu0 0.0
    %6846 = vmatprep.subr.mxu0 0.0
    %6847 = vmatpush2.msra.mxu0 0.0
    %6848 = vmatprep.subr.mxu0 0.0
    %6849 = vmatpush2.msra.mxu0 0.0
    %6850 = vmatprep.subr.mxu0 0.0
    %6851 = vmatpush2.msra.mxu0 0.0
    %6852 = vmatprep.subr.mxu0 0.0
    %6853 = vmatpush2.msra.mxu0 0.0
    %6854 = vmatprep.subr.mxu0 0.0
    %6855 = vmatpush2.msra.mxu0 0.0
    %6856 = vmatprep.subr.mxu0 0.0
    %6857 = vmatpush2.msra.mxu0 0.0
    %6858 = vmatprep.subr.mxu0 0.0
    %6859 = vmatpush2.msra.mxu0 0.0
    %6860 = vmatprep.mubr.f32.mxu0 0.0
    %6861 = vmatmul.mubr.f32.gmra.mxu0 %v6794
    %v6862 = vpop.f32.mrf.mxu0
    %v6863 = vadd.f32 0.0, %v6862
    %v6864 = vpop.f32.mrf.mxu0
    %v6865 = vadd.f32 0.0, %v6864
    %6866 = vdwg.mxu0
    %6867 = vmatprep.subr.mxu0 %v4432
    %6868 = vmatpush1.msra.mxu0 %v4431
    %6869 = vmatprep.subr.mxu0 %v4428
    %6870 = vmatpush1.msra.mxu0 %v4427
    %6871 = vmatprep.subr.mxu0 %v4424
    %6872 = vmatpush1.msra.mxu0 %v4423
    %6873 = vmatprep.subr.mxu0 %v4420
    %6874 = vmatpush1.msra.mxu0 %v4419
    %6875 = vmatprep.subr.mxu0 %v4416
    %6876 = vmatpush1.msra.mxu0 %v4415
    %6877 = vmatprep.subr.mxu0 %v4412
    %6878 = vmatpush1.msra.mxu0 %v4411
    %6879 = vmatprep.subr.mxu0 %v4408
    %6880 = vmatpush1.msra.mxu0 %v4407
    %6881 = vmatprep.subr.mxu0 %v4404
    %6882 = vmatpush1.msra.mxu0 %v4403
    %6883 = vmatprep.subr.mxu0 %v4400
    %6884 = vmatpush1.msra.mxu0 %v4399
    %6885 = vmatprep.subr.mxu0 %v4396
    %6886 = vmatpush1.msra.mxu0 %v4395
    %6887 = vmatprep.subr.mxu0 %v4392
    %6888 = vmatpush1.msra.mxu0 %v4391
    %6889 = vmatprep.subr.mxu0 %v4388
    %6890 = vmatpush1.msra.mxu0 %v4387
    %6891 = vmatprep.subr.mxu0 %v4384
    %6892 = vmatpush1.msra.mxu0 %v4383
    %6893 = vmatprep.subr.mxu0 %v4380
    %6894 = vmatpush1.msra.mxu0 %v4379
    %6895 = vmatprep.subr.mxu0 %v4376
    %6896 = vmatpush1.msra.mxu0 %v4375
    %6897 = vmatprep.subr.mxu0 %v4372
    %6898 = vmatpush1.msra.mxu0 %v4371
    %6899 = vmatprep.subr.mxu0 0.0
    %6900 = vmatpush2.msra.mxu0 0.0
    %6901 = vmatprep.subr.mxu0 0.0
    %6902 = vmatpush2.msra.mxu0 0.0
    %6903 = vmatprep.subr.mxu0 0.0
    %6904 = vmatpush2.msra.mxu0 0.0
    %6905 = vmatprep.subr.mxu0 0.0
    %6906 = vmatpush2.msra.mxu0 0.0
    %6907 = vmatprep.subr.mxu0 0.0
    %6908 = vmatpush2.msra.mxu0 0.0
    %6909 = vmatprep.subr.mxu0 0.0
    %6910 = vmatpush2.msra.mxu0 0.0
    %6911 = vmatprep.subr.mxu0 0.0
    %6912 = vmatpush2.msra.mxu0 0.0
    %6913 = vmatprep.subr.mxu0 0.0
    %6914 = vmatpush2.msra.mxu0 0.0
    %6915 = vmatprep.subr.mxu0 0.0
    %6916 = vmatpush2.msra.mxu0 0.0
    %6917 = vmatprep.subr.mxu0 0.0
    %6918 = vmatpush2.msra.mxu0 0.0
    %6919 = vmatprep.subr.mxu0 0.0
    %6920 = vmatpush2.msra.mxu0 0.0
    %6921 = vmatprep.subr.mxu0 0.0
    %6922 = vmatpush2.msra.mxu0 0.0
    %6923 = vmatprep.subr.mxu0 0.0
    %6924 = vmatpush2.msra.mxu0 0.0
    %6925 = vmatprep.subr.mxu0 0.0
    %6926 = vmatpush2.msra.mxu0 0.0
    %6927 = vmatprep.subr.mxu0 0.0
    %6928 = vmatpush2.msra.mxu0 0.0
    %6929 = vmatprep.subr.mxu0 0.0
    %6930 = vmatpush2.msra.mxu0 0.0
    %6931 = vmatprep.mubr.f32.mxu0 0.0
    %6932 = vmatmul.mubr.f32.gmra.mxu0 %v6794
    %v6933 = vpop.f32.mrf.mxu0
    %v6934 = vadd.f32 0.0, %v6933
    %v6935 = vpop.f32.mrf.mxu0
    %v6936 = vadd.f32 0.0, %v6935
    %6937 = vdwg.mxu0
    %v6942 = vrot.slane %v6863, 6
    %v6943 = vrot.slane %v6865, 6
    %v6944 = vrot.slane %v6934, 6
    %v6945 = vrot.slane %v6936, 6
    %v6950 = vadd.f32 %v4218, %v6942
    %v6951 = vadd.f32 %v4220, %v6943
    %v6952 = vadd.f32 %v4295, %v6944
    %v6953 = vadd.f32 %v4297, %v6945
    %v6954 = vxor.u32 %v6789, 2147483648
    %v6955 = vmul.f32 %v6954, 1.442695
    %v6956 = vpow.pop %v6955
    %v6957 = vadd.f32 %v6956, 1.0
    %v6958 = vrcp.pop %v6957
    %v6959 = vmul.f32 1.0, %v6958
    %v6960 = vxor.u32 %v6950, 2147483648
    %v6961 = vmul.f32 %v6960, 1.442695
    %v6962 = vpow.pop %v6961
    %v6963 = vadd.f32 %v6962, 1.0
    %v6964 = vrcp.pop %v6963
    %v6965 = vmul.f32 1.0, %v6964
    %v6966 = vxor.u32 %v6790, 2147483648
    %v6967 = vmul.f32 %v6966, 1.442695
    %v6968 = vpow.pop %v6967
    %v6969 = vadd.f32 %v6968, 1.0
    %v6970 = vrcp.pop %v6969
    %v6971 = vmul.f32 1.0, %v6970
    %v6972 = vxor.u32 %v6951, 2147483648
    %v6973 = vmul.f32 %v6972, 1.442695
    %v6974 = vpow.pop %v6973
    %v6975 = vadd.f32 %v6974, 1.0
    %v6976 = vrcp.pop %v6975
    %v6977 = vmul.f32 1.0, %v6976
    %v6978 = vtanh.pop %v6791
    %v6979 = vtanh.pop %v6952
    %v6980 = vxor.u32 %v6792, 2147483648
    %v6981 = vmul.f32 %v6980, 1.442695
    %v6982 = vpow.pop %v6981
    %v6983 = vadd.f32 %v6982, 1.0
    %v6984 = vrcp.pop %v6983
    %v6985 = vmul.f32 1.0, %v6984
    %v6986 = vxor.u32 %v6953, 2147483648
    %v6987 = vmul.f32 %v6986, 1.442695
    %v6988 = vpow.pop %v6987
    %v6989 = vadd.f32 %v6988, 1.0
    %v6990 = vrcp.pop %v6989
    %v6991 = vmul.f32 1.0, %v6990
    %v6993 = vrot.slane %v6621, 6
    %v6995 = vmul.f32 %v6971, %v6993
    %v6996 = vmul.f32 %v6959, %v6978
    %v6997 = vadd.f32 %v6995, %v6996
    %v6999 = vrot.slane %v6627, 2
    %v7001 = vmul.f32 %v6977, %v6999
    %v7002 = vmul.f32 %v6965, %v6979
    %v7003 = vadd.f32 %v7001, %v7002
    %v7004 = vtanh.pop %v6997
    %v7005 = vmul.f32 %v6985, %v7004
    %v7006 = vtanh.pop %v7003
    %v7007 = vmul.f32 %v6991, %v7006
    %v7009 = vrot.slane %v7005, 4
    %7011 = vmatprep.subr.mxu0 %v4366
    %7012 = vmatpush1.msra.mxu0 %v4365
    %7013 = vmatprep.subr.mxu0 %v4362
    %7014 = vmatpush1.msra.mxu0 %v4361
    %7015 = vmatprep.subr.mxu0 %v4358
    %7016 = vmatpush1.msra.mxu0 %v4357
    %7017 = vmatprep.subr.mxu0 %v4354
    %7018 = vmatpush1.msra.mxu0 %v4353
    %7019 = vmatprep.subr.mxu0 %v4350
    %7020 = vmatpush1.msra.mxu0 %v4349
    %7021 = vmatprep.subr.mxu0 %v4346
    %7022 = vmatpush1.msra.mxu0 %v4345
    %7023 = vmatprep.subr.mxu0 %v4342
    %7024 = vmatpush1.msra.mxu0 %v4341
    %7025 = vmatprep.subr.mxu0 %v4338
    %7026 = vmatpush1.msra.mxu0 %v4337
    %7027 = vmatprep.subr.mxu0 %v4334
    %7028 = vmatpush1.msra.mxu0 %v4333
    %7029 = vmatprep.subr.mxu0 %v4330
    %7030 = vmatpush1.msra.mxu0 %v4329
    %7031 = vmatprep.subr.mxu0 %v4326
    %7032 = vmatpush1.msra.mxu0 %v4325
    %7033 = vmatprep.subr.mxu0 %v4322
    %7034 = vmatpush1.msra.mxu0 %v4321
    %7035 = vmatprep.subr.mxu0 %v4318
    %7036 = vmatpush1.msra.mxu0 %v4317
    %7037 = vmatprep.subr.mxu0 %v4314
    %7038 = vmatpush1.msra.mxu0 %v4313
    %7039 = vmatprep.subr.mxu0 %v4310
    %7040 = vmatpush1.msra.mxu0 %v4309
    %7041 = vmatprep.subr.mxu0 %v4306
    %7042 = vmatpush1.msra.mxu0 %v4305
    %7043 = vmatprep.subr.mxu0 0.0
    %7044 = vmatpush2.msra.mxu0 0.0
    %7045 = vmatprep.subr.mxu0 0.0
    %7046 = vmatpush2.msra.mxu0 0.0
    %7047 = vmatprep.subr.mxu0 0.0
    %7048 = vmatpush2.msra.mxu0 0.0
    %7049 = vmatprep.subr.mxu0 0.0
    %7050 = vmatpush2.msra.mxu0 0.0
    %7051 = vmatprep.subr.mxu0 0.0
    %7052 = vmatpush2.msra.mxu0 0.0
    %7053 = vmatprep.subr.mxu0 0.0
    %7054 = vmatpush2.msra.mxu0 0.0
    %7055 = vmatprep.subr.mxu0 0.0
    %7056 = vmatpush2.msra.mxu0 0.0
    %7057 = vmatprep.subr.mxu0 0.0
    %7058 = vmatpush2.msra.mxu0 0.0
    %7059 = vmatprep.subr.mxu0 0.0
    %7060 = vmatpush2.msra.mxu0 0.0
    %7061 = vmatprep.subr.mxu0 0.0
    %7062 = vmatpush2.msra.mxu0 0.0
    %7063 = vmatprep.subr.mxu0 0.0
    %7064 = vmatpush2.msra.mxu0 0.0
    %7065 = vmatprep.subr.mxu0 0.0
    %7066 = vmatpush2.msra.mxu0 0.0
    %7067 = vmatprep.subr.mxu0 0.0
    %7068 = vmatpush2.msra.mxu0 0.0
    %7069 = vmatprep.subr.mxu0 0.0
    %7070 = vmatpush2.msra.mxu0 0.0
    %7071 = vmatprep.subr.mxu0 0.0
    %7072 = vmatpush2.msra.mxu0 0.0
    %7073 = vmatprep.subr.mxu0 0.0
    %7074 = vmatpush2.msra.mxu0 0.0
    %7075 = vmatprep.mubr.f32.mxu0 0.0
    %7076 = vmatmul.mubr.f32.gmra.mxu0 %v7009
    %v7077 = vpop.f32.mrf.mxu0
    %v7078 = vadd.f32 0.0, %v7077
    %v7079 = vpop.f32.mrf.mxu0
    %v7080 = vadd.f32 0.0, %v7079
    %7081 = vdwg.mxu0
    %7082 = vmatprep.subr.mxu0 %v4368
    %7083 = vmatpush1.msra.mxu0 %v4367
    %7084 = vmatprep.subr.mxu0 %v4364
    %7085 = vmatpush1.msra.mxu0 %v4363
    %7086 = vmatprep.subr.mxu0 %v4360
    %7087 = vmatpush1.msra.mxu0 %v4359
    %7088 = vmatprep.subr.mxu0 %v4356
    %7089 = vmatpush1.msra.mxu0 %v4355
    %7090 = vmatprep.subr.mxu0 %v4352
    %7091 = vmatpush1.msra.mxu0 %v4351
    %7092 = vmatprep.subr.mxu0 %v4348
    %7093 = vmatpush1.msra.mxu0 %v4347
    %7094 = vmatprep.subr.mxu0 %v4344
    %7095 = vmatpush1.msra.mxu0 %v4343
    %7096 = vmatprep.subr.mxu0 %v4340
    %7097 = vmatpush1.msra.mxu0 %v4339
    %7098 = vmatprep.subr.mxu0 %v4336
    %7099 = vmatpush1.msra.mxu0 %v4335
    %7100 = vmatprep.subr.mxu0 %v4332
    %7101 = vmatpush1.msra.mxu0 %v4331
    %7102 = vmatprep.subr.mxu0 %v4328
    %7103 = vmatpush1.msra.mxu0 %v4327
    %7104 = vmatprep.subr.mxu0 %v4324
    %7105 = vmatpush1.msra.mxu0 %v4323
    %7106 = vmatprep.subr.mxu0 %v4320
    %7107 = vmatpush1.msra.mxu0 %v4319
    %7108 = vmatprep.subr.mxu0 %v4316
    %7109 = vmatpush1.msra.mxu0 %v4315
    %7110 = vmatprep.subr.mxu0 %v4312
    %7111 = vmatpush1.msra.mxu0 %v4311
    %7112 = vmatprep.subr.mxu0 %v4308
    %7113 = vmatpush1.msra.mxu0 %v4307
    %7114 = vmatprep.subr.mxu0 0.0
    %7115 = vmatpush2.msra.mxu0 0.0
    %7116 = vmatprep.subr.mxu0 0.0
    %7117 = vmatpush2.msra.mxu0 0.0
    %7118 = vmatprep.subr.mxu0 0.0
    %7119 = vmatpush2.msra.mxu0 0.0
    %7120 = vmatprep.subr.mxu0 0.0
    %7121 = vmatpush2.msra.mxu0 0.0
    %7122 = vmatprep.subr.mxu0 0.0
    %7123 = vmatpush2.msra.mxu0 0.0
    %7124 = vmatprep.subr.mxu0 0.0
    %7125 = vmatpush2.msra.mxu0 0.0
    %7126 = vmatprep.subr.mxu0 0.0
    %7127 = vmatpush2.msra.mxu0 0.0
    %7128 = vmatprep.subr.mxu0 0.0
    %7129 = vmatpush2.msra.mxu0 0.0
    %7130 = vmatprep.subr.mxu0 0.0
    %7131 = vmatpush2.msra.mxu0 0.0
    %7132 = vmatprep.subr.mxu0 0.0
    %7133 = vmatpush2.msra.mxu0 0.0
    %7134 = vmatprep.subr.mxu0 0.0
    %7135 = vmatpush2.msra.mxu0 0.0
    %7136 = vmatprep.subr.mxu0 0.0
    %7137 = vmatpush2.msra.mxu0 0.0
    %7138 = vmatprep.subr.mxu0 0.0
    %7139 = vmatpush2.msra.mxu0 0.0
    %7140 = vmatprep.subr.mxu0 0.0
    %7141 = vmatpush2.msra.mxu0 0.0
    %7142 = vmatprep.subr.mxu0 0.0
    %7143 = vmatpush2.msra.mxu0 0.0
    %7144 = vmatprep.subr.mxu0 0.0
    %7145 = vmatpush2.msra.mxu0 0.0
    %7146 = vmatprep.mubr.f32.mxu0 0.0
    %7147 = vmatmul.mubr.f32.gmra.mxu0 %v7009
    %v7148 = vpop.f32.mrf.mxu0
    %v7149 = vadd.f32 0.0, %v7148
    %v7150 = vpop.f32.mrf.mxu0
    %v7151 = vadd.f32 0.0, %v7150
    %7152 = vdwg.mxu0
    %v7157 = vrot.slane %v7078, 2
    %v7158 = vrot.slane %v7080, 2
    %v7159 = vrot.slane %v7149, 2
    %v7160 = vrot.slane %v7151, 2
    %v7165 = vadd.f32 %v4070, %v7157
    %v7166 = vadd.f32 %v4072, %v7158
    %v7167 = vadd.f32 %v4147, %v7159
    %v7168 = vadd.f32 %v4149, %v7160
    %v7170 = vrot.slane %v7007, 2
    %7172 = vmatprep.subr.mxu0 %v4430
    %7173 = vmatpush1.msra.mxu0 %v4429
    %7174 = vmatprep.subr.mxu0 %v4426
    %7175 = vmatpush1.msra.mxu0 %v4425
    %7176 = vmatprep.subr.mxu0 %v4422
    %7177 = vmatpush1.msra.mxu0 %v4421
    %7178 = vmatprep.subr.mxu0 %v4418
    %7179 = vmatpush1.msra.mxu0 %v4417
    %7180 = vmatprep.subr.mxu0 %v4414
    %7181 = vmatpush1.msra.mxu0 %v4413
    %7182 = vmatprep.subr.mxu0 %v4410
    %7183 = vmatpush1.msra.mxu0 %v4409
    %7184 = vmatprep.subr.mxu0 %v4406
    %7185 = vmatpush1.msra.mxu0 %v4405
    %7186 = vmatprep.subr.mxu0 %v4402
    %7187 = vmatpush1.msra.mxu0 %v4401
    %7188 = vmatprep.subr.mxu0 %v4398
    %7189 = vmatpush1.msra.mxu0 %v4397
    %7190 = vmatprep.subr.mxu0 %v4394
    %7191 = vmatpush1.msra.mxu0 %v4393
    %7192 = vmatprep.subr.mxu0 %v4390
    %7193 = vmatpush1.msra.mxu0 %v4389
    %7194 = vmatprep.subr.mxu0 %v4386
    %7195 = vmatpush1.msra.mxu0 %v4385
    %7196 = vmatprep.subr.mxu0 %v4382
    %7197 = vmatpush1.msra.mxu0 %v4381
    %7198 = vmatprep.subr.mxu0 %v4378
    %7199 = vmatpush1.msra.mxu0 %v4377
    %7200 = vmatprep.subr.mxu0 %v4374
    %7201 = vmatpush1.msra.mxu0 %v4373
    %7202 = vmatprep.subr.mxu0 %v4370
    %7203 = vmatpush1.msra.mxu0 %v4369
    %7204 = vmatprep.subr.mxu0 0.0
    %7205 = vmatpush2.msra.mxu0 0.0
    %7206 = vmatprep.subr.mxu0 0.0
    %7207 = vmatpush2.msra.mxu0 0.0
    %7208 = vmatprep.subr.mxu0 0.0
    %7209 = vmatpush2.msra.mxu0 0.0
    %7210 = vmatprep.subr.mxu0 0.0
    %7211 = vmatpush2.msra.mxu0 0.0
    %7212 = vmatprep.subr.mxu0 0.0
    %7213 = vmatpush2.msra.mxu0 0.0
    %7214 = vmatprep.subr.mxu0 0.0
    %7215 = vmatpush2.msra.mxu0 0.0
    %7216 = vmatprep.subr.mxu0 0.0
    %7217 = vmatpush2.msra.mxu0 0.0
    %7218 = vmatprep.subr.mxu0 0.0
    %7219 = vmatpush2.msra.mxu0 0.0
    %7220 = vmatprep.subr.mxu0 0.0
    %7221 = vmatpush2.msra.mxu0 0.0
    %7222 = vmatprep.subr.mxu0 0.0
    %7223 = vmatpush2.msra.mxu0 0.0
    %7224 = vmatprep.subr.mxu0 0.0
    %7225 = vmatpush2.msra.mxu0 0.0
    %7226 = vmatprep.subr.mxu0 0.0
    %7227 = vmatpush2.msra.mxu0 0.0
    %7228 = vmatprep.subr.mxu0 0.0
    %7229 = vmatpush2.msra.mxu0 0.0
    %7230 = vmatprep.subr.mxu0 0.0
    %7231 = vmatpush2.msra.mxu0 0.0
    %7232 = vmatprep.subr.mxu0 0.0
    %7233 = vmatpush2.msra.mxu0 0.0
    %7234 = vmatprep.subr.mxu0 0.0
    %7235 = vmatpush2.msra.mxu0 0.0
    %7236 = vmatprep.mubr.f32.mxu0 0.0
    %7237 = vmatmul.mubr.f32.gmra.mxu0 %v7170
    %v7238 = vpop.f32.mrf.mxu0
    %v7239 = vadd.f32 0.0, %v7238
    %v7240 = vpop.f32.mrf.mxu0
    %v7241 = vadd.f32 0.0, %v7240
    %7242 = vdwg.mxu0
    %7243 = vmatprep.subr.mxu0 %v4432
    %7244 = vmatpush1.msra.mxu0 %v4431
    %7245 = vmatprep.subr.mxu0 %v4428
    %7246 = vmatpush1.msra.mxu0 %v4427
    %7247 = vmatprep.subr.mxu0 %v4424
    %7248 = vmatpush1.msra.mxu0 %v4423
    %7249 = vmatprep.subr.mxu0 %v4420
    %7250 = vmatpush1.msra.mxu0 %v4419
    %7251 = vmatprep.subr.mxu0 %v4416
    %7252 = vmatpush1.msra.mxu0 %v4415
    %7253 = vmatprep.subr.mxu0 %v4412
    %7254 = vmatpush1.msra.mxu0 %v4411
    %7255 = vmatprep.subr.mxu0 %v4408
    %7256 = vmatpush1.msra.mxu0 %v4407
    %7257 = vmatprep.subr.mxu0 %v4404
    %7258 = vmatpush1.msra.mxu0 %v4403
    %7259 = vmatprep.subr.mxu0 %v4400
    %7260 = vmatpush1.msra.mxu0 %v4399
    %7261 = vmatprep.subr.mxu0 %v4396
    %7262 = vmatpush1.msra.mxu0 %v4395
    %7263 = vmatprep.subr.mxu0 %v4392
    %7264 = vmatpush1.msra.mxu0 %v4391
    %7265 = vmatprep.subr.mxu0 %v4388
    %7266 = vmatpush1.msra.mxu0 %v4387
    %7267 = vmatprep.subr.mxu0 %v4384
    %7268 = vmatpush1.msra.mxu0 %v4383
    %7269 = vmatprep.subr.mxu0 %v4380
    %7270 = vmatpush1.msra.mxu0 %v4379
    %7271 = vmatprep.subr.mxu0 %v4376
    %7272 = vmatpush1.msra.mxu0 %v4375
    %7273 = vmatprep.subr.mxu0 %v4372
    %7274 = vmatpush1.msra.mxu0 %v4371
    %7275 = vmatprep.subr.mxu0 0.0
    %7276 = vmatpush2.msra.mxu0 0.0
    %7277 = vmatprep.subr.mxu0 0.0
    %7278 = vmatpush2.msra.mxu0 0.0
    %7279 = vmatprep.subr.mxu0 0.0
    %7280 = vmatpush2.msra.mxu0 0.0
    %7281 = vmatprep.subr.mxu0 0.0
    %7282 = vmatpush2.msra.mxu0 0.0
    %7283 = vmatprep.subr.mxu0 0.0
    %7284 = vmatpush2.msra.mxu0 0.0
    %7285 = vmatprep.subr.mxu0 0.0
    %7286 = vmatpush2.msra.mxu0 0.0
    %7287 = vmatprep.subr.mxu0 0.0
    %7288 = vmatpush2.msra.mxu0 0.0
    %7289 = vmatprep.subr.mxu0 0.0
    %7290 = vmatpush2.msra.mxu0 0.0
    %7291 = vmatprep.subr.mxu0 0.0
    %7292 = vmatpush2.msra.mxu0 0.0
    %7293 = vmatprep.subr.mxu0 0.0
    %7294 = vmatpush2.msra.mxu0 0.0
    %7295 = vmatprep.subr.mxu0 0.0
    %7296 = vmatpush2.msra.mxu0 0.0
    %7297 = vmatprep.subr.mxu0 0.0
    %7298 = vmatpush2.msra.mxu0 0.0
    %7299 = vmatprep.subr.mxu0 0.0
    %7300 = vmatpush2.msra.mxu0 0.0
    %7301 = vmatprep.subr.mxu0 0.0
    %7302 = vmatpush2.msra.mxu0 0.0
    %7303 = vmatprep.subr.mxu0 0.0
    %7304 = vmatpush2.msra.mxu0 0.0
    %7305 = vmatprep.subr.mxu0 0.0
    %7306 = vmatpush2.msra.mxu0 0.0
    %7307 = vmatprep.mubr.f32.mxu0 0.0
    %7308 = vmatmul.mubr.f32.gmra.mxu0 %v7170
    %v7309 = vpop.f32.mrf.mxu0
    %v7310 = vadd.f32 0.0, %v7309
    %v7311 = vpop.f32.mrf.mxu0
    %v7312 = vadd.f32 0.0, %v7311
    %7313 = vdwg.mxu0
    %v7314 = vadd.f32 %v4218, %v7239
    %v7315 = vadd.f32 %v4220, %v7241
    %v7316 = vadd.f32 %v4295, %v7310
    %v7317 = vadd.f32 %v4297, %v7312
    %v7318 = vxor.u32 %v7165, 2147483648
    %v7319 = vmul.f32 %v7318, 1.442695
    %v7320 = vpow.pop %v7319
    %v7321 = vadd.f32 %v7320, 1.0
    %v7322 = vrcp.pop %v7321
    %v7323 = vmul.f32 1.0, %v7322
    %v7324 = vxor.u32 %v7314, 2147483648
    %v7325 = vmul.f32 %v7324, 1.442695
    %v7326 = vpow.pop %v7325
    %v7327 = vadd.f32 %v7326, 1.0
    %v7328 = vrcp.pop %v7327
    %v7329 = vmul.f32 1.0, %v7328
    %v7330 = vxor.u32 %v7166, 2147483648
    %v7331 = vmul.f32 %v7330, 1.442695
    %v7332 = vpow.pop %v7331
    %v7333 = vadd.f32 %v7332, 1.0
    %v7334 = vrcp.pop %v7333
    %v7335 = vmul.f32 1.0, %v7334
    %v7336 = vxor.u32 %v7315, 2147483648
    %v7337 = vmul.f32 %v7336, 1.442695
    %v7338 = vpow.pop %v7337
    %v7339 = vadd.f32 %v7338, 1.0
    %v7340 = vrcp.pop %v7339
    %v7341 = vmul.f32 1.0, %v7340
    %v7342 = vtanh.pop %v7167
    %v7343 = vtanh.pop %v7316
    %v7344 = vxor.u32 %v7168, 2147483648
    %v7345 = vmul.f32 %v7344, 1.442695
    %v7346 = vpow.pop %v7345
    %v7347 = vadd.f32 %v7346, 1.0
    %v7348 = vrcp.pop %v7347
    %v7349 = vmul.f32 1.0, %v7348
    %v7350 = vxor.u32 %v7317, 2147483648
    %v7351 = vmul.f32 %v7350, 1.442695
    %v7352 = vpow.pop %v7351
    %v7353 = vadd.f32 %v7352, 1.0
    %v7354 = vrcp.pop %v7353
    %v7355 = vmul.f32 1.0, %v7354
    %v7357 = vrot.slane %v6997, 6
    %v7359 = vmul.f32 %v7335, %v7357
    %v7360 = vmul.f32 %v7323, %v7342
    %v7361 = vadd.f32 %v7359, %v7360
    %v7363 = vrot.slane %v7003, 2
    %v7365 = vmul.f32 %v7341, %v7363
    %v7366 = vmul.f32 %v7329, %v7343
    %v7367 = vadd.f32 %v7365, %v7366
    %v7368 = vtanh.pop %v7361
    %v7369 = vmul.f32 %v7349, %v7368
    %v7370 = vtanh.pop %v7367
    %v7371 = vmul.f32 %v7355, %v7370
    %v7372 = vld [vmem:[#allocation13] sm:$0xff]
    %v7373 = vld [vmem:[#allocation13 + $0x8] sm:$0xff]
    %v7374 = vld [vmem:[#allocation13 + $0x10] sm:$0xff]
    %v7375 = vld [vmem:[#allocation13 + $0x18] sm:$0xff]
    %v7376 = vld [vmem:[#allocation13 + $0x20] sm:$0xff]
    %v7377 = vld [vmem:[#allocation13 + $0x28] sm:$0xff]
    %v7378 = vld [vmem:[#allocation13 + $0x30] sm:$0xff]
    %v7379 = vld [vmem:[#allocation13 + $0x38] sm:$0xff]
    %v7380 = vld [vmem:[#allocation13 + $0x40] sm:$0xff]
    %v7381 = vld [vmem:[#allocation13 + $0x48] sm:$0xff]
    %v7382 = vld [vmem:[#allocation13 + $0x50] sm:$0xff]
    %v7383 = vld [vmem:[#allocation13 + $0x58] sm:$0xff]
    %v7384 = vld [vmem:[#allocation13 + $0x60] sm:$0xff]
    %v7385 = vld [vmem:[#allocation13 + $0x68] sm:$0xff]
    %v7386 = vld [vmem:[#allocation13 + $0x70] sm:$0xff]
    %v7387 = vld [vmem:[#allocation13 + $0x78] sm:$0xff]
    %v7388 = vld [vmem:[#allocation13 + $0x80] sm:$0xff]
    %v7389 = vld [vmem:[#allocation13 + $0x88] sm:$0xff]
    %v7390 = vld [vmem:[#allocation13 + $0x90] sm:$0xff]
    %v7391 = vld [vmem:[#allocation13 + $0x98] sm:$0xff]
    %v7392 = vld [vmem:[#allocation13 + $0xa0] sm:$0xff]
    %v7393 = vld [vmem:[#allocation13 + $0xa8] sm:$0xff]
    %v7394 = vld [vmem:[#allocation13 + $0xb0] sm:$0xff]
    %v7395 = vld [vmem:[#allocation13 + $0xb8] sm:$0xff]
    %v7396 = vld [vmem:[#allocation13 + $0xc0] sm:$0xff]
    %v7397 = vld [vmem:[#allocation13 + $0xc8] sm:$0xff]
    %v7398 = vld [vmem:[#allocation13 + $0xd0] sm:$0xff]
    %v7399 = vld [vmem:[#allocation13 + $0xd8] sm:$0xff]
    %v7400 = vld [vmem:[#allocation13 + $0xe0] sm:$0xff]
    %v7401 = vld [vmem:[#allocation13 + $0xe8] sm:$0xff]
    %v7402 = vld [vmem:[#allocation13 + $0xf0] sm:$0xff]
    %v7403 = vld [vmem:[#allocation13 + $0xf8] sm:$0xff]
    %v7404 = vld [vmem:[%s10] sm:$0x1]
    %v7405 = vlaneseq
    %v7406 = vand.u32 %v7405, 127
    %vm7407 = vcmp.lt.s32.totalorder %v7406, 8
    %v7408 = vrot.slane %v5155, 1
    %v7409 = vrot.slane %v7007, 1
    %v7412 = vrot.slane %v5531, 2
    %v7413 = vrot.slane %v6631, 2
    %v7416 = vrot.slane %v5895, 3
    %v7417 = vrot.slane %v6258, 3
    %v7422 = vrot.slane %v6256, 4
    %v7423 = vrot.slane %v5897, 4
    %v7426 = vrot.slane %v6629, 5
    %v7427 = vrot.slane %v5533, 5
    %v7430 = vrot.slane %v7005, 6
    %v7431 = vrot.slane %v5157, 6
    %v7435 = vrot.slane %v7369, 7
    %v7436 = vrot.slane %v4784, 7
    %vm7439 = vcmask 1040384
    %v7440 = vsel %vm7439, %v4782, %v7408
    %v7441 = vsel %vm7439, %v7371, %v7409
    %v7442 = vsel %vm3684, %v7440, %v7412
    %v7443 = vsel %vm3684, %v7441, %v7413
    %vm7444 = vcmask 1042432
    %v7445 = vsel %vm7444, %v7442, %v7416
    %v7446 = vsel %vm7444, %v7443, %v7417
    %v7447 = vsel %vm3687, %v7445, %v7422
    %v7448 = vsel %vm3687, %v7446, %v7423
    %vm7449 = vcmask 1044480
    %v7450 = vsel %vm7449, %v7447, %v7426
    %v7451 = vsel %vm7449, %v7448, %v7427
    %v7452 = vsel %vm3690, %v7450, %v7430
    %v7453 = vsel %vm3690, %v7451, %v7431
    %vm7454 = vcmask 1046528
    %v7455 = vsel %vm7454, %v7452, %v7435
    %v7456 = vsel %vm7454, %v7453, %v7436
    %7457 = vmatprep.subr.mxu0 0.0
    %7458 = vmatpush1.xpose.msra.mxu0 0.0
    %7459 = vmatprep.subr.mxu0 0.0
    %7460 = vmatpush1.xpose.msra.mxu0 0.0
    %7461 = vmatprep.subr.mxu0 0.0
    %7462 = vmatpush1.xpose.msra.mxu0 0.0
    %7463 = vmatprep.subr.mxu0 0.0
    %7464 = vmatpush1.xpose.msra.mxu0 0.0
    %7465 = vmatprep.subr.mxu0 0.0
    %7466 = vmatpush1.xpose.msra.mxu0 0.0
    %7467 = vmatprep.subr.mxu0 0.0
    %7468 = vmatpush1.xpose.msra.mxu0 0.0
    %7469 = vmatprep.subr.mxu0 0.0
    %7470 = vmatpush1.xpose.msra.mxu0 0.0
    %7471 = vmatprep.subr.mxu0 0.0
    %7472 = vmatpush1.xpose.msra.mxu0 0.0
    %7473 = vmatprep.subr.mxu0 0.0
    %7474 = vmatpush1.xpose.msra.mxu0 0.0
    %7475 = vmatprep.subr.mxu0 0.0
    %7476 = vmatpush1.xpose.msra.mxu0 0.0
    %7477 = vmatprep.subr.mxu0 0.0
    %7478 = vmatpush1.xpose.msra.mxu0 0.0
    %7479 = vmatprep.subr.mxu0 0.0
    %7480 = vmatpush1.xpose.msra.mxu0 0.0
    %7481 = vmatprep.subr.mxu0 0.0
    %7482 = vmatpush1.xpose.msra.mxu0 0.0
    %7483 = vmatprep.subr.mxu0 0.0
    %7484 = vmatpush1.xpose.msra.mxu0 0.0
    %7485 = vmatprep.subr.mxu0 0.0
    %7486 = vmatpush1.xpose.msra.mxu0 0.0
    %7487 = vmatprep.subr.mxu0 %v7456
    %7488 = vmatpush1.xpose.msra.mxu0 %v7455
    %7489 = vmatprep.subr.mxu0 0.0
    %7490 = vmatpush2.xpose.msra.mxu0 0.0
    %7491 = vmatprep.subr.mxu0 0.0
    %7492 = vmatpush2.xpose.msra.mxu0 0.0
    %7493 = vmatprep.subr.mxu0 0.0
    %7494 = vmatpush2.xpose.msra.mxu0 0.0
    %7495 = vmatprep.subr.mxu0 0.0
    %7496 = vmatpush2.xpose.msra.mxu0 0.0
    %7497 = vmatprep.subr.mxu0 0.0
    %7498 = vmatpush2.xpose.msra.mxu0 0.0
    %7499 = vmatprep.subr.mxu0 0.0
    %7500 = vmatpush2.xpose.msra.mxu0 0.0
    %7501 = vmatprep.subr.mxu0 0.0
    %7502 = vmatpush2.xpose.msra.mxu0 0.0
    %7503 = vmatprep.subr.mxu0 0.0
    %7504 = vmatpush2.xpose.msra.mxu0 0.0
    %7505 = vmatprep.subr.mxu0 0.0
    %7506 = vmatpush2.xpose.msra.mxu0 0.0
    %7507 = vmatprep.subr.mxu0 0.0
    %7508 = vmatpush2.xpose.msra.mxu0 0.0
    %7509 = vmatprep.subr.mxu0 0.0
    %7510 = vmatpush2.xpose.msra.mxu0 0.0
    %7511 = vmatprep.subr.mxu0 0.0
    %7512 = vmatpush2.xpose.msra.mxu0 0.0
    %7513 = vmatprep.subr.mxu0 0.0
    %7514 = vmatpush2.xpose.msra.mxu0 0.0
    %7515 = vmatprep.subr.mxu0 0.0
    %7516 = vmatpush2.xpose.msra.mxu0 0.0
    %7517 = vmatprep.subr.mxu0 0.0
    %7518 = vmatpush2.xpose.msra.mxu0 0.0
    %7519 = vmatprep.subr.mxu0 0.0
    %7520 = vmatpush2.xpose.msra.mxu0 0.0
    %7521 = vmatprep.mubr.f32.mxu0 %v7456
    %7522 = vmatmul.mubr.f32.gmra.mxu0 %v7455
    %v7523 = vpop.f32.mrf.mxu0
    %v7524 = vadd.f32 0.0, %v7523
    %v7525 = vpop.f32.mrf.mxu0
    %7526 = vdwg.mxu0
    %v7527 = vmul.f32 %v7524, 0.0625
    %v7528 = vsel %vm7407, %v7527, -1e+30
    %7529 = vmax.xlane.f32.xlu0 %v7528
    %v7530 = vpop.xlane.xlu0 %7529
    %v7531 = vsub.f32 %v7528, %v7530
    %v7532 = vmul.f32 %v7531, 1.442695
    %v7533 = vpow.pop %v7532
    %7534 = vadd.xlane.f32.xlu0 %v7533
    %v7535 = vpop.xlane.xlu0 %7534
    %v7536 = vrcp.pop %v7535
    %v7537 = vmul.f32 %v7533, %v7536
    %7538 = vst [vmem:[#allocation14] sm:$0xff] %v7537
    %v7539 = vrot.slane %v7537, 4
    %v7540 = vadd.f32 %v7537, %v7539
    %v7541 = vrot.slane %v7540, 2
    %v7542 = vadd.f32 %v7540, %v7541
    %v7543 = vrot.slane %v7542, 1
    %v7544 = vadd.f32 %v7542, %v7543
    %7545 = vmatprep.subr.mxu0 0.0
    %7546 = vmatpush1.msra.mxu0 0.0
    %7547 = vmatprep.subr.mxu0 0.0
    %7548 = vmatpush1.msra.mxu0 0.0
    %7549 = vmatprep.subr.mxu0 0.0
    %7550 = vmatpush1.msra.mxu0 0.0
    %7551 = vmatprep.subr.mxu0 0.0
    %7552 = vmatpush1.msra.mxu0 0.0
    %7553 = vmatprep.subr.mxu0 0.0
    %7554 = vmatpush1.msra.mxu0 0.0
    %7555 = vmatprep.subr.mxu0 0.0
    %7556 = vmatpush1.msra.mxu0 0.0
    %7557 = vmatprep.subr.mxu0 0.0
    %7558 = vmatpush1.msra.mxu0 0.0
    %7559 = vmatprep.subr.mxu0 0.0
    %7560 = vmatpush1.msra.mxu0 0.0
    %7561 = vmatprep.subr.mxu0 0.0
    %7562 = vmatpush1.msra.mxu0 0.0
    %7563 = vmatprep.subr.mxu0 0.0
    %7564 = vmatpush1.msra.mxu0 0.0
    %7565 = vmatprep.subr.mxu0 0.0
    %7566 = vmatpush1.msra.mxu0 0.0
    %7567 = vmatprep.subr.mxu0 0.0
    %7568 = vmatpush1.msra.mxu0 0.0
    %7569 = vmatprep.subr.mxu0 0.0
    %7570 = vmatpush1.msra.mxu0 0.0
    %7571 = vmatprep.subr.mxu0 0.0
    %7572 = vmatpush1.msra.mxu0 0.0
    %7573 = vmatprep.subr.mxu0 0.0
    %7574 = vmatpush1.msra.mxu0 0.0
    %7575 = vmatprep.subr.mxu0 %v7456
    %7576 = vmatpush1.msra.mxu0 %v7455
    %7577 = vmatprep.subr.mxu0 0.0
    %7578 = vmatpush2.msra.mxu0 0.0
    %7579 = vmatprep.subr.mxu0 0.0
    %7580 = vmatpush2.msra.mxu0 0.0
    %7581 = vmatprep.subr.mxu0 0.0
    %7582 = vmatpush2.msra.mxu0 0.0
    %7583 = vmatprep.subr.mxu0 0.0
    %7584 = vmatpush2.msra.mxu0 0.0
    %7585 = vmatprep.subr.mxu0 0.0
    %7586 = vmatpush2.msra.mxu0 0.0
    %7587 = vmatprep.subr.mxu0 0.0
    %7588 = vmatpush2.msra.mxu0 0.0
    %7589 = vmatprep.subr.mxu0 0.0
    %7590 = vmatpush2.msra.mxu0 0.0
    %7591 = vmatprep.subr.mxu0 0.0
    %7592 = vmatpush2.msra.mxu0 0.0
    %7593 = vmatprep.subr.mxu0 0.0
    %7594 = vmatpush2.msra.mxu0 0.0
    %7595 = vmatprep.subr.mxu0 0.0
    %7596 = vmatpush2.msra.mxu0 0.0
    %7597 = vmatprep.subr.mxu0 0.0
    %7598 = vmatpush2.msra.mxu0 0.0
    %7599 = vmatprep.subr.mxu0 0.0
    %7600 = vmatpush2.msra.mxu0 0.0
    %7601 = vmatprep.subr.mxu0 0.0
    %7602 = vmatpush2.msra.mxu0 0.0
    %7603 = vmatprep.subr.mxu0 0.0
    %7604 = vmatpush2.msra.mxu0 0.0
    %7605 = vmatprep.subr.mxu0 0.0
    %7606 = vmatpush2.msra.mxu0 0.0
    %7607 = vmatprep.subr.mxu0 0.0
    %7608 = vmatpush2.msra.mxu0 0.0
    %7609 = vmatprep.mubr.f32.mxu0 0.0
    %7610 = vmatmul.mubr.f32.gmra.mxu0 %v7544
    %v7611 = vpop.f32.mrf.mxu0
    %v7612 = vadd.f32 0.0, %v7611
    %v7613 = vpop.f32.mrf.mxu0
    %v7614 = vadd.f32 0.0, %v7613
    %7615 = vdwg.mxu0
    %7616 = vmatprep.subr.mxu0 0.0
    %7617 = vmatpush1.msra.mxu0 %v7387
    %7618 = vmatprep.subr.mxu0 0.0
    %7619 = vmatpush1.msra.mxu0 %v7386
    %7620 = vmatprep.subr.mxu0 0.0
    %7621 = vmatpush1.msra.mxu0 %v7385
    %7622 = vmatprep.subr.mxu0 0.0
    %7623 = vmatpush1.msra.mxu0 %v7384
    %7624 = vmatprep.subr.mxu0 0.0
    %7625 = vmatpush1.msra.mxu0 %v7383
    %7626 = vmatprep.subr.mxu0 0.0
    %7627 = vmatpush1.msra.mxu0 %v7382
    %7628 = vmatprep.subr.mxu0 0.0
    %7629 = vmatpush1.msra.mxu0 %v7381
    %7630 = vmatprep.subr.mxu0 0.0
    %7631 = vmatpush1.msra.mxu0 %v7380
    %7632 = vmatprep.subr.mxu0 0.0
    %7633 = vmatpush1.msra.mxu0 %v7379
    %7634 = vmatprep.subr.mxu0 0.0
    %7635 = vmatpush1.msra.mxu0 %v7378
    %7636 = vmatprep.subr.mxu0 0.0
    %7637 = vmatpush1.msra.mxu0 %v7377
    %7638 = vmatprep.subr.mxu0 0.0
    %7639 = vmatpush1.msra.mxu0 %v7376
    %7640 = vmatprep.subr.mxu0 0.0
    %7641 = vmatpush1.msra.mxu0 %v7375
    %7642 = vmatprep.subr.mxu0 0.0
    %7643 = vmatpush1.msra.mxu0 %v7374
    %7644 = vmatprep.subr.mxu0 0.0
    %7645 = vmatpush1.msra.mxu0 %v7373
    %7646 = vmatprep.subr.mxu0 0.0
    %7647 = vmatpush1.msra.mxu0 %v7372
    %7648 = vmatprep.subr.mxu0 0.0
    %7649 = vmatpush2.msra.mxu0 %v7403
    %7650 = vmatprep.subr.mxu0 0.0
    %7651 = vmatpush2.msra.mxu0 %v7402
    %7652 = vmatprep.subr.mxu0 0.0
    %7653 = vmatpush2.msra.mxu0 %v7401
    %7654 = vmatprep.subr.mxu0 0.0
    %7655 = vmatpush2.msra.mxu0 %v7400
    %7656 = vmatprep.subr.mxu0 0.0
    %7657 = vmatpush2.msra.mxu0 %v7399
    %7658 = vmatprep.subr.mxu0 0.0
    %7659 = vmatpush2.msra.mxu0 %v7398
    %7660 = vmatprep.subr.mxu0 0.0
    %7661 = vmatpush2.msra.mxu0 %v7397
    %7662 = vmatprep.subr.mxu0 0.0
    %7663 = vmatpush2.msra.mxu0 %v7396
    %7664 = vmatprep.subr.mxu0 0.0
    %7665 = vmatpush2.msra.mxu0 %v7395
    %7666 = vmatprep.subr.mxu0 0.0
    %7667 = vmatpush2.msra.mxu0 %v7394
    %7668 = vmatprep.subr.mxu0 0.0
    %7669 = vmatpush2.msra.mxu0 %v7393
    %7670 = vmatprep.subr.mxu0 0.0
    %7671 = vmatpush2.msra.mxu0 %v7392
    %7672 = vmatprep.subr.mxu0 0.0
    %7673 = vmatpush2.msra.mxu0 %v7391
    %7674 = vmatprep.subr.mxu0 0.0
    %7675 = vmatpush2.msra.mxu0 %v7390
    %7676 = vmatprep.subr.mxu0 0.0
    %7677 = vmatpush2.msra.mxu0 %v7389
    %7678 = vmatprep.subr.mxu0 0.0
    %7679 = vmatpush2.msra.mxu0 %v7388
    %7680 = vmatprep.mubr.f32.mxu0 %v7614
    %7681 = vmatmul.mubr.f32.gmra.mxu0 %v7612
    %v7682 = vpop.f32.mrf.mxu0
    %v7683 = vadd.f32 %v7404, %v7682
    %v7684 = vpop.f32.mrf.mxu0
    %7685 = vdwg.mxu0
    %v7688 = vrot.slane %v4782, 1
    %v7689 = vrot.slane %v7371, 1
    %v7692 = vrot.slane %v5531, 3
    %v7693 = vrot.slane %v6631, 3
    %v7696 = vrot.slane %v5895, 4
    %v7697 = vrot.slane %v6258, 4
    %v7700 = vrot.slane %v6256, 5
    %v7701 = vrot.slane %v5897, 5
    %v7704 = vrot.slane %v6629, 6
    %v7705 = vrot.slane %v5533, 6
    %v7708 = vrot.slane %v7005, 7
    %v7709 = vrot.slane %v5157, 7
    %v7712 = vsel %vm7439, %v7688, %v5159
    %v7713 = vsel %vm7439, %v7689, %v7170
    %v7714 = vsel %vm3684, %v7712, %v7692
    %v7715 = vsel %vm3684, %v7713, %v7693
    %v7716 = vsel %vm7444, %v7714, %v7696
    %v7717 = vsel %vm7444, %v7715, %v7697
    %v7718 = vsel %vm3687, %v7716, %v7700
    %v7719 = vsel %vm3687, %v7717, %v7701
    %v7720 = vsel %vm7449, %v7718, %v7704
    %v7721 = vsel %vm7449, %v7719, %v7705
    %v7722 = vsel %vm3690, %v7720, %v7708
    %v7723 = vsel %vm3690, %v7721, %v7709
    %v7724 = vsel %vm7454, %v7722, %v7369
    %v7725 = vsel %vm7454, %v7723, %v4784
    %7726 = vmatprep.subr.mxu0 0.0
    %7727 = vmatpush1.xpose.msra.mxu0 0.0
    %7728 = vmatprep.subr.mxu0 0.0
    %7729 = vmatpush1.xpose.msra.mxu0 0.0
    %7730 = vmatprep.subr.mxu0 0.0
    %7731 = vmatpush1.xpose.msra.mxu0 0.0
    %7732 = vmatprep.subr.mxu0 0.0
    %7733 = vmatpush1.xpose.msra.mxu0 0.0
    %7734 = vmatprep.subr.mxu0 0.0
    %7735 = vmatpush1.xpose.msra.mxu0 0.0
    %7736 = vmatprep.subr.mxu0 0.0
    %7737 = vmatpush1.xpose.msra.mxu0 0.0
    %7738 = vmatprep.subr.mxu0 0.0
    %7739 = vmatpush1.xpose.msra.mxu0 0.0
    %7740 = vmatprep.subr.mxu0 0.0
    %7741 = vmatpush1.xpose.msra.mxu0 0.0
    %7742 = vmatprep.subr.mxu0 0.0
    %7743 = vmatpush1.xpose.msra.mxu0 0.0
    %7744 = vmatprep.subr.mxu0 0.0
    %7745 = vmatpush1.xpose.msra.mxu0 0.0
    %7746 = vmatprep.subr.mxu0 0.0
    %7747 = vmatpush1.xpose.msra.mxu0 0.0
    %7748 = vmatprep.subr.mxu0 0.0
    %7749 = vmatpush1.xpose.msra.mxu0 0.0
    %7750 = vmatprep.subr.mxu0 0.0
    %7751 = vmatpush1.xpose.msra.mxu0 0.0
    %7752 = vmatprep.subr.mxu0 0.0
    %7753 = vmatpush1.xpose.msra.mxu0 0.0
    %7754 = vmatprep.subr.mxu0 0.0
    %7755 = vmatpush1.xpose.msra.mxu0 0.0
    %7756 = vmatprep.subr.mxu0 %v7725
    %7757 = vmatpush1.xpose.msra.mxu0 %v7724
    %7758 = vmatprep.subr.mxu0 0.0
    %7759 = vmatpush2.xpose.msra.mxu0 0.0
    %7760 = vmatprep.subr.mxu0 0.0
    %7761 = vmatpush2.xpose.msra.mxu0 0.0
    %7762 = vmatprep.subr.mxu0 0.0
    %7763 = vmatpush2.xpose.msra.mxu0 0.0
    %7764 = vmatprep.subr.mxu0 0.0
    %7765 = vmatpush2.xpose.msra.mxu0 0.0
    %7766 = vmatprep.subr.mxu0 0.0
    %7767 = vmatpush2.xpose.msra.mxu0 0.0
    %7768 = vmatprep.subr.mxu0 0.0
    %7769 = vmatpush2.xpose.msra.mxu0 0.0
    %7770 = vmatprep.subr.mxu0 0.0
    %7771 = vmatpush2.xpose.msra.mxu0 0.0
    %7772 = vmatprep.subr.mxu0 0.0
    %7773 = vmatpush2.xpose.msra.mxu0 0.0
    %7774 = vmatprep.subr.mxu0 0.0
    %7775 = vmatpush2.xpose.msra.mxu0 0.0
    %7776 = vmatprep.subr.mxu0 0.0
    %7777 = vmatpush2.xpose.msra.mxu0 0.0
    %7778 = vmatprep.subr.mxu0 0.0
    %7779 = vmatpush2.xpose.msra.mxu0 0.0
    %7780 = vmatprep.subr.mxu0 0.0
    %7781 = vmatpush2.xpose.msra.mxu0 0.0
    %7782 = vmatprep.subr.mxu0 0.0
    %7783 = vmatpush2.xpose.msra.mxu0 0.0
    %7784 = vmatprep.subr.mxu0 0.0
    %7785 = vmatpush2.xpose.msra.mxu0 0.0
    %7786 = vmatprep.subr.mxu0 0.0
    %7787 = vmatpush2.xpose.msra.mxu0 0.0
    %7788 = vmatprep.subr.mxu0 0.0
    %7789 = vmatpush2.xpose.msra.mxu0 0.0
    %7790 = vmatprep.mubr.f32.mxu0 %v7725
    %7791 = vmatmul.mubr.f32.gmra.mxu0 %v7724
    %v7792 = vpop.f32.mrf.mxu0
    %v7793 = vadd.f32 0.0, %v7792
    %v7794 = vpop.f32.mrf.mxu0
    %7795 = vdwg.mxu0
    %v7796 = vmul.f32 %v7793, 0.0625
    %v7797 = vsel %vm7407, %v7796, -1e+30
    %7798 = vmax.xlane.f32.xlu0 %v7797
    %v7799 = vpop.xlane.xlu0 %7798
    %v7800 = vsub.f32 %v7797, %v7799
    %v7801 = vmul.f32 %v7800, 1.442695
    %v7802 = vpow.pop %v7801
    %7803 = vadd.xlane.f32.xlu0 %v7802
    %v7804 = vpop.xlane.xlu0 %7803
    %v7805 = vrcp.pop %v7804
    %v7806 = vmul.f32 %v7802, %v7805
    %s7807 = scalar_lea.vmem [#allocation14], 8
    %7808 = vst [vmem:[%s7807] sm:$0xff] %v7806
    %v7809 = vrot.slane %v7806, 4
    %v7810 = vadd.f32 %v7806, %v7809
    %v7811 = vrot.slane %v7810, 2
    %v7812 = vadd.f32 %v7810, %v7811
    %v7813 = vrot.slane %v7812, 1
    %v7814 = vadd.f32 %v7812, %v7813
    %7815 = vmatprep.subr.mxu0 0.0
    %7816 = vmatpush1.msra.mxu0 0.0
    %7817 = vmatprep.subr.mxu0 0.0
    %7818 = vmatpush1.msra.mxu0 0.0
    %7819 = vmatprep.subr.mxu0 0.0
    %7820 = vmatpush1.msra.mxu0 0.0
    %7821 = vmatprep.subr.mxu0 0.0
    %7822 = vmatpush1.msra.mxu0 0.0
    %7823 = vmatprep.subr.mxu0 0.0
    %7824 = vmatpush1.msra.mxu0 0.0
    %7825 = vmatprep.subr.mxu0 0.0
    %7826 = vmatpush1.msra.mxu0 0.0
    %7827 = vmatprep.subr.mxu0 0.0
    %7828 = vmatpush1.msra.mxu0 0.0
    %7829 = vmatprep.subr.mxu0 0.0
    %7830 = vmatpush1.msra.mxu0 0.0
    %7831 = vmatprep.subr.mxu0 0.0
    %7832 = vmatpush1.msra.mxu0 0.0
    %7833 = vmatprep.subr.mxu0 0.0
    %7834 = vmatpush1.msra.mxu0 0.0
    %7835 = vmatprep.subr.mxu0 0.0
    %7836 = vmatpush1.msra.mxu0 0.0
    %7837 = vmatprep.subr.mxu0 0.0
    %7838 = vmatpush1.msra.mxu0 0.0
    %7839 = vmatprep.subr.mxu0 0.0
    %7840 = vmatpush1.msra.mxu0 0.0
    %7841 = vmatprep.subr.mxu0 0.0
    %7842 = vmatpush1.msra.mxu0 0.0
    %7843 = vmatprep.subr.mxu0 0.0
    %7844 = vmatpush1.msra.mxu0 0.0
    %7845 = vmatprep.subr.mxu0 %v7725
    %7846 = vmatpush1.msra.mxu0 %v7724
    %7847 = vmatprep.subr.mxu0 0.0
    %7848 = vmatpush2.msra.mxu0 0.0
    %7849 = vmatprep.subr.mxu0 0.0
    %7850 = vmatpush2.msra.mxu0 0.0
    %7851 = vmatprep.subr.mxu0 0.0
    %7852 = vmatpush2.msra.mxu0 0.0
    %7853 = vmatprep.subr.mxu0 0.0
    %7854 = vmatpush2.msra.mxu0 0.0
    %7855 = vmatprep.subr.mxu0 0.0
    %7856 = vmatpush2.msra.mxu0 0.0
    %7857 = vmatprep.subr.mxu0 0.0
    %7858 = vmatpush2.msra.mxu0 0.0
    %7859 = vmatprep.subr.mxu0 0.0
    %7860 = vmatpush2.msra.mxu0 0.0
    %7861 = vmatprep.subr.mxu0 0.0
    %7862 = vmatpush2.msra.mxu0 0.0
    %7863 = vmatprep.subr.mxu0 0.0
    %7864 = vmatpush2.msra.mxu0 0.0
    %7865 = vmatprep.subr.mxu0 0.0
    %7866 = vmatpush2.msra.mxu0 0.0
    %7867 = vmatprep.subr.mxu0 0.0
    %7868 = vmatpush2.msra.mxu0 0.0
    %7869 = vmatprep.subr.mxu0 0.0
    %7870 = vmatpush2.msra.mxu0 0.0
    %7871 = vmatprep.subr.mxu0 0.0
    %7872 = vmatpush2.msra.mxu0 0.0
    %7873 = vmatprep.subr.mxu0 0.0
    %7874 = vmatpush2.msra.mxu0 0.0
    %7875 = vmatprep.subr.mxu0 0.0
    %7876 = vmatpush2.msra.mxu0 0.0
    %7877 = vmatprep.subr.mxu0 0.0
    %7878 = vmatpush2.msra.mxu0 0.0
    %7879 = vmatprep.mubr.f32.mxu0 0.0
    %7880 = vmatmul.mubr.f32.gmra.mxu0 %v7814
    %v7881 = vpop.f32.mrf.mxu0
    %v7882 = vadd.f32 0.0, %v7881
    %v7883 = vpop.f32.mrf.mxu0
    %v7884 = vadd.f32 0.0, %v7883
    %7885 = vdwg.mxu0
    %7886 = vmatprep.subr.mxu0 0.0
    %7887 = vmatpush1.msra.mxu0 %v7387
    %7888 = vmatprep.subr.mxu0 0.0
    %7889 = vmatpush1.msra.mxu0 %v7386
    %7890 = vmatprep.subr.mxu0 0.0
    %7891 = vmatpush1.msra.mxu0 %v7385
    %7892 = vmatprep.subr.mxu0 0.0
    %7893 = vmatpush1.msra.mxu0 %v7384
    %7894 = vmatprep.subr.mxu0 0.0
    %7895 = vmatpush1.msra.mxu0 %v7383
    %7896 = vmatprep.subr.mxu0 0.0
    %7897 = vmatpush1.msra.mxu0 %v7382
    %7898 = vmatprep.subr.mxu0 0.0
    %7899 = vmatpush1.msra.mxu0 %v7381
    %7900 = vmatprep.subr.mxu0 0.0
    %7901 = vmatpush1.msra.mxu0 %v7380
    %7902 = vmatprep.subr.mxu0 0.0
    %7903 = vmatpush1.msra.mxu0 %v7379
    %7904 = vmatprep.subr.mxu0 0.0
    %7905 = vmatpush1.msra.mxu0 %v7378
    %7906 = vmatprep.subr.mxu0 0.0
    %7907 = vmatpush1.msra.mxu0 %v7377
    %7908 = vmatprep.subr.mxu0 0.0
    %7909 = vmatpush1.msra.mxu0 %v7376
    %7910 = vmatprep.subr.mxu0 0.0
    %7911 = vmatpush1.msra.mxu0 %v7375
    %7912 = vmatprep.subr.mxu0 0.0
    %7913 = vmatpush1.msra.mxu0 %v7374
    %7914 = vmatprep.subr.mxu0 0.0
    %7915 = vmatpush1.msra.mxu0 %v7373
    %7916 = vmatprep.subr.mxu0 0.0
    %7917 = vmatpush1.msra.mxu0 %v7372
    %7918 = vmatprep.subr.mxu0 0.0
    %7919 = vmatpush2.msra.mxu0 %v7403
    %7920 = vmatprep.subr.mxu0 0.0
    %7921 = vmatpush2.msra.mxu0 %v7402
    %7922 = vmatprep.subr.mxu0 0.0
    %7923 = vmatpush2.msra.mxu0 %v7401
    %7924 = vmatprep.subr.mxu0 0.0
    %7925 = vmatpush2.msra.mxu0 %v7400
    %7926 = vmatprep.subr.mxu0 0.0
    %7927 = vmatpush2.msra.mxu0 %v7399
    %7928 = vmatprep.subr.mxu0 0.0
    %7929 = vmatpush2.msra.mxu0 %v7398
    %7930 = vmatprep.subr.mxu0 0.0
    %7931 = vmatpush2.msra.mxu0 %v7397
    %7932 = vmatprep.subr.mxu0 0.0
    %7933 = vmatpush2.msra.mxu0 %v7396
    %7934 = vmatprep.subr.mxu0 0.0
    %7935 = vmatpush2.msra.mxu0 %v7395
    %7936 = vmatprep.subr.mxu0 0.0
    %7937 = vmatpush2.msra.mxu0 %v7394
    %7938 = vmatprep.subr.mxu0 0.0
    %7939 = vmatpush2.msra.mxu0 %v7393
    %7940 = vmatprep.subr.mxu0 0.0
    %7941 = vmatpush2.msra.mxu0 %v7392
    %7942 = vmatprep.subr.mxu0 0.0
    %7943 = vmatpush2.msra.mxu0 %v7391
    %7944 = vmatprep.subr.mxu0 0.0
    %7945 = vmatpush2.msra.mxu0 %v7390
    %7946 = vmatprep.subr.mxu0 0.0
    %7947 = vmatpush2.msra.mxu0 %v7389
    %7948 = vmatprep.subr.mxu0 0.0
    %7949 = vmatpush2.msra.mxu0 %v7388
    %7950 = vmatprep.mubr.f32.mxu0 %v7884
    %7951 = vmatmul.mubr.f32.gmra.mxu0 %v7882
    %v7952 = vpop.f32.mrf.mxu0
    %v7953 = vadd.f32 %v7404, %v7952
    %v7954 = vpop.f32.mrf.mxu0
    %7955 = vdwg.mxu0
    %v7957 = vrot.slane %v7953, 7
    %v7959 = vsel %vm7439, %v7683, %v7957
    %7960 = vst [vmem:[#allocation15] sm:$0x3] %v7959
    // Predicated region
    $region74: #{bilstm_attention_forward.1} parent=1 // pred_check
      _
    $region75: #{bilstm_attention_forward.1} parent=1 // pred_check_branch
      %7962 = sbr.rel (0) target = $region77
    $region76: #{bilstm_attention_forward.1} parent=1 // pred_region
      %s7964 = ssub.s32 256, 256
      %7965 = vsyncadd [#allocation4], %s7964
      %s7966 = sshll.u32 [#allocation14], 4
      %s7967 = int_to_ptr.vmem [resolvable:$true] %s7966
      %7972 = dma.vmem_to_hbm [thread:$0]  %s7967, 256, %s11, [#allocation4], 128, 128, 8
    $region77: #{bilstm_attention_forward.1} parent=1 // pred_fallthru
      _
    // Predicated region
    $region78: #{bilstm_attention_forward.1} parent=1 // pred_check
      _
    $region79: #{bilstm_attention_forward.1} parent=1 // pred_check_branch
      %7974 = sbr.rel (0) target = $region81
    $region80: #{bilstm_attention_forward.1} parent=1 // pred_region
      %s7976 = ssub.s32 32, 32
      %7977 = vsyncadd [#allocation16], %s7976
      %s7979 = sshll.u32 [#allocation15], 4
      %s7980 = int_to_ptr.vmem [resolvable:$true] %s7979
      %7982 = dma.vmem_to_hbm [thread:$0]  %s7980, 32, %s12, [#allocation16]
    $region81: #{bilstm_attention_forward.1} parent=1 // pred_fallthru
      _
    // Predicated region
    $region82: #{bilstm_attention_forward.1} parent=1 // pred_check
      _
    $region83: #{bilstm_attention_forward.1} parent=1 // pred_check_branch
      %7984 = sbr.rel (0) target = $region85
    $region84: #{bilstm_attention_forward.1} parent=1 // pred_region
      %7985 = dma.done [#allocation4], 256
    $region85: #{bilstm_attention_forward.1} parent=1 // pred_fallthru
      _
    // Predicated region
    $region86: #{bilstm_attention_forward.1} parent=1 // pred_check
      _
    $region87: #{bilstm_attention_forward.1} parent=1 // pred_check_branch
      %7987 = sbr.rel (0) target = $region89
    $region88: #{bilstm_attention_forward.1} parent=1 // pred_region
      %7988 = dma.done [#allocation16], 32
    $region89: #{bilstm_attention_forward.1} parent=1 // pred_fallthru
      _
    %7989 = vsyncpa [#allocation3], 1
    %7990 = vsyncpa [#allocation6], 1
    %7991 = vsyncpa [#allocation9], 1
    %7992 = vsyncpa [#allocation12], 1
    %7993 = vsyncpa [#allocation4], 1
    %7994 = vsyncpa [#allocation16], 1

</llo_original>
